<compile_context>
chip_gen: v5e
topology: v5e:2x2
jax: 0.10.0
libtpu: 0.0.40
codegen_flags: <defaults>
</compile_context>

<pallas_src>
import functools

import jax
import jax.numpy as jnp
from jax.experimental import pallas as pl
from jax.experimental.pallas import tpu as pltpu


IMG = 90 * 90  # 8100

# (in_features, out_features, activation) for the full encoder + decoder stack.
_LAYERS = [
    (IMG, 2000, "relu"),
    (2000, 1000, "relu"),
    (1000, 100, "relu"),
    (100, 2, "none"),     # encoder output (latent)
    (2, 100, "relu"),
    (100, 1000, "relu"),
    (1000, 2000, "relu"),
    (2000, IMG, "tanh"),  # decoder output
]


def _round_up(n, m):
    return ((n + m - 1) // m) * m


# ---------------------------------------------------------------------------
# Tiled kernel:  y = activation(x @ W + b)   (W streamed in bf16, f32 accum)
# Accumulates directly into the resident f32 output block across the k axis.
# ---------------------------------------------------------------------------
def _linear_act_kernel(x_ref, w_ref, b_ref, o_ref, *, activation):
    k = pl.program_id(1)

    @pl.when(k == 0)
    def _():
        o_ref[...] = jnp.zeros_like(o_ref)

    o_ref[...] += jnp.dot(
        x_ref[...].astype(jnp.bfloat16),
        w_ref[...],
        preferred_element_type=jnp.float32,
    )

    @pl.when(k == pl.num_programs(1) - 1)
    def _():
        r = o_ref[...] + b_ref[...]
        if activation == "relu":
            r = jnp.maximum(r, 0.0)
        elif activation == "tanh":
            r = jnp.tanh(r)
        o_ref[...] = r


def pallas_linear(x, w, b, activation="none"):
    """y = activation(x @ w + b).

    x : (M, K) f32   w : (K, N) bf16   b : (1, N) f32   ->  (M, N) f32
    M is one block (small batch, multiple of 8); K, N multiples of 128.
    """
    M, K = x.shape
    Kw, N = w.shape
    assert K == Kw and M % 8 == 0 and K % 128 == 0 and N % 128 == 0

    # Tile selection: keep >= 2 blocks along N when possible (v7x has two
    # TensorCores and shards the leading 'parallel' axis across them); use
    # fat K tiles (2-4 MiB bf16 weight blocks) to amortize per-step overhead.
    if N >= 2048:
        tn = 1024
    elif N >= 256:
        tn = N // 2
    else:
        tn = N
    tk = min(2048, K)
    assert N % tn == 0 and K % tk == 0

    kernel = functools.partial(_linear_act_kernel, activation=activation)

    return pl.pallas_call(
        kernel,
        out_shape=jax.ShapeDtypeStruct((M, N), jnp.float32),
        grid_spec=pltpu.PrefetchScalarGridSpec(
            num_scalar_prefetch=0,
            grid=(N // tn, K // tk),
            in_specs=[
                pl.BlockSpec((M, tk), lambda j, k: (0, k)),
                pl.BlockSpec((tk, tn), lambda j, k: (k, j)),
                pl.BlockSpec((1, tn), lambda j, k: (0, j)),
            ],
            out_specs=pl.BlockSpec((M, tn), lambda j, k: (0, j)),
        ),
        compiler_params=pltpu.CompilerParams(
            dimension_semantics=("parallel", "arbitrary"),
            # Double-buffered bf16 weight blocks (<= 4 MiB each) + activations
            # stay far below this; 48 MiB is within v7x's 64 MiB physical VMEM.
            vmem_limit_bytes=48 * 1024 * 1024,
        ),
    )(x, w, b)


# ---------------------------------------------------------------------------
# Fused bottleneck kernel: 1000 -> 100 -> 2 -> 100 -> 1000 in one pallas_call.
# All (padded) weights fit in VMEM, so no grid / tiling is needed.
# ---------------------------------------------------------------------------
def _bottleneck_kernel(x_ref,
                       w3_ref, b3_ref, w4_ref, b4_ref,
                       w5_ref, b5_ref, w6_ref, b6_ref,
                       o_ref):
    def lin(h, w_ref, b_ref, act):
        r = jnp.dot(
            h.astype(jnp.bfloat16), w_ref[...],
            preferred_element_type=jnp.float32,
        ) + b_ref[...]
        if act == "relu":
            r = jnp.maximum(r, 0.0)
        return r

    h = x_ref[...]                       # (M, 1024) f32
    h = lin(h, w3_ref, b3_ref, "relu")   # 1000 -> 100   (padded 1024 -> 128)
    h = lin(h, w4_ref, b4_ref, "none")   # 100  -> 2     (latent, no act)
    h = lin(h, w5_ref, b5_ref, "relu")   # 2    -> 100
    h = lin(h, w6_ref, b6_ref, "relu")   # 100  -> 1000  (padded -> 1024)
    o_ref[...] = h


def pallas_bottleneck(x, mid_params):
    """mid_params: [(w3,b3),(w4,b4),(w5,b5),(w6,b6)] padded, w in bf16."""
    (w3, b3), (w4, b4), (w5, b5), (w6, b6) = mid_params
    M = x.shape[0]
    N = w6.shape[1]
    # No grid: whole (tiny) operands are placed in VMEM automatically.
    return pl.pallas_call(
        _bottleneck_kernel,
        out_shape=jax.ShapeDtypeStruct((M, N), jnp.float32),
    )(x, w3, b3, w4, b4, w5, b5, w6, b6)


# ---------------------------------------------------------------------------
# Parameter construction (deterministic, PyTorch-Linear-like init)
# ---------------------------------------------------------------------------
def init_params(key):
    """Weights zero-padded to multiples of 128, stored bf16; biases f32."""
    params = []
    for (fan_in, fan_out, act) in _LAYERS:
        key, kw, kb = jax.random.split(key, 3)
        bound = 1.0 / jnp.sqrt(jnp.float32(fan_in))
        w = jax.random.uniform(
            kw, (fan_in, fan_out), jnp.float32, minval=-bound, maxval=bound
        )
        b = jax.random.uniform(
            kb, (fan_out,), jnp.float32, minval=-bound, maxval=bound
        )
        kp = _round_up(fan_in, 128)
        np_ = _round_up(fan_out, 128)
        w_pad = (
            jnp.zeros((kp, np_), jnp.float32).at[:fan_in, :fan_out].set(w)
        ).astype(jnp.bfloat16)
        b_pad = jnp.zeros((1, np_), jnp.float32).at[0, :fan_out].set(b)
        params.append((w_pad, b_pad, act))
    return params


# ---------------------------------------------------------------------------
# Forward pass matching the PyTorch module.
# ---------------------------------------------------------------------------
def autoencoder_forward(x, params):
    """x: (B, 8100) float32 -> (B, 8100) float32."""
    B, F = x.shape
    assert F == IMG
    Bp = _round_up(max(B, 8), 8)
    Fp = _round_up(F, 128)

    # Zero-pad batch and feature dims (padding is mathematically inert).
    h = jnp.zeros((Bp, Fp), jnp.float32).at[:B, :F].set(x)

    # Encoder front: 8100 -> 2000 -> 1000 (big, HBM-bound layers, tiled).
    h = pallas_linear(h, params[0][0], params[0][1], activation=params[0][2])
    h = pallas_linear(h, params[1][0], params[1][1], activation=params[1][2])

    # Fused bottleneck: 1000 -> 100 -> 2 -> 100 -> 1000 (single launch).
    h = pallas_bottleneck(h, [(w, b) for (w, b, _) in params[2:6]])

    # Decoder tail: 1000 -> 2000 -> 8100 (tanh).
    h = pallas_linear(h, params[6][0], params[6][1], activation=params[6][2])
    h = pallas_linear(h, params[7][0], params[7][1], activation=params[7][2])

    return h[:B, :F]


# ---------------------------------------------------------------------------
if __name__ == "__main__":
    key = jax.random.PRNGKey(0)
    kx, kp = jax.random.split(key)

    batch = 2
    x = jax.random.normal(kx, (batch, IMG), jnp.float32)

    params = init_params(kp)

    y = autoencoder_forward(x, params)
    y = jax.block_until_ready(y)

    assert y.shape == (batch, IMG)
    assert bool(jnp.all(jnp.isfinite(y)))
    # Final Tanh bounds the output.
    assert bool(jnp.all(jnp.abs(y) <= 1.0 + 1e-6))

    print("KERNEL_OK")
</pallas_src>

<mosaic_0001>
module attributes {stable_mosaic.version = 11 : i64} {
  func.func @_linear_act_kernel(%arg0: i32, %arg1: i32, %arg2: memref<8x2048xf32, #tpu.memory_space<vmem>>, %arg3: memref<2048x1024xbf16, #tpu.memory_space<vmem>>, %arg4: memref<1x1024xf32, #tpu.memory_space<vmem>>, %arg5: memref<8x1024xf32, #tpu.memory_space<vmem>>) attributes {dimension_semantics = [#tpu.dimension_semantics<parallel>, #tpu.dimension_semantics<arbitrary>], iteration_bounds = array<i64: 2, 4>, scalar_prefetch = 0 : i64, scratch_operands = 0 : i64, tpu.core_type = #tpu.core_type<tc>, window_params = [{transform_indices = @transform_0, window_bounds = array<i64: 8, 2048>}, {transform_indices = @transform_1, window_bounds = array<i64: 2048, 1024>}, {transform_indices = @transform_2, window_bounds = array<i64: 1, 1024>}, {transform_indices = @transform_3, window_bounds = array<i64: 8, 1024>}]} {
    %c0_i32 = arith.constant 0 : i32
    %0 = arith.cmpi eq, %arg1, %c0_i32 : i32
    %1 = arith.extui %0 : i1 to i32
    %c0_i32_0 = arith.constant 0 : i32
    %2 = arith.cmpi ne, %1, %c0_i32_0 : i32
    scf.if %2 {
      %cst_9 = arith.constant 0.000000e+00 : f32
      %13 = vector.broadcast %cst_9 : f32 to vector<8x1024xf32>
      %c0_10 = arith.constant 0 : index
      %c0_11 = arith.constant 0 : index
      %14 = vector.load %arg5[%c0_10, %c0_11] : memref<8x1024xf32, #tpu.memory_space<vmem>>, vector<8x1024xf32>
      tpu.vector_store %arg5[%c0_10, %c0_11], %13 {strides = array<i32>} : memref<8x1024xf32, #tpu.memory_space<vmem>>, vector<8x1024xf32>,
    } else {
    }
    %c0 = arith.constant 0 : index
    %c0_1 = arith.constant 0 : index
    %3 = vector.load %arg5[%c0, %c0_1] : memref<8x1024xf32, #tpu.memory_space<vmem>>, vector<8x1024xf32>
    %c0_2 = arith.constant 0 : index
    %c0_3 = arith.constant 0 : index
    %4 = vector.load %arg2[%c0_2, %c0_3] : memref<8x2048xf32, #tpu.memory_space<vmem>>, vector<8x2048xf32>
    %5 = arith.truncf %4 : vector<8x2048xf32> to vector<8x2048xbf16>
    %c0_4 = arith.constant 0 : index
    %c0_5 = arith.constant 0 : index
    %6 = vector.load %arg3[%c0_4, %c0_5] : memref<2048x1024xbf16, #tpu.memory_space<vmem>>, vector<2048x1024xbf16>
    %cst = arith.constant dense<0.000000e+00> : vector<8x1024xf32>
    %7 = tpu.matmul %5, %6, %cst {dimension_numbers = #tpu.dot_dimension_numbers<[1], [0], [0], [1], [0, 0, 1, 1], [], []>} : vector<8x2048xbf16>, vector<2048x1024xbf16>, vector<8x1024xf32> -> vector<8x1024xf32>
    %8 = arith.addf %3, %7 : vector<8x1024xf32>
    %c0_6 = arith.constant 0 : index
    %c0_7 = arith.constant 0 : index
    %9 = vector.load %arg5[%c0_6, %c0_7] : memref<8x1024xf32, #tpu.memory_space<vmem>>, vector<8x1024xf32>
    tpu.vector_store %arg5[%c0_6, %c0_7], %8 {strides = array<i32>} : memref<8x1024xf32, #tpu.memory_space<vmem>>, vector<8x1024xf32>,
    %c3_i32 = arith.constant 3 : i32
    %10 = arith.cmpi eq, %arg1, %c3_i32 : i32
    %11 = arith.extui %10 : i1 to i32
    %c0_i32_8 = arith.constant 0 : i32
    %12 = arith.cmpi ne, %11, %c0_i32_8 : i32
    scf.if %12 {
      %c0_9 = arith.constant 0 : index
      %c0_10 = arith.constant 0 : index
      %13 = vector.load %arg5[%c0_9, %c0_10] : memref<8x1024xf32, #tpu.memory_space<vmem>>, vector<8x1024xf32>
      %c0_11 = arith.constant 0 : index
      %c0_12 = arith.constant 0 : index
      %14 = vector.load %arg4[%c0_11, %c0_12] : memref<1x1024xf32, #tpu.memory_space<vmem>>, vector<1x1024xf32>
      %15 = vector.broadcast %14 : vector<1x1024xf32> to vector<8x1024xf32>
      %16 = arith.addf %13, %15 : vector<8x1024xf32>
      %cst_13 = arith.constant 0.000000e+00 : f32
      %17 = vector.broadcast %cst_13 : f32 to vector<8x1024xf32>
      %18 = arith.maximumf %16, %17 : vector<8x1024xf32>
      %c0_14 = arith.constant 0 : index
      %c0_15 = arith.constant 0 : index
      %19 = vector.load %arg5[%c0_14, %c0_15] : memref<8x1024xf32, #tpu.memory_space<vmem>>, vector<8x1024xf32>
      tpu.vector_store %arg5[%c0_14, %c0_15], %18 {strides = array<i32>} : memref<8x1024xf32, #tpu.memory_space<vmem>>, vector<8x1024xf32>,
    } else {
    }
    return
  }
  func.func @transform_0(%arg0: i32, %arg1: i32) -> (i32, i32) {
    %c0_i32 = arith.constant 0 : i32
    %c0_i32_0 = arith.constant 0 : i32
    return %c0_i32, %arg1 : i32, i32
  }
  func.func @transform_1(%arg0: i32, %arg1: i32) -> (i32, i32) {
    %c0_i32 = arith.constant 0 : i32
    return %arg1, %arg0 : i32, i32
  }
  func.func @transform_2(%arg0: i32, %arg1: i32) -> (i32, i32) {
    %c0_i32 = arith.constant 0 : i32
    %c0_i32_0 = arith.constant 0 : i32
    return %c0_i32, %arg0 : i32, i32
  }
  func.func @transform_3(%arg0: i32, %arg1: i32) -> (i32, i32) {
    %c0_i32 = arith.constant 0 : i32
    %c0_i32_0 = arith.constant 0 : i32
    return %c0_i32, %arg0 : i32, i32
  }
}

</mosaic_0001>

<llo_original>
// kernel: tpu_custom_call.1
$region0: #{tpu_custom_call.1}
  #allocation0 [shape = 'u32[]', space=smem, size = 0x4, offset = 0x4, fixed_abs, tag = 'smem constant byte address 0x4 - core index']
  #allocation1 [shape = 'u32[72,128]{1,0:T(1,128)}', space=vmem, size = 0x9000, scoped, tag = 'internal scratch']
  %s0 = inlined_call_operand.hbm [shape: f32[8,8192], index: 0, kind: input, shape index: {}]
  %s1 = inlined_call_operand.hbm [shape: bf16[8192,2048], index: 1, kind: input, shape index: {}]
  %s2 = inlined_call_operand.hbm [shape: f32[1,2048], index: 2, kind: input, shape index: {}]
  %s3 = inlined_call_operand.hbm [shape: f32[8,2048], index: 3, kind: output, shape index: {}]
  %s4 = sld [smem:[#allocation0]]
  $region65: #{tpu_custom_call.1} parent=0
    _
  %s6 = ssub.s32 1, %s4
  %s7 = scalar_select 0, %s6, %s4
  $region1: #{tpu_custom_call.1} parent=0
    #allocation2 [shape = 'u8[131072]{0}', space=vmem, size = 0x20000, scoped, tag = 'input window, operand 0']
    #allocation3 [shape = 's32[2]{0}', space=sflag, size = 0x8, scoped, tag = 'scoped memory for tpu_custom_call.1']
    #allocation4 [shape = 's32[2]{0}', space=sflag, size = 0x8, scoped, tag = 'scoped memory for tpu_custom_call.1']
    #allocation5 [shape = 'u8[8388608]{0}', space=vmem, size = 0x800000, scoped, tag = 'input window, operand 1']
    #allocation6 [shape = 's32[2]{0}', space=sflag, size = 0x8, scoped, tag = 'scoped memory for tpu_custom_call.1']
    #allocation7 [shape = 'u8[8192]{0}', space=vmem, size = 0x2000, scoped, tag = 'input window, operand 2']
    #allocation8 [shape = 'u8[65536]{0}', space=vmem, size = 0x10000, scoped, tag = 'output window, operand 0']
    %8 = vsyncpa [#allocation3], 0
    %s9 = scalar_lea.sflag [#allocation3], 1
    %10 = vsyncpa %s9, 0
    %11 = vsyncpa [#allocation6], 0
    %s12 = scalar_lea.sflag [#allocation6], 1
    %13 = vsyncpa %s12, 0
    %14 = vsyncpa [#allocation4], 0
    %s15 = scalar_lea.sflag [#allocation4], 1
    %16 = vsyncpa %s15, 0
    loop: start=0, step=1, limit=10
    $region2: #{tpu_custom_call.1} parent=1 // loop_pre_header
      _
    $region3: #{tpu_custom_call.1} parent=1 // loop_header
      %s18 = sphi 0, %s22
      %p19 = scmp.ge.s32.totalorder %s18, 10
      %s25 = sphi 0, %s37
      %s26 = sphi 0, %s33
      %s27 = sphi 0, %s25
      %s28 = sphi 0, %s26
      %s29 = sphi 0, %s27
      %s30 = sphi 0, %s28
      %s40 = sphi 0, %s42
      %s43 = sphi 0, %s40
      %s44 = sphi 0, %s43
      %s60 = sphi 0, %s44
      %s68 = sphi 0, %s70
      %s71 = sphi 0, %s68
      %s72 = sphi 0, %s71
      %s88 = sphi 0, %s72
      %s94 = sphi 0, %s96
      %s97 = sphi 0, %s94
      %s98 = sphi 0, %s97
      %s114 = sphi 0, %s98
      %s120 = sphi 0, %s122
      %s123 = sphi 0, %s120
      %s124 = sphi 0, %s123
      %s140 = sphi 0, %s124
    $region4: #{tpu_custom_call.1} parent=1 // loop_header_branch
      %21 = sbr.rel (%p19) target = $region8
    $region5: #{tpu_custom_call.1} parent=1 // loop_body
      %s23 = ssub.s32 %s18, 1
      %s24 = ssub.s32 %s18, 2
      %s31 = sadd.s32 1, %s26
      %p32 = scmp.ge.s32.totalorder %s31, 4
      %s33 = scalar_select %p32, 0, %s31
      %s34 = sadd.s32 1, %s25
      %s35 = scalar_select %p32, %s34, %s25
      %p36 = scmp.ge.s32.totalorder %s35, 2
      %s37 = scalar_select %p36, 0, %s35
      %s38 = ssub.s32 %s26, %s33
      %p39 = scmp.eq.s32.totalorder %s38, 0
      %s41 = sadd.s32 %s40, 1
      %s42 = scalar_select %p39, %s40, %s41
      %p45 = pneg %p39
      %p46 = scmp.eq.s32.totalorder %s18, 7
      %p47 = por %p45, %p46
      %p48 = scmp.ne.s32.totalorder %s40, %s43
      %p49 = scmp.eq.s32.totalorder %s18, 0
      %p50 = por %p48, %p49
      %p51 = scmp.ne.s32.totalorder %s40, %s43
      %p52 = scmp.eq.s32.totalorder %s23, 7
      %p53 = por %p51, %p52
      %p54 = scmp.ne.s32.totalorder %s43, %s44
      %p55 = scmp.eq.s32.totalorder %s23, 0
      %p56 = por %p54, %p55
      %p57 = scmp.ne.s32.totalorder %s43, %s44
      %p58 = scmp.eq.s32.totalorder %s24, 7
      %p59 = por %p57, %p58
      %p61 = scmp.ne.s32.totalorder %s44, %s60
      %p62 = scmp.eq.s32.totalorder %s24, 0
      %p63 = por %p61, %p62
      %s64 = ssub.s32 %s26, %s33
      %s65 = ssub.s32 %s25, %s37
      %s66 = sor.u32 %s64, %s65
      %p67 = scmp.eq.s32.totalorder %s66, 0
      %s69 = sadd.s32 %s68, 1
      %s70 = scalar_select %p67, %s68, %s69
      %p73 = pneg %p67
      %p74 = scmp.eq.s32.totalorder %s18, 7
      %p75 = por %p73, %p74
      %p76 = scmp.ne.s32.totalorder %s68, %s71
      %p77 = scmp.eq.s32.totalorder %s18, 0
      %p78 = por %p76, %p77
      %p79 = scmp.ne.s32.totalorder %s68, %s71
      %p80 = scmp.eq.s32.totalorder %s23, 7
      %p81 = por %p79, %p80
      %p82 = scmp.ne.s32.totalorder %s71, %s72
      %p83 = scmp.eq.s32.totalorder %s23, 0
      %p84 = por %p82, %p83
      %p85 = scmp.ne.s32.totalorder %s71, %s72
      %p86 = scmp.eq.s32.totalorder %s24, 7
      %p87 = por %p85, %p86
      %p89 = scmp.ne.s32.totalorder %s72, %s88
      %p90 = scmp.eq.s32.totalorder %s24, 0
      %p91 = por %p89, %p90
      %s92 = ssub.s32 %s25, %s37
      %p93 = scmp.eq.s32.totalorder %s92, 0
      %s95 = sadd.s32 %s94, 1
      %s96 = scalar_select %p93, %s94, %s95
      %p99 = pneg %p93
      %p100 = scmp.eq.s32.totalorder %s18, 7
      %p101 = por %p99, %p100
      %p102 = scmp.ne.s32.totalorder %s94, %s97
      %p103 = scmp.eq.s32.totalorder %s18, 0
      %p104 = por %p102, %p103
      %p105 = scmp.ne.s32.totalorder %s94, %s97
      %p106 = scmp.eq.s32.totalorder %s23, 7
      %p107 = por %p105, %p106
      %p108 = scmp.ne.s32.totalorder %s97, %s98
      %p109 = scmp.eq.s32.totalorder %s23, 0
      %p110 = por %p108, %p109
      %p111 = scmp.ne.s32.totalorder %s97, %s98
      %p112 = scmp.eq.s32.totalorder %s24, 7
      %p113 = por %p111, %p112
      %p115 = scmp.ne.s32.totalorder %s98, %s114
      %p116 = scmp.eq.s32.totalorder %s24, 0
      %p117 = por %p115, %p116
      %s118 = ssub.s32 %s25, %s37
      %p119 = scmp.eq.s32.totalorder %s118, 0
      %s121 = sadd.s32 %s120, 1
      %s122 = scalar_select %p119, %s120, %s121
      %p125 = pneg %p119
      %p126 = scmp.eq.s32.totalorder %s18, 7
      %p127 = por %p125, %p126
      %p128 = scmp.ne.s32.totalorder %s120, %s123
      %p129 = scmp.eq.s32.totalorder %s18, 0
      %p130 = por %p128, %p129
      %p131 = scmp.ne.s32.totalorder %s120, %s123
      %p132 = scmp.eq.s32.totalorder %s23, 7
      %p133 = por %p131, %p132
      %p134 = scmp.ne.s32.totalorder %s123, %s124
      %p135 = scmp.eq.s32.totalorder %s23, 0
      %p136 = por %p134, %p135
      %p137 = scmp.ne.s32.totalorder %s123, %s124
      %p138 = scmp.eq.s32.totalorder %s24, 7
      %p139 = por %p137, %p138
      %p141 = scmp.ne.s32.totalorder %s124, %s140
      %p142 = scmp.eq.s32.totalorder %s24, 0
      %p143 = por %p141, %p142
      %p144 = scmp.le.s32.totalorder 1, %s18
      %p145 = scmp.lt.s32.totalorder %s18, 9
      %p146 = pnand %p144, %p145
      %p147 = pneg %p146
      // Predicated region
      $region9: #{tpu_custom_call.1} parent=5 // pred_check
        _
      $region10: #{tpu_custom_call.1} parent=5 // pred_check_branch
        %149 = sbr.rel (%p146) target = $region12
      $region11: #{tpu_custom_call.1} parent=5 // pred_region
        %s150 = ssub.s32 %s18, 1
      $region12: #{tpu_custom_call.1} parent=5 // pred_fallthru
        _
      %p151 = scmp.lt.s32.totalorder %s18, 8
      // Predicated region
      $region13: #{tpu_custom_call.1} parent=5 // pred_check
        %p152 = pneg %p151
      $region14: #{tpu_custom_call.1} parent=5 // pred_check_branch
        %154 = sbr.rel (%p152) target = $region16
      $region15: #{tpu_custom_call.1} parent=5 // pred_region
        // Predicated region
        $region17: #{tpu_custom_call.1} parent=15 // pred_check
          %p155 = pneg %p50
        $region18: #{tpu_custom_call.1} parent=15 // pred_check_branch
          %157 = sbr.rel (%p155) target = $region20
        $region19: #{tpu_custom_call.1} parent=15 // pred_region
          %s158 = sand.u32 %s40, 1
          %s159 = scalar_lea.sflag [#allocation3], %s158
          %s160 = sand.u32 %s40, 1
          %s161 = smul.addr %s160, 128
          %s162 = scalar_lea.vmem [#allocation2], %s161
          %s163 = smul.u32 16, %s26
          %165 = vsyncadd %s159, 0
          %s166 = smul.addr %s163, 8
          %s167 = scalar_lea.hbm %s0, %s166
          %s169 = sshll.u32 %s167, 4
          %s170 = int_to_ptr.hbm [resolvable:$true] %s169
          %s171 = sshll.u32 %s162, 4
          %s172 = int_to_ptr.vmem [resolvable:$true] %s171
          %174 = dma.hbm_to_vmem [thread:$0]  %s170, 2048, %s172, %s159
        $region20: #{tpu_custom_call.1} parent=15 // pred_fallthru
          _
        // Predicated region
        $region21: #{tpu_custom_call.1} parent=15 // pred_check
          %p175 = pneg %p78
        $region22: #{tpu_custom_call.1} parent=15 // pred_check_branch
          %177 = sbr.rel (%p175) target = $region24
        $region23: #{tpu_custom_call.1} parent=15 // pred_region
          %s178 = sand.u32 %s18, 1
          %s179 = scalar_lea.sflag [#allocation6], %s178
          %s180 = sand.u32 %s68, 1
          %s181 = smul.addr %s180, 8192
          %s182 = scalar_lea.vmem [#allocation5], %s181
          %s183 = smul.u32 256, %s26
          %s184 = smul.u32 8, %s25
          %186 = vsyncadd %s179, 0
          %s187 = smul.addr %s183, 16
          %s188 = sadd.s32 %s184, %s187
          %s189 = smul.addr %s188, 4
          %s190 = scalar_lea.hbm %s1, %s189
          %s191 = sshll.u32 %s190, 4
          %s192 = int_to_ptr.hbm [resolvable:$true] %s191
          %s193 = sshll.u32 %s182, 4
          %s194 = int_to_ptr.vmem [resolvable:$true] %s193
          %199 = dma.hbm_to_vmem [thread:$0]  %s192, 131072, %s194, %s179, 1024, 512, 32
        $region24: #{tpu_custom_call.1} parent=15 // pred_fallthru
          _
        // Predicated region
        $region25: #{tpu_custom_call.1} parent=15 // pred_check
          %p200 = pneg %p104
        $region26: #{tpu_custom_call.1} parent=15 // pred_check_branch
          %202 = sbr.rel (%p200) target = $region28
        $region27: #{tpu_custom_call.1} parent=15 // pred_region
          %s203 = sand.u32 %s18, 1
          %s204 = scalar_lea.sflag [#allocation6], %s203
          %s205 = sand.u32 %s94, 1
          %s206 = smul.addr %s205, 8
          %s207 = scalar_lea.vmem [#allocation7], %s206
          %s208 = smul.u32 8, %s25
          %210 = vsyncadd %s204, 0
          %s211 = scalar_lea.hbm %s2, %s208
          %s213 = sshll.u32 %s211, 4
          %s214 = int_to_ptr.hbm [resolvable:$true] %s213
          %s215 = sshll.u32 %s207, 4
          %s216 = int_to_ptr.vmem [resolvable:$true] %s215
          %218 = dma.hbm_to_vmem [thread:$0]  %s214, 128, %s216, %s204
        $region28: #{tpu_custom_call.1} parent=15 // pred_fallthru
          _
      $region16: #{tpu_custom_call.1} parent=5 // pred_fallthru
        _
      %p219 = scmp.le.s32.totalorder 1, %s18
      %p220 = scmp.lt.s32.totalorder %s18, 9
      %p221 = pnand %p219, %p220
      %p222 = pneg %p221
      // Predicated region
      $region29: #{tpu_custom_call.1} parent=5 // pred_check
        _
      $region30: #{tpu_custom_call.1} parent=5 // pred_check_branch
        %224 = sbr.rel (%p221) target = $region32
      $region31: #{tpu_custom_call.1} parent=5 // pred_region
        %s225 = ssub.s32 %s18, 1
        %s226 = sand.u32 %s43, 1
        %s227 = scalar_lea.sflag [#allocation3], %s226
        %s228 = sand.u32 %s43, 1
        %s229 = smul.addr %s228, 128
        %s230 = scalar_lea.vmem [#allocation2], %s229
        // Predicated region
        $region33: #{tpu_custom_call.1} parent=31 // pred_check
          %p231 = pneg %p56
        $region34: #{tpu_custom_call.1} parent=31 // pred_check_branch
          %233 = sbr.rel (%p231) target = $region36
        $region35: #{tpu_custom_call.1} parent=31 // pred_region
          %235 = dma.done %s227, 2048
        $region36: #{tpu_custom_call.1} parent=31 // pred_fallthru
          _
        %s236 = sand.u32 %s23, 1
        %s237 = scalar_lea.sflag [#allocation6], %s236
        %s238 = sand.u32 %s71, 1
        %s239 = smul.addr %s238, 8192
        %s240 = scalar_lea.vmem [#allocation5], %s239
        // Predicated region
        $region37: #{tpu_custom_call.1} parent=31 // pred_check
          %p241 = pneg %p84
        $region38: #{tpu_custom_call.1} parent=31 // pred_check_branch
          %243 = sbr.rel (%p241) target = $region40
        $region39: #{tpu_custom_call.1} parent=31 // pred_region
          %245 = dma.done %s237, 131072
        $region40: #{tpu_custom_call.1} parent=31 // pred_fallthru
          _
        %s246 = sand.u32 %s23, 1
        %s247 = scalar_lea.sflag [#allocation6], %s246
        %s248 = sand.u32 %s97, 1
        %s249 = smul.addr %s248, 8
        %s250 = scalar_lea.vmem [#allocation7], %s249
        // Predicated region
        $region41: #{tpu_custom_call.1} parent=31 // pred_check
          %p251 = pneg %p110
        $region42: #{tpu_custom_call.1} parent=31 // pred_check_branch
          %253 = sbr.rel (%p251) target = $region44
        $region43: #{tpu_custom_call.1} parent=31 // pred_region
          %255 = dma.done %s247, 128
        $region44: #{tpu_custom_call.1} parent=31 // pred_fallthru
          _
        %s256 = sand.u32 %s43, 1
        %s257 = scalar_lea.sflag [#allocation3], %s256
        %s258 = sand.u32 %s43, 1
        %s259 = smul.addr %s258, 128
        %s260 = scalar_lea.vmem [#allocation2], %s259
        %p261 = pneg %p56
        %p262 = pneg %p53
        %s263 = sand.u32 %s23, 1
        %s264 = scalar_lea.sflag [#allocation6], %s263
        %s265 = sand.u32 %s71, 1
        %s266 = smul.addr %s265, 8192
        %s267 = scalar_lea.vmem [#allocation5], %s266
        %p268 = pneg %p84
        %p269 = pneg %p81
        %s270 = sand.u32 %s23, 1
        %s271 = scalar_lea.sflag [#allocation6], %s270
        %s272 = sand.u32 %s97, 1
        %s273 = smul.addr %s272, 8
        %s274 = scalar_lea.vmem [#allocation7], %s273
        %p275 = pneg %p110
        %p276 = pneg %p107
        %p277 = pneg %p136
        %p278 = pneg %p133
        %s279 = sand.u32 %s123, 1
        %s280 = scalar_lea.sflag [#allocation4], %s279
        %s281 = sand.u32 %s123, 1
        %s282 = smul.addr %s281, 64
        %s283 = scalar_lea.vmem [#allocation8], %s282
        %s284 = smul.u32 16, %s28
        %s285 = smul.u32 256, %s28
        %s286 = smul.u32 8, %s27
        %s287 = smul.u32 8, %s27
        %s288 = smul.u32 8, %s27
        %p289 = scmp.eq.s32.totalorder %s28, 0
        // Predicated region
        $region45: #{tpu_custom_call.1} parent=31 // pred_check
          %p290 = pneg %p289
        $region46: #{tpu_custom_call.1} parent=31 // pred_check_branch
          %292 = sbr.rel (%p290) target = $region48
        $region47: #{tpu_custom_call.1} parent=31 // pred_region
          %293 = vst [vmem:[%s283] sm:$0xff] 0.0
          %294 = vst [vmem:[%s283 + $0x8] sm:$0xff] 0.0
          %295 = vst [vmem:[%s283 + $0x10] sm:$0xff] 0.0
          %296 = vst [vmem:[%s283 + $0x18] sm:$0xff] 0.0
          %297 = vst [vmem:[%s283 + $0x20] sm:$0xff] 0.0
          %298 = vst [vmem:[%s283 + $0x28] sm:$0xff] 0.0
          %299 = vst [vmem:[%s283 + $0x30] sm:$0xff] 0.0
          %300 = vst [vmem:[%s283 + $0x38] sm:$0xff] 0.0
        $region48: #{tpu_custom_call.1} parent=31 // pred_fallthru
          _
        %v301 = vld [vmem:[%s283] sm:$0xff]
        %v302 = vld [vmem:[%s283 + $0x8] sm:$0xff]
        %v303 = vld [vmem:[%s283 + $0x10] sm:$0xff]
        %v304 = vld [vmem:[%s283 + $0x18] sm:$0xff]
        %v305 = vld [vmem:[%s283 + $0x20] sm:$0xff]
        %v306 = vld [vmem:[%s283 + $0x28] sm:$0xff]
        %v307 = vld [vmem:[%s283 + $0x30] sm:$0xff]
        %v308 = vld [vmem:[%s283 + $0x38] sm:$0xff]
        %v309 = vld [vmem:[%s230] sm:$0xff]
        %v310 = vld [vmem:[%s230 + $0x8] sm:$0xff]
        %v311 = vld [vmem:[%s230 + $0x10] sm:$0xff]
        %v312 = vld [vmem:[%s230 + $0x18] sm:$0xff]
        %v313 = vld [vmem:[%s230 + $0x20] sm:$0xff]
        %v314 = vld [vmem:[%s230 + $0x28] sm:$0xff]
        %v315 = vld [vmem:[%s230 + $0x30] sm:$0xff]
        %v316 = vld [vmem:[%s230 + $0x38] sm:$0xff]
        %v317 = vld [vmem:[%s230 + $0x40] sm:$0xff]
        %v318 = vld [vmem:[%s230 + $0x48] sm:$0xff]
        %v319 = vld [vmem:[%s230 + $0x50] sm:$0xff]
        %v320 = vld [vmem:[%s230 + $0x58] sm:$0xff]
        %v321 = vld [vmem:[%s230 + $0x60] sm:$0xff]
        %v322 = vld [vmem:[%s230 + $0x68] sm:$0xff]
        %v323 = vld [vmem:[%s230 + $0x70] sm:$0xff]
        %v324 = vld [vmem:[%s230 + $0x78] sm:$0xff]
        %v325 = vpack.c.bf16 %v309, %v309
        %v326 = vpack.c.bf16 %v310, %v310
        %v327 = vpack.c.bf16 %v311, %v311
        %v328 = vpack.c.bf16 %v312, %v312
        %v329 = vpack.c.bf16 %v313, %v313
        %v330 = vpack.c.bf16 %v314, %v314
        %v331 = vpack.c.bf16 %v315, %v315
        %v332 = vpack.c.bf16 %v316, %v316
        %v333 = vpack.c.bf16 %v317, %v317
        %v334 = vpack.c.bf16 %v318, %v318
        %v335 = vpack.c.bf16 %v319, %v319
        %v336 = vpack.c.bf16 %v320, %v320
        %v337 = vpack.c.bf16 %v321, %v321
        %v338 = vpack.c.bf16 %v322, %v322
        %v339 = vpack.c.bf16 %v323, %v323
        %v340 = vpack.c.bf16 %v324, %v324
        %v341 = vld [vmem:[%s240] sm:$0xff]
        %v342 = vld [vmem:[%s240 + $0x8] sm:$0xff]
        %v343 = vld [vmem:[%s240 + $0x10] sm:$0xff]
        %v344 = vld [vmem:[%s240 + $0x18] sm:$0xff]
        %v345 = vld [vmem:[%s240 + $0x20] sm:$0xff]
        %v346 = vld [vmem:[%s240 + $0x28] sm:$0xff]
        %v347 = vld [vmem:[%s240 + $0x30] sm:$0xff]
        %v348 = vld [vmem:[%s240 + $0x38] sm:$0xff]
        %v349 = vld [vmem:[%s240 + $0x40] sm:$0xff]
        %v350 = vld [vmem:[%s240 + $0x48] sm:$0xff]
        %v351 = vld [vmem:[%s240 + $0x50] sm:$0xff]
        %v352 = vld [vmem:[%s240 + $0x58] sm:$0xff]
        %v353 = vld [vmem:[%s240 + $0x60] sm:$0xff]
        %v354 = vld [vmem:[%s240 + $0x68] sm:$0xff]
        %v355 = vld [vmem:[%s240 + $0x70] sm:$0xff]
        %v356 = vld [vmem:[%s240 + $0x78] sm:$0xff]
        %v357 = vld [vmem:[%s240 + $0x80] sm:$0xff]
        %v358 = vld [vmem:[%s240 + $0x88] sm:$0xff]
        %v359 = vld [vmem:[%s240 + $0x90] sm:$0xff]
        %v360 = vld [vmem:[%s240 + $0x98] sm:$0xff]
        %v361 = vld [vmem:[%s240 + $0xa0] sm:$0xff]
        %v362 = vld [vmem:[%s240 + $0xa8] sm:$0xff]
        %v363 = vld [vmem:[%s240 + $0xb0] sm:$0xff]
        %v364 = vld [vmem:[%s240 + $0xb8] sm:$0xff]
        %v365 = vld [vmem:[%s240 + $0xc0] sm:$0xff]
        %v366 = vld [vmem:[%s240 + $0xc8] sm:$0xff]
        %v367 = vld [vmem:[%s240 + $0xd0] sm:$0xff]
        %v368 = vld [vmem:[%s240 + $0xd8] sm:$0xff]
        %v369 = vld [vmem:[%s240 + $0xe0] sm:$0xff]
        %v370 = vld [vmem:[%s240 + $0xe8] sm:$0xff]
        %v371 = vld [vmem:[%s240 + $0xf0] sm:$0xff]
        %v372 = vld [vmem:[%s240 + $0xf8] sm:$0xff]
        %v373 = vld [vmem:[%s240 + $0x100] sm:$0xff]
        %v374 = vld [vmem:[%s240 + $0x108] sm:$0xff]
        %v375 = vld [vmem:[%s240 + $0x110] sm:$0xff]
        %v376 = vld [vmem:[%s240 + $0x118] sm:$0xff]
        %v377 = vld [vmem:[%s240 + $0x120] sm:$0xff]
        %v378 = vld [vmem:[%s240 + $0x128] sm:$0xff]
        %v379 = vld [vmem:[%s240 + $0x130] sm:$0xff]
        %v380 = vld [vmem:[%s240 + $0x138] sm:$0xff]
        %v381 = vld [vmem:[%s240 + $0x140] sm:$0xff]
        %v382 = vld [vmem:[%s240 + $0x148] sm:$0xff]
        %v383 = vld [vmem:[%s240 + $0x150] sm:$0xff]
        %v384 = vld [vmem:[%s240 + $0x158] sm:$0xff]
        %v385 = vld [vmem:[%s240 + $0x160] sm:$0xff]
        %v386 = vld [vmem:[%s240 + $0x168] sm:$0xff]
        %v387 = vld [vmem:[%s240 + $0x170] sm:$0xff]
        %v388 = vld [vmem:[%s240 + $0x178] sm:$0xff]
        %v389 = vld [vmem:[%s240 + $0x180] sm:$0xff]
        %v390 = vld [vmem:[%s240 + $0x188] sm:$0xff]
        %v391 = vld [vmem:[%s240 + $0x190] sm:$0xff]
        %v392 = vld [vmem:[%s240 + $0x198] sm:$0xff]
        %v393 = vld [vmem:[%s240 + $0x1a0] sm:$0xff]
        %v394 = vld [vmem:[%s240 + $0x1a8] sm:$0xff]
        %v395 = vld [vmem:[%s240 + $0x1b0] sm:$0xff]
        %v396 = vld [vmem:[%s240 + $0x1b8] sm:$0xff]
        %v397 = vld [vmem:[%s240 + $0x1c0] sm:$0xff]
        %v398 = vld [vmem:[%s240 + $0x1c8] sm:$0xff]
        %v399 = vld [vmem:[%s240 + $0x1d0] sm:$0xff]
        %v400 = vld [vmem:[%s240 + $0x1d8] sm:$0xff]
        %v401 = vld [vmem:[%s240 + $0x1e0] sm:$0xff]
        %v402 = vld [vmem:[%s240 + $0x1e8] sm:$0xff]
        %v403 = vld [vmem:[%s240 + $0x1f0] sm:$0xff]
        %v404 = vld [vmem:[%s240 + $0x1f8] sm:$0xff]
        %v405 = vld [vmem:[%s240 + $0x200] sm:$0xff]
        %v406 = vld [vmem:[%s240 + $0x208] sm:$0xff]
        %v407 = vld [vmem:[%s240 + $0x210] sm:$0xff]
        %v408 = vld [vmem:[%s240 + $0x218] sm:$0xff]
        %v409 = vld [vmem:[%s240 + $0x220] sm:$0xff]
        %v410 = vld [vmem:[%s240 + $0x228] sm:$0xff]
        %v411 = vld [vmem:[%s240 + $0x230] sm:$0xff]
        %v412 = vld [vmem:[%s240 + $0x238] sm:$0xff]
        %v413 = vld [vmem:[%s240 + $0x240] sm:$0xff]
        %v414 = vld [vmem:[%s240 + $0x248] sm:$0xff]
        %v415 = vld [vmem:[%s240 + $0x250] sm:$0xff]
        %v416 = vld [vmem:[%s240 + $0x258] sm:$0xff]
        %v417 = vld [vmem:[%s240 + $0x260] sm:$0xff]
        %v418 = vld [vmem:[%s240 + $0x268] sm:$0xff]
        %v419 = vld [vmem:[%s240 + $0x270] sm:$0xff]
        %v420 = vld [vmem:[%s240 + $0x278] sm:$0xff]
        %v421 = vld [vmem:[%s240 + $0x280] sm:$0xff]
        %v422 = vld [vmem:[%s240 + $0x288] sm:$0xff]
        %v423 = vld [vmem:[%s240 + $0x290] sm:$0xff]
        %v424 = vld [vmem:[%s240 + $0x298] sm:$0xff]
        %v425 = vld [vmem:[%s240 + $0x2a0] sm:$0xff]
        %v426 = vld [vmem:[%s240 + $0x2a8] sm:$0xff]
        %v427 = vld [vmem:[%s240 + $0x2b0] sm:$0xff]
        %v428 = vld [vmem:[%s240 + $0x2b8] sm:$0xff]
        %v429 = vld [vmem:[%s240 + $0x2c0] sm:$0xff]
        %v430 = vld [vmem:[%s240 + $0x2c8] sm:$0xff]
        %v431 = vld [vmem:[%s240 + $0x2d0] sm:$0xff]
        %v432 = vld [vmem:[%s240 + $0x2d8] sm:$0xff]
        %v433 = vld [vmem:[%s240 + $0x2e0] sm:$0xff]
        %v434 = vld [vmem:[%s240 + $0x2e8] sm:$0xff]
        %v435 = vld [vmem:[%s240 + $0x2f0] sm:$0xff]
        %v436 = vld [vmem:[%s240 + $0x2f8] sm:$0xff]
        %v437 = vld [vmem:[%s240 + $0x300] sm:$0xff]
        %v438 = vld [vmem:[%s240 + $0x308] sm:$0xff]
        %v439 = vld [vmem:[%s240 + $0x310] sm:$0xff]
        %v440 = vld [vmem:[%s240 + $0x318] sm:$0xff]
        %v441 = vld [vmem:[%s240 + $0x320] sm:$0xff]
        %v442 = vld [vmem:[%s240 + $0x328] sm:$0xff]
        %v443 = vld [vmem:[%s240 + $0x330] sm:$0xff]
        %v444 = vld [vmem:[%s240 + $0x338] sm:$0xff]
        %v445 = vld [vmem:[%s240 + $0x340] sm:$0xff]
        %v446 = vld [vmem:[%s240 + $0x348] sm:$0xff]
        %v447 = vld [vmem:[%s240 + $0x350] sm:$0xff]
        %v448 = vld [vmem:[%s240 + $0x358] sm:$0xff]
        %v449 = vld [vmem:[%s240 + $0x360] sm:$0xff]
        %v450 = vld [vmem:[%s240 + $0x368] sm:$0xff]
        %v451 = vld [vmem:[%s240 + $0x370] sm:$0xff]
        %v452 = vld [vmem:[%s240 + $0x378] sm:$0xff]
        %v453 = vld [vmem:[%s240 + $0x380] sm:$0xff]
        %v454 = vld [vmem:[%s240 + $0x388] sm:$0xff]
        %v455 = vld [vmem:[%s240 + $0x390] sm:$0xff]
        %v456 = vld [vmem:[%s240 + $0x398] sm:$0xff]
        %v457 = vld [vmem:[%s240 + $0x3a0] sm:$0xff]
        %v458 = vld [vmem:[%s240 + $0x3a8] sm:$0xff]
        %v459 = vld [vmem:[%s240 + $0x3b0] sm:$0xff]
        %v460 = vld [vmem:[%s240 + $0x3b8] sm:$0xff]
        %v461 = vld [vmem:[%s240 + $0x3c0] sm:$0xff]
        %v462 = vld [vmem:[%s240 + $0x3c8] sm:$0xff]
        %v463 = vld [vmem:[%s240 + $0x3d0] sm:$0xff]
        %v464 = vld [vmem:[%s240 + $0x3d8] sm:$0xff]
        %v465 = vld [vmem:[%s240 + $0x3e0] sm:$0xff]
        %v466 = vld [vmem:[%s240 + $0x3e8] sm:$0xff]
        %v467 = vld [vmem:[%s240 + $0x3f0] sm:$0xff]
        %v468 = vld [vmem:[%s240 + $0x3f8] sm:$0xff]
        %v469 = vld [vmem:[%s240 + $0x400] sm:$0xff]
        %v470 = vld [vmem:[%s240 + $0x408] sm:$0xff]
        %v471 = vld [vmem:[%s240 + $0x410] sm:$0xff]
        %v472 = vld [vmem:[%s240 + $0x418] sm:$0xff]
        %v473 = vld [vmem:[%s240 + $0x420] sm:$0xff]
        %v474 = vld [vmem:[%s240 + $0x428] sm:$0xff]
        %v475 = vld [vmem:[%s240 + $0x430] sm:$0xff]
        %v476 = vld [vmem:[%s240 + $0x438] sm:$0xff]
        %v477 = vld [vmem:[%s240 + $0x440] sm:$0xff]
        %v478 = vld [vmem:[%s240 + $0x448] sm:$0xff]
        %v479 = vld [vmem:[%s240 + $0x450] sm:$0xff]
        %v480 = vld [vmem:[%s240 + $0x458] sm:$0xff]
        %v481 = vld [vmem:[%s240 + $0x460] sm:$0xff]
        %v482 = vld [vmem:[%s240 + $0x468] sm:$0xff]
        %v483 = vld [vmem:[%s240 + $0x470] sm:$0xff]
        %v484 = vld [vmem:[%s240 + $0x478] sm:$0xff]
        %v485 = vld [vmem:[%s240 + $0x480] sm:$0xff]
        %v486 = vld [vmem:[%s240 + $0x488] sm:$0xff]
        %v487 = vld [vmem:[%s240 + $0x490] sm:$0xff]
        %v488 = vld [vmem:[%s240 + $0x498] sm:$0xff]
        %v489 = vld [vmem:[%s240 + $0x4a0] sm:$0xff]
        %v490 = vld [vmem:[%s240 + $0x4a8] sm:$0xff]
        %v491 = vld [vmem:[%s240 + $0x4b0] sm:$0xff]
        %v492 = vld [vmem:[%s240 + $0x4b8] sm:$0xff]
        %v493 = vld [vmem:[%s240 + $0x4c0] sm:$0xff]
        %v494 = vld [vmem:[%s240 + $0x4c8] sm:$0xff]
        %v495 = vld [vmem:[%s240 + $0x4d0] sm:$0xff]
        %v496 = vld [vmem:[%s240 + $0x4d8] sm:$0xff]
        %v497 = vld [vmem:[%s240 + $0x4e0] sm:$0xff]
        %v498 = vld [vmem:[%s240 + $0x4e8] sm:$0xff]
        %v499 = vld [vmem:[%s240 + $0x4f0] sm:$0xff]
        %v500 = vld [vmem:[%s240 + $0x4f8] sm:$0xff]
        %v501 = vld [vmem:[%s240 + $0x500] sm:$0xff]
        %v502 = vld [vmem:[%s240 + $0x508] sm:$0xff]
        %v503 = vld [vmem:[%s240 + $0x510] sm:$0xff]
        %v504 = vld [vmem:[%s240 + $0x518] sm:$0xff]
        %v505 = vld [vmem:[%s240 + $0x520] sm:$0xff]
        %v506 = vld [vmem:[%s240 + $0x528] sm:$0xff]
        %v507 = vld [vmem:[%s240 + $0x530] sm:$0xff]
        %v508 = vld [vmem:[%s240 + $0x538] sm:$0xff]
        %v509 = vld [vmem:[%s240 + $0x540] sm:$0xff]
        %v510 = vld [vmem:[%s240 + $0x548] sm:$0xff]
        %v511 = vld [vmem:[%s240 + $0x550] sm:$0xff]
        %v512 = vld [vmem:[%s240 + $0x558] sm:$0xff]
        %v513 = vld [vmem:[%s240 + $0x560] sm:$0xff]
        %v514 = vld [vmem:[%s240 + $0x568] sm:$0xff]
        %v515 = vld [vmem:[%s240 + $0x570] sm:$0xff]
        %v516 = vld [vmem:[%s240 + $0x578] sm:$0xff]
        %v517 = vld [vmem:[%s240 + $0x580] sm:$0xff]
        %v518 = vld [vmem:[%s240 + $0x588] sm:$0xff]
        %v519 = vld [vmem:[%s240 + $0x590] sm:$0xff]
        %v520 = vld [vmem:[%s240 + $0x598] sm:$0xff]
        %v521 = vld [vmem:[%s240 + $0x5a0] sm:$0xff]
        %v522 = vld [vmem:[%s240 + $0x5a8] sm:$0xff]
        %v523 = vld [vmem:[%s240 + $0x5b0] sm:$0xff]
        %v524 = vld [vmem:[%s240 + $0x5b8] sm:$0xff]
        %v525 = vld [vmem:[%s240 + $0x5c0] sm:$0xff]
        %v526 = vld [vmem:[%s240 + $0x5c8] sm:$0xff]
        %v527 = vld [vmem:[%s240 + $0x5d0] sm:$0xff]
        %v528 = vld [vmem:[%s240 + $0x5d8] sm:$0xff]
        %v529 = vld [vmem:[%s240 + $0x5e0] sm:$0xff]
        %v530 = vld [vmem:[%s240 + $0x5e8] sm:$0xff]
        %v531 = vld [vmem:[%s240 + $0x5f0] sm:$0xff]
        %v532 = vld [vmem:[%s240 + $0x5f8] sm:$0xff]
        %v533 = vld [vmem:[%s240 + $0x600] sm:$0xff]
        %v534 = vld [vmem:[%s240 + $0x608] sm:$0xff]
        %v535 = vld [vmem:[%s240 + $0x610] sm:$0xff]
        %v536 = vld [vmem:[%s240 + $0x618] sm:$0xff]
        %v537 = vld [vmem:[%s240 + $0x620] sm:$0xff]
        %v538 = vld [vmem:[%s240 + $0x628] sm:$0xff]
        %v539 = vld [vmem:[%s240 + $0x630] sm:$0xff]
        %v540 = vld [vmem:[%s240 + $0x638] sm:$0xff]
        %v541 = vld [vmem:[%s240 + $0x640] sm:$0xff]
        %v542 = vld [vmem:[%s240 + $0x648] sm:$0xff]
        %v543 = vld [vmem:[%s240 + $0x650] sm:$0xff]
        %v544 = vld [vmem:[%s240 + $0x658] sm:$0xff]
        %v545 = vld [vmem:[%s240 + $0x660] sm:$0xff]
        %v546 = vld [vmem:[%s240 + $0x668] sm:$0xff]
        %v547 = vld [vmem:[%s240 + $0x670] sm:$0xff]
        %v548 = vld [vmem:[%s240 + $0x678] sm:$0xff]
        %v549 = vld [vmem:[%s240 + $0x680] sm:$0xff]
        %v550 = vld [vmem:[%s240 + $0x688] sm:$0xff]
        %v551 = vld [vmem:[%s240 + $0x690] sm:$0xff]
        %v552 = vld [vmem:[%s240 + $0x698] sm:$0xff]
        %v553 = vld [vmem:[%s240 + $0x6a0] sm:$0xff]
        %v554 = vld [vmem:[%s240 + $0x6a8] sm:$0xff]
        %v555 = vld [vmem:[%s240 + $0x6b0] sm:$0xff]
        %v556 = vld [vmem:[%s240 + $0x6b8] sm:$0xff]
        %v557 = vld [vmem:[%s240 + $0x6c0] sm:$0xff]
        %v558 = vld [vmem:[%s240 + $0x6c8] sm:$0xff]
        %v559 = vld [vmem:[%s240 + $0x6d0] sm:$0xff]
        %v560 = vld [vmem:[%s240 + $0x6d8] sm:$0xff]
        %v561 = vld [vmem:[%s240 + $0x6e0] sm:$0xff]
        %v562 = vld [vmem:[%s240 + $0x6e8] sm:$0xff]
        %v563 = vld [vmem:[%s240 + $0x6f0] sm:$0xff]
        %v564 = vld [vmem:[%s240 + $0x6f8] sm:$0xff]
        %v565 = vld [vmem:[%s240 + $0x700] sm:$0xff]
        %v566 = vld [vmem:[%s240 + $0x708] sm:$0xff]
        %v567 = vld [vmem:[%s240 + $0x710] sm:$0xff]
        %v568 = vld [vmem:[%s240 + $0x718] sm:$0xff]
        %v569 = vld [vmem:[%s240 + $0x720] sm:$0xff]
        %v570 = vld [vmem:[%s240 + $0x728] sm:$0xff]
        %v571 = vld [vmem:[%s240 + $0x730] sm:$0xff]
        %v572 = vld [vmem:[%s240 + $0x738] sm:$0xff]
        %v573 = vld [vmem:[%s240 + $0x740] sm:$0xff]
        %v574 = vld [vmem:[%s240 + $0x748] sm:$0xff]
        %v575 = vld [vmem:[%s240 + $0x750] sm:$0xff]
        %v576 = vld [vmem:[%s240 + $0x758] sm:$0xff]
        %v577 = vld [vmem:[%s240 + $0x760] sm:$0xff]
        %v578 = vld [vmem:[%s240 + $0x768] sm:$0xff]
        %v579 = vld [vmem:[%s240 + $0x770] sm:$0xff]
        %v580 = vld [vmem:[%s240 + $0x778] sm:$0xff]
        %v581 = vld [vmem:[%s240 + $0x780] sm:$0xff]
        %v582 = vld [vmem:[%s240 + $0x788] sm:$0xff]
        %v583 = vld [vmem:[%s240 + $0x790] sm:$0xff]
        %v584 = vld [vmem:[%s240 + $0x798] sm:$0xff]
        %v585 = vld [vmem:[%s240 + $0x7a0] sm:$0xff]
        %v586 = vld [vmem:[%s240 + $0x7a8] sm:$0xff]
        %v587 = vld [vmem:[%s240 + $0x7b0] sm:$0xff]
        %v588 = vld [vmem:[%s240 + $0x7b8] sm:$0xff]
        %v589 = vld [vmem:[%s240 + $0x7c0] sm:$0xff]
        %v590 = vld [vmem:[%s240 + $0x7c8] sm:$0xff]
        %v591 = vld [vmem:[%s240 + $0x7d0] sm:$0xff]
        %v592 = vld [vmem:[%s240 + $0x7d8] sm:$0xff]
        %v593 = vld [vmem:[%s240 + $0x7e0] sm:$0xff]
        %v594 = vld [vmem:[%s240 + $0x7e8] sm:$0xff]
        %v595 = vld [vmem:[%s240 + $0x7f0] sm:$0xff]
        %v596 = vld [vmem:[%s240 + $0x7f8] sm:$0xff]
        %v597 = vld [vmem:[%s240 + $0x800] sm:$0xff]
        %v598 = vld [vmem:[%s240 + $0x808] sm:$0xff]
        %v599 = vld [vmem:[%s240 + $0x810] sm:$0xff]
        %v600 = vld [vmem:[%s240 + $0x818] sm:$0xff]
        %v601 = vld [vmem:[%s240 + $0x820] sm:$0xff]
        %v602 = vld [vmem:[%s240 + $0x828] sm:$0xff]
        %v603 = vld [vmem:[%s240 + $0x830] sm:$0xff]
        %v604 = vld [vmem:[%s240 + $0x838] sm:$0xff]
        %v605 = vld [vmem:[%s240 + $0x840] sm:$0xff]
        %v606 = vld [vmem:[%s240 + $0x848] sm:$0xff]
        %v607 = vld [vmem:[%s240 + $0x850] sm:$0xff]
        %v608 = vld [vmem:[%s240 + $0x858] sm:$0xff]
        %v609 = vld [vmem:[%s240 + $0x860] sm:$0xff]
        %v610 = vld [vmem:[%s240 + $0x868] sm:$0xff]
        %v611 = vld [vmem:[%s240 + $0x870] sm:$0xff]
        %v612 = vld [vmem:[%s240 + $0x878] sm:$0xff]
        %v613 = vld [vmem:[%s240 + $0x880] sm:$0xff]
        %v614 = vld [vmem:[%s240 + $0x888] sm:$0xff]
        %v615 = vld [vmem:[%s240 + $0x890] sm:$0xff]
        %v616 = vld [vmem:[%s240 + $0x898] sm:$0xff]
        %v617 = vld [vmem:[%s240 + $0x8a0] sm:$0xff]
        %v618 = vld [vmem:[%s240 + $0x8a8] sm:$0xff]
        %v619 = vld [vmem:[%s240 + $0x8b0] sm:$0xff]
        %v620 = vld [vmem:[%s240 + $0x8b8] sm:$0xff]
        %v621 = vld [vmem:[%s240 + $0x8c0] sm:$0xff]
        %v622 = vld [vmem:[%s240 + $0x8c8] sm:$0xff]
        %v623 = vld [vmem:[%s240 + $0x8d0] sm:$0xff]
        %v624 = vld [vmem:[%s240 + $0x8d8] sm:$0xff]
        %v625 = vld [vmem:[%s240 + $0x8e0] sm:$0xff]
        %v626 = vld [vmem:[%s240 + $0x8e8] sm:$0xff]
        %v627 = vld [vmem:[%s240 + $0x8f0] sm:$0xff]
        %v628 = vld [vmem:[%s240 + $0x8f8] sm:$0xff]
        %v629 = vld [vmem:[%s240 + $0x900] sm:$0xff]
        %v630 = vld [vmem:[%s240 + $0x908] sm:$0xff]
        %v631 = vld [vmem:[%s240 + $0x910] sm:$0xff]
        %v632 = vld [vmem:[%s240 + $0x918] sm:$0xff]
        %v633 = vld [vmem:[%s240 + $0x920] sm:$0xff]
        %v634 = vld [vmem:[%s240 + $0x928] sm:$0xff]
        %v635 = vld [vmem:[%s240 + $0x930] sm:$0xff]
        %v636 = vld [vmem:[%s240 + $0x938] sm:$0xff]
        %v637 = vld [vmem:[%s240 + $0x940] sm:$0xff]
        %v638 = vld [vmem:[%s240 + $0x948] sm:$0xff]
        %v639 = vld [vmem:[%s240 + $0x950] sm:$0xff]
        %v640 = vld [vmem:[%s240 + $0x958] sm:$0xff]
        %v641 = vld [vmem:[%s240 + $0x960] sm:$0xff]
        %v642 = vld [vmem:[%s240 + $0x968] sm:$0xff]
        %v643 = vld [vmem:[%s240 + $0x970] sm:$0xff]
        %v644 = vld [vmem:[%s240 + $0x978] sm:$0xff]
        %v645 = vld [vmem:[%s240 + $0x980] sm:$0xff]
        %v646 = vld [vmem:[%s240 + $0x988] sm:$0xff]
        %v647 = vld [vmem:[%s240 + $0x990] sm:$0xff]
        %v648 = vld [vmem:[%s240 + $0x998] sm:$0xff]
        %v649 = vld [vmem:[%s240 + $0x9a0] sm:$0xff]
        %v650 = vld [vmem:[%s240 + $0x9a8] sm:$0xff]
        %v651 = vld [vmem:[%s240 + $0x9b0] sm:$0xff]
        %v652 = vld [vmem:[%s240 + $0x9b8] sm:$0xff]
        %v653 = vld [vmem:[%s240 + $0x9c0] sm:$0xff]
        %v654 = vld [vmem:[%s240 + $0x9c8] sm:$0xff]
        %v655 = vld [vmem:[%s240 + $0x9d0] sm:$0xff]
        %v656 = vld [vmem:[%s240 + $0x9d8] sm:$0xff]
        %v657 = vld [vmem:[%s240 + $0x9e0] sm:$0xff]
        %v658 = vld [vmem:[%s240 + $0x9e8] sm:$0xff]
        %v659 = vld [vmem:[%s240 + $0x9f0] sm:$0xff]
        %v660 = vld [vmem:[%s240 + $0x9f8] sm:$0xff]
        %v661 = vld [vmem:[%s240 + $0xa00] sm:$0xff]
        %v662 = vld [vmem:[%s240 + $0xa08] sm:$0xff]
        %v663 = vld [vmem:[%s240 + $0xa10] sm:$0xff]
        %v664 = vld [vmem:[%s240 + $0xa18] sm:$0xff]
        %v665 = vld [vmem:[%s240 + $0xa20] sm:$0xff]
        %v666 = vld [vmem:[%s240 + $0xa28] sm:$0xff]
        %v667 = vld [vmem:[%s240 + $0xa30] sm:$0xff]
        %v668 = vld [vmem:[%s240 + $0xa38] sm:$0xff]
        %v669 = vld [vmem:[%s240 + $0xa40] sm:$0xff]
        %v670 = vld [vmem:[%s240 + $0xa48] sm:$0xff]
        %v671 = vld [vmem:[%s240 + $0xa50] sm:$0xff]
        %v672 = vld [vmem:[%s240 + $0xa58] sm:$0xff]
        %v673 = vld [vmem:[%s240 + $0xa60] sm:$0xff]
        %v674 = vld [vmem:[%s240 + $0xa68] sm:$0xff]
        %v675 = vld [vmem:[%s240 + $0xa70] sm:$0xff]
        %v676 = vld [vmem:[%s240 + $0xa78] sm:$0xff]
        %v677 = vld [vmem:[%s240 + $0xa80] sm:$0xff]
        %v678 = vld [vmem:[%s240 + $0xa88] sm:$0xff]
        %v679 = vld [vmem:[%s240 + $0xa90] sm:$0xff]
        %v680 = vld [vmem:[%s240 + $0xa98] sm:$0xff]
        %v681 = vld [vmem:[%s240 + $0xaa0] sm:$0xff]
        %v682 = vld [vmem:[%s240 + $0xaa8] sm:$0xff]
        %v683 = vld [vmem:[%s240 + $0xab0] sm:$0xff]
        %v684 = vld [vmem:[%s240 + $0xab8] sm:$0xff]
        %v685 = vld [vmem:[%s240 + $0xac0] sm:$0xff]
        %v686 = vld [vmem:[%s240 + $0xac8] sm:$0xff]
        %v687 = vld [vmem:[%s240 + $0xad0] sm:$0xff]
        %v688 = vld [vmem:[%s240 + $0xad8] sm:$0xff]
        %v689 = vld [vmem:[%s240 + $0xae0] sm:$0xff]
        %v690 = vld [vmem:[%s240 + $0xae8] sm:$0xff]
        %v691 = vld [vmem:[%s240 + $0xaf0] sm:$0xff]
        %v692 = vld [vmem:[%s240 + $0xaf8] sm:$0xff]
        %v693 = vld [vmem:[%s240 + $0xb00] sm:$0xff]
        %v694 = vld [vmem:[%s240 + $0xb08] sm:$0xff]
        %v695 = vld [vmem:[%s240 + $0xb10] sm:$0xff]
        %v696 = vld [vmem:[%s240 + $0xb18] sm:$0xff]
        %v697 = vld [vmem:[%s240 + $0xb20] sm:$0xff]
        %v698 = vld [vmem:[%s240 + $0xb28] sm:$0xff]
        %v699 = vld [vmem:[%s240 + $0xb30] sm:$0xff]
        %v700 = vld [vmem:[%s240 + $0xb38] sm:$0xff]
        %v701 = vld [vmem:[%s240 + $0xb40] sm:$0xff]
        %v702 = vld [vmem:[%s240 + $0xb48] sm:$0xff]
        %v703 = vld [vmem:[%s240 + $0xb50] sm:$0xff]
        %v704 = vld [vmem:[%s240 + $0xb58] sm:$0xff]
        %v705 = vld [vmem:[%s240 + $0xb60] sm:$0xff]
        %v706 = vld [vmem:[%s240 + $0xb68] sm:$0xff]
        %v707 = vld [vmem:[%s240 + $0xb70] sm:$0xff]
        %v708 = vld [vmem:[%s240 + $0xb78] sm:$0xff]
        %v709 = vld [vmem:[%s240 + $0xb80] sm:$0xff]
        %v710 = vld [vmem:[%s240 + $0xb88] sm:$0xff]
        %v711 = vld [vmem:[%s240 + $0xb90] sm:$0xff]
        %v712 = vld [vmem:[%s240 + $0xb98] sm:$0xff]
        %v713 = vld [vmem:[%s240 + $0xba0] sm:$0xff]
        %v714 = vld [vmem:[%s240 + $0xba8] sm:$0xff]
        %v715 = vld [vmem:[%s240 + $0xbb0] sm:$0xff]
        %v716 = vld [vmem:[%s240 + $0xbb8] sm:$0xff]
        %v717 = vld [vmem:[%s240 + $0xbc0] sm:$0xff]
        %v718 = vld [vmem:[%s240 + $0xbc8] sm:$0xff]
        %v719 = vld [vmem:[%s240 + $0xbd0] sm:$0xff]
        %v720 = vld [vmem:[%s240 + $0xbd8] sm:$0xff]
        %v721 = vld [vmem:[%s240 + $0xbe0] sm:$0xff]
        %v722 = vld [vmem:[%s240 + $0xbe8] sm:$0xff]
        %v723 = vld [vmem:[%s240 + $0xbf0] sm:$0xff]
        %v724 = vld [vmem:[%s240 + $0xbf8] sm:$0xff]
        %v725 = vld [vmem:[%s240 + $0xc00] sm:$0xff]
        %v726 = vld [vmem:[%s240 + $0xc08] sm:$0xff]
        %v727 = vld [vmem:[%s240 + $0xc10] sm:$0xff]
        %v728 = vld [vmem:[%s240 + $0xc18] sm:$0xff]
        %v729 = vld [vmem:[%s240 + $0xc20] sm:$0xff]
        %v730 = vld [vmem:[%s240 + $0xc28] sm:$0xff]
        %v731 = vld [vmem:[%s240 + $0xc30] sm:$0xff]
        %v732 = vld [vmem:[%s240 + $0xc38] sm:$0xff]
        %v733 = vld [vmem:[%s240 + $0xc40] sm:$0xff]
        %v734 = vld [vmem:[%s240 + $0xc48] sm:$0xff]
        %v735 = vld [vmem:[%s240 + $0xc50] sm:$0xff]
        %v736 = vld [vmem:[%s240 + $0xc58] sm:$0xff]
        %v737 = vld [vmem:[%s240 + $0xc60] sm:$0xff]
        %v738 = vld [vmem:[%s240 + $0xc68] sm:$0xff]
        %v739 = vld [vmem:[%s240 + $0xc70] sm:$0xff]
        %v740 = vld [vmem:[%s240 + $0xc78] sm:$0xff]
        %v741 = vld [vmem:[%s240 + $0xc80] sm:$0xff]
        %v742 = vld [vmem:[%s240 + $0xc88] sm:$0xff]
        %v743 = vld [vmem:[%s240 + $0xc90] sm:$0xff]
        %v744 = vld [vmem:[%s240 + $0xc98] sm:$0xff]
        %v745 = vld [vmem:[%s240 + $0xca0] sm:$0xff]
        %v746 = vld [vmem:[%s240 + $0xca8] sm:$0xff]
        %v747 = vld [vmem:[%s240 + $0xcb0] sm:$0xff]
        %v748 = vld [vmem:[%s240 + $0xcb8] sm:$0xff]
        %v749 = vld [vmem:[%s240 + $0xcc0] sm:$0xff]
        %v750 = vld [vmem:[%s240 + $0xcc8] sm:$0xff]
        %v751 = vld [vmem:[%s240 + $0xcd0] sm:$0xff]
        %v752 = vld [vmem:[%s240 + $0xcd8] sm:$0xff]
        %v753 = vld [vmem:[%s240 + $0xce0] sm:$0xff]
        %v754 = vld [vmem:[%s240 + $0xce8] sm:$0xff]
        %v755 = vld [vmem:[%s240 + $0xcf0] sm:$0xff]
        %v756 = vld [vmem:[%s240 + $0xcf8] sm:$0xff]
        %v757 = vld [vmem:[%s240 + $0xd00] sm:$0xff]
        %v758 = vld [vmem:[%s240 + $0xd08] sm:$0xff]
        %v759 = vld [vmem:[%s240 + $0xd10] sm:$0xff]
        %v760 = vld [vmem:[%s240 + $0xd18] sm:$0xff]
        %v761 = vld [vmem:[%s240 + $0xd20] sm:$0xff]
        %v762 = vld [vmem:[%s240 + $0xd28] sm:$0xff]
        %v763 = vld [vmem:[%s240 + $0xd30] sm:$0xff]
        %v764 = vld [vmem:[%s240 + $0xd38] sm:$0xff]
        %v765 = vld [vmem:[%s240 + $0xd40] sm:$0xff]
        %v766 = vld [vmem:[%s240 + $0xd48] sm:$0xff]
        %v767 = vld [vmem:[%s240 + $0xd50] sm:$0xff]
        %v768 = vld [vmem:[%s240 + $0xd58] sm:$0xff]
        %v769 = vld [vmem:[%s240 + $0xd60] sm:$0xff]
        %v770 = vld [vmem:[%s240 + $0xd68] sm:$0xff]
        %v771 = vld [vmem:[%s240 + $0xd70] sm:$0xff]
        %v772 = vld [vmem:[%s240 + $0xd78] sm:$0xff]
        %v773 = vld [vmem:[%s240 + $0xd80] sm:$0xff]
        %v774 = vld [vmem:[%s240 + $0xd88] sm:$0xff]
        %v775 = vld [vmem:[%s240 + $0xd90] sm:$0xff]
        %v776 = vld [vmem:[%s240 + $0xd98] sm:$0xff]
        %v777 = vld [vmem:[%s240 + $0xda0] sm:$0xff]
        %v778 = vld [vmem:[%s240 + $0xda8] sm:$0xff]
        %v779 = vld [vmem:[%s240 + $0xdb0] sm:$0xff]
        %v780 = vld [vmem:[%s240 + $0xdb8] sm:$0xff]
        %v781 = vld [vmem:[%s240 + $0xdc0] sm:$0xff]
        %v782 = vld [vmem:[%s240 + $0xdc8] sm:$0xff]
        %v783 = vld [vmem:[%s240 + $0xdd0] sm:$0xff]
        %v784 = vld [vmem:[%s240 + $0xdd8] sm:$0xff]
        %v785 = vld [vmem:[%s240 + $0xde0] sm:$0xff]
        %v786 = vld [vmem:[%s240 + $0xde8] sm:$0xff]
        %v787 = vld [vmem:[%s240 + $0xdf0] sm:$0xff]
        %v788 = vld [vmem:[%s240 + $0xdf8] sm:$0xff]
        %v789 = vld [vmem:[%s240 + $0xe00] sm:$0xff]
        %v790 = vld [vmem:[%s240 + $0xe08] sm:$0xff]
        %v791 = vld [vmem:[%s240 + $0xe10] sm:$0xff]
        %v792 = vld [vmem:[%s240 + $0xe18] sm:$0xff]
        %v793 = vld [vmem:[%s240 + $0xe20] sm:$0xff]
        %v794 = vld [vmem:[%s240 + $0xe28] sm:$0xff]
        %v795 = vld [vmem:[%s240 + $0xe30] sm:$0xff]
        %v796 = vld [vmem:[%s240 + $0xe38] sm:$0xff]
        %v797 = vld [vmem:[%s240 + $0xe40] sm:$0xff]
        %v798 = vld [vmem:[%s240 + $0xe48] sm:$0xff]
        %v799 = vld [vmem:[%s240 + $0xe50] sm:$0xff]
        %v800 = vld [vmem:[%s240 + $0xe58] sm:$0xff]
        %v801 = vld [vmem:[%s240 + $0xe60] sm:$0xff]
        %v802 = vld [vmem:[%s240 + $0xe68] sm:$0xff]
        %v803 = vld [vmem:[%s240 + $0xe70] sm:$0xff]
        %v804 = vld [vmem:[%s240 + $0xe78] sm:$0xff]
        %v805 = vld [vmem:[%s240 + $0xe80] sm:$0xff]
        %v806 = vld [vmem:[%s240 + $0xe88] sm:$0xff]
        %v807 = vld [vmem:[%s240 + $0xe90] sm:$0xff]
        %v808 = vld [vmem:[%s240 + $0xe98] sm:$0xff]
        %v809 = vld [vmem:[%s240 + $0xea0] sm:$0xff]
        %v810 = vld [vmem:[%s240 + $0xea8] sm:$0xff]
        %v811 = vld [vmem:[%s240 + $0xeb0] sm:$0xff]
        %v812 = vld [vmem:[%s240 + $0xeb8] sm:$0xff]
        %v813 = vld [vmem:[%s240 + $0xec0] sm:$0xff]
        %v814 = vld [vmem:[%s240 + $0xec8] sm:$0xff]
        %v815 = vld [vmem:[%s240 + $0xed0] sm:$0xff]
        %v816 = vld [vmem:[%s240 + $0xed8] sm:$0xff]
        %v817 = vld [vmem:[%s240 + $0xee0] sm:$0xff]
        %v818 = vld [vmem:[%s240 + $0xee8] sm:$0xff]
        %v819 = vld [vmem:[%s240 + $0xef0] sm:$0xff]
        %v820 = vld [vmem:[%s240 + $0xef8] sm:$0xff]
        %v821 = vld [vmem:[%s240 + $0xf00] sm:$0xff]
        %v822 = vld [vmem:[%s240 + $0xf08] sm:$0xff]
        %v823 = vld [vmem:[%s240 + $0xf10] sm:$0xff]
        %v824 = vld [vmem:[%s240 + $0xf18] sm:$0xff]
        %v825 = vld [vmem:[%s240 + $0xf20] sm:$0xff]
        %v826 = vld [vmem:[%s240 + $0xf28] sm:$0xff]
        %v827 = vld [vmem:[%s240 + $0xf30] sm:$0xff]
        %v828 = vld [vmem:[%s240 + $0xf38] sm:$0xff]
        %v829 = vld [vmem:[%s240 + $0xf40] sm:$0xff]
        %v830 = vld [vmem:[%s240 + $0xf48] sm:$0xff]
        %v831 = vld [vmem:[%s240 + $0xf50] sm:$0xff]
        %v832 = vld [vmem:[%s240 + $0xf58] sm:$0xff]
        %v833 = vld [vmem:[%s240 + $0xf60] sm:$0xff]
        %v834 = vld [vmem:[%s240 + $0xf68] sm:$0xff]
        %v835 = vld [vmem:[%s240 + $0xf70] sm:$0xff]
        %v836 = vld [vmem:[%s240 + $0xf78] sm:$0xff]
        %v837 = vld [vmem:[%s240 + $0xf80] sm:$0xff]
        %v838 = vld [vmem:[%s240 + $0xf88] sm:$0xff]
        %v839 = vld [vmem:[%s240 + $0xf90] sm:$0xff]
        %v840 = vld [vmem:[%s240 + $0xf98] sm:$0xff]
        %v841 = vld [vmem:[%s240 + $0xfa0] sm:$0xff]
        %v842 = vld [vmem:[%s240 + $0xfa8] sm:$0xff]
        %v843 = vld [vmem:[%s240 + $0xfb0] sm:$0xff]
        %v844 = vld [vmem:[%s240 + $0xfb8] sm:$0xff]
        %v845 = vld [vmem:[%s240 + $0xfc0] sm:$0xff]
        %v846 = vld [vmem:[%s240 + $0xfc8] sm:$0xff]
        %v847 = vld [vmem:[%s240 + $0xfd0] sm:$0xff]
        %v848 = vld [vmem:[%s240 + $0xfd8] sm:$0xff]
        %v849 = vld [vmem:[%s240 + $0xfe0] sm:$0xff]
        %v850 = vld [vmem:[%s240 + $0xfe8] sm:$0xff]
        %v851 = vld [vmem:[%s240 + $0xff0] sm:$0xff]
        %v852 = vld [vmem:[%s240 + $0xff8] sm:$0xff]
        %v853 = vld [vmem:[%s240 + $0x1000] sm:$0xff]
        %v854 = vld [vmem:[%s240 + $0x1008] sm:$0xff]
        %v855 = vld [vmem:[%s240 + $0x1010] sm:$0xff]
        %v856 = vld [vmem:[%s240 + $0x1018] sm:$0xff]
        %v857 = vld [vmem:[%s240 + $0x1020] sm:$0xff]
        %v858 = vld [vmem:[%s240 + $0x1028] sm:$0xff]
        %v859 = vld [vmem:[%s240 + $0x1030] sm:$0xff]
        %v860 = vld [vmem:[%s240 + $0x1038] sm:$0xff]
        %v861 = vld [vmem:[%s240 + $0x1040] sm:$0xff]
        %v862 = vld [vmem:[%s240 + $0x1048] sm:$0xff]
        %v863 = vld [vmem:[%s240 + $0x1050] sm:$0xff]
        %v864 = vld [vmem:[%s240 + $0x1058] sm:$0xff]
        %v865 = vld [vmem:[%s240 + $0x1060] sm:$0xff]
        %v866 = vld [vmem:[%s240 + $0x1068] sm:$0xff]
        %v867 = vld [vmem:[%s240 + $0x1070] sm:$0xff]
        %v868 = vld [vmem:[%s240 + $0x1078] sm:$0xff]
        %v869 = vld [vmem:[%s240 + $0x1080] sm:$0xff]
        %v870 = vld [vmem:[%s240 + $0x1088] sm:$0xff]
        %v871 = vld [vmem:[%s240 + $0x1090] sm:$0xff]
        %v872 = vld [vmem:[%s240 + $0x1098] sm:$0xff]
        %v873 = vld [vmem:[%s240 + $0x10a0] sm:$0xff]
        %v874 = vld [vmem:[%s240 + $0x10a8] sm:$0xff]
        %v875 = vld [vmem:[%s240 + $0x10b0] sm:$0xff]
        %v876 = vld [vmem:[%s240 + $0x10b8] sm:$0xff]
        %v877 = vld [vmem:[%s240 + $0x10c0] sm:$0xff]
        %v878 = vld [vmem:[%s240 + $0x10c8] sm:$0xff]
        %v879 = vld [vmem:[%s240 + $0x10d0] sm:$0xff]
        %v880 = vld [vmem:[%s240 + $0x10d8] sm:$0xff]
        %v881 = vld [vmem:[%s240 + $0x10e0] sm:$0xff]
        %v882 = vld [vmem:[%s240 + $0x10e8] sm:$0xff]
        %v883 = vld [vmem:[%s240 + $0x10f0] sm:$0xff]
        %v884 = vld [vmem:[%s240 + $0x10f8] sm:$0xff]
        %v885 = vld [vmem:[%s240 + $0x1100] sm:$0xff]
        %v886 = vld [vmem:[%s240 + $0x1108] sm:$0xff]
        %v887 = vld [vmem:[%s240 + $0x1110] sm:$0xff]
        %v888 = vld [vmem:[%s240 + $0x1118] sm:$0xff]
        %v889 = vld [vmem:[%s240 + $0x1120] sm:$0xff]
        %v890 = vld [vmem:[%s240 + $0x1128] sm:$0xff]
        %v891 = vld [vmem:[%s240 + $0x1130] sm:$0xff]
        %v892 = vld [vmem:[%s240 + $0x1138] sm:$0xff]
        %v893 = vld [vmem:[%s240 + $0x1140] sm:$0xff]
        %v894 = vld [vmem:[%s240 + $0x1148] sm:$0xff]
        %v895 = vld [vmem:[%s240 + $0x1150] sm:$0xff]
        %v896 = vld [vmem:[%s240 + $0x1158] sm:$0xff]
        %v897 = vld [vmem:[%s240 + $0x1160] sm:$0xff]
        %v898 = vld [vmem:[%s240 + $0x1168] sm:$0xff]
        %v899 = vld [vmem:[%s240 + $0x1170] sm:$0xff]
        %v900 = vld [vmem:[%s240 + $0x1178] sm:$0xff]
        %v901 = vld [vmem:[%s240 + $0x1180] sm:$0xff]
        %v902 = vld [vmem:[%s240 + $0x1188] sm:$0xff]
        %v903 = vld [vmem:[%s240 + $0x1190] sm:$0xff]
        %v904 = vld [vmem:[%s240 + $0x1198] sm:$0xff]
        %v905 = vld [vmem:[%s240 + $0x11a0] sm:$0xff]
        %v906 = vld [vmem:[%s240 + $0x11a8] sm:$0xff]
        %v907 = vld [vmem:[%s240 + $0x11b0] sm:$0xff]
        %v908 = vld [vmem:[%s240 + $0x11b8] sm:$0xff]
        %v909 = vld [vmem:[%s240 + $0x11c0] sm:$0xff]
        %v910 = vld [vmem:[%s240 + $0x11c8] sm:$0xff]
        %v911 = vld [vmem:[%s240 + $0x11d0] sm:$0xff]
        %v912 = vld [vmem:[%s240 + $0x11d8] sm:$0xff]
        %v913 = vld [vmem:[%s240 + $0x11e0] sm:$0xff]
        %v914 = vld [vmem:[%s240 + $0x11e8] sm:$0xff]
        %v915 = vld [vmem:[%s240 + $0x11f0] sm:$0xff]
        %v916 = vld [vmem:[%s240 + $0x11f8] sm:$0xff]
        %v917 = vld [vmem:[%s240 + $0x1200] sm:$0xff]
        %v918 = vld [vmem:[%s240 + $0x1208] sm:$0xff]
        %v919 = vld [vmem:[%s240 + $0x1210] sm:$0xff]
        %v920 = vld [vmem:[%s240 + $0x1218] sm:$0xff]
        %v921 = vld [vmem:[%s240 + $0x1220] sm:$0xff]
        %v922 = vld [vmem:[%s240 + $0x1228] sm:$0xff]
        %v923 = vld [vmem:[%s240 + $0x1230] sm:$0xff]
        %v924 = vld [vmem:[%s240 + $0x1238] sm:$0xff]
        %v925 = vld [vmem:[%s240 + $0x1240] sm:$0xff]
        %v926 = vld [vmem:[%s240 + $0x1248] sm:$0xff]
        %v927 = vld [vmem:[%s240 + $0x1250] sm:$0xff]
        %v928 = vld [vmem:[%s240 + $0x1258] sm:$0xff]
        %v929 = vld [vmem:[%s240 + $0x1260] sm:$0xff]
        %v930 = vld [vmem:[%s240 + $0x1268] sm:$0xff]
        %v931 = vld [vmem:[%s240 + $0x1270] sm:$0xff]
        %v932 = vld [vmem:[%s240 + $0x1278] sm:$0xff]
        %v933 = vld [vmem:[%s240 + $0x1280] sm:$0xff]
        %v934 = vld [vmem:[%s240 + $0x1288] sm:$0xff]
        %v935 = vld [vmem:[%s240 + $0x1290] sm:$0xff]
        %v936 = vld [vmem:[%s240 + $0x1298] sm:$0xff]
        %v937 = vld [vmem:[%s240 + $0x12a0] sm:$0xff]
        %v938 = vld [vmem:[%s240 + $0x12a8] sm:$0xff]
        %v939 = vld [vmem:[%s240 + $0x12b0] sm:$0xff]
        %v940 = vld [vmem:[%s240 + $0x12b8] sm:$0xff]
        %v941 = vld [vmem:[%s240 + $0x12c0] sm:$0xff]
        %v942 = vld [vmem:[%s240 + $0x12c8] sm:$0xff]
        %v943 = vld [vmem:[%s240 + $0x12d0] sm:$0xff]
        %v944 = vld [vmem:[%s240 + $0x12d8] sm:$0xff]
        %v945 = vld [vmem:[%s240 + $0x12e0] sm:$0xff]
        %v946 = vld [vmem:[%s240 + $0x12e8] sm:$0xff]
        %v947 = vld [vmem:[%s240 + $0x12f0] sm:$0xff]
        %v948 = vld [vmem:[%s240 + $0x12f8] sm:$0xff]
        %v949 = vld [vmem:[%s240 + $0x1300] sm:$0xff]
        %v950 = vld [vmem:[%s240 + $0x1308] sm:$0xff]
        %v951 = vld [vmem:[%s240 + $0x1310] sm:$0xff]
        %v952 = vld [vmem:[%s240 + $0x1318] sm:$0xff]
        %v953 = vld [vmem:[%s240 + $0x1320] sm:$0xff]
        %v954 = vld [vmem:[%s240 + $0x1328] sm:$0xff]
        %v955 = vld [vmem:[%s240 + $0x1330] sm:$0xff]
        %v956 = vld [vmem:[%s240 + $0x1338] sm:$0xff]
        %v957 = vld [vmem:[%s240 + $0x1340] sm:$0xff]
        %v958 = vld [vmem:[%s240 + $0x1348] sm:$0xff]
        %v959 = vld [vmem:[%s240 + $0x1350] sm:$0xff]
        %v960 = vld [vmem:[%s240 + $0x1358] sm:$0xff]
        %v961 = vld [vmem:[%s240 + $0x1360] sm:$0xff]
        %v962 = vld [vmem:[%s240 + $0x1368] sm:$0xff]
        %v963 = vld [vmem:[%s240 + $0x1370] sm:$0xff]
        %v964 = vld [vmem:[%s240 + $0x1378] sm:$0xff]
        %v965 = vld [vmem:[%s240 + $0x1380] sm:$0xff]
        %v966 = vld [vmem:[%s240 + $0x1388] sm:$0xff]
        %v967 = vld [vmem:[%s240 + $0x1390] sm:$0xff]
        %v968 = vld [vmem:[%s240 + $0x1398] sm:$0xff]
        %v969 = vld [vmem:[%s240 + $0x13a0] sm:$0xff]
        %v970 = vld [vmem:[%s240 + $0x13a8] sm:$0xff]
        %v971 = vld [vmem:[%s240 + $0x13b0] sm:$0xff]
        %v972 = vld [vmem:[%s240 + $0x13b8] sm:$0xff]
        %v973 = vld [vmem:[%s240 + $0x13c0] sm:$0xff]
        %v974 = vld [vmem:[%s240 + $0x13c8] sm:$0xff]
        %v975 = vld [vmem:[%s240 + $0x13d0] sm:$0xff]
        %v976 = vld [vmem:[%s240 + $0x13d8] sm:$0xff]
        %v977 = vld [vmem:[%s240 + $0x13e0] sm:$0xff]
        %v978 = vld [vmem:[%s240 + $0x13e8] sm:$0xff]
        %v979 = vld [vmem:[%s240 + $0x13f0] sm:$0xff]
        %v980 = vld [vmem:[%s240 + $0x13f8] sm:$0xff]
        %v981 = vld [vmem:[%s240 + $0x1400] sm:$0xff]
        %v982 = vld [vmem:[%s240 + $0x1408] sm:$0xff]
        %v983 = vld [vmem:[%s240 + $0x1410] sm:$0xff]
        %v984 = vld [vmem:[%s240 + $0x1418] sm:$0xff]
        %v985 = vld [vmem:[%s240 + $0x1420] sm:$0xff]
        %v986 = vld [vmem:[%s240 + $0x1428] sm:$0xff]
        %v987 = vld [vmem:[%s240 + $0x1430] sm:$0xff]
        %v988 = vld [vmem:[%s240 + $0x1438] sm:$0xff]
        %v989 = vld [vmem:[%s240 + $0x1440] sm:$0xff]
        %v990 = vld [vmem:[%s240 + $0x1448] sm:$0xff]
        %v991 = vld [vmem:[%s240 + $0x1450] sm:$0xff]
        %v992 = vld [vmem:[%s240 + $0x1458] sm:$0xff]
        %v993 = vld [vmem:[%s240 + $0x1460] sm:$0xff]
        %v994 = vld [vmem:[%s240 + $0x1468] sm:$0xff]
        %v995 = vld [vmem:[%s240 + $0x1470] sm:$0xff]
        %v996 = vld [vmem:[%s240 + $0x1478] sm:$0xff]
        %v997 = vld [vmem:[%s240 + $0x1480] sm:$0xff]
        %v998 = vld [vmem:[%s240 + $0x1488] sm:$0xff]
        %v999 = vld [vmem:[%s240 + $0x1490] sm:$0xff]
        %v1000 = vld [vmem:[%s240 + $0x1498] sm:$0xff]
        %v1001 = vld [vmem:[%s240 + $0x14a0] sm:$0xff]
        %v1002 = vld [vmem:[%s240 + $0x14a8] sm:$0xff]
        %v1003 = vld [vmem:[%s240 + $0x14b0] sm:$0xff]
        %v1004 = vld [vmem:[%s240 + $0x14b8] sm:$0xff]
        %v1005 = vld [vmem:[%s240 + $0x14c0] sm:$0xff]
        %v1006 = vld [vmem:[%s240 + $0x14c8] sm:$0xff]
        %v1007 = vld [vmem:[%s240 + $0x14d0] sm:$0xff]
        %v1008 = vld [vmem:[%s240 + $0x14d8] sm:$0xff]
        %v1009 = vld [vmem:[%s240 + $0x14e0] sm:$0xff]
        %v1010 = vld [vmem:[%s240 + $0x14e8] sm:$0xff]
        %v1011 = vld [vmem:[%s240 + $0x14f0] sm:$0xff]
        %v1012 = vld [vmem:[%s240 + $0x14f8] sm:$0xff]
        %v1013 = vld [vmem:[%s240 + $0x1500] sm:$0xff]
        %v1014 = vld [vmem:[%s240 + $0x1508] sm:$0xff]
        %v1015 = vld [vmem:[%s240 + $0x1510] sm:$0xff]
        %v1016 = vld [vmem:[%s240 + $0x1518] sm:$0xff]
        %v1017 = vld [vmem:[%s240 + $0x1520] sm:$0xff]
        %v1018 = vld [vmem:[%s240 + $0x1528] sm:$0xff]
        %v1019 = vld [vmem:[%s240 + $0x1530] sm:$0xff]
        %v1020 = vld [vmem:[%s240 + $0x1538] sm:$0xff]
        %v1021 = vld [vmem:[%s240 + $0x1540] sm:$0xff]
        %v1022 = vld [vmem:[%s240 + $0x1548] sm:$0xff]
        %v1023 = vld [vmem:[%s240 + $0x1550] sm:$0xff]
        %v1024 = vld [vmem:[%s240 + $0x1558] sm:$0xff]
        %v1025 = vld [vmem:[%s240 + $0x1560] sm:$0xff]
        %v1026 = vld [vmem:[%s240 + $0x1568] sm:$0xff]
        %v1027 = vld [vmem:[%s240 + $0x1570] sm:$0xff]
        %v1028 = vld [vmem:[%s240 + $0x1578] sm:$0xff]
        %v1029 = vld [vmem:[%s240 + $0x1580] sm:$0xff]
        %v1030 = vld [vmem:[%s240 + $0x1588] sm:$0xff]
        %v1031 = vld [vmem:[%s240 + $0x1590] sm:$0xff]
        %v1032 = vld [vmem:[%s240 + $0x1598] sm:$0xff]
        %v1033 = vld [vmem:[%s240 + $0x15a0] sm:$0xff]
        %v1034 = vld [vmem:[%s240 + $0x15a8] sm:$0xff]
        %v1035 = vld [vmem:[%s240 + $0x15b0] sm:$0xff]
        %v1036 = vld [vmem:[%s240 + $0x15b8] sm:$0xff]
        %v1037 = vld [vmem:[%s240 + $0x15c0] sm:$0xff]
        %v1038 = vld [vmem:[%s240 + $0x15c8] sm:$0xff]
        %v1039 = vld [vmem:[%s240 + $0x15d0] sm:$0xff]
        %v1040 = vld [vmem:[%s240 + $0x15d8] sm:$0xff]
        %v1041 = vld [vmem:[%s240 + $0x15e0] sm:$0xff]
        %v1042 = vld [vmem:[%s240 + $0x15e8] sm:$0xff]
        %v1043 = vld [vmem:[%s240 + $0x15f0] sm:$0xff]
        %v1044 = vld [vmem:[%s240 + $0x15f8] sm:$0xff]
        %v1045 = vld [vmem:[%s240 + $0x1600] sm:$0xff]
        %v1046 = vld [vmem:[%s240 + $0x1608] sm:$0xff]
        %v1047 = vld [vmem:[%s240 + $0x1610] sm:$0xff]
        %v1048 = vld [vmem:[%s240 + $0x1618] sm:$0xff]
        %v1049 = vld [vmem:[%s240 + $0x1620] sm:$0xff]
        %v1050 = vld [vmem:[%s240 + $0x1628] sm:$0xff]
        %v1051 = vld [vmem:[%s240 + $0x1630] sm:$0xff]
        %v1052 = vld [vmem:[%s240 + $0x1638] sm:$0xff]
        %v1053 = vld [vmem:[%s240 + $0x1640] sm:$0xff]
        %v1054 = vld [vmem:[%s240 + $0x1648] sm:$0xff]
        %v1055 = vld [vmem:[%s240 + $0x1650] sm:$0xff]
        %v1056 = vld [vmem:[%s240 + $0x1658] sm:$0xff]
        %v1057 = vld [vmem:[%s240 + $0x1660] sm:$0xff]
        %v1058 = vld [vmem:[%s240 + $0x1668] sm:$0xff]
        %v1059 = vld [vmem:[%s240 + $0x1670] sm:$0xff]
        %v1060 = vld [vmem:[%s240 + $0x1678] sm:$0xff]
        %v1061 = vld [vmem:[%s240 + $0x1680] sm:$0xff]
        %v1062 = vld [vmem:[%s240 + $0x1688] sm:$0xff]
        %v1063 = vld [vmem:[%s240 + $0x1690] sm:$0xff]
        %v1064 = vld [vmem:[%s240 + $0x1698] sm:$0xff]
        %v1065 = vld [vmem:[%s240 + $0x16a0] sm:$0xff]
        %v1066 = vld [vmem:[%s240 + $0x16a8] sm:$0xff]
        %v1067 = vld [vmem:[%s240 + $0x16b0] sm:$0xff]
        %v1068 = vld [vmem:[%s240 + $0x16b8] sm:$0xff]
        %v1069 = vld [vmem:[%s240 + $0x16c0] sm:$0xff]
        %v1070 = vld [vmem:[%s240 + $0x16c8] sm:$0xff]
        %v1071 = vld [vmem:[%s240 + $0x16d0] sm:$0xff]
        %v1072 = vld [vmem:[%s240 + $0x16d8] sm:$0xff]
        %v1073 = vld [vmem:[%s240 + $0x16e0] sm:$0xff]
        %v1074 = vld [vmem:[%s240 + $0x16e8] sm:$0xff]
        %v1075 = vld [vmem:[%s240 + $0x16f0] sm:$0xff]
        %v1076 = vld [vmem:[%s240 + $0x16f8] sm:$0xff]
        %v1077 = vld [vmem:[%s240 + $0x1700] sm:$0xff]
        %v1078 = vld [vmem:[%s240 + $0x1708] sm:$0xff]
        %v1079 = vld [vmem:[%s240 + $0x1710] sm:$0xff]
        %v1080 = vld [vmem:[%s240 + $0x1718] sm:$0xff]
        %v1081 = vld [vmem:[%s240 + $0x1720] sm:$0xff]
        %v1082 = vld [vmem:[%s240 + $0x1728] sm:$0xff]
        %v1083 = vld [vmem:[%s240 + $0x1730] sm:$0xff]
        %v1084 = vld [vmem:[%s240 + $0x1738] sm:$0xff]
        %v1085 = vld [vmem:[%s240 + $0x1740] sm:$0xff]
        %v1086 = vld [vmem:[%s240 + $0x1748] sm:$0xff]
        %v1087 = vld [vmem:[%s240 + $0x1750] sm:$0xff]
        %v1088 = vld [vmem:[%s240 + $0x1758] sm:$0xff]
        %v1089 = vld [vmem:[%s240 + $0x1760] sm:$0xff]
        %v1090 = vld [vmem:[%s240 + $0x1768] sm:$0xff]
        %v1091 = vld [vmem:[%s240 + $0x1770] sm:$0xff]
        %v1092 = vld [vmem:[%s240 + $0x1778] sm:$0xff]
        %v1093 = vld [vmem:[%s240 + $0x1780] sm:$0xff]
        %v1094 = vld [vmem:[%s240 + $0x1788] sm:$0xff]
        %v1095 = vld [vmem:[%s240 + $0x1790] sm:$0xff]
        %v1096 = vld [vmem:[%s240 + $0x1798] sm:$0xff]
        %v1097 = vld [vmem:[%s240 + $0x17a0] sm:$0xff]
        %v1098 = vld [vmem:[%s240 + $0x17a8] sm:$0xff]
        %v1099 = vld [vmem:[%s240 + $0x17b0] sm:$0xff]
        %v1100 = vld [vmem:[%s240 + $0x17b8] sm:$0xff]
        %v1101 = vld [vmem:[%s240 + $0x17c0] sm:$0xff]
        %v1102 = vld [vmem:[%s240 + $0x17c8] sm:$0xff]
        %v1103 = vld [vmem:[%s240 + $0x17d0] sm:$0xff]
        %v1104 = vld [vmem:[%s240 + $0x17d8] sm:$0xff]
        %v1105 = vld [vmem:[%s240 + $0x17e0] sm:$0xff]
        %v1106 = vld [vmem:[%s240 + $0x17e8] sm:$0xff]
        %v1107 = vld [vmem:[%s240 + $0x17f0] sm:$0xff]
        %v1108 = vld [vmem:[%s240 + $0x17f8] sm:$0xff]
        %v1109 = vld [vmem:[%s240 + $0x1800] sm:$0xff]
        %v1110 = vld [vmem:[%s240 + $0x1808] sm:$0xff]
        %v1111 = vld [vmem:[%s240 + $0x1810] sm:$0xff]
        %v1112 = vld [vmem:[%s240 + $0x1818] sm:$0xff]
        %v1113 = vld [vmem:[%s240 + $0x1820] sm:$0xff]
        %v1114 = vld [vmem:[%s240 + $0x1828] sm:$0xff]
        %v1115 = vld [vmem:[%s240 + $0x1830] sm:$0xff]
        %v1116 = vld [vmem:[%s240 + $0x1838] sm:$0xff]
        %v1117 = vld [vmem:[%s240 + $0x1840] sm:$0xff]
        %v1118 = vld [vmem:[%s240 + $0x1848] sm:$0xff]
        %v1119 = vld [vmem:[%s240 + $0x1850] sm:$0xff]
        %v1120 = vld [vmem:[%s240 + $0x1858] sm:$0xff]
        %v1121 = vld [vmem:[%s240 + $0x1860] sm:$0xff]
        %v1122 = vld [vmem:[%s240 + $0x1868] sm:$0xff]
        %v1123 = vld [vmem:[%s240 + $0x1870] sm:$0xff]
        %v1124 = vld [vmem:[%s240 + $0x1878] sm:$0xff]
        %v1125 = vld [vmem:[%s240 + $0x1880] sm:$0xff]
        %v1126 = vld [vmem:[%s240 + $0x1888] sm:$0xff]
        %v1127 = vld [vmem:[%s240 + $0x1890] sm:$0xff]
        %v1128 = vld [vmem:[%s240 + $0x1898] sm:$0xff]
        %v1129 = vld [vmem:[%s240 + $0x18a0] sm:$0xff]
        %v1130 = vld [vmem:[%s240 + $0x18a8] sm:$0xff]
        %v1131 = vld [vmem:[%s240 + $0x18b0] sm:$0xff]
        %v1132 = vld [vmem:[%s240 + $0x18b8] sm:$0xff]
        %v1133 = vld [vmem:[%s240 + $0x18c0] sm:$0xff]
        %v1134 = vld [vmem:[%s240 + $0x18c8] sm:$0xff]
        %v1135 = vld [vmem:[%s240 + $0x18d0] sm:$0xff]
        %v1136 = vld [vmem:[%s240 + $0x18d8] sm:$0xff]
        %v1137 = vld [vmem:[%s240 + $0x18e0] sm:$0xff]
        %v1138 = vld [vmem:[%s240 + $0x18e8] sm:$0xff]
        %v1139 = vld [vmem:[%s240 + $0x18f0] sm:$0xff]
        %v1140 = vld [vmem:[%s240 + $0x18f8] sm:$0xff]
        %v1141 = vld [vmem:[%s240 + $0x1900] sm:$0xff]
        %v1142 = vld [vmem:[%s240 + $0x1908] sm:$0xff]
        %v1143 = vld [vmem:[%s240 + $0x1910] sm:$0xff]
        %v1144 = vld [vmem:[%s240 + $0x1918] sm:$0xff]
        %v1145 = vld [vmem:[%s240 + $0x1920] sm:$0xff]
        %v1146 = vld [vmem:[%s240 + $0x1928] sm:$0xff]
        %v1147 = vld [vmem:[%s240 + $0x1930] sm:$0xff]
        %v1148 = vld [vmem:[%s240 + $0x1938] sm:$0xff]
        %v1149 = vld [vmem:[%s240 + $0x1940] sm:$0xff]
        %v1150 = vld [vmem:[%s240 + $0x1948] sm:$0xff]
        %v1151 = vld [vmem:[%s240 + $0x1950] sm:$0xff]
        %v1152 = vld [vmem:[%s240 + $0x1958] sm:$0xff]
        %v1153 = vld [vmem:[%s240 + $0x1960] sm:$0xff]
        %v1154 = vld [vmem:[%s240 + $0x1968] sm:$0xff]
        %v1155 = vld [vmem:[%s240 + $0x1970] sm:$0xff]
        %v1156 = vld [vmem:[%s240 + $0x1978] sm:$0xff]
        %v1157 = vld [vmem:[%s240 + $0x1980] sm:$0xff]
        %v1158 = vld [vmem:[%s240 + $0x1988] sm:$0xff]
        %v1159 = vld [vmem:[%s240 + $0x1990] sm:$0xff]
        %v1160 = vld [vmem:[%s240 + $0x1998] sm:$0xff]
        %v1161 = vld [vmem:[%s240 + $0x19a0] sm:$0xff]
        %v1162 = vld [vmem:[%s240 + $0x19a8] sm:$0xff]
        %v1163 = vld [vmem:[%s240 + $0x19b0] sm:$0xff]
        %v1164 = vld [vmem:[%s240 + $0x19b8] sm:$0xff]
        %v1165 = vld [vmem:[%s240 + $0x19c0] sm:$0xff]
        %v1166 = vld [vmem:[%s240 + $0x19c8] sm:$0xff]
        %v1167 = vld [vmem:[%s240 + $0x19d0] sm:$0xff]
        %v1168 = vld [vmem:[%s240 + $0x19d8] sm:$0xff]
        %v1169 = vld [vmem:[%s240 + $0x19e0] sm:$0xff]
        %v1170 = vld [vmem:[%s240 + $0x19e8] sm:$0xff]
        %v1171 = vld [vmem:[%s240 + $0x19f0] sm:$0xff]
        %v1172 = vld [vmem:[%s240 + $0x19f8] sm:$0xff]
        %v1173 = vld [vmem:[%s240 + $0x1a00] sm:$0xff]
        %v1174 = vld [vmem:[%s240 + $0x1a08] sm:$0xff]
        %v1175 = vld [vmem:[%s240 + $0x1a10] sm:$0xff]
        %v1176 = vld [vmem:[%s240 + $0x1a18] sm:$0xff]
        %v1177 = vld [vmem:[%s240 + $0x1a20] sm:$0xff]
        %v1178 = vld [vmem:[%s240 + $0x1a28] sm:$0xff]
        %v1179 = vld [vmem:[%s240 + $0x1a30] sm:$0xff]
        %v1180 = vld [vmem:[%s240 + $0x1a38] sm:$0xff]
        %v1181 = vld [vmem:[%s240 + $0x1a40] sm:$0xff]
        %v1182 = vld [vmem:[%s240 + $0x1a48] sm:$0xff]
        %v1183 = vld [vmem:[%s240 + $0x1a50] sm:$0xff]
        %v1184 = vld [vmem:[%s240 + $0x1a58] sm:$0xff]
        %v1185 = vld [vmem:[%s240 + $0x1a60] sm:$0xff]
        %v1186 = vld [vmem:[%s240 + $0x1a68] sm:$0xff]
        %v1187 = vld [vmem:[%s240 + $0x1a70] sm:$0xff]
        %v1188 = vld [vmem:[%s240 + $0x1a78] sm:$0xff]
        %v1189 = vld [vmem:[%s240 + $0x1a80] sm:$0xff]
        %v1190 = vld [vmem:[%s240 + $0x1a88] sm:$0xff]
        %v1191 = vld [vmem:[%s240 + $0x1a90] sm:$0xff]
        %v1192 = vld [vmem:[%s240 + $0x1a98] sm:$0xff]
        %v1193 = vld [vmem:[%s240 + $0x1aa0] sm:$0xff]
        %v1194 = vld [vmem:[%s240 + $0x1aa8] sm:$0xff]
        %v1195 = vld [vmem:[%s240 + $0x1ab0] sm:$0xff]
        %v1196 = vld [vmem:[%s240 + $0x1ab8] sm:$0xff]
        %v1197 = vld [vmem:[%s240 + $0x1ac0] sm:$0xff]
        %v1198 = vld [vmem:[%s240 + $0x1ac8] sm:$0xff]
        %v1199 = vld [vmem:[%s240 + $0x1ad0] sm:$0xff]
        %v1200 = vld [vmem:[%s240 + $0x1ad8] sm:$0xff]
        %v1201 = vld [vmem:[%s240 + $0x1ae0] sm:$0xff]
        %v1202 = vld [vmem:[%s240 + $0x1ae8] sm:$0xff]
        %v1203 = vld [vmem:[%s240 + $0x1af0] sm:$0xff]
        %v1204 = vld [vmem:[%s240 + $0x1af8] sm:$0xff]
        %v1205 = vld [vmem:[%s240 + $0x1b00] sm:$0xff]
        %v1206 = vld [vmem:[%s240 + $0x1b08] sm:$0xff]
        %v1207 = vld [vmem:[%s240 + $0x1b10] sm:$0xff]
        %v1208 = vld [vmem:[%s240 + $0x1b18] sm:$0xff]
        %v1209 = vld [vmem:[%s240 + $0x1b20] sm:$0xff]
        %v1210 = vld [vmem:[%s240 + $0x1b28] sm:$0xff]
        %v1211 = vld [vmem:[%s240 + $0x1b30] sm:$0xff]
        %v1212 = vld [vmem:[%s240 + $0x1b38] sm:$0xff]
        %v1213 = vld [vmem:[%s240 + $0x1b40] sm:$0xff]
        %v1214 = vld [vmem:[%s240 + $0x1b48] sm:$0xff]
        %v1215 = vld [vmem:[%s240 + $0x1b50] sm:$0xff]
        %v1216 = vld [vmem:[%s240 + $0x1b58] sm:$0xff]
        %v1217 = vld [vmem:[%s240 + $0x1b60] sm:$0xff]
        %v1218 = vld [vmem:[%s240 + $0x1b68] sm:$0xff]
        %v1219 = vld [vmem:[%s240 + $0x1b70] sm:$0xff]
        %v1220 = vld [vmem:[%s240 + $0x1b78] sm:$0xff]
        %v1221 = vld [vmem:[%s240 + $0x1b80] sm:$0xff]
        %v1222 = vld [vmem:[%s240 + $0x1b88] sm:$0xff]
        %v1223 = vld [vmem:[%s240 + $0x1b90] sm:$0xff]
        %v1224 = vld [vmem:[%s240 + $0x1b98] sm:$0xff]
        %v1225 = vld [vmem:[%s240 + $0x1ba0] sm:$0xff]
        %v1226 = vld [vmem:[%s240 + $0x1ba8] sm:$0xff]
        %v1227 = vld [vmem:[%s240 + $0x1bb0] sm:$0xff]
        %v1228 = vld [vmem:[%s240 + $0x1bb8] sm:$0xff]
        %v1229 = vld [vmem:[%s240 + $0x1bc0] sm:$0xff]
        %v1230 = vld [vmem:[%s240 + $0x1bc8] sm:$0xff]
        %v1231 = vld [vmem:[%s240 + $0x1bd0] sm:$0xff]
        %v1232 = vld [vmem:[%s240 + $0x1bd8] sm:$0xff]
        %v1233 = vld [vmem:[%s240 + $0x1be0] sm:$0xff]
        %v1234 = vld [vmem:[%s240 + $0x1be8] sm:$0xff]
        %v1235 = vld [vmem:[%s240 + $0x1bf0] sm:$0xff]
        %v1236 = vld [vmem:[%s240 + $0x1bf8] sm:$0xff]
        %v1237 = vld [vmem:[%s240 + $0x1c00] sm:$0xff]
        %v1238 = vld [vmem:[%s240 + $0x1c08] sm:$0xff]
        %v1239 = vld [vmem:[%s240 + $0x1c10] sm:$0xff]
        %v1240 = vld [vmem:[%s240 + $0x1c18] sm:$0xff]
        %v1241 = vld [vmem:[%s240 + $0x1c20] sm:$0xff]
        %v1242 = vld [vmem:[%s240 + $0x1c28] sm:$0xff]
        %v1243 = vld [vmem:[%s240 + $0x1c30] sm:$0xff]
        %v1244 = vld [vmem:[%s240 + $0x1c38] sm:$0xff]
        %v1245 = vld [vmem:[%s240 + $0x1c40] sm:$0xff]
        %v1246 = vld [vmem:[%s240 + $0x1c48] sm:$0xff]
        %v1247 = vld [vmem:[%s240 + $0x1c50] sm:$0xff]
        %v1248 = vld [vmem:[%s240 + $0x1c58] sm:$0xff]
        %v1249 = vld [vmem:[%s240 + $0x1c60] sm:$0xff]
        %v1250 = vld [vmem:[%s240 + $0x1c68] sm:$0xff]
        %v1251 = vld [vmem:[%s240 + $0x1c70] sm:$0xff]
        %v1252 = vld [vmem:[%s240 + $0x1c78] sm:$0xff]
        %v1253 = vld [vmem:[%s240 + $0x1c80] sm:$0xff]
        %v1254 = vld [vmem:[%s240 + $0x1c88] sm:$0xff]
        %v1255 = vld [vmem:[%s240 + $0x1c90] sm:$0xff]
        %v1256 = vld [vmem:[%s240 + $0x1c98] sm:$0xff]
        %v1257 = vld [vmem:[%s240 + $0x1ca0] sm:$0xff]
        %v1258 = vld [vmem:[%s240 + $0x1ca8] sm:$0xff]
        %v1259 = vld [vmem:[%s240 + $0x1cb0] sm:$0xff]
        %v1260 = vld [vmem:[%s240 + $0x1cb8] sm:$0xff]
        %v1261 = vld [vmem:[%s240 + $0x1cc0] sm:$0xff]
        %v1262 = vld [vmem:[%s240 + $0x1cc8] sm:$0xff]
        %v1263 = vld [vmem:[%s240 + $0x1cd0] sm:$0xff]
        %v1264 = vld [vmem:[%s240 + $0x1cd8] sm:$0xff]
        %v1265 = vld [vmem:[%s240 + $0x1ce0] sm:$0xff]
        %v1266 = vld [vmem:[%s240 + $0x1ce8] sm:$0xff]
        %v1267 = vld [vmem:[%s240 + $0x1cf0] sm:$0xff]
        %v1268 = vld [vmem:[%s240 + $0x1cf8] sm:$0xff]
        %v1269 = vld [vmem:[%s240 + $0x1d00] sm:$0xff]
        %v1270 = vld [vmem:[%s240 + $0x1d08] sm:$0xff]
        %v1271 = vld [vmem:[%s240 + $0x1d10] sm:$0xff]
        %v1272 = vld [vmem:[%s240 + $0x1d18] sm:$0xff]
        %v1273 = vld [vmem:[%s240 + $0x1d20] sm:$0xff]
        %v1274 = vld [vmem:[%s240 + $0x1d28] sm:$0xff]
        %v1275 = vld [vmem:[%s240 + $0x1d30] sm:$0xff]
        %v1276 = vld [vmem:[%s240 + $0x1d38] sm:$0xff]
        %v1277 = vld [vmem:[%s240 + $0x1d40] sm:$0xff]
        %v1278 = vld [vmem:[%s240 + $0x1d48] sm:$0xff]
        %v1279 = vld [vmem:[%s240 + $0x1d50] sm:$0xff]
        %v1280 = vld [vmem:[%s240 + $0x1d58] sm:$0xff]
        %v1281 = vld [vmem:[%s240 + $0x1d60] sm:$0xff]
        %v1282 = vld [vmem:[%s240 + $0x1d68] sm:$0xff]
        %v1283 = vld [vmem:[%s240 + $0x1d70] sm:$0xff]
        %v1284 = vld [vmem:[%s240 + $0x1d78] sm:$0xff]
        %v1285 = vld [vmem:[%s240 + $0x1d80] sm:$0xff]
        %v1286 = vld [vmem:[%s240 + $0x1d88] sm:$0xff]
        %v1287 = vld [vmem:[%s240 + $0x1d90] sm:$0xff]
        %v1288 = vld [vmem:[%s240 + $0x1d98] sm:$0xff]
        %v1289 = vld [vmem:[%s240 + $0x1da0] sm:$0xff]
        %v1290 = vld [vmem:[%s240 + $0x1da8] sm:$0xff]
        %v1291 = vld [vmem:[%s240 + $0x1db0] sm:$0xff]
        %v1292 = vld [vmem:[%s240 + $0x1db8] sm:$0xff]
        %v1293 = vld [vmem:[%s240 + $0x1dc0] sm:$0xff]
        %v1294 = vld [vmem:[%s240 + $0x1dc8] sm:$0xff]
        %v1295 = vld [vmem:[%s240 + $0x1dd0] sm:$0xff]
        %v1296 = vld [vmem:[%s240 + $0x1dd8] sm:$0xff]
        %v1297 = vld [vmem:[%s240 + $0x1de0] sm:$0xff]
        %v1298 = vld [vmem:[%s240 + $0x1de8] sm:$0xff]
        %v1299 = vld [vmem:[%s240 + $0x1df0] sm:$0xff]
        %v1300 = vld [vmem:[%s240 + $0x1df8] sm:$0xff]
        %v1301 = vld [vmem:[%s240 + $0x1e00] sm:$0xff]
        %v1302 = vld [vmem:[%s240 + $0x1e08] sm:$0xff]
        %v1303 = vld [vmem:[%s240 + $0x1e10] sm:$0xff]
        %v1304 = vld [vmem:[%s240 + $0x1e18] sm:$0xff]
        %v1305 = vld [vmem:[%s240 + $0x1e20] sm:$0xff]
        %v1306 = vld [vmem:[%s240 + $0x1e28] sm:$0xff]
        %v1307 = vld [vmem:[%s240 + $0x1e30] sm:$0xff]
        %v1308 = vld [vmem:[%s240 + $0x1e38] sm:$0xff]
        %v1309 = vld [vmem:[%s240 + $0x1e40] sm:$0xff]
        %v1310 = vld [vmem:[%s240 + $0x1e48] sm:$0xff]
        %v1311 = vld [vmem:[%s240 + $0x1e50] sm:$0xff]
        %v1312 = vld [vmem:[%s240 + $0x1e58] sm:$0xff]
        %v1313 = vld [vmem:[%s240 + $0x1e60] sm:$0xff]
        %v1314 = vld [vmem:[%s240 + $0x1e68] sm:$0xff]
        %v1315 = vld [vmem:[%s240 + $0x1e70] sm:$0xff]
        %v1316 = vld [vmem:[%s240 + $0x1e78] sm:$0xff]
        %v1317 = vld [vmem:[%s240 + $0x1e80] sm:$0xff]
        %v1318 = vld [vmem:[%s240 + $0x1e88] sm:$0xff]
        %v1319 = vld [vmem:[%s240 + $0x1e90] sm:$0xff]
        %v1320 = vld [vmem:[%s240 + $0x1e98] sm:$0xff]
        %v1321 = vld [vmem:[%s240 + $0x1ea0] sm:$0xff]
        %v1322 = vld [vmem:[%s240 + $0x1ea8] sm:$0xff]
        %v1323 = vld [vmem:[%s240 + $0x1eb0] sm:$0xff]
        %v1324 = vld [vmem:[%s240 + $0x1eb8] sm:$0xff]
        %v1325 = vld [vmem:[%s240 + $0x1ec0] sm:$0xff]
        %v1326 = vld [vmem:[%s240 + $0x1ec8] sm:$0xff]
        %v1327 = vld [vmem:[%s240 + $0x1ed0] sm:$0xff]
        %v1328 = vld [vmem:[%s240 + $0x1ed8] sm:$0xff]
        %v1329 = vld [vmem:[%s240 + $0x1ee0] sm:$0xff]
        %v1330 = vld [vmem:[%s240 + $0x1ee8] sm:$0xff]
        %v1331 = vld [vmem:[%s240 + $0x1ef0] sm:$0xff]
        %v1332 = vld [vmem:[%s240 + $0x1ef8] sm:$0xff]
        %v1333 = vld [vmem:[%s240 + $0x1f00] sm:$0xff]
        %v1334 = vld [vmem:[%s240 + $0x1f08] sm:$0xff]
        %v1335 = vld [vmem:[%s240 + $0x1f10] sm:$0xff]
        %v1336 = vld [vmem:[%s240 + $0x1f18] sm:$0xff]
        %v1337 = vld [vmem:[%s240 + $0x1f20] sm:$0xff]
        %v1338 = vld [vmem:[%s240 + $0x1f28] sm:$0xff]
        %v1339 = vld [vmem:[%s240 + $0x1f30] sm:$0xff]
        %v1340 = vld [vmem:[%s240 + $0x1f38] sm:$0xff]
        %v1341 = vld [vmem:[%s240 + $0x1f40] sm:$0xff]
        %v1342 = vld [vmem:[%s240 + $0x1f48] sm:$0xff]
        %v1343 = vld [vmem:[%s240 + $0x1f50] sm:$0xff]
        %v1344 = vld [vmem:[%s240 + $0x1f58] sm:$0xff]
        %v1345 = vld [vmem:[%s240 + $0x1f60] sm:$0xff]
        %v1346 = vld [vmem:[%s240 + $0x1f68] sm:$0xff]
        %v1347 = vld [vmem:[%s240 + $0x1f70] sm:$0xff]
        %v1348 = vld [vmem:[%s240 + $0x1f78] sm:$0xff]
        %v1349 = vld [vmem:[%s240 + $0x1f80] sm:$0xff]
        %v1350 = vld [vmem:[%s240 + $0x1f88] sm:$0xff]
        %v1351 = vld [vmem:[%s240 + $0x1f90] sm:$0xff]
        %v1352 = vld [vmem:[%s240 + $0x1f98] sm:$0xff]
        %v1353 = vld [vmem:[%s240 + $0x1fa0] sm:$0xff]
        %v1354 = vld [vmem:[%s240 + $0x1fa8] sm:$0xff]
        %v1355 = vld [vmem:[%s240 + $0x1fb0] sm:$0xff]
        %v1356 = vld [vmem:[%s240 + $0x1fb8] sm:$0xff]
        %v1357 = vld [vmem:[%s240 + $0x1fc0] sm:$0xff]
        %v1358 = vld [vmem:[%s240 + $0x1fc8] sm:$0xff]
        %v1359 = vld [vmem:[%s240 + $0x1fd0] sm:$0xff]
        %v1360 = vld [vmem:[%s240 + $0x1fd8] sm:$0xff]
        %v1361 = vld [vmem:[%s240 + $0x1fe0] sm:$0xff]
        %v1362 = vld [vmem:[%s240 + $0x1fe8] sm:$0xff]
        %v1363 = vld [vmem:[%s240 + $0x1ff0] sm:$0xff]
        %v1364 = vld [vmem:[%s240 + $0x1ff8] sm:$0xff]
        %v2389 = vunpack.c.l.b16 %v341
        %v2390 = vunpack.c.h.b16 %v341
        %v2391 = vunpack.c.l.b16 %v342
        %v2392 = vunpack.c.h.b16 %v342
        %v2393 = vunpack.c.l.b16 %v343
        %v2394 = vunpack.c.h.b16 %v343
        %v2395 = vunpack.c.l.b16 %v344
        %v2396 = vunpack.c.h.b16 %v344
        %v2397 = vunpack.c.l.b16 %v345
        %v2398 = vunpack.c.h.b16 %v345
        %v2399 = vunpack.c.l.b16 %v346
        %v2400 = vunpack.c.h.b16 %v346
        %v2401 = vunpack.c.l.b16 %v347
        %v2402 = vunpack.c.h.b16 %v347
        %v2403 = vunpack.c.l.b16 %v348
        %v2404 = vunpack.c.h.b16 %v348
        %v2405 = vunpack.c.l.b16 %v349
        %v2406 = vunpack.c.h.b16 %v349
        %v2407 = vunpack.c.l.b16 %v350
        %v2408 = vunpack.c.h.b16 %v350
        %v2409 = vunpack.c.l.b16 %v351
        %v2410 = vunpack.c.h.b16 %v351
        %v2411 = vunpack.c.l.b16 %v352
        %v2412 = vunpack.c.h.b16 %v352
        %v2413 = vunpack.c.l.b16 %v353
        %v2414 = vunpack.c.h.b16 %v353
        %v2415 = vunpack.c.l.b16 %v354
        %v2416 = vunpack.c.h.b16 %v354
        %v2417 = vunpack.c.l.b16 %v355
        %v2418 = vunpack.c.h.b16 %v355
        %v2419 = vunpack.c.l.b16 %v356
        %v2420 = vunpack.c.h.b16 %v356
        %v2421 = vunpack.c.l.b16 %v357
        %v2422 = vunpack.c.h.b16 %v357
        %v2423 = vunpack.c.l.b16 %v358
        %v2424 = vunpack.c.h.b16 %v358
        %v2425 = vunpack.c.l.b16 %v359
        %v2426 = vunpack.c.h.b16 %v359
        %v2427 = vunpack.c.l.b16 %v360
        %v2428 = vunpack.c.h.b16 %v360
        %v2429 = vunpack.c.l.b16 %v361
        %v2430 = vunpack.c.h.b16 %v361
        %v2431 = vunpack.c.l.b16 %v362
        %v2432 = vunpack.c.h.b16 %v362
        %v2433 = vunpack.c.l.b16 %v363
        %v2434 = vunpack.c.h.b16 %v363
        %v2435 = vunpack.c.l.b16 %v364
        %v2436 = vunpack.c.h.b16 %v364
        %v2437 = vunpack.c.l.b16 %v365
        %v2438 = vunpack.c.h.b16 %v365
        %v2439 = vunpack.c.l.b16 %v366
        %v2440 = vunpack.c.h.b16 %v366
        %v2441 = vunpack.c.l.b16 %v367
        %v2442 = vunpack.c.h.b16 %v367
        %v2443 = vunpack.c.l.b16 %v368
        %v2444 = vunpack.c.h.b16 %v368
        %v2445 = vunpack.c.l.b16 %v369
        %v2446 = vunpack.c.h.b16 %v369
        %v2447 = vunpack.c.l.b16 %v370
        %v2448 = vunpack.c.h.b16 %v370
        %v2449 = vunpack.c.l.b16 %v371
        %v2450 = vunpack.c.h.b16 %v371
        %v2451 = vunpack.c.l.b16 %v372
        %v2452 = vunpack.c.h.b16 %v372
        %v2453 = vunpack.c.l.b16 %v373
        %v2454 = vunpack.c.h.b16 %v373
        %v2455 = vunpack.c.l.b16 %v374
        %v2456 = vunpack.c.h.b16 %v374
        %v2457 = vunpack.c.l.b16 %v375
        %v2458 = vunpack.c.h.b16 %v375
        %v2459 = vunpack.c.l.b16 %v376
        %v2460 = vunpack.c.h.b16 %v376
        %v2461 = vunpack.c.l.b16 %v377
        %v2462 = vunpack.c.h.b16 %v377
        %v2463 = vunpack.c.l.b16 %v378
        %v2464 = vunpack.c.h.b16 %v378
        %v2465 = vunpack.c.l.b16 %v379
        %v2466 = vunpack.c.h.b16 %v379
        %v2467 = vunpack.c.l.b16 %v380
        %v2468 = vunpack.c.h.b16 %v380
        %v2469 = vunpack.c.l.b16 %v381
        %v2470 = vunpack.c.h.b16 %v381
        %v2471 = vunpack.c.l.b16 %v382
        %v2472 = vunpack.c.h.b16 %v382
        %v2473 = vunpack.c.l.b16 %v383
        %v2474 = vunpack.c.h.b16 %v383
        %v2475 = vunpack.c.l.b16 %v384
        %v2476 = vunpack.c.h.b16 %v384
        %v2477 = vunpack.c.l.b16 %v385
        %v2478 = vunpack.c.h.b16 %v385
        %v2479 = vunpack.c.l.b16 %v386
        %v2480 = vunpack.c.h.b16 %v386
        %v2481 = vunpack.c.l.b16 %v387
        %v2482 = vunpack.c.h.b16 %v387
        %v2483 = vunpack.c.l.b16 %v388
        %v2484 = vunpack.c.h.b16 %v388
        %v2485 = vunpack.c.l.b16 %v389
        %v2486 = vunpack.c.h.b16 %v389
        %v2487 = vunpack.c.l.b16 %v390
        %v2488 = vunpack.c.h.b16 %v390
        %v2489 = vunpack.c.l.b16 %v391
        %v2490 = vunpack.c.h.b16 %v391
        %v2491 = vunpack.c.l.b16 %v392
        %v2492 = vunpack.c.h.b16 %v392
        %v2493 = vunpack.c.l.b16 %v393
        %v2494 = vunpack.c.h.b16 %v393
        %v2495 = vunpack.c.l.b16 %v394
        %v2496 = vunpack.c.h.b16 %v394
        %v2497 = vunpack.c.l.b16 %v395
        %v2498 = vunpack.c.h.b16 %v395
        %v2499 = vunpack.c.l.b16 %v396
        %v2500 = vunpack.c.h.b16 %v396
        %v2501 = vunpack.c.l.b16 %v397
        %v2502 = vunpack.c.h.b16 %v397
        %v2503 = vunpack.c.l.b16 %v398
        %v2504 = vunpack.c.h.b16 %v398
        %v2505 = vunpack.c.l.b16 %v399
        %v2506 = vunpack.c.h.b16 %v399
        %v2507 = vunpack.c.l.b16 %v400
        %v2508 = vunpack.c.h.b16 %v400
        %v2509 = vunpack.c.l.b16 %v401
        %v2510 = vunpack.c.h.b16 %v401
        %v2511 = vunpack.c.l.b16 %v402
        %v2512 = vunpack.c.h.b16 %v402
        %v2513 = vunpack.c.l.b16 %v403
        %v2514 = vunpack.c.h.b16 %v403
        %v2515 = vunpack.c.l.b16 %v404
        %v2516 = vunpack.c.h.b16 %v404
        %v2517 = vunpack.c.l.b16 %v405
        %v2518 = vunpack.c.h.b16 %v405
        %v2519 = vunpack.c.l.b16 %v406
        %v2520 = vunpack.c.h.b16 %v406
        %v2521 = vunpack.c.l.b16 %v407
        %v2522 = vunpack.c.h.b16 %v407
        %v2523 = vunpack.c.l.b16 %v408
        %v2524 = vunpack.c.h.b16 %v408
        %v2525 = vunpack.c.l.b16 %v409
        %v2526 = vunpack.c.h.b16 %v409
        %v2527 = vunpack.c.l.b16 %v410
        %v2528 = vunpack.c.h.b16 %v410
        %v2529 = vunpack.c.l.b16 %v411
        %v2530 = vunpack.c.h.b16 %v411
        %v2531 = vunpack.c.l.b16 %v412
        %v2532 = vunpack.c.h.b16 %v412
        %v2533 = vunpack.c.l.b16 %v413
        %v2534 = vunpack.c.h.b16 %v413
        %v2535 = vunpack.c.l.b16 %v414
        %v2536 = vunpack.c.h.b16 %v414
        %v2537 = vunpack.c.l.b16 %v415
        %v2538 = vunpack.c.h.b16 %v415
        %v2539 = vunpack.c.l.b16 %v416
        %v2540 = vunpack.c.h.b16 %v416
        %v2541 = vunpack.c.l.b16 %v417
        %v2542 = vunpack.c.h.b16 %v417
        %v2543 = vunpack.c.l.b16 %v418
        %v2544 = vunpack.c.h.b16 %v418
        %v2545 = vunpack.c.l.b16 %v419
        %v2546 = vunpack.c.h.b16 %v419
        %v2547 = vunpack.c.l.b16 %v420
        %v2548 = vunpack.c.h.b16 %v420
        %v2549 = vunpack.c.l.b16 %v421
        %v2550 = vunpack.c.h.b16 %v421
        %v2551 = vunpack.c.l.b16 %v422
        %v2552 = vunpack.c.h.b16 %v422
        %v2553 = vunpack.c.l.b16 %v423
        %v2554 = vunpack.c.h.b16 %v423
        %v2555 = vunpack.c.l.b16 %v424
        %v2556 = vunpack.c.h.b16 %v424
        %v2557 = vunpack.c.l.b16 %v425
        %v2558 = vunpack.c.h.b16 %v425
        %v2559 = vunpack.c.l.b16 %v426
        %v2560 = vunpack.c.h.b16 %v426
        %v2561 = vunpack.c.l.b16 %v427
        %v2562 = vunpack.c.h.b16 %v427
        %v2563 = vunpack.c.l.b16 %v428
        %v2564 = vunpack.c.h.b16 %v428
        %v2565 = vunpack.c.l.b16 %v429
        %v2566 = vunpack.c.h.b16 %v429
        %v2567 = vunpack.c.l.b16 %v430
        %v2568 = vunpack.c.h.b16 %v430
        %v2569 = vunpack.c.l.b16 %v431
        %v2570 = vunpack.c.h.b16 %v431
        %v2571 = vunpack.c.l.b16 %v432
        %v2572 = vunpack.c.h.b16 %v432
        %v2573 = vunpack.c.l.b16 %v433
        %v2574 = vunpack.c.h.b16 %v433
        %v2575 = vunpack.c.l.b16 %v434
        %v2576 = vunpack.c.h.b16 %v434
        %v2577 = vunpack.c.l.b16 %v435
        %v2578 = vunpack.c.h.b16 %v435
        %v2579 = vunpack.c.l.b16 %v436
        %v2580 = vunpack.c.h.b16 %v436
        %v2581 = vunpack.c.l.b16 %v437
        %v2582 = vunpack.c.h.b16 %v437
        %v2583 = vunpack.c.l.b16 %v438
        %v2584 = vunpack.c.h.b16 %v438
        %v2585 = vunpack.c.l.b16 %v439
        %v2586 = vunpack.c.h.b16 %v439
        %v2587 = vunpack.c.l.b16 %v440
        %v2588 = vunpack.c.h.b16 %v440
        %v2589 = vunpack.c.l.b16 %v441
        %v2590 = vunpack.c.h.b16 %v441
        %v2591 = vunpack.c.l.b16 %v442
        %v2592 = vunpack.c.h.b16 %v442
        %v2593 = vunpack.c.l.b16 %v443
        %v2594 = vunpack.c.h.b16 %v443
        %v2595 = vunpack.c.l.b16 %v444
        %v2596 = vunpack.c.h.b16 %v444
        %v2597 = vunpack.c.l.b16 %v445
        %v2598 = vunpack.c.h.b16 %v445
        %v2599 = vunpack.c.l.b16 %v446
        %v2600 = vunpack.c.h.b16 %v446
        %v2601 = vunpack.c.l.b16 %v447
        %v2602 = vunpack.c.h.b16 %v447
        %v2603 = vunpack.c.l.b16 %v448
        %v2604 = vunpack.c.h.b16 %v448
        %v2605 = vunpack.c.l.b16 %v449
        %v2606 = vunpack.c.h.b16 %v449
        %v2607 = vunpack.c.l.b16 %v450
        %v2608 = vunpack.c.h.b16 %v450
        %v2609 = vunpack.c.l.b16 %v451
        %v2610 = vunpack.c.h.b16 %v451
        %v2611 = vunpack.c.l.b16 %v452
        %v2612 = vunpack.c.h.b16 %v452
        %v2613 = vunpack.c.l.b16 %v453
        %v2614 = vunpack.c.h.b16 %v453
        %v2615 = vunpack.c.l.b16 %v454
        %v2616 = vunpack.c.h.b16 %v454
        %v2617 = vunpack.c.l.b16 %v455
        %v2618 = vunpack.c.h.b16 %v455
        %v2619 = vunpack.c.l.b16 %v456
        %v2620 = vunpack.c.h.b16 %v456
        %v2621 = vunpack.c.l.b16 %v457
        %v2622 = vunpack.c.h.b16 %v457
        %v2623 = vunpack.c.l.b16 %v458
        %v2624 = vunpack.c.h.b16 %v458
        %v2625 = vunpack.c.l.b16 %v459
        %v2626 = vunpack.c.h.b16 %v459
        %v2627 = vunpack.c.l.b16 %v460
        %v2628 = vunpack.c.h.b16 %v460
        %v2629 = vunpack.c.l.b16 %v461
        %v2630 = vunpack.c.h.b16 %v461
        %v2631 = vunpack.c.l.b16 %v462
        %v2632 = vunpack.c.h.b16 %v462
        %v2633 = vunpack.c.l.b16 %v463
        %v2634 = vunpack.c.h.b16 %v463
        %v2635 = vunpack.c.l.b16 %v464
        %v2636 = vunpack.c.h.b16 %v464
        %v2637 = vunpack.c.l.b16 %v465
        %v2638 = vunpack.c.h.b16 %v465
        %v2639 = vunpack.c.l.b16 %v466
        %v2640 = vunpack.c.h.b16 %v466
        %v2641 = vunpack.c.l.b16 %v467
        %v2642 = vunpack.c.h.b16 %v467
        %v2643 = vunpack.c.l.b16 %v468
        %v2644 = vunpack.c.h.b16 %v468
        %v2645 = vunpack.c.l.b16 %v469
        %v2646 = vunpack.c.h.b16 %v469
        %v2647 = vunpack.c.l.b16 %v470
        %v2648 = vunpack.c.h.b16 %v470
        %v2649 = vunpack.c.l.b16 %v471
        %v2650 = vunpack.c.h.b16 %v471
        %v2651 = vunpack.c.l.b16 %v472
        %v2652 = vunpack.c.h.b16 %v472
        %v2653 = vunpack.c.l.b16 %v473
        %v2654 = vunpack.c.h.b16 %v473
        %v2655 = vunpack.c.l.b16 %v474
        %v2656 = vunpack.c.h.b16 %v474
        %v2657 = vunpack.c.l.b16 %v475
        %v2658 = vunpack.c.h.b16 %v475
        %v2659 = vunpack.c.l.b16 %v476
        %v2660 = vunpack.c.h.b16 %v476
        %v2661 = vunpack.c.l.b16 %v477
        %v2662 = vunpack.c.h.b16 %v477
        %v2663 = vunpack.c.l.b16 %v478
        %v2664 = vunpack.c.h.b16 %v478
        %v2665 = vunpack.c.l.b16 %v479
        %v2666 = vunpack.c.h.b16 %v479
        %v2667 = vunpack.c.l.b16 %v480
        %v2668 = vunpack.c.h.b16 %v480
        %v2669 = vunpack.c.l.b16 %v481
        %v2670 = vunpack.c.h.b16 %v481
        %v2671 = vunpack.c.l.b16 %v482
        %v2672 = vunpack.c.h.b16 %v482
        %v2673 = vunpack.c.l.b16 %v483
        %v2674 = vunpack.c.h.b16 %v483
        %v2675 = vunpack.c.l.b16 %v484
        %v2676 = vunpack.c.h.b16 %v484
        %v2677 = vunpack.c.l.b16 %v485
        %v2678 = vunpack.c.h.b16 %v485
        %v2679 = vunpack.c.l.b16 %v486
        %v2680 = vunpack.c.h.b16 %v486
        %v2681 = vunpack.c.l.b16 %v487
        %v2682 = vunpack.c.h.b16 %v487
        %v2683 = vunpack.c.l.b16 %v488
        %v2684 = vunpack.c.h.b16 %v488
        %v2685 = vunpack.c.l.b16 %v489
        %v2686 = vunpack.c.h.b16 %v489
        %v2687 = vunpack.c.l.b16 %v490
        %v2688 = vunpack.c.h.b16 %v490
        %v2689 = vunpack.c.l.b16 %v491
        %v2690 = vunpack.c.h.b16 %v491
        %v2691 = vunpack.c.l.b16 %v492
        %v2692 = vunpack.c.h.b16 %v492
        %v2693 = vunpack.c.l.b16 %v493
        %v2694 = vunpack.c.h.b16 %v493
        %v2695 = vunpack.c.l.b16 %v494
        %v2696 = vunpack.c.h.b16 %v494
        %v2697 = vunpack.c.l.b16 %v495
        %v2698 = vunpack.c.h.b16 %v495
        %v2699 = vunpack.c.l.b16 %v496
        %v2700 = vunpack.c.h.b16 %v496
        %v2701 = vunpack.c.l.b16 %v497
        %v2702 = vunpack.c.h.b16 %v497
        %v2703 = vunpack.c.l.b16 %v498
        %v2704 = vunpack.c.h.b16 %v498
        %v2705 = vunpack.c.l.b16 %v499
        %v2706 = vunpack.c.h.b16 %v499
        %v2707 = vunpack.c.l.b16 %v500
        %v2708 = vunpack.c.h.b16 %v500
        %v2709 = vunpack.c.l.b16 %v501
        %v2710 = vunpack.c.h.b16 %v501
        %v2711 = vunpack.c.l.b16 %v502
        %v2712 = vunpack.c.h.b16 %v502
        %v2713 = vunpack.c.l.b16 %v503
        %v2714 = vunpack.c.h.b16 %v503
        %v2715 = vunpack.c.l.b16 %v504
        %v2716 = vunpack.c.h.b16 %v504
        %v2717 = vunpack.c.l.b16 %v505
        %v2718 = vunpack.c.h.b16 %v505
        %v2719 = vunpack.c.l.b16 %v506
        %v2720 = vunpack.c.h.b16 %v506
        %v2721 = vunpack.c.l.b16 %v507
        %v2722 = vunpack.c.h.b16 %v507
        %v2723 = vunpack.c.l.b16 %v508
        %v2724 = vunpack.c.h.b16 %v508
        %v2725 = vunpack.c.l.b16 %v509
        %v2726 = vunpack.c.h.b16 %v509
        %v2727 = vunpack.c.l.b16 %v510
        %v2728 = vunpack.c.h.b16 %v510
        %v2729 = vunpack.c.l.b16 %v511
        %v2730 = vunpack.c.h.b16 %v511
        %v2731 = vunpack.c.l.b16 %v512
        %v2732 = vunpack.c.h.b16 %v512
        %v2733 = vunpack.c.l.b16 %v513
        %v2734 = vunpack.c.h.b16 %v513
        %v2735 = vunpack.c.l.b16 %v514
        %v2736 = vunpack.c.h.b16 %v514
        %v2737 = vunpack.c.l.b16 %v515
        %v2738 = vunpack.c.h.b16 %v515
        %v2739 = vunpack.c.l.b16 %v516
        %v2740 = vunpack.c.h.b16 %v516
        %v2741 = vunpack.c.l.b16 %v517
        %v2742 = vunpack.c.h.b16 %v517
        %v2743 = vunpack.c.l.b16 %v518
        %v2744 = vunpack.c.h.b16 %v518
        %v2745 = vunpack.c.l.b16 %v519
        %v2746 = vunpack.c.h.b16 %v519
        %v2747 = vunpack.c.l.b16 %v520
        %v2748 = vunpack.c.h.b16 %v520
        %v2749 = vunpack.c.l.b16 %v521
        %v2750 = vunpack.c.h.b16 %v521
        %v2751 = vunpack.c.l.b16 %v522
        %v2752 = vunpack.c.h.b16 %v522
        %v2753 = vunpack.c.l.b16 %v523
        %v2754 = vunpack.c.h.b16 %v523
        %v2755 = vunpack.c.l.b16 %v524
        %v2756 = vunpack.c.h.b16 %v524
        %v2757 = vunpack.c.l.b16 %v525
        %v2758 = vunpack.c.h.b16 %v525
        %v2759 = vunpack.c.l.b16 %v526
        %v2760 = vunpack.c.h.b16 %v526
        %v2761 = vunpack.c.l.b16 %v527
        %v2762 = vunpack.c.h.b16 %v527
        %v2763 = vunpack.c.l.b16 %v528
        %v2764 = vunpack.c.h.b16 %v528
        %v2765 = vunpack.c.l.b16 %v529
        %v2766 = vunpack.c.h.b16 %v529
        %v2767 = vunpack.c.l.b16 %v530
        %v2768 = vunpack.c.h.b16 %v530
        %v2769 = vunpack.c.l.b16 %v531
        %v2770 = vunpack.c.h.b16 %v531
        %v2771 = vunpack.c.l.b16 %v532
        %v2772 = vunpack.c.h.b16 %v532
        %v2773 = vunpack.c.l.b16 %v533
        %v2774 = vunpack.c.h.b16 %v533
        %v2775 = vunpack.c.l.b16 %v534
        %v2776 = vunpack.c.h.b16 %v534
        %v2777 = vunpack.c.l.b16 %v535
        %v2778 = vunpack.c.h.b16 %v535
        %v2779 = vunpack.c.l.b16 %v536
        %v2780 = vunpack.c.h.b16 %v536
        %v2781 = vunpack.c.l.b16 %v537
        %v2782 = vunpack.c.h.b16 %v537
        %v2783 = vunpack.c.l.b16 %v538
        %v2784 = vunpack.c.h.b16 %v538
        %v2785 = vunpack.c.l.b16 %v539
        %v2786 = vunpack.c.h.b16 %v539
        %v2787 = vunpack.c.l.b16 %v540
        %v2788 = vunpack.c.h.b16 %v540
        %v2789 = vunpack.c.l.b16 %v541
        %v2790 = vunpack.c.h.b16 %v541
        %v2791 = vunpack.c.l.b16 %v542
        %v2792 = vunpack.c.h.b16 %v542
        %v2793 = vunpack.c.l.b16 %v543
        %v2794 = vunpack.c.h.b16 %v543
        %v2795 = vunpack.c.l.b16 %v544
        %v2796 = vunpack.c.h.b16 %v544
        %v2797 = vunpack.c.l.b16 %v545
        %v2798 = vunpack.c.h.b16 %v545
        %v2799 = vunpack.c.l.b16 %v546
        %v2800 = vunpack.c.h.b16 %v546
        %v2801 = vunpack.c.l.b16 %v547
        %v2802 = vunpack.c.h.b16 %v547
        %v2803 = vunpack.c.l.b16 %v548
        %v2804 = vunpack.c.h.b16 %v548
        %v2805 = vunpack.c.l.b16 %v549
        %v2806 = vunpack.c.h.b16 %v549
        %v2807 = vunpack.c.l.b16 %v550
        %v2808 = vunpack.c.h.b16 %v550
        %v2809 = vunpack.c.l.b16 %v551
        %v2810 = vunpack.c.h.b16 %v551
        %v2811 = vunpack.c.l.b16 %v552
        %v2812 = vunpack.c.h.b16 %v552
        %v2813 = vunpack.c.l.b16 %v553
        %v2814 = vunpack.c.h.b16 %v553
        %v2815 = vunpack.c.l.b16 %v554
        %v2816 = vunpack.c.h.b16 %v554
        %v2817 = vunpack.c.l.b16 %v555
        %v2818 = vunpack.c.h.b16 %v555
        %v2819 = vunpack.c.l.b16 %v556
        %v2820 = vunpack.c.h.b16 %v556
        %v2821 = vunpack.c.l.b16 %v557
        %v2822 = vunpack.c.h.b16 %v557
        %v2823 = vunpack.c.l.b16 %v558
        %v2824 = vunpack.c.h.b16 %v558
        %v2825 = vunpack.c.l.b16 %v559
        %v2826 = vunpack.c.h.b16 %v559
        %v2827 = vunpack.c.l.b16 %v560
        %v2828 = vunpack.c.h.b16 %v560
        %v2829 = vunpack.c.l.b16 %v561
        %v2830 = vunpack.c.h.b16 %v561
        %v2831 = vunpack.c.l.b16 %v562
        %v2832 = vunpack.c.h.b16 %v562
        %v2833 = vunpack.c.l.b16 %v563
        %v2834 = vunpack.c.h.b16 %v563
        %v2835 = vunpack.c.l.b16 %v564
        %v2836 = vunpack.c.h.b16 %v564
        %v2837 = vunpack.c.l.b16 %v565
        %v2838 = vunpack.c.h.b16 %v565
        %v2839 = vunpack.c.l.b16 %v566
        %v2840 = vunpack.c.h.b16 %v566
        %v2841 = vunpack.c.l.b16 %v567
        %v2842 = vunpack.c.h.b16 %v567
        %v2843 = vunpack.c.l.b16 %v568
        %v2844 = vunpack.c.h.b16 %v568
        %v2845 = vunpack.c.l.b16 %v569
        %v2846 = vunpack.c.h.b16 %v569
        %v2847 = vunpack.c.l.b16 %v570
        %v2848 = vunpack.c.h.b16 %v570
        %v2849 = vunpack.c.l.b16 %v571
        %v2850 = vunpack.c.h.b16 %v571
        %v2851 = vunpack.c.l.b16 %v572
        %v2852 = vunpack.c.h.b16 %v572
        %v2853 = vunpack.c.l.b16 %v573
        %v2854 = vunpack.c.h.b16 %v573
        %v2855 = vunpack.c.l.b16 %v574
        %v2856 = vunpack.c.h.b16 %v574
        %v2857 = vunpack.c.l.b16 %v575
        %v2858 = vunpack.c.h.b16 %v575
        %v2859 = vunpack.c.l.b16 %v576
        %v2860 = vunpack.c.h.b16 %v576
        %v2861 = vunpack.c.l.b16 %v577
        %v2862 = vunpack.c.h.b16 %v577
        %v2863 = vunpack.c.l.b16 %v578
        %v2864 = vunpack.c.h.b16 %v578
        %v2865 = vunpack.c.l.b16 %v579
        %v2866 = vunpack.c.h.b16 %v579
        %v2867 = vunpack.c.l.b16 %v580
        %v2868 = vunpack.c.h.b16 %v580
        %v2869 = vunpack.c.l.b16 %v581
        %v2870 = vunpack.c.h.b16 %v581
        %v2871 = vunpack.c.l.b16 %v582
        %v2872 = vunpack.c.h.b16 %v582
        %v2873 = vunpack.c.l.b16 %v583
        %v2874 = vunpack.c.h.b16 %v583
        %v2875 = vunpack.c.l.b16 %v584
        %v2876 = vunpack.c.h.b16 %v584
        %v2877 = vunpack.c.l.b16 %v585
        %v2878 = vunpack.c.h.b16 %v585
        %v2879 = vunpack.c.l.b16 %v586
        %v2880 = vunpack.c.h.b16 %v586
        %v2881 = vunpack.c.l.b16 %v587
        %v2882 = vunpack.c.h.b16 %v587
        %v2883 = vunpack.c.l.b16 %v588
        %v2884 = vunpack.c.h.b16 %v588
        %v2885 = vunpack.c.l.b16 %v589
        %v2886 = vunpack.c.h.b16 %v589
        %v2887 = vunpack.c.l.b16 %v590
        %v2888 = vunpack.c.h.b16 %v590
        %v2889 = vunpack.c.l.b16 %v591
        %v2890 = vunpack.c.h.b16 %v591
        %v2891 = vunpack.c.l.b16 %v592
        %v2892 = vunpack.c.h.b16 %v592
        %v2893 = vunpack.c.l.b16 %v593
        %v2894 = vunpack.c.h.b16 %v593
        %v2895 = vunpack.c.l.b16 %v594
        %v2896 = vunpack.c.h.b16 %v594
        %v2897 = vunpack.c.l.b16 %v595
        %v2898 = vunpack.c.h.b16 %v595
        %v2899 = vunpack.c.l.b16 %v596
        %v2900 = vunpack.c.h.b16 %v596
        %v2901 = vunpack.c.l.b16 %v597
        %v2902 = vunpack.c.h.b16 %v597
        %v2903 = vunpack.c.l.b16 %v598
        %v2904 = vunpack.c.h.b16 %v598
        %v2905 = vunpack.c.l.b16 %v599
        %v2906 = vunpack.c.h.b16 %v599
        %v2907 = vunpack.c.l.b16 %v600
        %v2908 = vunpack.c.h.b16 %v600
        %v2909 = vunpack.c.l.b16 %v601
        %v2910 = vunpack.c.h.b16 %v601
        %v2911 = vunpack.c.l.b16 %v602
        %v2912 = vunpack.c.h.b16 %v602
        %v2913 = vunpack.c.l.b16 %v603
        %v2914 = vunpack.c.h.b16 %v603
        %v2915 = vunpack.c.l.b16 %v604
        %v2916 = vunpack.c.h.b16 %v604
        %v2917 = vunpack.c.l.b16 %v605
        %v2918 = vunpack.c.h.b16 %v605
        %v2919 = vunpack.c.l.b16 %v606
        %v2920 = vunpack.c.h.b16 %v606
        %v2921 = vunpack.c.l.b16 %v607
        %v2922 = vunpack.c.h.b16 %v607
        %v2923 = vunpack.c.l.b16 %v608
        %v2924 = vunpack.c.h.b16 %v608
        %v2925 = vunpack.c.l.b16 %v609
        %v2926 = vunpack.c.h.b16 %v609
        %v2927 = vunpack.c.l.b16 %v610
        %v2928 = vunpack.c.h.b16 %v610
        %v2929 = vunpack.c.l.b16 %v611
        %v2930 = vunpack.c.h.b16 %v611
        %v2931 = vunpack.c.l.b16 %v612
        %v2932 = vunpack.c.h.b16 %v612
        %v2933 = vunpack.c.l.b16 %v613
        %v2934 = vunpack.c.h.b16 %v613
        %v2935 = vunpack.c.l.b16 %v614
        %v2936 = vunpack.c.h.b16 %v614
        %v2937 = vunpack.c.l.b16 %v615
        %v2938 = vunpack.c.h.b16 %v615
        %v2939 = vunpack.c.l.b16 %v616
        %v2940 = vunpack.c.h.b16 %v616
        %v2941 = vunpack.c.l.b16 %v617
        %v2942 = vunpack.c.h.b16 %v617
        %v2943 = vunpack.c.l.b16 %v618
        %v2944 = vunpack.c.h.b16 %v618
        %v2945 = vunpack.c.l.b16 %v619
        %v2946 = vunpack.c.h.b16 %v619
        %v2947 = vunpack.c.l.b16 %v620
        %v2948 = vunpack.c.h.b16 %v620
        %v2949 = vunpack.c.l.b16 %v621
        %v2950 = vunpack.c.h.b16 %v621
        %v2951 = vunpack.c.l.b16 %v622
        %v2952 = vunpack.c.h.b16 %v622
        %v2953 = vunpack.c.l.b16 %v623
        %v2954 = vunpack.c.h.b16 %v623
        %v2955 = vunpack.c.l.b16 %v624
        %v2956 = vunpack.c.h.b16 %v624
        %v2957 = vunpack.c.l.b16 %v625
        %v2958 = vunpack.c.h.b16 %v625
        %v2959 = vunpack.c.l.b16 %v626
        %v2960 = vunpack.c.h.b16 %v626
        %v2961 = vunpack.c.l.b16 %v627
        %v2962 = vunpack.c.h.b16 %v627
        %v2963 = vunpack.c.l.b16 %v628
        %v2964 = vunpack.c.h.b16 %v628
        %v2965 = vunpack.c.l.b16 %v629
        %v2966 = vunpack.c.h.b16 %v629
        %v2967 = vunpack.c.l.b16 %v630
        %v2968 = vunpack.c.h.b16 %v630
        %v2969 = vunpack.c.l.b16 %v631
        %v2970 = vunpack.c.h.b16 %v631
        %v2971 = vunpack.c.l.b16 %v632
        %v2972 = vunpack.c.h.b16 %v632
        %v2973 = vunpack.c.l.b16 %v633
        %v2974 = vunpack.c.h.b16 %v633
        %v2975 = vunpack.c.l.b16 %v634
        %v2976 = vunpack.c.h.b16 %v634
        %v2977 = vunpack.c.l.b16 %v635
        %v2978 = vunpack.c.h.b16 %v635
        %v2979 = vunpack.c.l.b16 %v636
        %v2980 = vunpack.c.h.b16 %v636
        %v2981 = vunpack.c.l.b16 %v637
        %v2982 = vunpack.c.h.b16 %v637
        %v2983 = vunpack.c.l.b16 %v638
        %v2984 = vunpack.c.h.b16 %v638
        %v2985 = vunpack.c.l.b16 %v639
        %v2986 = vunpack.c.h.b16 %v639
        %v2987 = vunpack.c.l.b16 %v640
        %v2988 = vunpack.c.h.b16 %v640
        %v2989 = vunpack.c.l.b16 %v641
        %v2990 = vunpack.c.h.b16 %v641
        %v2991 = vunpack.c.l.b16 %v642
        %v2992 = vunpack.c.h.b16 %v642
        %v2993 = vunpack.c.l.b16 %v643
        %v2994 = vunpack.c.h.b16 %v643
        %v2995 = vunpack.c.l.b16 %v644
        %v2996 = vunpack.c.h.b16 %v644
        %v2997 = vunpack.c.l.b16 %v645
        %v2998 = vunpack.c.h.b16 %v645
        %v2999 = vunpack.c.l.b16 %v646
        %v3000 = vunpack.c.h.b16 %v646
        %v3001 = vunpack.c.l.b16 %v647
        %v3002 = vunpack.c.h.b16 %v647
        %v3003 = vunpack.c.l.b16 %v648
        %v3004 = vunpack.c.h.b16 %v648
        %v3005 = vunpack.c.l.b16 %v649
        %v3006 = vunpack.c.h.b16 %v649
        %v3007 = vunpack.c.l.b16 %v650
        %v3008 = vunpack.c.h.b16 %v650
        %v3009 = vunpack.c.l.b16 %v651
        %v3010 = vunpack.c.h.b16 %v651
        %v3011 = vunpack.c.l.b16 %v652
        %v3012 = vunpack.c.h.b16 %v652
        %v3013 = vunpack.c.l.b16 %v653
        %v3014 = vunpack.c.h.b16 %v653
        %v3015 = vunpack.c.l.b16 %v654
        %v3016 = vunpack.c.h.b16 %v654
        %v3017 = vunpack.c.l.b16 %v655
        %v3018 = vunpack.c.h.b16 %v655
        %v3019 = vunpack.c.l.b16 %v656
        %v3020 = vunpack.c.h.b16 %v656
        %v3021 = vunpack.c.l.b16 %v657
        %v3022 = vunpack.c.h.b16 %v657
        %v3023 = vunpack.c.l.b16 %v658
        %v3024 = vunpack.c.h.b16 %v658
        %v3025 = vunpack.c.l.b16 %v659
        %v3026 = vunpack.c.h.b16 %v659
        %v3027 = vunpack.c.l.b16 %v660
        %v3028 = vunpack.c.h.b16 %v660
        %v3029 = vunpack.c.l.b16 %v661
        %v3030 = vunpack.c.h.b16 %v661
        %v3031 = vunpack.c.l.b16 %v662
        %v3032 = vunpack.c.h.b16 %v662
        %v3033 = vunpack.c.l.b16 %v663
        %v3034 = vunpack.c.h.b16 %v663
        %v3035 = vunpack.c.l.b16 %v664
        %v3036 = vunpack.c.h.b16 %v664
        %v3037 = vunpack.c.l.b16 %v665
        %v3038 = vunpack.c.h.b16 %v665
        %v3039 = vunpack.c.l.b16 %v666
        %v3040 = vunpack.c.h.b16 %v666
        %v3041 = vunpack.c.l.b16 %v667
        %v3042 = vunpack.c.h.b16 %v667
        %v3043 = vunpack.c.l.b16 %v668
        %v3044 = vunpack.c.h.b16 %v668
        %v3045 = vunpack.c.l.b16 %v669
        %v3046 = vunpack.c.h.b16 %v669
        %v3047 = vunpack.c.l.b16 %v670
        %v3048 = vunpack.c.h.b16 %v670
        %v3049 = vunpack.c.l.b16 %v671
        %v3050 = vunpack.c.h.b16 %v671
        %v3051 = vunpack.c.l.b16 %v672
        %v3052 = vunpack.c.h.b16 %v672
        %v3053 = vunpack.c.l.b16 %v673
        %v3054 = vunpack.c.h.b16 %v673
        %v3055 = vunpack.c.l.b16 %v674
        %v3056 = vunpack.c.h.b16 %v674
        %v3057 = vunpack.c.l.b16 %v675
        %v3058 = vunpack.c.h.b16 %v675
        %v3059 = vunpack.c.l.b16 %v676
        %v3060 = vunpack.c.h.b16 %v676
        %v3061 = vunpack.c.l.b16 %v677
        %v3062 = vunpack.c.h.b16 %v677
        %v3063 = vunpack.c.l.b16 %v678
        %v3064 = vunpack.c.h.b16 %v678
        %v3065 = vunpack.c.l.b16 %v679
        %v3066 = vunpack.c.h.b16 %v679
        %v3067 = vunpack.c.l.b16 %v680
        %v3068 = vunpack.c.h.b16 %v680
        %v3069 = vunpack.c.l.b16 %v681
        %v3070 = vunpack.c.h.b16 %v681
        %v3071 = vunpack.c.l.b16 %v682
        %v3072 = vunpack.c.h.b16 %v682
        %v3073 = vunpack.c.l.b16 %v683
        %v3074 = vunpack.c.h.b16 %v683
        %v3075 = vunpack.c.l.b16 %v684
        %v3076 = vunpack.c.h.b16 %v684
        %v3077 = vunpack.c.l.b16 %v685
        %v3078 = vunpack.c.h.b16 %v685
        %v3079 = vunpack.c.l.b16 %v686
        %v3080 = vunpack.c.h.b16 %v686
        %v3081 = vunpack.c.l.b16 %v687
        %v3082 = vunpack.c.h.b16 %v687
        %v3083 = vunpack.c.l.b16 %v688
        %v3084 = vunpack.c.h.b16 %v688
        %v3085 = vunpack.c.l.b16 %v689
        %v3086 = vunpack.c.h.b16 %v689
        %v3087 = vunpack.c.l.b16 %v690
        %v3088 = vunpack.c.h.b16 %v690
        %v3089 = vunpack.c.l.b16 %v691
        %v3090 = vunpack.c.h.b16 %v691
        %v3091 = vunpack.c.l.b16 %v692
        %v3092 = vunpack.c.h.b16 %v692
        %v3093 = vunpack.c.l.b16 %v693
        %v3094 = vunpack.c.h.b16 %v693
        %v3095 = vunpack.c.l.b16 %v694
        %v3096 = vunpack.c.h.b16 %v694
        %v3097 = vunpack.c.l.b16 %v695
        %v3098 = vunpack.c.h.b16 %v695
        %v3099 = vunpack.c.l.b16 %v696
        %v3100 = vunpack.c.h.b16 %v696
        %v3101 = vunpack.c.l.b16 %v697
        %v3102 = vunpack.c.h.b16 %v697
        %v3103 = vunpack.c.l.b16 %v698
        %v3104 = vunpack.c.h.b16 %v698
        %v3105 = vunpack.c.l.b16 %v699
        %v3106 = vunpack.c.h.b16 %v699
        %v3107 = vunpack.c.l.b16 %v700
        %v3108 = vunpack.c.h.b16 %v700
        %v3109 = vunpack.c.l.b16 %v701
        %v3110 = vunpack.c.h.b16 %v701
        %v3111 = vunpack.c.l.b16 %v702
        %v3112 = vunpack.c.h.b16 %v702
        %v3113 = vunpack.c.l.b16 %v703
        %v3114 = vunpack.c.h.b16 %v703
        %v3115 = vunpack.c.l.b16 %v704
        %v3116 = vunpack.c.h.b16 %v704
        %v3117 = vunpack.c.l.b16 %v705
        %v3118 = vunpack.c.h.b16 %v705
        %v3119 = vunpack.c.l.b16 %v706
        %v3120 = vunpack.c.h.b16 %v706
        %v3121 = vunpack.c.l.b16 %v707
        %v3122 = vunpack.c.h.b16 %v707
        %v3123 = vunpack.c.l.b16 %v708
        %v3124 = vunpack.c.h.b16 %v708
        %v3125 = vunpack.c.l.b16 %v709
        %v3126 = vunpack.c.h.b16 %v709
        %v3127 = vunpack.c.l.b16 %v710
        %v3128 = vunpack.c.h.b16 %v710
        %v3129 = vunpack.c.l.b16 %v711
        %v3130 = vunpack.c.h.b16 %v711
        %v3131 = vunpack.c.l.b16 %v712
        %v3132 = vunpack.c.h.b16 %v712
        %v3133 = vunpack.c.l.b16 %v713
        %v3134 = vunpack.c.h.b16 %v713
        %v3135 = vunpack.c.l.b16 %v714
        %v3136 = vunpack.c.h.b16 %v714
        %v3137 = vunpack.c.l.b16 %v715
        %v3138 = vunpack.c.h.b16 %v715
        %v3139 = vunpack.c.l.b16 %v716
        %v3140 = vunpack.c.h.b16 %v716
        %v3141 = vunpack.c.l.b16 %v717
        %v3142 = vunpack.c.h.b16 %v717
        %v3143 = vunpack.c.l.b16 %v718
        %v3144 = vunpack.c.h.b16 %v718
        %v3145 = vunpack.c.l.b16 %v719
        %v3146 = vunpack.c.h.b16 %v719
        %v3147 = vunpack.c.l.b16 %v720
        %v3148 = vunpack.c.h.b16 %v720
        %v3149 = vunpack.c.l.b16 %v721
        %v3150 = vunpack.c.h.b16 %v721
        %v3151 = vunpack.c.l.b16 %v722
        %v3152 = vunpack.c.h.b16 %v722
        %v3153 = vunpack.c.l.b16 %v723
        %v3154 = vunpack.c.h.b16 %v723
        %v3155 = vunpack.c.l.b16 %v724
        %v3156 = vunpack.c.h.b16 %v724
        %v3157 = vunpack.c.l.b16 %v725
        %v3158 = vunpack.c.h.b16 %v725
        %v3159 = vunpack.c.l.b16 %v726
        %v3160 = vunpack.c.h.b16 %v726
        %v3161 = vunpack.c.l.b16 %v727
        %v3162 = vunpack.c.h.b16 %v727
        %v3163 = vunpack.c.l.b16 %v728
        %v3164 = vunpack.c.h.b16 %v728
        %v3165 = vunpack.c.l.b16 %v729
        %v3166 = vunpack.c.h.b16 %v729
        %v3167 = vunpack.c.l.b16 %v730
        %v3168 = vunpack.c.h.b16 %v730
        %v3169 = vunpack.c.l.b16 %v731
        %v3170 = vunpack.c.h.b16 %v731
        %v3171 = vunpack.c.l.b16 %v732
        %v3172 = vunpack.c.h.b16 %v732
        %v3173 = vunpack.c.l.b16 %v733
        %v3174 = vunpack.c.h.b16 %v733
        %v3175 = vunpack.c.l.b16 %v734
        %v3176 = vunpack.c.h.b16 %v734
        %v3177 = vunpack.c.l.b16 %v735
        %v3178 = vunpack.c.h.b16 %v735
        %v3179 = vunpack.c.l.b16 %v736
        %v3180 = vunpack.c.h.b16 %v736
        %v3181 = vunpack.c.l.b16 %v737
        %v3182 = vunpack.c.h.b16 %v737
        %v3183 = vunpack.c.l.b16 %v738
        %v3184 = vunpack.c.h.b16 %v738
        %v3185 = vunpack.c.l.b16 %v739
        %v3186 = vunpack.c.h.b16 %v739
        %v3187 = vunpack.c.l.b16 %v740
        %v3188 = vunpack.c.h.b16 %v740
        %v3189 = vunpack.c.l.b16 %v741
        %v3190 = vunpack.c.h.b16 %v741
        %v3191 = vunpack.c.l.b16 %v742
        %v3192 = vunpack.c.h.b16 %v742
        %v3193 = vunpack.c.l.b16 %v743
        %v3194 = vunpack.c.h.b16 %v743
        %v3195 = vunpack.c.l.b16 %v744
        %v3196 = vunpack.c.h.b16 %v744
        %v3197 = vunpack.c.l.b16 %v745
        %v3198 = vunpack.c.h.b16 %v745
        %v3199 = vunpack.c.l.b16 %v746
        %v3200 = vunpack.c.h.b16 %v746
        %v3201 = vunpack.c.l.b16 %v747
        %v3202 = vunpack.c.h.b16 %v747
        %v3203 = vunpack.c.l.b16 %v748
        %v3204 = vunpack.c.h.b16 %v748
        %v3205 = vunpack.c.l.b16 %v749
        %v3206 = vunpack.c.h.b16 %v749
        %v3207 = vunpack.c.l.b16 %v750
        %v3208 = vunpack.c.h.b16 %v750
        %v3209 = vunpack.c.l.b16 %v751
        %v3210 = vunpack.c.h.b16 %v751
        %v3211 = vunpack.c.l.b16 %v752
        %v3212 = vunpack.c.h.b16 %v752
        %v3213 = vunpack.c.l.b16 %v753
        %v3214 = vunpack.c.h.b16 %v753
        %v3215 = vunpack.c.l.b16 %v754
        %v3216 = vunpack.c.h.b16 %v754
        %v3217 = vunpack.c.l.b16 %v755
        %v3218 = vunpack.c.h.b16 %v755
        %v3219 = vunpack.c.l.b16 %v756
        %v3220 = vunpack.c.h.b16 %v756
        %v3221 = vunpack.c.l.b16 %v757
        %v3222 = vunpack.c.h.b16 %v757
        %v3223 = vunpack.c.l.b16 %v758
        %v3224 = vunpack.c.h.b16 %v758
        %v3225 = vunpack.c.l.b16 %v759
        %v3226 = vunpack.c.h.b16 %v759
        %v3227 = vunpack.c.l.b16 %v760
        %v3228 = vunpack.c.h.b16 %v760
        %v3229 = vunpack.c.l.b16 %v761
        %v3230 = vunpack.c.h.b16 %v761
        %v3231 = vunpack.c.l.b16 %v762
        %v3232 = vunpack.c.h.b16 %v762
        %v3233 = vunpack.c.l.b16 %v763
        %v3234 = vunpack.c.h.b16 %v763
        %v3235 = vunpack.c.l.b16 %v764
        %v3236 = vunpack.c.h.b16 %v764
        %v3237 = vunpack.c.l.b16 %v765
        %v3238 = vunpack.c.h.b16 %v765
        %v3239 = vunpack.c.l.b16 %v766
        %v3240 = vunpack.c.h.b16 %v766
        %v3241 = vunpack.c.l.b16 %v767
        %v3242 = vunpack.c.h.b16 %v767
        %v3243 = vunpack.c.l.b16 %v768
        %v3244 = vunpack.c.h.b16 %v768
        %v3245 = vunpack.c.l.b16 %v769
        %v3246 = vunpack.c.h.b16 %v769
        %v3247 = vunpack.c.l.b16 %v770
        %v3248 = vunpack.c.h.b16 %v770
        %v3249 = vunpack.c.l.b16 %v771
        %v3250 = vunpack.c.h.b16 %v771
        %v3251 = vunpack.c.l.b16 %v772
        %v3252 = vunpack.c.h.b16 %v772
        %v3253 = vunpack.c.l.b16 %v773
        %v3254 = vunpack.c.h.b16 %v773
        %v3255 = vunpack.c.l.b16 %v774
        %v3256 = vunpack.c.h.b16 %v774
        %v3257 = vunpack.c.l.b16 %v775
        %v3258 = vunpack.c.h.b16 %v775
        %v3259 = vunpack.c.l.b16 %v776
        %v3260 = vunpack.c.h.b16 %v776
        %v3261 = vunpack.c.l.b16 %v777
        %v3262 = vunpack.c.h.b16 %v777
        %v3263 = vunpack.c.l.b16 %v778
        %v3264 = vunpack.c.h.b16 %v778
        %v3265 = vunpack.c.l.b16 %v779
        %v3266 = vunpack.c.h.b16 %v779
        %v3267 = vunpack.c.l.b16 %v780
        %v3268 = vunpack.c.h.b16 %v780
        %v3269 = vunpack.c.l.b16 %v781
        %v3270 = vunpack.c.h.b16 %v781
        %v3271 = vunpack.c.l.b16 %v782
        %v3272 = vunpack.c.h.b16 %v782
        %v3273 = vunpack.c.l.b16 %v783
        %v3274 = vunpack.c.h.b16 %v783
        %v3275 = vunpack.c.l.b16 %v784
        %v3276 = vunpack.c.h.b16 %v784
        %v3277 = vunpack.c.l.b16 %v785
        %v3278 = vunpack.c.h.b16 %v785
        %v3279 = vunpack.c.l.b16 %v786
        %v3280 = vunpack.c.h.b16 %v786
        %v3281 = vunpack.c.l.b16 %v787
        %v3282 = vunpack.c.h.b16 %v787
        %v3283 = vunpack.c.l.b16 %v788
        %v3284 = vunpack.c.h.b16 %v788
        %v3285 = vunpack.c.l.b16 %v789
        %v3286 = vunpack.c.h.b16 %v789
        %v3287 = vunpack.c.l.b16 %v790
        %v3288 = vunpack.c.h.b16 %v790
        %v3289 = vunpack.c.l.b16 %v791
        %v3290 = vunpack.c.h.b16 %v791
        %v3291 = vunpack.c.l.b16 %v792
        %v3292 = vunpack.c.h.b16 %v792
        %v3293 = vunpack.c.l.b16 %v793
        %v3294 = vunpack.c.h.b16 %v793
        %v3295 = vunpack.c.l.b16 %v794
        %v3296 = vunpack.c.h.b16 %v794
        %v3297 = vunpack.c.l.b16 %v795
        %v3298 = vunpack.c.h.b16 %v795
        %v3299 = vunpack.c.l.b16 %v796
        %v3300 = vunpack.c.h.b16 %v796
        %v3301 = vunpack.c.l.b16 %v797
        %v3302 = vunpack.c.h.b16 %v797
        %v3303 = vunpack.c.l.b16 %v798
        %v3304 = vunpack.c.h.b16 %v798
        %v3305 = vunpack.c.l.b16 %v799
        %v3306 = vunpack.c.h.b16 %v799
        %v3307 = vunpack.c.l.b16 %v800
        %v3308 = vunpack.c.h.b16 %v800
        %v3309 = vunpack.c.l.b16 %v801
        %v3310 = vunpack.c.h.b16 %v801
        %v3311 = vunpack.c.l.b16 %v802
        %v3312 = vunpack.c.h.b16 %v802
        %v3313 = vunpack.c.l.b16 %v803
        %v3314 = vunpack.c.h.b16 %v803
        %v3315 = vunpack.c.l.b16 %v804
        %v3316 = vunpack.c.h.b16 %v804
        %v3317 = vunpack.c.l.b16 %v805
        %v3318 = vunpack.c.h.b16 %v805
        %v3319 = vunpack.c.l.b16 %v806
        %v3320 = vunpack.c.h.b16 %v806
        %v3321 = vunpack.c.l.b16 %v807
        %v3322 = vunpack.c.h.b16 %v807
        %v3323 = vunpack.c.l.b16 %v808
        %v3324 = vunpack.c.h.b16 %v808
        %v3325 = vunpack.c.l.b16 %v809
        %v3326 = vunpack.c.h.b16 %v809
        %v3327 = vunpack.c.l.b16 %v810
        %v3328 = vunpack.c.h.b16 %v810
        %v3329 = vunpack.c.l.b16 %v811
        %v3330 = vunpack.c.h.b16 %v811
        %v3331 = vunpack.c.l.b16 %v812
        %v3332 = vunpack.c.h.b16 %v812
        %v3333 = vunpack.c.l.b16 %v813
        %v3334 = vunpack.c.h.b16 %v813
        %v3335 = vunpack.c.l.b16 %v814
        %v3336 = vunpack.c.h.b16 %v814
        %v3337 = vunpack.c.l.b16 %v815
        %v3338 = vunpack.c.h.b16 %v815
        %v3339 = vunpack.c.l.b16 %v816
        %v3340 = vunpack.c.h.b16 %v816
        %v3341 = vunpack.c.l.b16 %v817
        %v3342 = vunpack.c.h.b16 %v817
        %v3343 = vunpack.c.l.b16 %v818
        %v3344 = vunpack.c.h.b16 %v818
        %v3345 = vunpack.c.l.b16 %v819
        %v3346 = vunpack.c.h.b16 %v819
        %v3347 = vunpack.c.l.b16 %v820
        %v3348 = vunpack.c.h.b16 %v820
        %v3349 = vunpack.c.l.b16 %v821
        %v3350 = vunpack.c.h.b16 %v821
        %v3351 = vunpack.c.l.b16 %v822
        %v3352 = vunpack.c.h.b16 %v822
        %v3353 = vunpack.c.l.b16 %v823
        %v3354 = vunpack.c.h.b16 %v823
        %v3355 = vunpack.c.l.b16 %v824
        %v3356 = vunpack.c.h.b16 %v824
        %v3357 = vunpack.c.l.b16 %v825
        %v3358 = vunpack.c.h.b16 %v825
        %v3359 = vunpack.c.l.b16 %v826
        %v3360 = vunpack.c.h.b16 %v826
        %v3361 = vunpack.c.l.b16 %v827
        %v3362 = vunpack.c.h.b16 %v827
        %v3363 = vunpack.c.l.b16 %v828
        %v3364 = vunpack.c.h.b16 %v828
        %v3365 = vunpack.c.l.b16 %v829
        %v3366 = vunpack.c.h.b16 %v829
        %v3367 = vunpack.c.l.b16 %v830
        %v3368 = vunpack.c.h.b16 %v830
        %v3369 = vunpack.c.l.b16 %v831
        %v3370 = vunpack.c.h.b16 %v831
        %v3371 = vunpack.c.l.b16 %v832
        %v3372 = vunpack.c.h.b16 %v832
        %v3373 = vunpack.c.l.b16 %v833
        %v3374 = vunpack.c.h.b16 %v833
        %v3375 = vunpack.c.l.b16 %v834
        %v3376 = vunpack.c.h.b16 %v834
        %v3377 = vunpack.c.l.b16 %v835
        %v3378 = vunpack.c.h.b16 %v835
        %v3379 = vunpack.c.l.b16 %v836
        %v3380 = vunpack.c.h.b16 %v836
        %v3381 = vunpack.c.l.b16 %v837
        %v3382 = vunpack.c.h.b16 %v837
        %v3383 = vunpack.c.l.b16 %v838
        %v3384 = vunpack.c.h.b16 %v838
        %v3385 = vunpack.c.l.b16 %v839
        %v3386 = vunpack.c.h.b16 %v839
        %v3387 = vunpack.c.l.b16 %v840
        %v3388 = vunpack.c.h.b16 %v840
        %v3389 = vunpack.c.l.b16 %v841
        %v3390 = vunpack.c.h.b16 %v841
        %v3391 = vunpack.c.l.b16 %v842
        %v3392 = vunpack.c.h.b16 %v842
        %v3393 = vunpack.c.l.b16 %v843
        %v3394 = vunpack.c.h.b16 %v843
        %v3395 = vunpack.c.l.b16 %v844
        %v3396 = vunpack.c.h.b16 %v844
        %v3397 = vunpack.c.l.b16 %v845
        %v3398 = vunpack.c.h.b16 %v845
        %v3399 = vunpack.c.l.b16 %v846
        %v3400 = vunpack.c.h.b16 %v846
        %v3401 = vunpack.c.l.b16 %v847
        %v3402 = vunpack.c.h.b16 %v847
        %v3403 = vunpack.c.l.b16 %v848
        %v3404 = vunpack.c.h.b16 %v848
        %v3405 = vunpack.c.l.b16 %v849
        %v3406 = vunpack.c.h.b16 %v849
        %v3407 = vunpack.c.l.b16 %v850
        %v3408 = vunpack.c.h.b16 %v850
        %v3409 = vunpack.c.l.b16 %v851
        %v3410 = vunpack.c.h.b16 %v851
        %v3411 = vunpack.c.l.b16 %v852
        %v3412 = vunpack.c.h.b16 %v852
        %v3413 = vunpack.c.l.b16 %v853
        %v3414 = vunpack.c.h.b16 %v853
        %v3415 = vunpack.c.l.b16 %v854
        %v3416 = vunpack.c.h.b16 %v854
        %v3417 = vunpack.c.l.b16 %v855
        %v3418 = vunpack.c.h.b16 %v855
        %v3419 = vunpack.c.l.b16 %v856
        %v3420 = vunpack.c.h.b16 %v856
        %v3421 = vunpack.c.l.b16 %v857
        %v3422 = vunpack.c.h.b16 %v857
        %v3423 = vunpack.c.l.b16 %v858
        %v3424 = vunpack.c.h.b16 %v858
        %v3425 = vunpack.c.l.b16 %v859
        %v3426 = vunpack.c.h.b16 %v859
        %v3427 = vunpack.c.l.b16 %v860
        %v3428 = vunpack.c.h.b16 %v860
        %v3429 = vunpack.c.l.b16 %v861
        %v3430 = vunpack.c.h.b16 %v861
        %v3431 = vunpack.c.l.b16 %v862
        %v3432 = vunpack.c.h.b16 %v862
        %v3433 = vunpack.c.l.b16 %v863
        %v3434 = vunpack.c.h.b16 %v863
        %v3435 = vunpack.c.l.b16 %v864
        %v3436 = vunpack.c.h.b16 %v864
        %v3437 = vunpack.c.l.b16 %v865
        %v3438 = vunpack.c.h.b16 %v865
        %v3439 = vunpack.c.l.b16 %v866
        %v3440 = vunpack.c.h.b16 %v866
        %v3441 = vunpack.c.l.b16 %v867
        %v3442 = vunpack.c.h.b16 %v867
        %v3443 = vunpack.c.l.b16 %v868
        %v3444 = vunpack.c.h.b16 %v868
        %v3445 = vunpack.c.l.b16 %v869
        %v3446 = vunpack.c.h.b16 %v869
        %v3447 = vunpack.c.l.b16 %v870
        %v3448 = vunpack.c.h.b16 %v870
        %v3449 = vunpack.c.l.b16 %v871
        %v3450 = vunpack.c.h.b16 %v871
        %v3451 = vunpack.c.l.b16 %v872
        %v3452 = vunpack.c.h.b16 %v872
        %v3453 = vunpack.c.l.b16 %v873
        %v3454 = vunpack.c.h.b16 %v873
        %v3455 = vunpack.c.l.b16 %v874
        %v3456 = vunpack.c.h.b16 %v874
        %v3457 = vunpack.c.l.b16 %v875
        %v3458 = vunpack.c.h.b16 %v875
        %v3459 = vunpack.c.l.b16 %v876
        %v3460 = vunpack.c.h.b16 %v876
        %v3461 = vunpack.c.l.b16 %v877
        %v3462 = vunpack.c.h.b16 %v877
        %v3463 = vunpack.c.l.b16 %v878
        %v3464 = vunpack.c.h.b16 %v878
        %v3465 = vunpack.c.l.b16 %v879
        %v3466 = vunpack.c.h.b16 %v879
        %v3467 = vunpack.c.l.b16 %v880
        %v3468 = vunpack.c.h.b16 %v880
        %v3469 = vunpack.c.l.b16 %v881
        %v3470 = vunpack.c.h.b16 %v881
        %v3471 = vunpack.c.l.b16 %v882
        %v3472 = vunpack.c.h.b16 %v882
        %v3473 = vunpack.c.l.b16 %v883
        %v3474 = vunpack.c.h.b16 %v883
        %v3475 = vunpack.c.l.b16 %v884
        %v3476 = vunpack.c.h.b16 %v884
        %v3477 = vunpack.c.l.b16 %v885
        %v3478 = vunpack.c.h.b16 %v885
        %v3479 = vunpack.c.l.b16 %v886
        %v3480 = vunpack.c.h.b16 %v886
        %v3481 = vunpack.c.l.b16 %v887
        %v3482 = vunpack.c.h.b16 %v887
        %v3483 = vunpack.c.l.b16 %v888
        %v3484 = vunpack.c.h.b16 %v888
        %v3485 = vunpack.c.l.b16 %v889
        %v3486 = vunpack.c.h.b16 %v889
        %v3487 = vunpack.c.l.b16 %v890
        %v3488 = vunpack.c.h.b16 %v890
        %v3489 = vunpack.c.l.b16 %v891
        %v3490 = vunpack.c.h.b16 %v891
        %v3491 = vunpack.c.l.b16 %v892
        %v3492 = vunpack.c.h.b16 %v892
        %v3493 = vunpack.c.l.b16 %v893
        %v3494 = vunpack.c.h.b16 %v893
        %v3495 = vunpack.c.l.b16 %v894
        %v3496 = vunpack.c.h.b16 %v894
        %v3497 = vunpack.c.l.b16 %v895
        %v3498 = vunpack.c.h.b16 %v895
        %v3499 = vunpack.c.l.b16 %v896
        %v3500 = vunpack.c.h.b16 %v896
        %v3501 = vunpack.c.l.b16 %v897
        %v3502 = vunpack.c.h.b16 %v897
        %v3503 = vunpack.c.l.b16 %v898
        %v3504 = vunpack.c.h.b16 %v898
        %v3505 = vunpack.c.l.b16 %v899
        %v3506 = vunpack.c.h.b16 %v899
        %v3507 = vunpack.c.l.b16 %v900
        %v3508 = vunpack.c.h.b16 %v900
        %v3509 = vunpack.c.l.b16 %v901
        %v3510 = vunpack.c.h.b16 %v901
        %v3511 = vunpack.c.l.b16 %v902
        %v3512 = vunpack.c.h.b16 %v902
        %v3513 = vunpack.c.l.b16 %v903
        %v3514 = vunpack.c.h.b16 %v903
        %v3515 = vunpack.c.l.b16 %v904
        %v3516 = vunpack.c.h.b16 %v904
        %v3517 = vunpack.c.l.b16 %v905
        %v3518 = vunpack.c.h.b16 %v905
        %v3519 = vunpack.c.l.b16 %v906
        %v3520 = vunpack.c.h.b16 %v906
        %v3521 = vunpack.c.l.b16 %v907
        %v3522 = vunpack.c.h.b16 %v907
        %v3523 = vunpack.c.l.b16 %v908
        %v3524 = vunpack.c.h.b16 %v908
        %v3525 = vunpack.c.l.b16 %v909
        %v3526 = vunpack.c.h.b16 %v909
        %v3527 = vunpack.c.l.b16 %v910
        %v3528 = vunpack.c.h.b16 %v910
        %v3529 = vunpack.c.l.b16 %v911
        %v3530 = vunpack.c.h.b16 %v911
        %v3531 = vunpack.c.l.b16 %v912
        %v3532 = vunpack.c.h.b16 %v912
        %v3533 = vunpack.c.l.b16 %v913
        %v3534 = vunpack.c.h.b16 %v913
        %v3535 = vunpack.c.l.b16 %v914
        %v3536 = vunpack.c.h.b16 %v914
        %v3537 = vunpack.c.l.b16 %v915
        %v3538 = vunpack.c.h.b16 %v915
        %v3539 = vunpack.c.l.b16 %v916
        %v3540 = vunpack.c.h.b16 %v916
        %v3541 = vunpack.c.l.b16 %v917
        %v3542 = vunpack.c.h.b16 %v917
        %v3543 = vunpack.c.l.b16 %v918
        %v3544 = vunpack.c.h.b16 %v918
        %v3545 = vunpack.c.l.b16 %v919
        %v3546 = vunpack.c.h.b16 %v919
        %v3547 = vunpack.c.l.b16 %v920
        %v3548 = vunpack.c.h.b16 %v920
        %v3549 = vunpack.c.l.b16 %v921
        %v3550 = vunpack.c.h.b16 %v921
        %v3551 = vunpack.c.l.b16 %v922
        %v3552 = vunpack.c.h.b16 %v922
        %v3553 = vunpack.c.l.b16 %v923
        %v3554 = vunpack.c.h.b16 %v923
        %v3555 = vunpack.c.l.b16 %v924
        %v3556 = vunpack.c.h.b16 %v924
        %v3557 = vunpack.c.l.b16 %v925
        %v3558 = vunpack.c.h.b16 %v925
        %v3559 = vunpack.c.l.b16 %v926
        %v3560 = vunpack.c.h.b16 %v926
        %v3561 = vunpack.c.l.b16 %v927
        %v3562 = vunpack.c.h.b16 %v927
        %v3563 = vunpack.c.l.b16 %v928
        %v3564 = vunpack.c.h.b16 %v928
        %v3565 = vunpack.c.l.b16 %v929
        %v3566 = vunpack.c.h.b16 %v929
        %v3567 = vunpack.c.l.b16 %v930
        %v3568 = vunpack.c.h.b16 %v930
        %v3569 = vunpack.c.l.b16 %v931
        %v3570 = vunpack.c.h.b16 %v931
        %v3571 = vunpack.c.l.b16 %v932
        %v3572 = vunpack.c.h.b16 %v932
        %v3573 = vunpack.c.l.b16 %v933
        %v3574 = vunpack.c.h.b16 %v933
        %v3575 = vunpack.c.l.b16 %v934
        %v3576 = vunpack.c.h.b16 %v934
        %v3577 = vunpack.c.l.b16 %v935
        %v3578 = vunpack.c.h.b16 %v935
        %v3579 = vunpack.c.l.b16 %v936
        %v3580 = vunpack.c.h.b16 %v936
        %v3581 = vunpack.c.l.b16 %v937
        %v3582 = vunpack.c.h.b16 %v937
        %v3583 = vunpack.c.l.b16 %v938
        %v3584 = vunpack.c.h.b16 %v938
        %v3585 = vunpack.c.l.b16 %v939
        %v3586 = vunpack.c.h.b16 %v939
        %v3587 = vunpack.c.l.b16 %v940
        %v3588 = vunpack.c.h.b16 %v940
        %v3589 = vunpack.c.l.b16 %v941
        %v3590 = vunpack.c.h.b16 %v941
        %v3591 = vunpack.c.l.b16 %v942
        %v3592 = vunpack.c.h.b16 %v942
        %v3593 = vunpack.c.l.b16 %v943
        %v3594 = vunpack.c.h.b16 %v943
        %v3595 = vunpack.c.l.b16 %v944
        %v3596 = vunpack.c.h.b16 %v944
        %v3597 = vunpack.c.l.b16 %v945
        %v3598 = vunpack.c.h.b16 %v945
        %v3599 = vunpack.c.l.b16 %v946
        %v3600 = vunpack.c.h.b16 %v946
        %v3601 = vunpack.c.l.b16 %v947
        %v3602 = vunpack.c.h.b16 %v947
        %v3603 = vunpack.c.l.b16 %v948
        %v3604 = vunpack.c.h.b16 %v948
        %v3605 = vunpack.c.l.b16 %v949
        %v3606 = vunpack.c.h.b16 %v949
        %v3607 = vunpack.c.l.b16 %v950
        %v3608 = vunpack.c.h.b16 %v950
        %v3609 = vunpack.c.l.b16 %v951
        %v3610 = vunpack.c.h.b16 %v951
        %v3611 = vunpack.c.l.b16 %v952
        %v3612 = vunpack.c.h.b16 %v952
        %v3613 = vunpack.c.l.b16 %v953
        %v3614 = vunpack.c.h.b16 %v953
        %v3615 = vunpack.c.l.b16 %v954
        %v3616 = vunpack.c.h.b16 %v954
        %v3617 = vunpack.c.l.b16 %v955
        %v3618 = vunpack.c.h.b16 %v955
        %v3619 = vunpack.c.l.b16 %v956
        %v3620 = vunpack.c.h.b16 %v956
        %v3621 = vunpack.c.l.b16 %v957
        %v3622 = vunpack.c.h.b16 %v957
        %v3623 = vunpack.c.l.b16 %v958
        %v3624 = vunpack.c.h.b16 %v958
        %v3625 = vunpack.c.l.b16 %v959
        %v3626 = vunpack.c.h.b16 %v959
        %v3627 = vunpack.c.l.b16 %v960
        %v3628 = vunpack.c.h.b16 %v960
        %v3629 = vunpack.c.l.b16 %v961
        %v3630 = vunpack.c.h.b16 %v961
        %v3631 = vunpack.c.l.b16 %v962
        %v3632 = vunpack.c.h.b16 %v962
        %v3633 = vunpack.c.l.b16 %v963
        %v3634 = vunpack.c.h.b16 %v963
        %v3635 = vunpack.c.l.b16 %v964
        %v3636 = vunpack.c.h.b16 %v964
        %v3637 = vunpack.c.l.b16 %v965
        %v3638 = vunpack.c.h.b16 %v965
        %v3639 = vunpack.c.l.b16 %v966
        %v3640 = vunpack.c.h.b16 %v966
        %v3641 = vunpack.c.l.b16 %v967
        %v3642 = vunpack.c.h.b16 %v967
        %v3643 = vunpack.c.l.b16 %v968
        %v3644 = vunpack.c.h.b16 %v968
        %v3645 = vunpack.c.l.b16 %v969
        %v3646 = vunpack.c.h.b16 %v969
        %v3647 = vunpack.c.l.b16 %v970
        %v3648 = vunpack.c.h.b16 %v970
        %v3649 = vunpack.c.l.b16 %v971
        %v3650 = vunpack.c.h.b16 %v971
        %v3651 = vunpack.c.l.b16 %v972
        %v3652 = vunpack.c.h.b16 %v972
        %v3653 = vunpack.c.l.b16 %v973
        %v3654 = vunpack.c.h.b16 %v973
        %v3655 = vunpack.c.l.b16 %v974
        %v3656 = vunpack.c.h.b16 %v974
        %v3657 = vunpack.c.l.b16 %v975
        %v3658 = vunpack.c.h.b16 %v975
        %v3659 = vunpack.c.l.b16 %v976
        %v3660 = vunpack.c.h.b16 %v976
        %v3661 = vunpack.c.l.b16 %v977
        %v3662 = vunpack.c.h.b16 %v977
        %v3663 = vunpack.c.l.b16 %v978
        %v3664 = vunpack.c.h.b16 %v978
        %v3665 = vunpack.c.l.b16 %v979
        %v3666 = vunpack.c.h.b16 %v979
        %v3667 = vunpack.c.l.b16 %v980
        %v3668 = vunpack.c.h.b16 %v980
        %v3669 = vunpack.c.l.b16 %v981
        %v3670 = vunpack.c.h.b16 %v981
        %v3671 = vunpack.c.l.b16 %v982
        %v3672 = vunpack.c.h.b16 %v982
        %v3673 = vunpack.c.l.b16 %v983
        %v3674 = vunpack.c.h.b16 %v983
        %v3675 = vunpack.c.l.b16 %v984
        %v3676 = vunpack.c.h.b16 %v984
        %v3677 = vunpack.c.l.b16 %v985
        %v3678 = vunpack.c.h.b16 %v985
        %v3679 = vunpack.c.l.b16 %v986
        %v3680 = vunpack.c.h.b16 %v986
        %v3681 = vunpack.c.l.b16 %v987
        %v3682 = vunpack.c.h.b16 %v987
        %v3683 = vunpack.c.l.b16 %v988
        %v3684 = vunpack.c.h.b16 %v988
        %v3685 = vunpack.c.l.b16 %v989
        %v3686 = vunpack.c.h.b16 %v989
        %v3687 = vunpack.c.l.b16 %v990
        %v3688 = vunpack.c.h.b16 %v990
        %v3689 = vunpack.c.l.b16 %v991
        %v3690 = vunpack.c.h.b16 %v991
        %v3691 = vunpack.c.l.b16 %v992
        %v3692 = vunpack.c.h.b16 %v992
        %v3693 = vunpack.c.l.b16 %v993
        %v3694 = vunpack.c.h.b16 %v993
        %v3695 = vunpack.c.l.b16 %v994
        %v3696 = vunpack.c.h.b16 %v994
        %v3697 = vunpack.c.l.b16 %v995
        %v3698 = vunpack.c.h.b16 %v995
        %v3699 = vunpack.c.l.b16 %v996
        %v3700 = vunpack.c.h.b16 %v996
        %v3701 = vunpack.c.l.b16 %v997
        %v3702 = vunpack.c.h.b16 %v997
        %v3703 = vunpack.c.l.b16 %v998
        %v3704 = vunpack.c.h.b16 %v998
        %v3705 = vunpack.c.l.b16 %v999
        %v3706 = vunpack.c.h.b16 %v999
        %v3707 = vunpack.c.l.b16 %v1000
        %v3708 = vunpack.c.h.b16 %v1000
        %v3709 = vunpack.c.l.b16 %v1001
        %v3710 = vunpack.c.h.b16 %v1001
        %v3711 = vunpack.c.l.b16 %v1002
        %v3712 = vunpack.c.h.b16 %v1002
        %v3713 = vunpack.c.l.b16 %v1003
        %v3714 = vunpack.c.h.b16 %v1003
        %v3715 = vunpack.c.l.b16 %v1004
        %v3716 = vunpack.c.h.b16 %v1004
        %v3717 = vunpack.c.l.b16 %v1005
        %v3718 = vunpack.c.h.b16 %v1005
        %v3719 = vunpack.c.l.b16 %v1006
        %v3720 = vunpack.c.h.b16 %v1006
        %v3721 = vunpack.c.l.b16 %v1007
        %v3722 = vunpack.c.h.b16 %v1007
        %v3723 = vunpack.c.l.b16 %v1008
        %v3724 = vunpack.c.h.b16 %v1008
        %v3725 = vunpack.c.l.b16 %v1009
        %v3726 = vunpack.c.h.b16 %v1009
        %v3727 = vunpack.c.l.b16 %v1010
        %v3728 = vunpack.c.h.b16 %v1010
        %v3729 = vunpack.c.l.b16 %v1011
        %v3730 = vunpack.c.h.b16 %v1011
        %v3731 = vunpack.c.l.b16 %v1012
        %v3732 = vunpack.c.h.b16 %v1012
        %v3733 = vunpack.c.l.b16 %v1013
        %v3734 = vunpack.c.h.b16 %v1013
        %v3735 = vunpack.c.l.b16 %v1014
        %v3736 = vunpack.c.h.b16 %v1014
        %v3737 = vunpack.c.l.b16 %v1015
        %v3738 = vunpack.c.h.b16 %v1015
        %v3739 = vunpack.c.l.b16 %v1016
        %v3740 = vunpack.c.h.b16 %v1016
        %v3741 = vunpack.c.l.b16 %v1017
        %v3742 = vunpack.c.h.b16 %v1017
        %v3743 = vunpack.c.l.b16 %v1018
        %v3744 = vunpack.c.h.b16 %v1018
        %v3745 = vunpack.c.l.b16 %v1019
        %v3746 = vunpack.c.h.b16 %v1019
        %v3747 = vunpack.c.l.b16 %v1020
        %v3748 = vunpack.c.h.b16 %v1020
        %v3749 = vunpack.c.l.b16 %v1021
        %v3750 = vunpack.c.h.b16 %v1021
        %v3751 = vunpack.c.l.b16 %v1022
        %v3752 = vunpack.c.h.b16 %v1022
        %v3753 = vunpack.c.l.b16 %v1023
        %v3754 = vunpack.c.h.b16 %v1023
        %v3755 = vunpack.c.l.b16 %v1024
        %v3756 = vunpack.c.h.b16 %v1024
        %v3757 = vunpack.c.l.b16 %v1025
        %v3758 = vunpack.c.h.b16 %v1025
        %v3759 = vunpack.c.l.b16 %v1026
        %v3760 = vunpack.c.h.b16 %v1026
        %v3761 = vunpack.c.l.b16 %v1027
        %v3762 = vunpack.c.h.b16 %v1027
        %v3763 = vunpack.c.l.b16 %v1028
        %v3764 = vunpack.c.h.b16 %v1028
        %v3765 = vunpack.c.l.b16 %v1029
        %v3766 = vunpack.c.h.b16 %v1029
        %v3767 = vunpack.c.l.b16 %v1030
        %v3768 = vunpack.c.h.b16 %v1030
        %v3769 = vunpack.c.l.b16 %v1031
        %v3770 = vunpack.c.h.b16 %v1031
        %v3771 = vunpack.c.l.b16 %v1032
        %v3772 = vunpack.c.h.b16 %v1032
        %v3773 = vunpack.c.l.b16 %v1033
        %v3774 = vunpack.c.h.b16 %v1033
        %v3775 = vunpack.c.l.b16 %v1034
        %v3776 = vunpack.c.h.b16 %v1034
        %v3777 = vunpack.c.l.b16 %v1035
        %v3778 = vunpack.c.h.b16 %v1035
        %v3779 = vunpack.c.l.b16 %v1036
        %v3780 = vunpack.c.h.b16 %v1036
        %v3781 = vunpack.c.l.b16 %v1037
        %v3782 = vunpack.c.h.b16 %v1037
        %v3783 = vunpack.c.l.b16 %v1038
        %v3784 = vunpack.c.h.b16 %v1038
        %v3785 = vunpack.c.l.b16 %v1039
        %v3786 = vunpack.c.h.b16 %v1039
        %v3787 = vunpack.c.l.b16 %v1040
        %v3788 = vunpack.c.h.b16 %v1040
        %v3789 = vunpack.c.l.b16 %v1041
        %v3790 = vunpack.c.h.b16 %v1041
        %v3791 = vunpack.c.l.b16 %v1042
        %v3792 = vunpack.c.h.b16 %v1042
        %v3793 = vunpack.c.l.b16 %v1043
        %v3794 = vunpack.c.h.b16 %v1043
        %v3795 = vunpack.c.l.b16 %v1044
        %v3796 = vunpack.c.h.b16 %v1044
        %v3797 = vunpack.c.l.b16 %v1045
        %v3798 = vunpack.c.h.b16 %v1045
        %v3799 = vunpack.c.l.b16 %v1046
        %v3800 = vunpack.c.h.b16 %v1046
        %v3801 = vunpack.c.l.b16 %v1047
        %v3802 = vunpack.c.h.b16 %v1047
        %v3803 = vunpack.c.l.b16 %v1048
        %v3804 = vunpack.c.h.b16 %v1048
        %v3805 = vunpack.c.l.b16 %v1049
        %v3806 = vunpack.c.h.b16 %v1049
        %v3807 = vunpack.c.l.b16 %v1050
        %v3808 = vunpack.c.h.b16 %v1050
        %v3809 = vunpack.c.l.b16 %v1051
        %v3810 = vunpack.c.h.b16 %v1051
        %v3811 = vunpack.c.l.b16 %v1052
        %v3812 = vunpack.c.h.b16 %v1052
        %v3813 = vunpack.c.l.b16 %v1053
        %v3814 = vunpack.c.h.b16 %v1053
        %v3815 = vunpack.c.l.b16 %v1054
        %v3816 = vunpack.c.h.b16 %v1054
        %v3817 = vunpack.c.l.b16 %v1055
        %v3818 = vunpack.c.h.b16 %v1055
        %v3819 = vunpack.c.l.b16 %v1056
        %v3820 = vunpack.c.h.b16 %v1056
        %v3821 = vunpack.c.l.b16 %v1057
        %v3822 = vunpack.c.h.b16 %v1057
        %v3823 = vunpack.c.l.b16 %v1058
        %v3824 = vunpack.c.h.b16 %v1058
        %v3825 = vunpack.c.l.b16 %v1059
        %v3826 = vunpack.c.h.b16 %v1059
        %v3827 = vunpack.c.l.b16 %v1060
        %v3828 = vunpack.c.h.b16 %v1060
        %v3829 = vunpack.c.l.b16 %v1061
        %v3830 = vunpack.c.h.b16 %v1061
        %v3831 = vunpack.c.l.b16 %v1062
        %v3832 = vunpack.c.h.b16 %v1062
        %v3833 = vunpack.c.l.b16 %v1063
        %v3834 = vunpack.c.h.b16 %v1063
        %v3835 = vunpack.c.l.b16 %v1064
        %v3836 = vunpack.c.h.b16 %v1064
        %v3837 = vunpack.c.l.b16 %v1065
        %v3838 = vunpack.c.h.b16 %v1065
        %v3839 = vunpack.c.l.b16 %v1066
        %v3840 = vunpack.c.h.b16 %v1066
        %v3841 = vunpack.c.l.b16 %v1067
        %v3842 = vunpack.c.h.b16 %v1067
        %v3843 = vunpack.c.l.b16 %v1068
        %v3844 = vunpack.c.h.b16 %v1068
        %v3845 = vunpack.c.l.b16 %v1069
        %v3846 = vunpack.c.h.b16 %v1069
        %v3847 = vunpack.c.l.b16 %v1070
        %v3848 = vunpack.c.h.b16 %v1070
        %v3849 = vunpack.c.l.b16 %v1071
        %v3850 = vunpack.c.h.b16 %v1071
        %v3851 = vunpack.c.l.b16 %v1072
        %v3852 = vunpack.c.h.b16 %v1072
        %v3853 = vunpack.c.l.b16 %v1073
        %v3854 = vunpack.c.h.b16 %v1073
        %v3855 = vunpack.c.l.b16 %v1074
        %v3856 = vunpack.c.h.b16 %v1074
        %v3857 = vunpack.c.l.b16 %v1075
        %v3858 = vunpack.c.h.b16 %v1075
        %v3859 = vunpack.c.l.b16 %v1076
        %v3860 = vunpack.c.h.b16 %v1076
        %v3861 = vunpack.c.l.b16 %v1077
        %v3862 = vunpack.c.h.b16 %v1077
        %v3863 = vunpack.c.l.b16 %v1078
        %v3864 = vunpack.c.h.b16 %v1078
        %v3865 = vunpack.c.l.b16 %v1079
        %v3866 = vunpack.c.h.b16 %v1079
        %v3867 = vunpack.c.l.b16 %v1080
        %v3868 = vunpack.c.h.b16 %v1080
        %v3869 = vunpack.c.l.b16 %v1081
        %v3870 = vunpack.c.h.b16 %v1081
        %v3871 = vunpack.c.l.b16 %v1082
        %v3872 = vunpack.c.h.b16 %v1082
        %v3873 = vunpack.c.l.b16 %v1083
        %v3874 = vunpack.c.h.b16 %v1083
        %v3875 = vunpack.c.l.b16 %v1084
        %v3876 = vunpack.c.h.b16 %v1084
        %v3877 = vunpack.c.l.b16 %v1085
        %v3878 = vunpack.c.h.b16 %v1085
        %v3879 = vunpack.c.l.b16 %v1086
        %v3880 = vunpack.c.h.b16 %v1086
        %v3881 = vunpack.c.l.b16 %v1087
        %v3882 = vunpack.c.h.b16 %v1087
        %v3883 = vunpack.c.l.b16 %v1088
        %v3884 = vunpack.c.h.b16 %v1088
        %v3885 = vunpack.c.l.b16 %v1089
        %v3886 = vunpack.c.h.b16 %v1089
        %v3887 = vunpack.c.l.b16 %v1090
        %v3888 = vunpack.c.h.b16 %v1090
        %v3889 = vunpack.c.l.b16 %v1091
        %v3890 = vunpack.c.h.b16 %v1091
        %v3891 = vunpack.c.l.b16 %v1092
        %v3892 = vunpack.c.h.b16 %v1092
        %v3893 = vunpack.c.l.b16 %v1093
        %v3894 = vunpack.c.h.b16 %v1093
        %v3895 = vunpack.c.l.b16 %v1094
        %v3896 = vunpack.c.h.b16 %v1094
        %v3897 = vunpack.c.l.b16 %v1095
        %v3898 = vunpack.c.h.b16 %v1095
        %v3899 = vunpack.c.l.b16 %v1096
        %v3900 = vunpack.c.h.b16 %v1096
        %v3901 = vunpack.c.l.b16 %v1097
        %v3902 = vunpack.c.h.b16 %v1097
        %v3903 = vunpack.c.l.b16 %v1098
        %v3904 = vunpack.c.h.b16 %v1098
        %v3905 = vunpack.c.l.b16 %v1099
        %v3906 = vunpack.c.h.b16 %v1099
        %v3907 = vunpack.c.l.b16 %v1100
        %v3908 = vunpack.c.h.b16 %v1100
        %v3909 = vunpack.c.l.b16 %v1101
        %v3910 = vunpack.c.h.b16 %v1101
        %v3911 = vunpack.c.l.b16 %v1102
        %v3912 = vunpack.c.h.b16 %v1102
        %v3913 = vunpack.c.l.b16 %v1103
        %v3914 = vunpack.c.h.b16 %v1103
        %v3915 = vunpack.c.l.b16 %v1104
        %v3916 = vunpack.c.h.b16 %v1104
        %v3917 = vunpack.c.l.b16 %v1105
        %v3918 = vunpack.c.h.b16 %v1105
        %v3919 = vunpack.c.l.b16 %v1106
        %v3920 = vunpack.c.h.b16 %v1106
        %v3921 = vunpack.c.l.b16 %v1107
        %v3922 = vunpack.c.h.b16 %v1107
        %v3923 = vunpack.c.l.b16 %v1108
        %v3924 = vunpack.c.h.b16 %v1108
        %v3925 = vunpack.c.l.b16 %v1109
        %v3926 = vunpack.c.h.b16 %v1109
        %v3927 = vunpack.c.l.b16 %v1110
        %v3928 = vunpack.c.h.b16 %v1110
        %v3929 = vunpack.c.l.b16 %v1111
        %v3930 = vunpack.c.h.b16 %v1111
        %v3931 = vunpack.c.l.b16 %v1112
        %v3932 = vunpack.c.h.b16 %v1112
        %v3933 = vunpack.c.l.b16 %v1113
        %v3934 = vunpack.c.h.b16 %v1113
        %v3935 = vunpack.c.l.b16 %v1114
        %v3936 = vunpack.c.h.b16 %v1114
        %v3937 = vunpack.c.l.b16 %v1115
        %v3938 = vunpack.c.h.b16 %v1115
        %v3939 = vunpack.c.l.b16 %v1116
        %v3940 = vunpack.c.h.b16 %v1116
        %v3941 = vunpack.c.l.b16 %v1117
        %v3942 = vunpack.c.h.b16 %v1117
        %v3943 = vunpack.c.l.b16 %v1118
        %v3944 = vunpack.c.h.b16 %v1118
        %v3945 = vunpack.c.l.b16 %v1119
        %v3946 = vunpack.c.h.b16 %v1119
        %v3947 = vunpack.c.l.b16 %v1120
        %v3948 = vunpack.c.h.b16 %v1120
        %v3949 = vunpack.c.l.b16 %v1121
        %v3950 = vunpack.c.h.b16 %v1121
        %v3951 = vunpack.c.l.b16 %v1122
        %v3952 = vunpack.c.h.b16 %v1122
        %v3953 = vunpack.c.l.b16 %v1123
        %v3954 = vunpack.c.h.b16 %v1123
        %v3955 = vunpack.c.l.b16 %v1124
        %v3956 = vunpack.c.h.b16 %v1124
        %v3957 = vunpack.c.l.b16 %v1125
        %v3958 = vunpack.c.h.b16 %v1125
        %v3959 = vunpack.c.l.b16 %v1126
        %v3960 = vunpack.c.h.b16 %v1126
        %v3961 = vunpack.c.l.b16 %v1127
        %v3962 = vunpack.c.h.b16 %v1127
        %v3963 = vunpack.c.l.b16 %v1128
        %v3964 = vunpack.c.h.b16 %v1128
        %v3965 = vunpack.c.l.b16 %v1129
        %v3966 = vunpack.c.h.b16 %v1129
        %v3967 = vunpack.c.l.b16 %v1130
        %v3968 = vunpack.c.h.b16 %v1130
        %v3969 = vunpack.c.l.b16 %v1131
        %v3970 = vunpack.c.h.b16 %v1131
        %v3971 = vunpack.c.l.b16 %v1132
        %v3972 = vunpack.c.h.b16 %v1132
        %v3973 = vunpack.c.l.b16 %v1133
        %v3974 = vunpack.c.h.b16 %v1133
        %v3975 = vunpack.c.l.b16 %v1134
        %v3976 = vunpack.c.h.b16 %v1134
        %v3977 = vunpack.c.l.b16 %v1135
        %v3978 = vunpack.c.h.b16 %v1135
        %v3979 = vunpack.c.l.b16 %v1136
        %v3980 = vunpack.c.h.b16 %v1136
        %v3981 = vunpack.c.l.b16 %v1137
        %v3982 = vunpack.c.h.b16 %v1137
        %v3983 = vunpack.c.l.b16 %v1138
        %v3984 = vunpack.c.h.b16 %v1138
        %v3985 = vunpack.c.l.b16 %v1139
        %v3986 = vunpack.c.h.b16 %v1139
        %v3987 = vunpack.c.l.b16 %v1140
        %v3988 = vunpack.c.h.b16 %v1140
        %v3989 = vunpack.c.l.b16 %v1141
        %v3990 = vunpack.c.h.b16 %v1141
        %v3991 = vunpack.c.l.b16 %v1142
        %v3992 = vunpack.c.h.b16 %v1142
        %v3993 = vunpack.c.l.b16 %v1143
        %v3994 = vunpack.c.h.b16 %v1143
        %v3995 = vunpack.c.l.b16 %v1144
        %v3996 = vunpack.c.h.b16 %v1144
        %v3997 = vunpack.c.l.b16 %v1145
        %v3998 = vunpack.c.h.b16 %v1145
        %v3999 = vunpack.c.l.b16 %v1146
        %v4000 = vunpack.c.h.b16 %v1146
        %v4001 = vunpack.c.l.b16 %v1147
        %v4002 = vunpack.c.h.b16 %v1147
        %v4003 = vunpack.c.l.b16 %v1148
        %v4004 = vunpack.c.h.b16 %v1148
        %v4005 = vunpack.c.l.b16 %v1149
        %v4006 = vunpack.c.h.b16 %v1149
        %v4007 = vunpack.c.l.b16 %v1150
        %v4008 = vunpack.c.h.b16 %v1150
        %v4009 = vunpack.c.l.b16 %v1151
        %v4010 = vunpack.c.h.b16 %v1151
        %v4011 = vunpack.c.l.b16 %v1152
        %v4012 = vunpack.c.h.b16 %v1152
        %v4013 = vunpack.c.l.b16 %v1153
        %v4014 = vunpack.c.h.b16 %v1153
        %v4015 = vunpack.c.l.b16 %v1154
        %v4016 = vunpack.c.h.b16 %v1154
        %v4017 = vunpack.c.l.b16 %v1155
        %v4018 = vunpack.c.h.b16 %v1155
        %v4019 = vunpack.c.l.b16 %v1156
        %v4020 = vunpack.c.h.b16 %v1156
        %v4021 = vunpack.c.l.b16 %v1157
        %v4022 = vunpack.c.h.b16 %v1157
        %v4023 = vunpack.c.l.b16 %v1158
        %v4024 = vunpack.c.h.b16 %v1158
        %v4025 = vunpack.c.l.b16 %v1159
        %v4026 = vunpack.c.h.b16 %v1159
        %v4027 = vunpack.c.l.b16 %v1160
        %v4028 = vunpack.c.h.b16 %v1160
        %v4029 = vunpack.c.l.b16 %v1161
        %v4030 = vunpack.c.h.b16 %v1161
        %v4031 = vunpack.c.l.b16 %v1162
        %v4032 = vunpack.c.h.b16 %v1162
        %v4033 = vunpack.c.l.b16 %v1163
        %v4034 = vunpack.c.h.b16 %v1163
        %v4035 = vunpack.c.l.b16 %v1164
        %v4036 = vunpack.c.h.b16 %v1164
        %v4037 = vunpack.c.l.b16 %v1165
        %v4038 = vunpack.c.h.b16 %v1165
        %v4039 = vunpack.c.l.b16 %v1166
        %v4040 = vunpack.c.h.b16 %v1166
        %v4041 = vunpack.c.l.b16 %v1167
        %v4042 = vunpack.c.h.b16 %v1167
        %v4043 = vunpack.c.l.b16 %v1168
        %v4044 = vunpack.c.h.b16 %v1168
        %v4045 = vunpack.c.l.b16 %v1169
        %v4046 = vunpack.c.h.b16 %v1169
        %v4047 = vunpack.c.l.b16 %v1170
        %v4048 = vunpack.c.h.b16 %v1170
        %v4049 = vunpack.c.l.b16 %v1171
        %v4050 = vunpack.c.h.b16 %v1171
        %v4051 = vunpack.c.l.b16 %v1172
        %v4052 = vunpack.c.h.b16 %v1172
        %v4053 = vunpack.c.l.b16 %v1173
        %v4054 = vunpack.c.h.b16 %v1173
        %v4055 = vunpack.c.l.b16 %v1174
        %v4056 = vunpack.c.h.b16 %v1174
        %v4057 = vunpack.c.l.b16 %v1175
        %v4058 = vunpack.c.h.b16 %v1175
        %v4059 = vunpack.c.l.b16 %v1176
        %v4060 = vunpack.c.h.b16 %v1176
        %v4061 = vunpack.c.l.b16 %v1177
        %v4062 = vunpack.c.h.b16 %v1177
        %v4063 = vunpack.c.l.b16 %v1178
        %v4064 = vunpack.c.h.b16 %v1178
        %v4065 = vunpack.c.l.b16 %v1179
        %v4066 = vunpack.c.h.b16 %v1179
        %v4067 = vunpack.c.l.b16 %v1180
        %v4068 = vunpack.c.h.b16 %v1180
        %v4069 = vunpack.c.l.b16 %v1181
        %v4070 = vunpack.c.h.b16 %v1181
        %v4071 = vunpack.c.l.b16 %v1182
        %v4072 = vunpack.c.h.b16 %v1182
        %v4073 = vunpack.c.l.b16 %v1183
        %v4074 = vunpack.c.h.b16 %v1183
        %v4075 = vunpack.c.l.b16 %v1184
        %v4076 = vunpack.c.h.b16 %v1184
        %v4077 = vunpack.c.l.b16 %v1185
        %v4078 = vunpack.c.h.b16 %v1185
        %v4079 = vunpack.c.l.b16 %v1186
        %v4080 = vunpack.c.h.b16 %v1186
        %v4081 = vunpack.c.l.b16 %v1187
        %v4082 = vunpack.c.h.b16 %v1187
        %v4083 = vunpack.c.l.b16 %v1188
        %v4084 = vunpack.c.h.b16 %v1188
        %v4085 = vunpack.c.l.b16 %v1189
        %v4086 = vunpack.c.h.b16 %v1189
        %v4087 = vunpack.c.l.b16 %v1190
        %v4088 = vunpack.c.h.b16 %v1190
        %v4089 = vunpack.c.l.b16 %v1191
        %v4090 = vunpack.c.h.b16 %v1191
        %v4091 = vunpack.c.l.b16 %v1192
        %v4092 = vunpack.c.h.b16 %v1192
        %v4093 = vunpack.c.l.b16 %v1193
        %v4094 = vunpack.c.h.b16 %v1193
        %v4095 = vunpack.c.l.b16 %v1194
        %v4096 = vunpack.c.h.b16 %v1194
        %v4097 = vunpack.c.l.b16 %v1195
        %v4098 = vunpack.c.h.b16 %v1195
        %v4099 = vunpack.c.l.b16 %v1196
        %v4100 = vunpack.c.h.b16 %v1196
        %v4101 = vunpack.c.l.b16 %v1197
        %v4102 = vunpack.c.h.b16 %v1197
        %v4103 = vunpack.c.l.b16 %v1198
        %v4104 = vunpack.c.h.b16 %v1198
        %v4105 = vunpack.c.l.b16 %v1199
        %v4106 = vunpack.c.h.b16 %v1199
        %v4107 = vunpack.c.l.b16 %v1200
        %v4108 = vunpack.c.h.b16 %v1200
        %v4109 = vunpack.c.l.b16 %v1201
        %v4110 = vunpack.c.h.b16 %v1201
        %v4111 = vunpack.c.l.b16 %v1202
        %v4112 = vunpack.c.h.b16 %v1202
        %v4113 = vunpack.c.l.b16 %v1203
        %v4114 = vunpack.c.h.b16 %v1203
        %v4115 = vunpack.c.l.b16 %v1204
        %v4116 = vunpack.c.h.b16 %v1204
        %v4117 = vunpack.c.l.b16 %v1205
        %v4118 = vunpack.c.h.b16 %v1205
        %v4119 = vunpack.c.l.b16 %v1206
        %v4120 = vunpack.c.h.b16 %v1206
        %v4121 = vunpack.c.l.b16 %v1207
        %v4122 = vunpack.c.h.b16 %v1207
        %v4123 = vunpack.c.l.b16 %v1208
        %v4124 = vunpack.c.h.b16 %v1208
        %v4125 = vunpack.c.l.b16 %v1209
        %v4126 = vunpack.c.h.b16 %v1209
        %v4127 = vunpack.c.l.b16 %v1210
        %v4128 = vunpack.c.h.b16 %v1210
        %v4129 = vunpack.c.l.b16 %v1211
        %v4130 = vunpack.c.h.b16 %v1211
        %v4131 = vunpack.c.l.b16 %v1212
        %v4132 = vunpack.c.h.b16 %v1212
        %v4133 = vunpack.c.l.b16 %v1213
        %v4134 = vunpack.c.h.b16 %v1213
        %v4135 = vunpack.c.l.b16 %v1214
        %v4136 = vunpack.c.h.b16 %v1214
        %v4137 = vunpack.c.l.b16 %v1215
        %v4138 = vunpack.c.h.b16 %v1215
        %v4139 = vunpack.c.l.b16 %v1216
        %v4140 = vunpack.c.h.b16 %v1216
        %v4141 = vunpack.c.l.b16 %v1217
        %v4142 = vunpack.c.h.b16 %v1217
        %v4143 = vunpack.c.l.b16 %v1218
        %v4144 = vunpack.c.h.b16 %v1218
        %v4145 = vunpack.c.l.b16 %v1219
        %v4146 = vunpack.c.h.b16 %v1219
        %v4147 = vunpack.c.l.b16 %v1220
        %v4148 = vunpack.c.h.b16 %v1220
        %v4149 = vunpack.c.l.b16 %v1221
        %v4150 = vunpack.c.h.b16 %v1221
        %v4151 = vunpack.c.l.b16 %v1222
        %v4152 = vunpack.c.h.b16 %v1222
        %v4153 = vunpack.c.l.b16 %v1223
        %v4154 = vunpack.c.h.b16 %v1223
        %v4155 = vunpack.c.l.b16 %v1224
        %v4156 = vunpack.c.h.b16 %v1224
        %v4157 = vunpack.c.l.b16 %v1225
        %v4158 = vunpack.c.h.b16 %v1225
        %v4159 = vunpack.c.l.b16 %v1226
        %v4160 = vunpack.c.h.b16 %v1226
        %v4161 = vunpack.c.l.b16 %v1227
        %v4162 = vunpack.c.h.b16 %v1227
        %v4163 = vunpack.c.l.b16 %v1228
        %v4164 = vunpack.c.h.b16 %v1228
        %v4165 = vunpack.c.l.b16 %v1229
        %v4166 = vunpack.c.h.b16 %v1229
        %v4167 = vunpack.c.l.b16 %v1230
        %v4168 = vunpack.c.h.b16 %v1230
        %v4169 = vunpack.c.l.b16 %v1231
        %v4170 = vunpack.c.h.b16 %v1231
        %v4171 = vunpack.c.l.b16 %v1232
        %v4172 = vunpack.c.h.b16 %v1232
        %v4173 = vunpack.c.l.b16 %v1233
        %v4174 = vunpack.c.h.b16 %v1233
        %v4175 = vunpack.c.l.b16 %v1234
        %v4176 = vunpack.c.h.b16 %v1234
        %v4177 = vunpack.c.l.b16 %v1235
        %v4178 = vunpack.c.h.b16 %v1235
        %v4179 = vunpack.c.l.b16 %v1236
        %v4180 = vunpack.c.h.b16 %v1236
        %v4181 = vunpack.c.l.b16 %v1237
        %v4182 = vunpack.c.h.b16 %v1237
        %v4183 = vunpack.c.l.b16 %v1238
        %v4184 = vunpack.c.h.b16 %v1238
        %v4185 = vunpack.c.l.b16 %v1239
        %v4186 = vunpack.c.h.b16 %v1239
        %v4187 = vunpack.c.l.b16 %v1240
        %v4188 = vunpack.c.h.b16 %v1240
        %v4189 = vunpack.c.l.b16 %v1241
        %v4190 = vunpack.c.h.b16 %v1241
        %v4191 = vunpack.c.l.b16 %v1242
        %v4192 = vunpack.c.h.b16 %v1242
        %v4193 = vunpack.c.l.b16 %v1243
        %v4194 = vunpack.c.h.b16 %v1243
        %v4195 = vunpack.c.l.b16 %v1244
        %v4196 = vunpack.c.h.b16 %v1244
        %v4197 = vunpack.c.l.b16 %v1245
        %v4198 = vunpack.c.h.b16 %v1245
        %v4199 = vunpack.c.l.b16 %v1246
        %v4200 = vunpack.c.h.b16 %v1246
        %v4201 = vunpack.c.l.b16 %v1247
        %v4202 = vunpack.c.h.b16 %v1247
        %v4203 = vunpack.c.l.b16 %v1248
        %v4204 = vunpack.c.h.b16 %v1248
        %v4205 = vunpack.c.l.b16 %v1249
        %v4206 = vunpack.c.h.b16 %v1249
        %v4207 = vunpack.c.l.b16 %v1250
        %v4208 = vunpack.c.h.b16 %v1250
        %v4209 = vunpack.c.l.b16 %v1251
        %v4210 = vunpack.c.h.b16 %v1251
        %v4211 = vunpack.c.l.b16 %v1252
        %v4212 = vunpack.c.h.b16 %v1252
        %v4213 = vunpack.c.l.b16 %v1253
        %v4214 = vunpack.c.h.b16 %v1253
        %v4215 = vunpack.c.l.b16 %v1254
        %v4216 = vunpack.c.h.b16 %v1254
        %v4217 = vunpack.c.l.b16 %v1255
        %v4218 = vunpack.c.h.b16 %v1255
        %v4219 = vunpack.c.l.b16 %v1256
        %v4220 = vunpack.c.h.b16 %v1256
        %v4221 = vunpack.c.l.b16 %v1257
        %v4222 = vunpack.c.h.b16 %v1257
        %v4223 = vunpack.c.l.b16 %v1258
        %v4224 = vunpack.c.h.b16 %v1258
        %v4225 = vunpack.c.l.b16 %v1259
        %v4226 = vunpack.c.h.b16 %v1259
        %v4227 = vunpack.c.l.b16 %v1260
        %v4228 = vunpack.c.h.b16 %v1260
        %v4229 = vunpack.c.l.b16 %v1261
        %v4230 = vunpack.c.h.b16 %v1261
        %v4231 = vunpack.c.l.b16 %v1262
        %v4232 = vunpack.c.h.b16 %v1262
        %v4233 = vunpack.c.l.b16 %v1263
        %v4234 = vunpack.c.h.b16 %v1263
        %v4235 = vunpack.c.l.b16 %v1264
        %v4236 = vunpack.c.h.b16 %v1264
        %v4237 = vunpack.c.l.b16 %v1265
        %v4238 = vunpack.c.h.b16 %v1265
        %v4239 = vunpack.c.l.b16 %v1266
        %v4240 = vunpack.c.h.b16 %v1266
        %v4241 = vunpack.c.l.b16 %v1267
        %v4242 = vunpack.c.h.b16 %v1267
        %v4243 = vunpack.c.l.b16 %v1268
        %v4244 = vunpack.c.h.b16 %v1268
        %v4245 = vunpack.c.l.b16 %v1269
        %v4246 = vunpack.c.h.b16 %v1269
        %v4247 = vunpack.c.l.b16 %v1270
        %v4248 = vunpack.c.h.b16 %v1270
        %v4249 = vunpack.c.l.b16 %v1271
        %v4250 = vunpack.c.h.b16 %v1271
        %v4251 = vunpack.c.l.b16 %v1272
        %v4252 = vunpack.c.h.b16 %v1272
        %v4253 = vunpack.c.l.b16 %v1273
        %v4254 = vunpack.c.h.b16 %v1273
        %v4255 = vunpack.c.l.b16 %v1274
        %v4256 = vunpack.c.h.b16 %v1274
        %v4257 = vunpack.c.l.b16 %v1275
        %v4258 = vunpack.c.h.b16 %v1275
        %v4259 = vunpack.c.l.b16 %v1276
        %v4260 = vunpack.c.h.b16 %v1276
        %v4261 = vunpack.c.l.b16 %v1277
        %v4262 = vunpack.c.h.b16 %v1277
        %v4263 = vunpack.c.l.b16 %v1278
        %v4264 = vunpack.c.h.b16 %v1278
        %v4265 = vunpack.c.l.b16 %v1279
        %v4266 = vunpack.c.h.b16 %v1279
        %v4267 = vunpack.c.l.b16 %v1280
        %v4268 = vunpack.c.h.b16 %v1280
        %v4269 = vunpack.c.l.b16 %v1281
        %v4270 = vunpack.c.h.b16 %v1281
        %v4271 = vunpack.c.l.b16 %v1282
        %v4272 = vunpack.c.h.b16 %v1282
        %v4273 = vunpack.c.l.b16 %v1283
        %v4274 = vunpack.c.h.b16 %v1283
        %v4275 = vunpack.c.l.b16 %v1284
        %v4276 = vunpack.c.h.b16 %v1284
        %v4277 = vunpack.c.l.b16 %v1285
        %v4278 = vunpack.c.h.b16 %v1285
        %v4279 = vunpack.c.l.b16 %v1286
        %v4280 = vunpack.c.h.b16 %v1286
        %v4281 = vunpack.c.l.b16 %v1287
        %v4282 = vunpack.c.h.b16 %v1287
        %v4283 = vunpack.c.l.b16 %v1288
        %v4284 = vunpack.c.h.b16 %v1288
        %v4285 = vunpack.c.l.b16 %v1289
        %v4286 = vunpack.c.h.b16 %v1289
        %v4287 = vunpack.c.l.b16 %v1290
        %v4288 = vunpack.c.h.b16 %v1290
        %v4289 = vunpack.c.l.b16 %v1291
        %v4290 = vunpack.c.h.b16 %v1291
        %v4291 = vunpack.c.l.b16 %v1292
        %v4292 = vunpack.c.h.b16 %v1292
        %v4293 = vunpack.c.l.b16 %v1293
        %v4294 = vunpack.c.h.b16 %v1293
        %v4295 = vunpack.c.l.b16 %v1294
        %v4296 = vunpack.c.h.b16 %v1294
        %v4297 = vunpack.c.l.b16 %v1295
        %v4298 = vunpack.c.h.b16 %v1295
        %v4299 = vunpack.c.l.b16 %v1296
        %v4300 = vunpack.c.h.b16 %v1296
        %v4301 = vunpack.c.l.b16 %v1297
        %v4302 = vunpack.c.h.b16 %v1297
        %v4303 = vunpack.c.l.b16 %v1298
        %v4304 = vunpack.c.h.b16 %v1298
        %v4305 = vunpack.c.l.b16 %v1299
        %v4306 = vunpack.c.h.b16 %v1299
        %v4307 = vunpack.c.l.b16 %v1300
        %v4308 = vunpack.c.h.b16 %v1300
        %v4309 = vunpack.c.l.b16 %v1301
        %v4310 = vunpack.c.h.b16 %v1301
        %v4311 = vunpack.c.l.b16 %v1302
        %v4312 = vunpack.c.h.b16 %v1302
        %v4313 = vunpack.c.l.b16 %v1303
        %v4314 = vunpack.c.h.b16 %v1303
        %v4315 = vunpack.c.l.b16 %v1304
        %v4316 = vunpack.c.h.b16 %v1304
        %v4317 = vunpack.c.l.b16 %v1305
        %v4318 = vunpack.c.h.b16 %v1305
        %v4319 = vunpack.c.l.b16 %v1306
        %v4320 = vunpack.c.h.b16 %v1306
        %v4321 = vunpack.c.l.b16 %v1307
        %v4322 = vunpack.c.h.b16 %v1307
        %v4323 = vunpack.c.l.b16 %v1308
        %v4324 = vunpack.c.h.b16 %v1308
        %v4325 = vunpack.c.l.b16 %v1309
        %v4326 = vunpack.c.h.b16 %v1309
        %v4327 = vunpack.c.l.b16 %v1310
        %v4328 = vunpack.c.h.b16 %v1310
        %v4329 = vunpack.c.l.b16 %v1311
        %v4330 = vunpack.c.h.b16 %v1311
        %v4331 = vunpack.c.l.b16 %v1312
        %v4332 = vunpack.c.h.b16 %v1312
        %v4333 = vunpack.c.l.b16 %v1313
        %v4334 = vunpack.c.h.b16 %v1313
        %v4335 = vunpack.c.l.b16 %v1314
        %v4336 = vunpack.c.h.b16 %v1314
        %v4337 = vunpack.c.l.b16 %v1315
        %v4338 = vunpack.c.h.b16 %v1315
        %v4339 = vunpack.c.l.b16 %v1316
        %v4340 = vunpack.c.h.b16 %v1316
        %v4341 = vunpack.c.l.b16 %v1317
        %v4342 = vunpack.c.h.b16 %v1317
        %v4343 = vunpack.c.l.b16 %v1318
        %v4344 = vunpack.c.h.b16 %v1318
        %v4345 = vunpack.c.l.b16 %v1319
        %v4346 = vunpack.c.h.b16 %v1319
        %v4347 = vunpack.c.l.b16 %v1320
        %v4348 = vunpack.c.h.b16 %v1320
        %v4349 = vunpack.c.l.b16 %v1321
        %v4350 = vunpack.c.h.b16 %v1321
        %v4351 = vunpack.c.l.b16 %v1322
        %v4352 = vunpack.c.h.b16 %v1322
        %v4353 = vunpack.c.l.b16 %v1323
        %v4354 = vunpack.c.h.b16 %v1323
        %v4355 = vunpack.c.l.b16 %v1324
        %v4356 = vunpack.c.h.b16 %v1324
        %v4357 = vunpack.c.l.b16 %v1325
        %v4358 = vunpack.c.h.b16 %v1325
        %v4359 = vunpack.c.l.b16 %v1326
        %v4360 = vunpack.c.h.b16 %v1326
        %v4361 = vunpack.c.l.b16 %v1327
        %v4362 = vunpack.c.h.b16 %v1327
        %v4363 = vunpack.c.l.b16 %v1328
        %v4364 = vunpack.c.h.b16 %v1328
        %v4365 = vunpack.c.l.b16 %v1329
        %v4366 = vunpack.c.h.b16 %v1329
        %v4367 = vunpack.c.l.b16 %v1330
        %v4368 = vunpack.c.h.b16 %v1330
        %v4369 = vunpack.c.l.b16 %v1331
        %v4370 = vunpack.c.h.b16 %v1331
        %v4371 = vunpack.c.l.b16 %v1332
        %v4372 = vunpack.c.h.b16 %v1332
        %v4373 = vunpack.c.l.b16 %v1333
        %v4374 = vunpack.c.h.b16 %v1333
        %v4375 = vunpack.c.l.b16 %v1334
        %v4376 = vunpack.c.h.b16 %v1334
        %v4377 = vunpack.c.l.b16 %v1335
        %v4378 = vunpack.c.h.b16 %v1335
        %v4379 = vunpack.c.l.b16 %v1336
        %v4380 = vunpack.c.h.b16 %v1336
        %v4381 = vunpack.c.l.b16 %v1337
        %v4382 = vunpack.c.h.b16 %v1337
        %v4383 = vunpack.c.l.b16 %v1338
        %v4384 = vunpack.c.h.b16 %v1338
        %v4385 = vunpack.c.l.b16 %v1339
        %v4386 = vunpack.c.h.b16 %v1339
        %v4387 = vunpack.c.l.b16 %v1340
        %v4388 = vunpack.c.h.b16 %v1340
        %v4389 = vunpack.c.l.b16 %v1341
        %v4390 = vunpack.c.h.b16 %v1341
        %v4391 = vunpack.c.l.b16 %v1342
        %v4392 = vunpack.c.h.b16 %v1342
        %v4393 = vunpack.c.l.b16 %v1343
        %v4394 = vunpack.c.h.b16 %v1343
        %v4395 = vunpack.c.l.b16 %v1344
        %v4396 = vunpack.c.h.b16 %v1344
        %v4397 = vunpack.c.l.b16 %v1345
        %v4398 = vunpack.c.h.b16 %v1345
        %v4399 = vunpack.c.l.b16 %v1346
        %v4400 = vunpack.c.h.b16 %v1346
        %v4401 = vunpack.c.l.b16 %v1347
        %v4402 = vunpack.c.h.b16 %v1347
        %v4403 = vunpack.c.l.b16 %v1348
        %v4404 = vunpack.c.h.b16 %v1348
        %v4405 = vunpack.c.l.b16 %v1349
        %v4406 = vunpack.c.h.b16 %v1349
        %v4407 = vunpack.c.l.b16 %v1350
        %v4408 = vunpack.c.h.b16 %v1350
        %v4409 = vunpack.c.l.b16 %v1351
        %v4410 = vunpack.c.h.b16 %v1351
        %v4411 = vunpack.c.l.b16 %v1352
        %v4412 = vunpack.c.h.b16 %v1352
        %v4413 = vunpack.c.l.b16 %v1353
        %v4414 = vunpack.c.h.b16 %v1353
        %v4415 = vunpack.c.l.b16 %v1354
        %v4416 = vunpack.c.h.b16 %v1354
        %v4417 = vunpack.c.l.b16 %v1355
        %v4418 = vunpack.c.h.b16 %v1355
        %v4419 = vunpack.c.l.b16 %v1356
        %v4420 = vunpack.c.h.b16 %v1356
        %v4421 = vunpack.c.l.b16 %v1357
        %v4422 = vunpack.c.h.b16 %v1357
        %v4423 = vunpack.c.l.b16 %v1358
        %v4424 = vunpack.c.h.b16 %v1358
        %v4425 = vunpack.c.l.b16 %v1359
        %v4426 = vunpack.c.h.b16 %v1359
        %v4427 = vunpack.c.l.b16 %v1360
        %v4428 = vunpack.c.h.b16 %v1360
        %v4429 = vunpack.c.l.b16 %v1361
        %v4430 = vunpack.c.h.b16 %v1361
        %v4431 = vunpack.c.l.b16 %v1362
        %v4432 = vunpack.c.h.b16 %v1362
        %v4433 = vunpack.c.l.b16 %v1363
        %v4434 = vunpack.c.h.b16 %v1363
        %v4435 = vunpack.c.l.b16 %v1364
        %v4436 = vunpack.c.h.b16 %v1364
        %v4437 = vpack.c.b16 %v2397, %v2389
        %v4438 = vpack.c.b16 %v2398, %v2390
        %v4439 = vpack.c.b16 %v2399, %v2391
        %v4440 = vpack.c.b16 %v2400, %v2392
        %v4441 = vpack.c.b16 %v2401, %v2393
        %v4442 = vpack.c.b16 %v2402, %v2394
        %v4443 = vpack.c.b16 %v2403, %v2395
        %v4444 = vpack.c.b16 %v2404, %v2396
        %v4445 = vpack.c.b16 %v2413, %v2405
        %v4446 = vpack.c.b16 %v2414, %v2406
        %v4447 = vpack.c.b16 %v2415, %v2407
        %v4448 = vpack.c.b16 %v2416, %v2408
        %v4449 = vpack.c.b16 %v2417, %v2409
        %v4450 = vpack.c.b16 %v2418, %v2410
        %v4451 = vpack.c.b16 %v2419, %v2411
        %v4452 = vpack.c.b16 %v2420, %v2412
        %v4453 = vpack.c.b16 %v2429, %v2421
        %v4454 = vpack.c.b16 %v2430, %v2422
        %v4455 = vpack.c.b16 %v2431, %v2423
        %v4456 = vpack.c.b16 %v2432, %v2424
        %v4457 = vpack.c.b16 %v2433, %v2425
        %v4458 = vpack.c.b16 %v2434, %v2426
        %v4459 = vpack.c.b16 %v2435, %v2427
        %v4460 = vpack.c.b16 %v2436, %v2428
        %v4461 = vpack.c.b16 %v2445, %v2437
        %v4462 = vpack.c.b16 %v2446, %v2438
        %v4463 = vpack.c.b16 %v2447, %v2439
        %v4464 = vpack.c.b16 %v2448, %v2440
        %v4465 = vpack.c.b16 %v2449, %v2441
        %v4466 = vpack.c.b16 %v2450, %v2442
        %v4467 = vpack.c.b16 %v2451, %v2443
        %v4468 = vpack.c.b16 %v2452, %v2444
        %v4469 = vpack.c.b16 %v2461, %v2453
        %v4470 = vpack.c.b16 %v2462, %v2454
        %v4471 = vpack.c.b16 %v2463, %v2455
        %v4472 = vpack.c.b16 %v2464, %v2456
        %v4473 = vpack.c.b16 %v2465, %v2457
        %v4474 = vpack.c.b16 %v2466, %v2458
        %v4475 = vpack.c.b16 %v2467, %v2459
        %v4476 = vpack.c.b16 %v2468, %v2460
        %v4477 = vpack.c.b16 %v2477, %v2469
        %v4478 = vpack.c.b16 %v2478, %v2470
        %v4479 = vpack.c.b16 %v2479, %v2471
        %v4480 = vpack.c.b16 %v2480, %v2472
        %v4481 = vpack.c.b16 %v2481, %v2473
        %v4482 = vpack.c.b16 %v2482, %v2474
        %v4483 = vpack.c.b16 %v2483, %v2475
        %v4484 = vpack.c.b16 %v2484, %v2476
        %v4485 = vpack.c.b16 %v2493, %v2485
        %v4486 = vpack.c.b16 %v2494, %v2486
        %v4487 = vpack.c.b16 %v2495, %v2487
        %v4488 = vpack.c.b16 %v2496, %v2488
        %v4489 = vpack.c.b16 %v2497, %v2489
        %v4490 = vpack.c.b16 %v2498, %v2490
        %v4491 = vpack.c.b16 %v2499, %v2491
        %v4492 = vpack.c.b16 %v2500, %v2492
        %v4493 = vpack.c.b16 %v2509, %v2501
        %v4494 = vpack.c.b16 %v2510, %v2502
        %v4495 = vpack.c.b16 %v2511, %v2503
        %v4496 = vpack.c.b16 %v2512, %v2504
        %v4497 = vpack.c.b16 %v2513, %v2505
        %v4498 = vpack.c.b16 %v2514, %v2506
        %v4499 = vpack.c.b16 %v2515, %v2507
        %v4500 = vpack.c.b16 %v2516, %v2508
        %v4501 = vpack.c.b16 %v2525, %v2517
        %v4502 = vpack.c.b16 %v2526, %v2518
        %v4503 = vpack.c.b16 %v2527, %v2519
        %v4504 = vpack.c.b16 %v2528, %v2520
        %v4505 = vpack.c.b16 %v2529, %v2521
        %v4506 = vpack.c.b16 %v2530, %v2522
        %v4507 = vpack.c.b16 %v2531, %v2523
        %v4508 = vpack.c.b16 %v2532, %v2524
        %v4509 = vpack.c.b16 %v2541, %v2533
        %v4510 = vpack.c.b16 %v2542, %v2534
        %v4511 = vpack.c.b16 %v2543, %v2535
        %v4512 = vpack.c.b16 %v2544, %v2536
        %v4513 = vpack.c.b16 %v2545, %v2537
        %v4514 = vpack.c.b16 %v2546, %v2538
        %v4515 = vpack.c.b16 %v2547, %v2539
        %v4516 = vpack.c.b16 %v2548, %v2540
        %v4517 = vpack.c.b16 %v2557, %v2549
        %v4518 = vpack.c.b16 %v2558, %v2550
        %v4519 = vpack.c.b16 %v2559, %v2551
        %v4520 = vpack.c.b16 %v2560, %v2552
        %v4521 = vpack.c.b16 %v2561, %v2553
        %v4522 = vpack.c.b16 %v2562, %v2554
        %v4523 = vpack.c.b16 %v2563, %v2555
        %v4524 = vpack.c.b16 %v2564, %v2556
        %v4525 = vpack.c.b16 %v2573, %v2565
        %v4526 = vpack.c.b16 %v2574, %v2566
        %v4527 = vpack.c.b16 %v2575, %v2567
        %v4528 = vpack.c.b16 %v2576, %v2568
        %v4529 = vpack.c.b16 %v2577, %v2569
        %v4530 = vpack.c.b16 %v2578, %v2570
        %v4531 = vpack.c.b16 %v2579, %v2571
        %v4532 = vpack.c.b16 %v2580, %v2572
        %v4533 = vpack.c.b16 %v2589, %v2581
        %v4534 = vpack.c.b16 %v2590, %v2582
        %v4535 = vpack.c.b16 %v2591, %v2583
        %v4536 = vpack.c.b16 %v2592, %v2584
        %v4537 = vpack.c.b16 %v2593, %v2585
        %v4538 = vpack.c.b16 %v2594, %v2586
        %v4539 = vpack.c.b16 %v2595, %v2587
        %v4540 = vpack.c.b16 %v2596, %v2588
        %v4541 = vpack.c.b16 %v2605, %v2597
        %v4542 = vpack.c.b16 %v2606, %v2598
        %v4543 = vpack.c.b16 %v2607, %v2599
        %v4544 = vpack.c.b16 %v2608, %v2600
        %v4545 = vpack.c.b16 %v2609, %v2601
        %v4546 = vpack.c.b16 %v2610, %v2602
        %v4547 = vpack.c.b16 %v2611, %v2603
        %v4548 = vpack.c.b16 %v2612, %v2604
        %v4549 = vpack.c.b16 %v2621, %v2613
        %v4550 = vpack.c.b16 %v2622, %v2614
        %v4551 = vpack.c.b16 %v2623, %v2615
        %v4552 = vpack.c.b16 %v2624, %v2616
        %v4553 = vpack.c.b16 %v2625, %v2617
        %v4554 = vpack.c.b16 %v2626, %v2618
        %v4555 = vpack.c.b16 %v2627, %v2619
        %v4556 = vpack.c.b16 %v2628, %v2620
        %v4557 = vpack.c.b16 %v2637, %v2629
        %v4558 = vpack.c.b16 %v2638, %v2630
        %v4559 = vpack.c.b16 %v2639, %v2631
        %v4560 = vpack.c.b16 %v2640, %v2632
        %v4561 = vpack.c.b16 %v2641, %v2633
        %v4562 = vpack.c.b16 %v2642, %v2634
        %v4563 = vpack.c.b16 %v2643, %v2635
        %v4564 = vpack.c.b16 %v2644, %v2636
        %v4565 = vpack.c.b16 %v2653, %v2645
        %v4566 = vpack.c.b16 %v2654, %v2646
        %v4567 = vpack.c.b16 %v2655, %v2647
        %v4568 = vpack.c.b16 %v2656, %v2648
        %v4569 = vpack.c.b16 %v2657, %v2649
        %v4570 = vpack.c.b16 %v2658, %v2650
        %v4571 = vpack.c.b16 %v2659, %v2651
        %v4572 = vpack.c.b16 %v2660, %v2652
        %v4573 = vpack.c.b16 %v2669, %v2661
        %v4574 = vpack.c.b16 %v2670, %v2662
        %v4575 = vpack.c.b16 %v2671, %v2663
        %v4576 = vpack.c.b16 %v2672, %v2664
        %v4577 = vpack.c.b16 %v2673, %v2665
        %v4578 = vpack.c.b16 %v2674, %v2666
        %v4579 = vpack.c.b16 %v2675, %v2667
        %v4580 = vpack.c.b16 %v2676, %v2668
        %v4581 = vpack.c.b16 %v2685, %v2677
        %v4582 = vpack.c.b16 %v2686, %v2678
        %v4583 = vpack.c.b16 %v2687, %v2679
        %v4584 = vpack.c.b16 %v2688, %v2680
        %v4585 = vpack.c.b16 %v2689, %v2681
        %v4586 = vpack.c.b16 %v2690, %v2682
        %v4587 = vpack.c.b16 %v2691, %v2683
        %v4588 = vpack.c.b16 %v2692, %v2684
        %v4589 = vpack.c.b16 %v2701, %v2693
        %v4590 = vpack.c.b16 %v2702, %v2694
        %v4591 = vpack.c.b16 %v2703, %v2695
        %v4592 = vpack.c.b16 %v2704, %v2696
        %v4593 = vpack.c.b16 %v2705, %v2697
        %v4594 = vpack.c.b16 %v2706, %v2698
        %v4595 = vpack.c.b16 %v2707, %v2699
        %v4596 = vpack.c.b16 %v2708, %v2700
        %v4597 = vpack.c.b16 %v2717, %v2709
        %v4598 = vpack.c.b16 %v2718, %v2710
        %v4599 = vpack.c.b16 %v2719, %v2711
        %v4600 = vpack.c.b16 %v2720, %v2712
        %v4601 = vpack.c.b16 %v2721, %v2713
        %v4602 = vpack.c.b16 %v2722, %v2714
        %v4603 = vpack.c.b16 %v2723, %v2715
        %v4604 = vpack.c.b16 %v2724, %v2716
        %v4605 = vpack.c.b16 %v2733, %v2725
        %v4606 = vpack.c.b16 %v2734, %v2726
        %v4607 = vpack.c.b16 %v2735, %v2727
        %v4608 = vpack.c.b16 %v2736, %v2728
        %v4609 = vpack.c.b16 %v2737, %v2729
        %v4610 = vpack.c.b16 %v2738, %v2730
        %v4611 = vpack.c.b16 %v2739, %v2731
        %v4612 = vpack.c.b16 %v2740, %v2732
        %v4613 = vpack.c.b16 %v2749, %v2741
        %v4614 = vpack.c.b16 %v2750, %v2742
        %v4615 = vpack.c.b16 %v2751, %v2743
        %v4616 = vpack.c.b16 %v2752, %v2744
        %v4617 = vpack.c.b16 %v2753, %v2745
        %v4618 = vpack.c.b16 %v2754, %v2746
        %v4619 = vpack.c.b16 %v2755, %v2747
        %v4620 = vpack.c.b16 %v2756, %v2748
        %v4621 = vpack.c.b16 %v2765, %v2757
        %v4622 = vpack.c.b16 %v2766, %v2758
        %v4623 = vpack.c.b16 %v2767, %v2759
        %v4624 = vpack.c.b16 %v2768, %v2760
        %v4625 = vpack.c.b16 %v2769, %v2761
        %v4626 = vpack.c.b16 %v2770, %v2762
        %v4627 = vpack.c.b16 %v2771, %v2763
        %v4628 = vpack.c.b16 %v2772, %v2764
        %v4629 = vpack.c.b16 %v2781, %v2773
        %v4630 = vpack.c.b16 %v2782, %v2774
        %v4631 = vpack.c.b16 %v2783, %v2775
        %v4632 = vpack.c.b16 %v2784, %v2776
        %v4633 = vpack.c.b16 %v2785, %v2777
        %v4634 = vpack.c.b16 %v2786, %v2778
        %v4635 = vpack.c.b16 %v2787, %v2779
        %v4636 = vpack.c.b16 %v2788, %v2780
        %v4637 = vpack.c.b16 %v2797, %v2789
        %v4638 = vpack.c.b16 %v2798, %v2790
        %v4639 = vpack.c.b16 %v2799, %v2791
        %v4640 = vpack.c.b16 %v2800, %v2792
        %v4641 = vpack.c.b16 %v2801, %v2793
        %v4642 = vpack.c.b16 %v2802, %v2794
        %v4643 = vpack.c.b16 %v2803, %v2795
        %v4644 = vpack.c.b16 %v2804, %v2796
        %v4645 = vpack.c.b16 %v2813, %v2805
        %v4646 = vpack.c.b16 %v2814, %v2806
        %v4647 = vpack.c.b16 %v2815, %v2807
        %v4648 = vpack.c.b16 %v2816, %v2808
        %v4649 = vpack.c.b16 %v2817, %v2809
        %v4650 = vpack.c.b16 %v2818, %v2810
        %v4651 = vpack.c.b16 %v2819, %v2811
        %v4652 = vpack.c.b16 %v2820, %v2812
        %v4653 = vpack.c.b16 %v2829, %v2821
        %v4654 = vpack.c.b16 %v2830, %v2822
        %v4655 = vpack.c.b16 %v2831, %v2823
        %v4656 = vpack.c.b16 %v2832, %v2824
        %v4657 = vpack.c.b16 %v2833, %v2825
        %v4658 = vpack.c.b16 %v2834, %v2826
        %v4659 = vpack.c.b16 %v2835, %v2827
        %v4660 = vpack.c.b16 %v2836, %v2828
        %v4661 = vpack.c.b16 %v2845, %v2837
        %v4662 = vpack.c.b16 %v2846, %v2838
        %v4663 = vpack.c.b16 %v2847, %v2839
        %v4664 = vpack.c.b16 %v2848, %v2840
        %v4665 = vpack.c.b16 %v2849, %v2841
        %v4666 = vpack.c.b16 %v2850, %v2842
        %v4667 = vpack.c.b16 %v2851, %v2843
        %v4668 = vpack.c.b16 %v2852, %v2844
        %v4669 = vpack.c.b16 %v2861, %v2853
        %v4670 = vpack.c.b16 %v2862, %v2854
        %v4671 = vpack.c.b16 %v2863, %v2855
        %v4672 = vpack.c.b16 %v2864, %v2856
        %v4673 = vpack.c.b16 %v2865, %v2857
        %v4674 = vpack.c.b16 %v2866, %v2858
        %v4675 = vpack.c.b16 %v2867, %v2859
        %v4676 = vpack.c.b16 %v2868, %v2860
        %v4677 = vpack.c.b16 %v2877, %v2869
        %v4678 = vpack.c.b16 %v2878, %v2870
        %v4679 = vpack.c.b16 %v2879, %v2871
        %v4680 = vpack.c.b16 %v2880, %v2872
        %v4681 = vpack.c.b16 %v2881, %v2873
        %v4682 = vpack.c.b16 %v2882, %v2874
        %v4683 = vpack.c.b16 %v2883, %v2875
        %v4684 = vpack.c.b16 %v2884, %v2876
        %v4685 = vpack.c.b16 %v2893, %v2885
        %v4686 = vpack.c.b16 %v2894, %v2886
        %v4687 = vpack.c.b16 %v2895, %v2887
        %v4688 = vpack.c.b16 %v2896, %v2888
        %v4689 = vpack.c.b16 %v2897, %v2889
        %v4690 = vpack.c.b16 %v2898, %v2890
        %v4691 = vpack.c.b16 %v2899, %v2891
        %v4692 = vpack.c.b16 %v2900, %v2892
        %v4693 = vpack.c.b16 %v2909, %v2901
        %v4694 = vpack.c.b16 %v2910, %v2902
        %v4695 = vpack.c.b16 %v2911, %v2903
        %v4696 = vpack.c.b16 %v2912, %v2904
        %v4697 = vpack.c.b16 %v2913, %v2905
        %v4698 = vpack.c.b16 %v2914, %v2906
        %v4699 = vpack.c.b16 %v2915, %v2907
        %v4700 = vpack.c.b16 %v2916, %v2908
        %v4701 = vpack.c.b16 %v2925, %v2917
        %v4702 = vpack.c.b16 %v2926, %v2918
        %v4703 = vpack.c.b16 %v2927, %v2919
        %v4704 = vpack.c.b16 %v2928, %v2920
        %v4705 = vpack.c.b16 %v2929, %v2921
        %v4706 = vpack.c.b16 %v2930, %v2922
        %v4707 = vpack.c.b16 %v2931, %v2923
        %v4708 = vpack.c.b16 %v2932, %v2924
        %v4709 = vpack.c.b16 %v2941, %v2933
        %v4710 = vpack.c.b16 %v2942, %v2934
        %v4711 = vpack.c.b16 %v2943, %v2935
        %v4712 = vpack.c.b16 %v2944, %v2936
        %v4713 = vpack.c.b16 %v2945, %v2937
        %v4714 = vpack.c.b16 %v2946, %v2938
        %v4715 = vpack.c.b16 %v2947, %v2939
        %v4716 = vpack.c.b16 %v2948, %v2940
        %v4717 = vpack.c.b16 %v2957, %v2949
        %v4718 = vpack.c.b16 %v2958, %v2950
        %v4719 = vpack.c.b16 %v2959, %v2951
        %v4720 = vpack.c.b16 %v2960, %v2952
        %v4721 = vpack.c.b16 %v2961, %v2953
        %v4722 = vpack.c.b16 %v2962, %v2954
        %v4723 = vpack.c.b16 %v2963, %v2955
        %v4724 = vpack.c.b16 %v2964, %v2956
        %v4725 = vpack.c.b16 %v2973, %v2965
        %v4726 = vpack.c.b16 %v2974, %v2966
        %v4727 = vpack.c.b16 %v2975, %v2967
        %v4728 = vpack.c.b16 %v2976, %v2968
        %v4729 = vpack.c.b16 %v2977, %v2969
        %v4730 = vpack.c.b16 %v2978, %v2970
        %v4731 = vpack.c.b16 %v2979, %v2971
        %v4732 = vpack.c.b16 %v2980, %v2972
        %v4733 = vpack.c.b16 %v2989, %v2981
        %v4734 = vpack.c.b16 %v2990, %v2982
        %v4735 = vpack.c.b16 %v2991, %v2983
        %v4736 = vpack.c.b16 %v2992, %v2984
        %v4737 = vpack.c.b16 %v2993, %v2985
        %v4738 = vpack.c.b16 %v2994, %v2986
        %v4739 = vpack.c.b16 %v2995, %v2987
        %v4740 = vpack.c.b16 %v2996, %v2988
        %v4741 = vpack.c.b16 %v3005, %v2997
        %v4742 = vpack.c.b16 %v3006, %v2998
        %v4743 = vpack.c.b16 %v3007, %v2999
        %v4744 = vpack.c.b16 %v3008, %v3000
        %v4745 = vpack.c.b16 %v3009, %v3001
        %v4746 = vpack.c.b16 %v3010, %v3002
        %v4747 = vpack.c.b16 %v3011, %v3003
        %v4748 = vpack.c.b16 %v3012, %v3004
        %v4749 = vpack.c.b16 %v3021, %v3013
        %v4750 = vpack.c.b16 %v3022, %v3014
        %v4751 = vpack.c.b16 %v3023, %v3015
        %v4752 = vpack.c.b16 %v3024, %v3016
        %v4753 = vpack.c.b16 %v3025, %v3017
        %v4754 = vpack.c.b16 %v3026, %v3018
        %v4755 = vpack.c.b16 %v3027, %v3019
        %v4756 = vpack.c.b16 %v3028, %v3020
        %v4757 = vpack.c.b16 %v3037, %v3029
        %v4758 = vpack.c.b16 %v3038, %v3030
        %v4759 = vpack.c.b16 %v3039, %v3031
        %v4760 = vpack.c.b16 %v3040, %v3032
        %v4761 = vpack.c.b16 %v3041, %v3033
        %v4762 = vpack.c.b16 %v3042, %v3034
        %v4763 = vpack.c.b16 %v3043, %v3035
        %v4764 = vpack.c.b16 %v3044, %v3036
        %v4765 = vpack.c.b16 %v3053, %v3045
        %v4766 = vpack.c.b16 %v3054, %v3046
        %v4767 = vpack.c.b16 %v3055, %v3047
        %v4768 = vpack.c.b16 %v3056, %v3048
        %v4769 = vpack.c.b16 %v3057, %v3049
        %v4770 = vpack.c.b16 %v3058, %v3050
        %v4771 = vpack.c.b16 %v3059, %v3051
        %v4772 = vpack.c.b16 %v3060, %v3052
        %v4773 = vpack.c.b16 %v3069, %v3061
        %v4774 = vpack.c.b16 %v3070, %v3062
        %v4775 = vpack.c.b16 %v3071, %v3063
        %v4776 = vpack.c.b16 %v3072, %v3064
        %v4777 = vpack.c.b16 %v3073, %v3065
        %v4778 = vpack.c.b16 %v3074, %v3066
        %v4779 = vpack.c.b16 %v3075, %v3067
        %v4780 = vpack.c.b16 %v3076, %v3068
        %v4781 = vpack.c.b16 %v3085, %v3077
        %v4782 = vpack.c.b16 %v3086, %v3078
        %v4783 = vpack.c.b16 %v3087, %v3079
        %v4784 = vpack.c.b16 %v3088, %v3080
        %v4785 = vpack.c.b16 %v3089, %v3081
        %v4786 = vpack.c.b16 %v3090, %v3082
        %v4787 = vpack.c.b16 %v3091, %v3083
        %v4788 = vpack.c.b16 %v3092, %v3084
        %v4789 = vpack.c.b16 %v3101, %v3093
        %v4790 = vpack.c.b16 %v3102, %v3094
        %v4791 = vpack.c.b16 %v3103, %v3095
        %v4792 = vpack.c.b16 %v3104, %v3096
        %v4793 = vpack.c.b16 %v3105, %v3097
        %v4794 = vpack.c.b16 %v3106, %v3098
        %v4795 = vpack.c.b16 %v3107, %v3099
        %v4796 = vpack.c.b16 %v3108, %v3100
        %v4797 = vpack.c.b16 %v3117, %v3109
        %v4798 = vpack.c.b16 %v3118, %v3110
        %v4799 = vpack.c.b16 %v3119, %v3111
        %v4800 = vpack.c.b16 %v3120, %v3112
        %v4801 = vpack.c.b16 %v3121, %v3113
        %v4802 = vpack.c.b16 %v3122, %v3114
        %v4803 = vpack.c.b16 %v3123, %v3115
        %v4804 = vpack.c.b16 %v3124, %v3116
        %v4805 = vpack.c.b16 %v3133, %v3125
        %v4806 = vpack.c.b16 %v3134, %v3126
        %v4807 = vpack.c.b16 %v3135, %v3127
        %v4808 = vpack.c.b16 %v3136, %v3128
        %v4809 = vpack.c.b16 %v3137, %v3129
        %v4810 = vpack.c.b16 %v3138, %v3130
        %v4811 = vpack.c.b16 %v3139, %v3131
        %v4812 = vpack.c.b16 %v3140, %v3132
        %v4813 = vpack.c.b16 %v3149, %v3141
        %v4814 = vpack.c.b16 %v3150, %v3142
        %v4815 = vpack.c.b16 %v3151, %v3143
        %v4816 = vpack.c.b16 %v3152, %v3144
        %v4817 = vpack.c.b16 %v3153, %v3145
        %v4818 = vpack.c.b16 %v3154, %v3146
        %v4819 = vpack.c.b16 %v3155, %v3147
        %v4820 = vpack.c.b16 %v3156, %v3148
        %v4821 = vpack.c.b16 %v3165, %v3157
        %v4822 = vpack.c.b16 %v3166, %v3158
        %v4823 = vpack.c.b16 %v3167, %v3159
        %v4824 = vpack.c.b16 %v3168, %v3160
        %v4825 = vpack.c.b16 %v3169, %v3161
        %v4826 = vpack.c.b16 %v3170, %v3162
        %v4827 = vpack.c.b16 %v3171, %v3163
        %v4828 = vpack.c.b16 %v3172, %v3164
        %v4829 = vpack.c.b16 %v3181, %v3173
        %v4830 = vpack.c.b16 %v3182, %v3174
        %v4831 = vpack.c.b16 %v3183, %v3175
        %v4832 = vpack.c.b16 %v3184, %v3176
        %v4833 = vpack.c.b16 %v3185, %v3177
        %v4834 = vpack.c.b16 %v3186, %v3178
        %v4835 = vpack.c.b16 %v3187, %v3179
        %v4836 = vpack.c.b16 %v3188, %v3180
        %v4837 = vpack.c.b16 %v3197, %v3189
        %v4838 = vpack.c.b16 %v3198, %v3190
        %v4839 = vpack.c.b16 %v3199, %v3191
        %v4840 = vpack.c.b16 %v3200, %v3192
        %v4841 = vpack.c.b16 %v3201, %v3193
        %v4842 = vpack.c.b16 %v3202, %v3194
        %v4843 = vpack.c.b16 %v3203, %v3195
        %v4844 = vpack.c.b16 %v3204, %v3196
        %v4845 = vpack.c.b16 %v3213, %v3205
        %v4846 = vpack.c.b16 %v3214, %v3206
        %v4847 = vpack.c.b16 %v3215, %v3207
        %v4848 = vpack.c.b16 %v3216, %v3208
        %v4849 = vpack.c.b16 %v3217, %v3209
        %v4850 = vpack.c.b16 %v3218, %v3210
        %v4851 = vpack.c.b16 %v3219, %v3211
        %v4852 = vpack.c.b16 %v3220, %v3212
        %v4853 = vpack.c.b16 %v3229, %v3221
        %v4854 = vpack.c.b16 %v3230, %v3222
        %v4855 = vpack.c.b16 %v3231, %v3223
        %v4856 = vpack.c.b16 %v3232, %v3224
        %v4857 = vpack.c.b16 %v3233, %v3225
        %v4858 = vpack.c.b16 %v3234, %v3226
        %v4859 = vpack.c.b16 %v3235, %v3227
        %v4860 = vpack.c.b16 %v3236, %v3228
        %v4861 = vpack.c.b16 %v3245, %v3237
        %v4862 = vpack.c.b16 %v3246, %v3238
        %v4863 = vpack.c.b16 %v3247, %v3239
        %v4864 = vpack.c.b16 %v3248, %v3240
        %v4865 = vpack.c.b16 %v3249, %v3241
        %v4866 = vpack.c.b16 %v3250, %v3242
        %v4867 = vpack.c.b16 %v3251, %v3243
        %v4868 = vpack.c.b16 %v3252, %v3244
        %v4869 = vpack.c.b16 %v3261, %v3253
        %v4870 = vpack.c.b16 %v3262, %v3254
        %v4871 = vpack.c.b16 %v3263, %v3255
        %v4872 = vpack.c.b16 %v3264, %v3256
        %v4873 = vpack.c.b16 %v3265, %v3257
        %v4874 = vpack.c.b16 %v3266, %v3258
        %v4875 = vpack.c.b16 %v3267, %v3259
        %v4876 = vpack.c.b16 %v3268, %v3260
        %v4877 = vpack.c.b16 %v3277, %v3269
        %v4878 = vpack.c.b16 %v3278, %v3270
        %v4879 = vpack.c.b16 %v3279, %v3271
        %v4880 = vpack.c.b16 %v3280, %v3272
        %v4881 = vpack.c.b16 %v3281, %v3273
        %v4882 = vpack.c.b16 %v3282, %v3274
        %v4883 = vpack.c.b16 %v3283, %v3275
        %v4884 = vpack.c.b16 %v3284, %v3276
        %v4885 = vpack.c.b16 %v3293, %v3285
        %v4886 = vpack.c.b16 %v3294, %v3286
        %v4887 = vpack.c.b16 %v3295, %v3287
        %v4888 = vpack.c.b16 %v3296, %v3288
        %v4889 = vpack.c.b16 %v3297, %v3289
        %v4890 = vpack.c.b16 %v3298, %v3290
        %v4891 = vpack.c.b16 %v3299, %v3291
        %v4892 = vpack.c.b16 %v3300, %v3292
        %v4893 = vpack.c.b16 %v3309, %v3301
        %v4894 = vpack.c.b16 %v3310, %v3302
        %v4895 = vpack.c.b16 %v3311, %v3303
        %v4896 = vpack.c.b16 %v3312, %v3304
        %v4897 = vpack.c.b16 %v3313, %v3305
        %v4898 = vpack.c.b16 %v3314, %v3306
        %v4899 = vpack.c.b16 %v3315, %v3307
        %v4900 = vpack.c.b16 %v3316, %v3308
        %v4901 = vpack.c.b16 %v3325, %v3317
        %v4902 = vpack.c.b16 %v3326, %v3318
        %v4903 = vpack.c.b16 %v3327, %v3319
        %v4904 = vpack.c.b16 %v3328, %v3320
        %v4905 = vpack.c.b16 %v3329, %v3321
        %v4906 = vpack.c.b16 %v3330, %v3322
        %v4907 = vpack.c.b16 %v3331, %v3323
        %v4908 = vpack.c.b16 %v3332, %v3324
        %v4909 = vpack.c.b16 %v3341, %v3333
        %v4910 = vpack.c.b16 %v3342, %v3334
        %v4911 = vpack.c.b16 %v3343, %v3335
        %v4912 = vpack.c.b16 %v3344, %v3336
        %v4913 = vpack.c.b16 %v3345, %v3337
        %v4914 = vpack.c.b16 %v3346, %v3338
        %v4915 = vpack.c.b16 %v3347, %v3339
        %v4916 = vpack.c.b16 %v3348, %v3340
        %v4917 = vpack.c.b16 %v3357, %v3349
        %v4918 = vpack.c.b16 %v3358, %v3350
        %v4919 = vpack.c.b16 %v3359, %v3351
        %v4920 = vpack.c.b16 %v3360, %v3352
        %v4921 = vpack.c.b16 %v3361, %v3353
        %v4922 = vpack.c.b16 %v3362, %v3354
        %v4923 = vpack.c.b16 %v3363, %v3355
        %v4924 = vpack.c.b16 %v3364, %v3356
        %v4925 = vpack.c.b16 %v3373, %v3365
        %v4926 = vpack.c.b16 %v3374, %v3366
        %v4927 = vpack.c.b16 %v3375, %v3367
        %v4928 = vpack.c.b16 %v3376, %v3368
        %v4929 = vpack.c.b16 %v3377, %v3369
        %v4930 = vpack.c.b16 %v3378, %v3370
        %v4931 = vpack.c.b16 %v3379, %v3371
        %v4932 = vpack.c.b16 %v3380, %v3372
        %v4933 = vpack.c.b16 %v3389, %v3381
        %v4934 = vpack.c.b16 %v3390, %v3382
        %v4935 = vpack.c.b16 %v3391, %v3383
        %v4936 = vpack.c.b16 %v3392, %v3384
        %v4937 = vpack.c.b16 %v3393, %v3385
        %v4938 = vpack.c.b16 %v3394, %v3386
        %v4939 = vpack.c.b16 %v3395, %v3387
        %v4940 = vpack.c.b16 %v3396, %v3388
        %v4941 = vpack.c.b16 %v3405, %v3397
        %v4942 = vpack.c.b16 %v3406, %v3398
        %v4943 = vpack.c.b16 %v3407, %v3399
        %v4944 = vpack.c.b16 %v3408, %v3400
        %v4945 = vpack.c.b16 %v3409, %v3401
        %v4946 = vpack.c.b16 %v3410, %v3402
        %v4947 = vpack.c.b16 %v3411, %v3403
        %v4948 = vpack.c.b16 %v3412, %v3404
        %v4949 = vpack.c.b16 %v3421, %v3413
        %v4950 = vpack.c.b16 %v3422, %v3414
        %v4951 = vpack.c.b16 %v3423, %v3415
        %v4952 = vpack.c.b16 %v3424, %v3416
        %v4953 = vpack.c.b16 %v3425, %v3417
        %v4954 = vpack.c.b16 %v3426, %v3418
        %v4955 = vpack.c.b16 %v3427, %v3419
        %v4956 = vpack.c.b16 %v3428, %v3420
        %v4957 = vpack.c.b16 %v3437, %v3429
        %v4958 = vpack.c.b16 %v3438, %v3430
        %v4959 = vpack.c.b16 %v3439, %v3431
        %v4960 = vpack.c.b16 %v3440, %v3432
        %v4961 = vpack.c.b16 %v3441, %v3433
        %v4962 = vpack.c.b16 %v3442, %v3434
        %v4963 = vpack.c.b16 %v3443, %v3435
        %v4964 = vpack.c.b16 %v3444, %v3436
        %v4965 = vpack.c.b16 %v3453, %v3445
        %v4966 = vpack.c.b16 %v3454, %v3446
        %v4967 = vpack.c.b16 %v3455, %v3447
        %v4968 = vpack.c.b16 %v3456, %v3448
        %v4969 = vpack.c.b16 %v3457, %v3449
        %v4970 = vpack.c.b16 %v3458, %v3450
        %v4971 = vpack.c.b16 %v3459, %v3451
        %v4972 = vpack.c.b16 %v3460, %v3452
        %v4973 = vpack.c.b16 %v3469, %v3461
        %v4974 = vpack.c.b16 %v3470, %v3462
        %v4975 = vpack.c.b16 %v3471, %v3463
        %v4976 = vpack.c.b16 %v3472, %v3464
        %v4977 = vpack.c.b16 %v3473, %v3465
        %v4978 = vpack.c.b16 %v3474, %v3466
        %v4979 = vpack.c.b16 %v3475, %v3467
        %v4980 = vpack.c.b16 %v3476, %v3468
        %v4981 = vpack.c.b16 %v3485, %v3477
        %v4982 = vpack.c.b16 %v3486, %v3478
        %v4983 = vpack.c.b16 %v3487, %v3479
        %v4984 = vpack.c.b16 %v3488, %v3480
        %v4985 = vpack.c.b16 %v3489, %v3481
        %v4986 = vpack.c.b16 %v3490, %v3482
        %v4987 = vpack.c.b16 %v3491, %v3483
        %v4988 = vpack.c.b16 %v3492, %v3484
        %v4989 = vpack.c.b16 %v3501, %v3493
        %v4990 = vpack.c.b16 %v3502, %v3494
        %v4991 = vpack.c.b16 %v3503, %v3495
        %v4992 = vpack.c.b16 %v3504, %v3496
        %v4993 = vpack.c.b16 %v3505, %v3497
        %v4994 = vpack.c.b16 %v3506, %v3498
        %v4995 = vpack.c.b16 %v3507, %v3499
        %v4996 = vpack.c.b16 %v3508, %v3500
        %v4997 = vpack.c.b16 %v3517, %v3509
        %v4998 = vpack.c.b16 %v3518, %v3510
        %v4999 = vpack.c.b16 %v3519, %v3511
        %v5000 = vpack.c.b16 %v3520, %v3512
        %v5001 = vpack.c.b16 %v3521, %v3513
        %v5002 = vpack.c.b16 %v3522, %v3514
        %v5003 = vpack.c.b16 %v3523, %v3515
        %v5004 = vpack.c.b16 %v3524, %v3516
        %v5005 = vpack.c.b16 %v3533, %v3525
        %v5006 = vpack.c.b16 %v3534, %v3526
        %v5007 = vpack.c.b16 %v3535, %v3527
        %v5008 = vpack.c.b16 %v3536, %v3528
        %v5009 = vpack.c.b16 %v3537, %v3529
        %v5010 = vpack.c.b16 %v3538, %v3530
        %v5011 = vpack.c.b16 %v3539, %v3531
        %v5012 = vpack.c.b16 %v3540, %v3532
        %v5013 = vpack.c.b16 %v3549, %v3541
        %v5014 = vpack.c.b16 %v3550, %v3542
        %v5015 = vpack.c.b16 %v3551, %v3543
        %v5016 = vpack.c.b16 %v3552, %v3544
        %v5017 = vpack.c.b16 %v3553, %v3545
        %v5018 = vpack.c.b16 %v3554, %v3546
        %v5019 = vpack.c.b16 %v3555, %v3547
        %v5020 = vpack.c.b16 %v3556, %v3548
        %v5021 = vpack.c.b16 %v3565, %v3557
        %v5022 = vpack.c.b16 %v3566, %v3558
        %v5023 = vpack.c.b16 %v3567, %v3559
        %v5024 = vpack.c.b16 %v3568, %v3560
        %v5025 = vpack.c.b16 %v3569, %v3561
        %v5026 = vpack.c.b16 %v3570, %v3562
        %v5027 = vpack.c.b16 %v3571, %v3563
        %v5028 = vpack.c.b16 %v3572, %v3564
        %v5029 = vpack.c.b16 %v3581, %v3573
        %v5030 = vpack.c.b16 %v3582, %v3574
        %v5031 = vpack.c.b16 %v3583, %v3575
        %v5032 = vpack.c.b16 %v3584, %v3576
        %v5033 = vpack.c.b16 %v3585, %v3577
        %v5034 = vpack.c.b16 %v3586, %v3578
        %v5035 = vpack.c.b16 %v3587, %v3579
        %v5036 = vpack.c.b16 %v3588, %v3580
        %v5037 = vpack.c.b16 %v3597, %v3589
        %v5038 = vpack.c.b16 %v3598, %v3590
        %v5039 = vpack.c.b16 %v3599, %v3591
        %v5040 = vpack.c.b16 %v3600, %v3592
        %v5041 = vpack.c.b16 %v3601, %v3593
        %v5042 = vpack.c.b16 %v3602, %v3594
        %v5043 = vpack.c.b16 %v3603, %v3595
        %v5044 = vpack.c.b16 %v3604, %v3596
        %v5045 = vpack.c.b16 %v3613, %v3605
        %v5046 = vpack.c.b16 %v3614, %v3606
        %v5047 = vpack.c.b16 %v3615, %v3607
        %v5048 = vpack.c.b16 %v3616, %v3608
        %v5049 = vpack.c.b16 %v3617, %v3609
        %v5050 = vpack.c.b16 %v3618, %v3610
        %v5051 = vpack.c.b16 %v3619, %v3611
        %v5052 = vpack.c.b16 %v3620, %v3612
        %v5053 = vpack.c.b16 %v3629, %v3621
        %v5054 = vpack.c.b16 %v3630, %v3622
        %v5055 = vpack.c.b16 %v3631, %v3623
        %v5056 = vpack.c.b16 %v3632, %v3624
        %v5057 = vpack.c.b16 %v3633, %v3625
        %v5058 = vpack.c.b16 %v3634, %v3626
        %v5059 = vpack.c.b16 %v3635, %v3627
        %v5060 = vpack.c.b16 %v3636, %v3628
        %v5061 = vpack.c.b16 %v3645, %v3637
        %v5062 = vpack.c.b16 %v3646, %v3638
        %v5063 = vpack.c.b16 %v3647, %v3639
        %v5064 = vpack.c.b16 %v3648, %v3640
        %v5065 = vpack.c.b16 %v3649, %v3641
        %v5066 = vpack.c.b16 %v3650, %v3642
        %v5067 = vpack.c.b16 %v3651, %v3643
        %v5068 = vpack.c.b16 %v3652, %v3644
        %v5069 = vpack.c.b16 %v3661, %v3653
        %v5070 = vpack.c.b16 %v3662, %v3654
        %v5071 = vpack.c.b16 %v3663, %v3655
        %v5072 = vpack.c.b16 %v3664, %v3656
        %v5073 = vpack.c.b16 %v3665, %v3657
        %v5074 = vpack.c.b16 %v3666, %v3658
        %v5075 = vpack.c.b16 %v3667, %v3659
        %v5076 = vpack.c.b16 %v3668, %v3660
        %v5077 = vpack.c.b16 %v3677, %v3669
        %v5078 = vpack.c.b16 %v3678, %v3670
        %v5079 = vpack.c.b16 %v3679, %v3671
        %v5080 = vpack.c.b16 %v3680, %v3672
        %v5081 = vpack.c.b16 %v3681, %v3673
        %v5082 = vpack.c.b16 %v3682, %v3674
        %v5083 = vpack.c.b16 %v3683, %v3675
        %v5084 = vpack.c.b16 %v3684, %v3676
        %v5085 = vpack.c.b16 %v3693, %v3685
        %v5086 = vpack.c.b16 %v3694, %v3686
        %v5087 = vpack.c.b16 %v3695, %v3687
        %v5088 = vpack.c.b16 %v3696, %v3688
        %v5089 = vpack.c.b16 %v3697, %v3689
        %v5090 = vpack.c.b16 %v3698, %v3690
        %v5091 = vpack.c.b16 %v3699, %v3691
        %v5092 = vpack.c.b16 %v3700, %v3692
        %v5093 = vpack.c.b16 %v3709, %v3701
        %v5094 = vpack.c.b16 %v3710, %v3702
        %v5095 = vpack.c.b16 %v3711, %v3703
        %v5096 = vpack.c.b16 %v3712, %v3704
        %v5097 = vpack.c.b16 %v3713, %v3705
        %v5098 = vpack.c.b16 %v3714, %v3706
        %v5099 = vpack.c.b16 %v3715, %v3707
        %v5100 = vpack.c.b16 %v3716, %v3708
        %v5101 = vpack.c.b16 %v3725, %v3717
        %v5102 = vpack.c.b16 %v3726, %v3718
        %v5103 = vpack.c.b16 %v3727, %v3719
        %v5104 = vpack.c.b16 %v3728, %v3720
        %v5105 = vpack.c.b16 %v3729, %v3721
        %v5106 = vpack.c.b16 %v3730, %v3722
        %v5107 = vpack.c.b16 %v3731, %v3723
        %v5108 = vpack.c.b16 %v3732, %v3724
        %v5109 = vpack.c.b16 %v3741, %v3733
        %v5110 = vpack.c.b16 %v3742, %v3734
        %v5111 = vpack.c.b16 %v3743, %v3735
        %v5112 = vpack.c.b16 %v3744, %v3736
        %v5113 = vpack.c.b16 %v3745, %v3737
        %v5114 = vpack.c.b16 %v3746, %v3738
        %v5115 = vpack.c.b16 %v3747, %v3739
        %v5116 = vpack.c.b16 %v3748, %v3740
        %v5117 = vpack.c.b16 %v3757, %v3749
        %v5118 = vpack.c.b16 %v3758, %v3750
        %v5119 = vpack.c.b16 %v3759, %v3751
        %v5120 = vpack.c.b16 %v3760, %v3752
        %v5121 = vpack.c.b16 %v3761, %v3753
        %v5122 = vpack.c.b16 %v3762, %v3754
        %v5123 = vpack.c.b16 %v3763, %v3755
        %v5124 = vpack.c.b16 %v3764, %v3756
        %v5125 = vpack.c.b16 %v3773, %v3765
        %v5126 = vpack.c.b16 %v3774, %v3766
        %v5127 = vpack.c.b16 %v3775, %v3767
        %v5128 = vpack.c.b16 %v3776, %v3768
        %v5129 = vpack.c.b16 %v3777, %v3769
        %v5130 = vpack.c.b16 %v3778, %v3770
        %v5131 = vpack.c.b16 %v3779, %v3771
        %v5132 = vpack.c.b16 %v3780, %v3772
        %v5133 = vpack.c.b16 %v3789, %v3781
        %v5134 = vpack.c.b16 %v3790, %v3782
        %v5135 = vpack.c.b16 %v3791, %v3783
        %v5136 = vpack.c.b16 %v3792, %v3784
        %v5137 = vpack.c.b16 %v3793, %v3785
        %v5138 = vpack.c.b16 %v3794, %v3786
        %v5139 = vpack.c.b16 %v3795, %v3787
        %v5140 = vpack.c.b16 %v3796, %v3788
        %v5141 = vpack.c.b16 %v3805, %v3797
        %v5142 = vpack.c.b16 %v3806, %v3798
        %v5143 = vpack.c.b16 %v3807, %v3799
        %v5144 = vpack.c.b16 %v3808, %v3800
        %v5145 = vpack.c.b16 %v3809, %v3801
        %v5146 = vpack.c.b16 %v3810, %v3802
        %v5147 = vpack.c.b16 %v3811, %v3803
        %v5148 = vpack.c.b16 %v3812, %v3804
        %v5149 = vpack.c.b16 %v3821, %v3813
        %v5150 = vpack.c.b16 %v3822, %v3814
        %v5151 = vpack.c.b16 %v3823, %v3815
        %v5152 = vpack.c.b16 %v3824, %v3816
        %v5153 = vpack.c.b16 %v3825, %v3817
        %v5154 = vpack.c.b16 %v3826, %v3818
        %v5155 = vpack.c.b16 %v3827, %v3819
        %v5156 = vpack.c.b16 %v3828, %v3820
        %v5157 = vpack.c.b16 %v3837, %v3829
        %v5158 = vpack.c.b16 %v3838, %v3830
        %v5159 = vpack.c.b16 %v3839, %v3831
        %v5160 = vpack.c.b16 %v3840, %v3832
        %v5161 = vpack.c.b16 %v3841, %v3833
        %v5162 = vpack.c.b16 %v3842, %v3834
        %v5163 = vpack.c.b16 %v3843, %v3835
        %v5164 = vpack.c.b16 %v3844, %v3836
        %v5165 = vpack.c.b16 %v3853, %v3845
        %v5166 = vpack.c.b16 %v3854, %v3846
        %v5167 = vpack.c.b16 %v3855, %v3847
        %v5168 = vpack.c.b16 %v3856, %v3848
        %v5169 = vpack.c.b16 %v3857, %v3849
        %v5170 = vpack.c.b16 %v3858, %v3850
        %v5171 = vpack.c.b16 %v3859, %v3851
        %v5172 = vpack.c.b16 %v3860, %v3852
        %v5173 = vpack.c.b16 %v3869, %v3861
        %v5174 = vpack.c.b16 %v3870, %v3862
        %v5175 = vpack.c.b16 %v3871, %v3863
        %v5176 = vpack.c.b16 %v3872, %v3864
        %v5177 = vpack.c.b16 %v3873, %v3865
        %v5178 = vpack.c.b16 %v3874, %v3866
        %v5179 = vpack.c.b16 %v3875, %v3867
        %v5180 = vpack.c.b16 %v3876, %v3868
        %v5181 = vpack.c.b16 %v3885, %v3877
        %v5182 = vpack.c.b16 %v3886, %v3878
        %v5183 = vpack.c.b16 %v3887, %v3879
        %v5184 = vpack.c.b16 %v3888, %v3880
        %v5185 = vpack.c.b16 %v3889, %v3881
        %v5186 = vpack.c.b16 %v3890, %v3882
        %v5187 = vpack.c.b16 %v3891, %v3883
        %v5188 = vpack.c.b16 %v3892, %v3884
        %v5189 = vpack.c.b16 %v3901, %v3893
        %v5190 = vpack.c.b16 %v3902, %v3894
        %v5191 = vpack.c.b16 %v3903, %v3895
        %v5192 = vpack.c.b16 %v3904, %v3896
        %v5193 = vpack.c.b16 %v3905, %v3897
        %v5194 = vpack.c.b16 %v3906, %v3898
        %v5195 = vpack.c.b16 %v3907, %v3899
        %v5196 = vpack.c.b16 %v3908, %v3900
        %v5197 = vpack.c.b16 %v3917, %v3909
        %v5198 = vpack.c.b16 %v3918, %v3910
        %v5199 = vpack.c.b16 %v3919, %v3911
        %v5200 = vpack.c.b16 %v3920, %v3912
        %v5201 = vpack.c.b16 %v3921, %v3913
        %v5202 = vpack.c.b16 %v3922, %v3914
        %v5203 = vpack.c.b16 %v3923, %v3915
        %v5204 = vpack.c.b16 %v3924, %v3916
        %v5205 = vpack.c.b16 %v3933, %v3925
        %v5206 = vpack.c.b16 %v3934, %v3926
        %v5207 = vpack.c.b16 %v3935, %v3927
        %v5208 = vpack.c.b16 %v3936, %v3928
        %v5209 = vpack.c.b16 %v3937, %v3929
        %v5210 = vpack.c.b16 %v3938, %v3930
        %v5211 = vpack.c.b16 %v3939, %v3931
        %v5212 = vpack.c.b16 %v3940, %v3932
        %v5213 = vpack.c.b16 %v3949, %v3941
        %v5214 = vpack.c.b16 %v3950, %v3942
        %v5215 = vpack.c.b16 %v3951, %v3943
        %v5216 = vpack.c.b16 %v3952, %v3944
        %v5217 = vpack.c.b16 %v3953, %v3945
        %v5218 = vpack.c.b16 %v3954, %v3946
        %v5219 = vpack.c.b16 %v3955, %v3947
        %v5220 = vpack.c.b16 %v3956, %v3948
        %v5221 = vpack.c.b16 %v3965, %v3957
        %v5222 = vpack.c.b16 %v3966, %v3958
        %v5223 = vpack.c.b16 %v3967, %v3959
        %v5224 = vpack.c.b16 %v3968, %v3960
        %v5225 = vpack.c.b16 %v3969, %v3961
        %v5226 = vpack.c.b16 %v3970, %v3962
        %v5227 = vpack.c.b16 %v3971, %v3963
        %v5228 = vpack.c.b16 %v3972, %v3964
        %v5229 = vpack.c.b16 %v3981, %v3973
        %v5230 = vpack.c.b16 %v3982, %v3974
        %v5231 = vpack.c.b16 %v3983, %v3975
        %v5232 = vpack.c.b16 %v3984, %v3976
        %v5233 = vpack.c.b16 %v3985, %v3977
        %v5234 = vpack.c.b16 %v3986, %v3978
        %v5235 = vpack.c.b16 %v3987, %v3979
        %v5236 = vpack.c.b16 %v3988, %v3980
        %v5237 = vpack.c.b16 %v3997, %v3989
        %v5238 = vpack.c.b16 %v3998, %v3990
        %v5239 = vpack.c.b16 %v3999, %v3991
        %v5240 = vpack.c.b16 %v4000, %v3992
        %v5241 = vpack.c.b16 %v4001, %v3993
        %v5242 = vpack.c.b16 %v4002, %v3994
        %v5243 = vpack.c.b16 %v4003, %v3995
        %v5244 = vpack.c.b16 %v4004, %v3996
        %v5245 = vpack.c.b16 %v4013, %v4005
        %v5246 = vpack.c.b16 %v4014, %v4006
        %v5247 = vpack.c.b16 %v4015, %v4007
        %v5248 = vpack.c.b16 %v4016, %v4008
        %v5249 = vpack.c.b16 %v4017, %v4009
        %v5250 = vpack.c.b16 %v4018, %v4010
        %v5251 = vpack.c.b16 %v4019, %v4011
        %v5252 = vpack.c.b16 %v4020, %v4012
        %v5253 = vpack.c.b16 %v4029, %v4021
        %v5254 = vpack.c.b16 %v4030, %v4022
        %v5255 = vpack.c.b16 %v4031, %v4023
        %v5256 = vpack.c.b16 %v4032, %v4024
        %v5257 = vpack.c.b16 %v4033, %v4025
        %v5258 = vpack.c.b16 %v4034, %v4026
        %v5259 = vpack.c.b16 %v4035, %v4027
        %v5260 = vpack.c.b16 %v4036, %v4028
        %v5261 = vpack.c.b16 %v4045, %v4037
        %v5262 = vpack.c.b16 %v4046, %v4038
        %v5263 = vpack.c.b16 %v4047, %v4039
        %v5264 = vpack.c.b16 %v4048, %v4040
        %v5265 = vpack.c.b16 %v4049, %v4041
        %v5266 = vpack.c.b16 %v4050, %v4042
        %v5267 = vpack.c.b16 %v4051, %v4043
        %v5268 = vpack.c.b16 %v4052, %v4044
        %v5269 = vpack.c.b16 %v4061, %v4053
        %v5270 = vpack.c.b16 %v4062, %v4054
        %v5271 = vpack.c.b16 %v4063, %v4055
        %v5272 = vpack.c.b16 %v4064, %v4056
        %v5273 = vpack.c.b16 %v4065, %v4057
        %v5274 = vpack.c.b16 %v4066, %v4058
        %v5275 = vpack.c.b16 %v4067, %v4059
        %v5276 = vpack.c.b16 %v4068, %v4060
        %v5277 = vpack.c.b16 %v4077, %v4069
        %v5278 = vpack.c.b16 %v4078, %v4070
        %v5279 = vpack.c.b16 %v4079, %v4071
        %v5280 = vpack.c.b16 %v4080, %v4072
        %v5281 = vpack.c.b16 %v4081, %v4073
        %v5282 = vpack.c.b16 %v4082, %v4074
        %v5283 = vpack.c.b16 %v4083, %v4075
        %v5284 = vpack.c.b16 %v4084, %v4076
        %v5285 = vpack.c.b16 %v4093, %v4085
        %v5286 = vpack.c.b16 %v4094, %v4086
        %v5287 = vpack.c.b16 %v4095, %v4087
        %v5288 = vpack.c.b16 %v4096, %v4088
        %v5289 = vpack.c.b16 %v4097, %v4089
        %v5290 = vpack.c.b16 %v4098, %v4090
        %v5291 = vpack.c.b16 %v4099, %v4091
        %v5292 = vpack.c.b16 %v4100, %v4092
        %v5293 = vpack.c.b16 %v4109, %v4101
        %v5294 = vpack.c.b16 %v4110, %v4102
        %v5295 = vpack.c.b16 %v4111, %v4103
        %v5296 = vpack.c.b16 %v4112, %v4104
        %v5297 = vpack.c.b16 %v4113, %v4105
        %v5298 = vpack.c.b16 %v4114, %v4106
        %v5299 = vpack.c.b16 %v4115, %v4107
        %v5300 = vpack.c.b16 %v4116, %v4108
        %v5301 = vpack.c.b16 %v4125, %v4117
        %v5302 = vpack.c.b16 %v4126, %v4118
        %v5303 = vpack.c.b16 %v4127, %v4119
        %v5304 = vpack.c.b16 %v4128, %v4120
        %v5305 = vpack.c.b16 %v4129, %v4121
        %v5306 = vpack.c.b16 %v4130, %v4122
        %v5307 = vpack.c.b16 %v4131, %v4123
        %v5308 = vpack.c.b16 %v4132, %v4124
        %v5309 = vpack.c.b16 %v4141, %v4133
        %v5310 = vpack.c.b16 %v4142, %v4134
        %v5311 = vpack.c.b16 %v4143, %v4135
        %v5312 = vpack.c.b16 %v4144, %v4136
        %v5313 = vpack.c.b16 %v4145, %v4137
        %v5314 = vpack.c.b16 %v4146, %v4138
        %v5315 = vpack.c.b16 %v4147, %v4139
        %v5316 = vpack.c.b16 %v4148, %v4140
        %v5317 = vpack.c.b16 %v4157, %v4149
        %v5318 = vpack.c.b16 %v4158, %v4150
        %v5319 = vpack.c.b16 %v4159, %v4151
        %v5320 = vpack.c.b16 %v4160, %v4152
        %v5321 = vpack.c.b16 %v4161, %v4153
        %v5322 = vpack.c.b16 %v4162, %v4154
        %v5323 = vpack.c.b16 %v4163, %v4155
        %v5324 = vpack.c.b16 %v4164, %v4156
        %v5325 = vpack.c.b16 %v4173, %v4165
        %v5326 = vpack.c.b16 %v4174, %v4166
        %v5327 = vpack.c.b16 %v4175, %v4167
        %v5328 = vpack.c.b16 %v4176, %v4168
        %v5329 = vpack.c.b16 %v4177, %v4169
        %v5330 = vpack.c.b16 %v4178, %v4170
        %v5331 = vpack.c.b16 %v4179, %v4171
        %v5332 = vpack.c.b16 %v4180, %v4172
        %v5333 = vpack.c.b16 %v4189, %v4181
        %v5334 = vpack.c.b16 %v4190, %v4182
        %v5335 = vpack.c.b16 %v4191, %v4183
        %v5336 = vpack.c.b16 %v4192, %v4184
        %v5337 = vpack.c.b16 %v4193, %v4185
        %v5338 = vpack.c.b16 %v4194, %v4186
        %v5339 = vpack.c.b16 %v4195, %v4187
        %v5340 = vpack.c.b16 %v4196, %v4188
        %v5341 = vpack.c.b16 %v4205, %v4197
        %v5342 = vpack.c.b16 %v4206, %v4198
        %v5343 = vpack.c.b16 %v4207, %v4199
        %v5344 = vpack.c.b16 %v4208, %v4200
        %v5345 = vpack.c.b16 %v4209, %v4201
        %v5346 = vpack.c.b16 %v4210, %v4202
        %v5347 = vpack.c.b16 %v4211, %v4203
        %v5348 = vpack.c.b16 %v4212, %v4204
        %v5349 = vpack.c.b16 %v4221, %v4213
        %v5350 = vpack.c.b16 %v4222, %v4214
        %v5351 = vpack.c.b16 %v4223, %v4215
        %v5352 = vpack.c.b16 %v4224, %v4216
        %v5353 = vpack.c.b16 %v4225, %v4217
        %v5354 = vpack.c.b16 %v4226, %v4218
        %v5355 = vpack.c.b16 %v4227, %v4219
        %v5356 = vpack.c.b16 %v4228, %v4220
        %v5357 = vpack.c.b16 %v4237, %v4229
        %v5358 = vpack.c.b16 %v4238, %v4230
        %v5359 = vpack.c.b16 %v4239, %v4231
        %v5360 = vpack.c.b16 %v4240, %v4232
        %v5361 = vpack.c.b16 %v4241, %v4233
        %v5362 = vpack.c.b16 %v4242, %v4234
        %v5363 = vpack.c.b16 %v4243, %v4235
        %v5364 = vpack.c.b16 %v4244, %v4236
        %v5365 = vpack.c.b16 %v4253, %v4245
        %v5366 = vpack.c.b16 %v4254, %v4246
        %v5367 = vpack.c.b16 %v4255, %v4247
        %v5368 = vpack.c.b16 %v4256, %v4248
        %v5369 = vpack.c.b16 %v4257, %v4249
        %v5370 = vpack.c.b16 %v4258, %v4250
        %v5371 = vpack.c.b16 %v4259, %v4251
        %v5372 = vpack.c.b16 %v4260, %v4252
        %v5373 = vpack.c.b16 %v4269, %v4261
        %v5374 = vpack.c.b16 %v4270, %v4262
        %v5375 = vpack.c.b16 %v4271, %v4263
        %v5376 = vpack.c.b16 %v4272, %v4264
        %v5377 = vpack.c.b16 %v4273, %v4265
        %v5378 = vpack.c.b16 %v4274, %v4266
        %v5379 = vpack.c.b16 %v4275, %v4267
        %v5380 = vpack.c.b16 %v4276, %v4268
        %v5381 = vpack.c.b16 %v4285, %v4277
        %v5382 = vpack.c.b16 %v4286, %v4278
        %v5383 = vpack.c.b16 %v4287, %v4279
        %v5384 = vpack.c.b16 %v4288, %v4280
        %v5385 = vpack.c.b16 %v4289, %v4281
        %v5386 = vpack.c.b16 %v4290, %v4282
        %v5387 = vpack.c.b16 %v4291, %v4283
        %v5388 = vpack.c.b16 %v4292, %v4284
        %v5389 = vpack.c.b16 %v4301, %v4293
        %v5390 = vpack.c.b16 %v4302, %v4294
        %v5391 = vpack.c.b16 %v4303, %v4295
        %v5392 = vpack.c.b16 %v4304, %v4296
        %v5393 = vpack.c.b16 %v4305, %v4297
        %v5394 = vpack.c.b16 %v4306, %v4298
        %v5395 = vpack.c.b16 %v4307, %v4299
        %v5396 = vpack.c.b16 %v4308, %v4300
        %v5397 = vpack.c.b16 %v4317, %v4309
        %v5398 = vpack.c.b16 %v4318, %v4310
        %v5399 = vpack.c.b16 %v4319, %v4311
        %v5400 = vpack.c.b16 %v4320, %v4312
        %v5401 = vpack.c.b16 %v4321, %v4313
        %v5402 = vpack.c.b16 %v4322, %v4314
        %v5403 = vpack.c.b16 %v4323, %v4315
        %v5404 = vpack.c.b16 %v4324, %v4316
        %v5405 = vpack.c.b16 %v4333, %v4325
        %v5406 = vpack.c.b16 %v4334, %v4326
        %v5407 = vpack.c.b16 %v4335, %v4327
        %v5408 = vpack.c.b16 %v4336, %v4328
        %v5409 = vpack.c.b16 %v4337, %v4329
        %v5410 = vpack.c.b16 %v4338, %v4330
        %v5411 = vpack.c.b16 %v4339, %v4331
        %v5412 = vpack.c.b16 %v4340, %v4332
        %v5413 = vpack.c.b16 %v4349, %v4341
        %v5414 = vpack.c.b16 %v4350, %v4342
        %v5415 = vpack.c.b16 %v4351, %v4343
        %v5416 = vpack.c.b16 %v4352, %v4344
        %v5417 = vpack.c.b16 %v4353, %v4345
        %v5418 = vpack.c.b16 %v4354, %v4346
        %v5419 = vpack.c.b16 %v4355, %v4347
        %v5420 = vpack.c.b16 %v4356, %v4348
        %v5421 = vpack.c.b16 %v4365, %v4357
        %v5422 = vpack.c.b16 %v4366, %v4358
        %v5423 = vpack.c.b16 %v4367, %v4359
        %v5424 = vpack.c.b16 %v4368, %v4360
        %v5425 = vpack.c.b16 %v4369, %v4361
        %v5426 = vpack.c.b16 %v4370, %v4362
        %v5427 = vpack.c.b16 %v4371, %v4363
        %v5428 = vpack.c.b16 %v4372, %v4364
        %v5429 = vpack.c.b16 %v4381, %v4373
        %v5430 = vpack.c.b16 %v4382, %v4374
        %v5431 = vpack.c.b16 %v4383, %v4375
        %v5432 = vpack.c.b16 %v4384, %v4376
        %v5433 = vpack.c.b16 %v4385, %v4377
        %v5434 = vpack.c.b16 %v4386, %v4378
        %v5435 = vpack.c.b16 %v4387, %v4379
        %v5436 = vpack.c.b16 %v4388, %v4380
        %v5437 = vpack.c.b16 %v4397, %v4389
        %v5438 = vpack.c.b16 %v4398, %v4390
        %v5439 = vpack.c.b16 %v4399, %v4391
        %v5440 = vpack.c.b16 %v4400, %v4392
        %v5441 = vpack.c.b16 %v4401, %v4393
        %v5442 = vpack.c.b16 %v4402, %v4394
        %v5443 = vpack.c.b16 %v4403, %v4395
        %v5444 = vpack.c.b16 %v4404, %v4396
        %v5445 = vpack.c.b16 %v4413, %v4405
        %v5446 = vpack.c.b16 %v4414, %v4406
        %v5447 = vpack.c.b16 %v4415, %v4407
        %v5448 = vpack.c.b16 %v4416, %v4408
        %v5449 = vpack.c.b16 %v4417, %v4409
        %v5450 = vpack.c.b16 %v4418, %v4410
        %v5451 = vpack.c.b16 %v4419, %v4411
        %v5452 = vpack.c.b16 %v4420, %v4412
        %v5453 = vpack.c.b16 %v4429, %v4421
        %v5454 = vpack.c.b16 %v4430, %v4422
        %v5455 = vpack.c.b16 %v4431, %v4423
        %v5456 = vpack.c.b16 %v4432, %v4424
        %v5457 = vpack.c.b16 %v4433, %v4425
        %v5458 = vpack.c.b16 %v4434, %v4426
        %v5459 = vpack.c.b16 %v4435, %v4427
        %v5460 = vpack.c.b16 %v4436, %v4428
        %6485 = vmatpush.bf16.msra.mxu0 %v4493
        %6486 = vmatpush.bf16.msra.mxu0 %v4485
        %6487 = vmatpush.bf16.msra.mxu0 %v4477
        %6488 = vmatpush.bf16.msra.mxu0 %v4469
        %6489 = vmatpush.bf16.msra.mxu0 %v4461
        %6490 = vmatpush.bf16.msra.mxu0 %v4453
        %6491 = vmatpush.bf16.msra.mxu0 %v4445
        %6492 = vmatpush.bf16.msra.mxu0 %v4437
        %6493 = vmatmul.bf16.gmra.mxu0 %v325
        %v6494 = vpop.f32.mrf.mxu0
        %v6495 = vadd.f32 0.0, %v6494
        %v6496 = vpop.f32.mrf.mxu0
        %6497 = vdwg.mxu0
        %6498 = vmatpush.bf16.msra.mxu0 %v4557
        %6499 = vmatpush.bf16.msra.mxu0 %v4549
        %6500 = vmatpush.bf16.msra.mxu0 %v4541
        %6501 = vmatpush.bf16.msra.mxu0 %v4533
        %6502 = vmatpush.bf16.msra.mxu0 %v4525
        %6503 = vmatpush.bf16.msra.mxu0 %v4517
        %6504 = vmatpush.bf16.msra.mxu0 %v4509
        %6505 = vmatpush.bf16.msra.mxu0 %v4501
        %6506 = vmatmul.bf16.gmra.mxu0 %v326
        %v6507 = vpop.f32.mrf.mxu0
        %v6508 = vadd.f32 %v6495, %v6507
        %v6509 = vpop.f32.mrf.mxu0
        %6510 = vdwg.mxu0
        %6511 = vmatpush.bf16.msra.mxu0 %v4621
        %6512 = vmatpush.bf16.msra.mxu0 %v4613
        %6513 = vmatpush.bf16.msra.mxu0 %v4605
        %6514 = vmatpush.bf16.msra.mxu0 %v4597
        %6515 = vmatpush.bf16.msra.mxu0 %v4589
        %6516 = vmatpush.bf16.msra.mxu0 %v4581
        %6517 = vmatpush.bf16.msra.mxu0 %v4573
        %6518 = vmatpush.bf16.msra.mxu0 %v4565
        %6519 = vmatmul.bf16.gmra.mxu0 %v327
        %v6520 = vpop.f32.mrf.mxu0
        %v6521 = vadd.f32 %v6508, %v6520
        %v6522 = vpop.f32.mrf.mxu0
        %6523 = vdwg.mxu0
        %6524 = vmatpush.bf16.msra.mxu0 %v4685
        %6525 = vmatpush.bf16.msra.mxu0 %v4677
        %6526 = vmatpush.bf16.msra.mxu0 %v4669
        %6527 = vmatpush.bf16.msra.mxu0 %v4661
        %6528 = vmatpush.bf16.msra.mxu0 %v4653
        %6529 = vmatpush.bf16.msra.mxu0 %v4645
        %6530 = vmatpush.bf16.msra.mxu0 %v4637
        %6531 = vmatpush.bf16.msra.mxu0 %v4629
        %6532 = vmatmul.bf16.gmra.mxu0 %v328
        %v6533 = vpop.f32.mrf.mxu0
        %v6534 = vadd.f32 %v6521, %v6533
        %v6535 = vpop.f32.mrf.mxu0
        %6536 = vdwg.mxu0
        %6537 = vmatpush.bf16.msra.mxu0 %v4749
        %6538 = vmatpush.bf16.msra.mxu0 %v4741
        %6539 = vmatpush.bf16.msra.mxu0 %v4733
        %6540 = vmatpush.bf16.msra.mxu0 %v4725
        %6541 = vmatpush.bf16.msra.mxu0 %v4717
        %6542 = vmatpush.bf16.msra.mxu0 %v4709
        %6543 = vmatpush.bf16.msra.mxu0 %v4701
        %6544 = vmatpush.bf16.msra.mxu0 %v4693
        %6545 = vmatmul.bf16.gmra.mxu0 %v329
        %v6546 = vpop.f32.mrf.mxu0
        %v6547 = vadd.f32 %v6534, %v6546
        %v6548 = vpop.f32.mrf.mxu0
        %6549 = vdwg.mxu0
        %6550 = vmatpush.bf16.msra.mxu0 %v4813
        %6551 = vmatpush.bf16.msra.mxu0 %v4805
        %6552 = vmatpush.bf16.msra.mxu0 %v4797
        %6553 = vmatpush.bf16.msra.mxu0 %v4789
        %6554 = vmatpush.bf16.msra.mxu0 %v4781
        %6555 = vmatpush.bf16.msra.mxu0 %v4773
        %6556 = vmatpush.bf16.msra.mxu0 %v4765
        %6557 = vmatpush.bf16.msra.mxu0 %v4757
        %6558 = vmatmul.bf16.gmra.mxu0 %v330
        %v6559 = vpop.f32.mrf.mxu0
        %v6560 = vadd.f32 %v6547, %v6559
        %v6561 = vpop.f32.mrf.mxu0
        %6562 = vdwg.mxu0
        %6563 = vmatpush.bf16.msra.mxu0 %v4877
        %6564 = vmatpush.bf16.msra.mxu0 %v4869
        %6565 = vmatpush.bf16.msra.mxu0 %v4861
        %6566 = vmatpush.bf16.msra.mxu0 %v4853
        %6567 = vmatpush.bf16.msra.mxu0 %v4845
        %6568 = vmatpush.bf16.msra.mxu0 %v4837
        %6569 = vmatpush.bf16.msra.mxu0 %v4829
        %6570 = vmatpush.bf16.msra.mxu0 %v4821
        %6571 = vmatmul.bf16.gmra.mxu0 %v331
        %v6572 = vpop.f32.mrf.mxu0
        %v6573 = vadd.f32 %v6560, %v6572
        %v6574 = vpop.f32.mrf.mxu0
        %6575 = vdwg.mxu0
        %6576 = vmatpush.bf16.msra.mxu0 %v4941
        %6577 = vmatpush.bf16.msra.mxu0 %v4933
        %6578 = vmatpush.bf16.msra.mxu0 %v4925
        %6579 = vmatpush.bf16.msra.mxu0 %v4917
        %6580 = vmatpush.bf16.msra.mxu0 %v4909
        %6581 = vmatpush.bf16.msra.mxu0 %v4901
        %6582 = vmatpush.bf16.msra.mxu0 %v4893
        %6583 = vmatpush.bf16.msra.mxu0 %v4885
        %6584 = vmatmul.bf16.gmra.mxu0 %v332
        %v6585 = vpop.f32.mrf.mxu0
        %v6586 = vadd.f32 %v6573, %v6585
        %v6587 = vpop.f32.mrf.mxu0
        %6588 = vdwg.mxu0
        %6589 = vmatpush.bf16.msra.mxu0 %v5005
        %6590 = vmatpush.bf16.msra.mxu0 %v4997
        %6591 = vmatpush.bf16.msra.mxu0 %v4989
        %6592 = vmatpush.bf16.msra.mxu0 %v4981
        %6593 = vmatpush.bf16.msra.mxu0 %v4973
        %6594 = vmatpush.bf16.msra.mxu0 %v4965
        %6595 = vmatpush.bf16.msra.mxu0 %v4957
        %6596 = vmatpush.bf16.msra.mxu0 %v4949
        %6597 = vmatmul.bf16.gmra.mxu0 %v333
        %v6598 = vpop.f32.mrf.mxu0
        %v6599 = vadd.f32 %v6586, %v6598
        %v6600 = vpop.f32.mrf.mxu0
        %6601 = vdwg.mxu0
        %6602 = vmatpush.bf16.msra.mxu0 %v5069
        %6603 = vmatpush.bf16.msra.mxu0 %v5061
        %6604 = vmatpush.bf16.msra.mxu0 %v5053
        %6605 = vmatpush.bf16.msra.mxu0 %v5045
        %6606 = vmatpush.bf16.msra.mxu0 %v5037
        %6607 = vmatpush.bf16.msra.mxu0 %v5029
        %6608 = vmatpush.bf16.msra.mxu0 %v5021
        %6609 = vmatpush.bf16.msra.mxu0 %v5013
        %6610 = vmatmul.bf16.gmra.mxu0 %v334
        %v6611 = vpop.f32.mrf.mxu0
        %v6612 = vadd.f32 %v6599, %v6611
        %v6613 = vpop.f32.mrf.mxu0
        %6614 = vdwg.mxu0
        %6615 = vmatpush.bf16.msra.mxu0 %v5133
        %6616 = vmatpush.bf16.msra.mxu0 %v5125
        %6617 = vmatpush.bf16.msra.mxu0 %v5117
        %6618 = vmatpush.bf16.msra.mxu0 %v5109
        %6619 = vmatpush.bf16.msra.mxu0 %v5101
        %6620 = vmatpush.bf16.msra.mxu0 %v5093
        %6621 = vmatpush.bf16.msra.mxu0 %v5085
        %6622 = vmatpush.bf16.msra.mxu0 %v5077
        %6623 = vmatmul.bf16.gmra.mxu0 %v335
        %v6624 = vpop.f32.mrf.mxu0
        %v6625 = vadd.f32 %v6612, %v6624
        %v6626 = vpop.f32.mrf.mxu0
        %6627 = vdwg.mxu0
        %6628 = vmatpush.bf16.msra.mxu0 %v5197
        %6629 = vmatpush.bf16.msra.mxu0 %v5189
        %6630 = vmatpush.bf16.msra.mxu0 %v5181
        %6631 = vmatpush.bf16.msra.mxu0 %v5173
        %6632 = vmatpush.bf16.msra.mxu0 %v5165
        %6633 = vmatpush.bf16.msra.mxu0 %v5157
        %6634 = vmatpush.bf16.msra.mxu0 %v5149
        %6635 = vmatpush.bf16.msra.mxu0 %v5141
        %6636 = vmatmul.bf16.gmra.mxu0 %v336
        %v6637 = vpop.f32.mrf.mxu0
        %v6638 = vadd.f32 %v6625, %v6637
        %v6639 = vpop.f32.mrf.mxu0
        %6640 = vdwg.mxu0
        %6641 = vmatpush.bf16.msra.mxu0 %v5261
        %6642 = vmatpush.bf16.msra.mxu0 %v5253
        %6643 = vmatpush.bf16.msra.mxu0 %v5245
        %6644 = vmatpush.bf16.msra.mxu0 %v5237
        %6645 = vmatpush.bf16.msra.mxu0 %v5229
        %6646 = vmatpush.bf16.msra.mxu0 %v5221
        %6647 = vmatpush.bf16.msra.mxu0 %v5213
        %6648 = vmatpush.bf16.msra.mxu0 %v5205
        %6649 = vmatmul.bf16.gmra.mxu0 %v337
        %v6650 = vpop.f32.mrf.mxu0
        %v6651 = vadd.f32 %v6638, %v6650
        %v6652 = vpop.f32.mrf.mxu0
        %6653 = vdwg.mxu0
        %6654 = vmatpush.bf16.msra.mxu0 %v5325
        %6655 = vmatpush.bf16.msra.mxu0 %v5317
        %6656 = vmatpush.bf16.msra.mxu0 %v5309
        %6657 = vmatpush.bf16.msra.mxu0 %v5301
        %6658 = vmatpush.bf16.msra.mxu0 %v5293
        %6659 = vmatpush.bf16.msra.mxu0 %v5285
        %6660 = vmatpush.bf16.msra.mxu0 %v5277
        %6661 = vmatpush.bf16.msra.mxu0 %v5269
        %6662 = vmatmul.bf16.gmra.mxu0 %v338
        %v6663 = vpop.f32.mrf.mxu0
        %v6664 = vadd.f32 %v6651, %v6663
        %v6665 = vpop.f32.mrf.mxu0
        %6666 = vdwg.mxu0
        %6667 = vmatpush.bf16.msra.mxu0 %v5389
        %6668 = vmatpush.bf16.msra.mxu0 %v5381
        %6669 = vmatpush.bf16.msra.mxu0 %v5373
        %6670 = vmatpush.bf16.msra.mxu0 %v5365
        %6671 = vmatpush.bf16.msra.mxu0 %v5357
        %6672 = vmatpush.bf16.msra.mxu0 %v5349
        %6673 = vmatpush.bf16.msra.mxu0 %v5341
        %6674 = vmatpush.bf16.msra.mxu0 %v5333
        %6675 = vmatmul.bf16.gmra.mxu0 %v339
        %v6676 = vpop.f32.mrf.mxu0
        %v6677 = vadd.f32 %v6664, %v6676
        %v6678 = vpop.f32.mrf.mxu0
        %6679 = vdwg.mxu0
        %6680 = vmatpush.bf16.msra.mxu0 %v5453
        %6681 = vmatpush.bf16.msra.mxu0 %v5445
        %6682 = vmatpush.bf16.msra.mxu0 %v5437
        %6683 = vmatpush.bf16.msra.mxu0 %v5429
        %6684 = vmatpush.bf16.msra.mxu0 %v5421
        %6685 = vmatpush.bf16.msra.mxu0 %v5413
        %6686 = vmatpush.bf16.msra.mxu0 %v5405
        %6687 = vmatpush.bf16.msra.mxu0 %v5397
        %6688 = vmatmul.bf16.gmra.mxu0 %v340
        %v6689 = vpop.f32.mrf.mxu0
        %v6690 = vadd.f32 %v6677, %v6689
        %v6691 = vpop.f32.mrf.mxu0
        %6692 = vdwg.mxu0
        %6693 = vmatpush.bf16.msra.mxu0 %v4494
        %6694 = vmatpush.bf16.msra.mxu0 %v4486
        %6695 = vmatpush.bf16.msra.mxu0 %v4478
        %6696 = vmatpush.bf16.msra.mxu0 %v4470
        %6697 = vmatpush.bf16.msra.mxu0 %v4462
        %6698 = vmatpush.bf16.msra.mxu0 %v4454
        %6699 = vmatpush.bf16.msra.mxu0 %v4446
        %6700 = vmatpush.bf16.msra.mxu0 %v4438
        %6701 = vmatmul.bf16.gmra.mxu0 %v325
        %v6702 = vpop.f32.mrf.mxu0
        %v6703 = vadd.f32 0.0, %v6702
        %v6704 = vpop.f32.mrf.mxu0
        %6705 = vdwg.mxu0
        %6706 = vmatpush.bf16.msra.mxu0 %v4558
        %6707 = vmatpush.bf16.msra.mxu0 %v4550
        %6708 = vmatpush.bf16.msra.mxu0 %v4542
        %6709 = vmatpush.bf16.msra.mxu0 %v4534
        %6710 = vmatpush.bf16.msra.mxu0 %v4526
        %6711 = vmatpush.bf16.msra.mxu0 %v4518
        %6712 = vmatpush.bf16.msra.mxu0 %v4510
        %6713 = vmatpush.bf16.msra.mxu0 %v4502
        %6714 = vmatmul.bf16.gmra.mxu0 %v326
        %v6715 = vpop.f32.mrf.mxu0
        %v6716 = vadd.f32 %v6703, %v6715
        %v6717 = vpop.f32.mrf.mxu0
        %6718 = vdwg.mxu0
        %6719 = vmatpush.bf16.msra.mxu0 %v4622
        %6720 = vmatpush.bf16.msra.mxu0 %v4614
        %6721 = vmatpush.bf16.msra.mxu0 %v4606
        %6722 = vmatpush.bf16.msra.mxu0 %v4598
        %6723 = vmatpush.bf16.msra.mxu0 %v4590
        %6724 = vmatpush.bf16.msra.mxu0 %v4582
        %6725 = vmatpush.bf16.msra.mxu0 %v4574
        %6726 = vmatpush.bf16.msra.mxu0 %v4566
        %6727 = vmatmul.bf16.gmra.mxu0 %v327
        %v6728 = vpop.f32.mrf.mxu0
        %v6729 = vadd.f32 %v6716, %v6728
        %v6730 = vpop.f32.mrf.mxu0
        %6731 = vdwg.mxu0
        %6732 = vmatpush.bf16.msra.mxu0 %v4686
        %6733 = vmatpush.bf16.msra.mxu0 %v4678
        %6734 = vmatpush.bf16.msra.mxu0 %v4670
        %6735 = vmatpush.bf16.msra.mxu0 %v4662
        %6736 = vmatpush.bf16.msra.mxu0 %v4654
        %6737 = vmatpush.bf16.msra.mxu0 %v4646
        %6738 = vmatpush.bf16.msra.mxu0 %v4638
        %6739 = vmatpush.bf16.msra.mxu0 %v4630
        %6740 = vmatmul.bf16.gmra.mxu0 %v328
        %v6741 = vpop.f32.mrf.mxu0
        %v6742 = vadd.f32 %v6729, %v6741
        %v6743 = vpop.f32.mrf.mxu0
        %6744 = vdwg.mxu0
        %6745 = vmatpush.bf16.msra.mxu0 %v4750
        %6746 = vmatpush.bf16.msra.mxu0 %v4742
        %6747 = vmatpush.bf16.msra.mxu0 %v4734
        %6748 = vmatpush.bf16.msra.mxu0 %v4726
        %6749 = vmatpush.bf16.msra.mxu0 %v4718
        %6750 = vmatpush.bf16.msra.mxu0 %v4710
        %6751 = vmatpush.bf16.msra.mxu0 %v4702
        %6752 = vmatpush.bf16.msra.mxu0 %v4694
        %6753 = vmatmul.bf16.gmra.mxu0 %v329
        %v6754 = vpop.f32.mrf.mxu0
        %v6755 = vadd.f32 %v6742, %v6754
        %v6756 = vpop.f32.mrf.mxu0
        %6757 = vdwg.mxu0
        %6758 = vmatpush.bf16.msra.mxu0 %v4814
        %6759 = vmatpush.bf16.msra.mxu0 %v4806
        %6760 = vmatpush.bf16.msra.mxu0 %v4798
        %6761 = vmatpush.bf16.msra.mxu0 %v4790
        %6762 = vmatpush.bf16.msra.mxu0 %v4782
        %6763 = vmatpush.bf16.msra.mxu0 %v4774
        %6764 = vmatpush.bf16.msra.mxu0 %v4766
        %6765 = vmatpush.bf16.msra.mxu0 %v4758
        %6766 = vmatmul.bf16.gmra.mxu0 %v330
        %v6767 = vpop.f32.mrf.mxu0
        %v6768 = vadd.f32 %v6755, %v6767
        %v6769 = vpop.f32.mrf.mxu0
        %6770 = vdwg.mxu0
        %6771 = vmatpush.bf16.msra.mxu0 %v4878
        %6772 = vmatpush.bf16.msra.mxu0 %v4870
        %6773 = vmatpush.bf16.msra.mxu0 %v4862
        %6774 = vmatpush.bf16.msra.mxu0 %v4854
        %6775 = vmatpush.bf16.msra.mxu0 %v4846
        %6776 = vmatpush.bf16.msra.mxu0 %v4838
        %6777 = vmatpush.bf16.msra.mxu0 %v4830
        %6778 = vmatpush.bf16.msra.mxu0 %v4822
        %6779 = vmatmul.bf16.gmra.mxu0 %v331
        %v6780 = vpop.f32.mrf.mxu0
        %v6781 = vadd.f32 %v6768, %v6780
        %v6782 = vpop.f32.mrf.mxu0
        %6783 = vdwg.mxu0
        %6784 = vmatpush.bf16.msra.mxu0 %v4942
        %6785 = vmatpush.bf16.msra.mxu0 %v4934
        %6786 = vmatpush.bf16.msra.mxu0 %v4926
        %6787 = vmatpush.bf16.msra.mxu0 %v4918
        %6788 = vmatpush.bf16.msra.mxu0 %v4910
        %6789 = vmatpush.bf16.msra.mxu0 %v4902
        %6790 = vmatpush.bf16.msra.mxu0 %v4894
        %6791 = vmatpush.bf16.msra.mxu0 %v4886
        %6792 = vmatmul.bf16.gmra.mxu0 %v332
        %v6793 = vpop.f32.mrf.mxu0
        %v6794 = vadd.f32 %v6781, %v6793
        %v6795 = vpop.f32.mrf.mxu0
        %6796 = vdwg.mxu0
        %6797 = vmatpush.bf16.msra.mxu0 %v5006
        %6798 = vmatpush.bf16.msra.mxu0 %v4998
        %6799 = vmatpush.bf16.msra.mxu0 %v4990
        %6800 = vmatpush.bf16.msra.mxu0 %v4982
        %6801 = vmatpush.bf16.msra.mxu0 %v4974
        %6802 = vmatpush.bf16.msra.mxu0 %v4966
        %6803 = vmatpush.bf16.msra.mxu0 %v4958
        %6804 = vmatpush.bf16.msra.mxu0 %v4950
        %6805 = vmatmul.bf16.gmra.mxu0 %v333
        %v6806 = vpop.f32.mrf.mxu0
        %v6807 = vadd.f32 %v6794, %v6806
        %v6808 = vpop.f32.mrf.mxu0
        %6809 = vdwg.mxu0
        %6810 = vmatpush.bf16.msra.mxu0 %v5070
        %6811 = vmatpush.bf16.msra.mxu0 %v5062
        %6812 = vmatpush.bf16.msra.mxu0 %v5054
        %6813 = vmatpush.bf16.msra.mxu0 %v5046
        %6814 = vmatpush.bf16.msra.mxu0 %v5038
        %6815 = vmatpush.bf16.msra.mxu0 %v5030
        %6816 = vmatpush.bf16.msra.mxu0 %v5022
        %6817 = vmatpush.bf16.msra.mxu0 %v5014
        %6818 = vmatmul.bf16.gmra.mxu0 %v334
        %v6819 = vpop.f32.mrf.mxu0
        %v6820 = vadd.f32 %v6807, %v6819
        %v6821 = vpop.f32.mrf.mxu0
        %6822 = vdwg.mxu0
        %6823 = vmatpush.bf16.msra.mxu0 %v5134
        %6824 = vmatpush.bf16.msra.mxu0 %v5126
        %6825 = vmatpush.bf16.msra.mxu0 %v5118
        %6826 = vmatpush.bf16.msra.mxu0 %v5110
        %6827 = vmatpush.bf16.msra.mxu0 %v5102
        %6828 = vmatpush.bf16.msra.mxu0 %v5094
        %6829 = vmatpush.bf16.msra.mxu0 %v5086
        %6830 = vmatpush.bf16.msra.mxu0 %v5078
        %6831 = vmatmul.bf16.gmra.mxu0 %v335
        %v6832 = vpop.f32.mrf.mxu0
        %v6833 = vadd.f32 %v6820, %v6832
        %v6834 = vpop.f32.mrf.mxu0
        %6835 = vdwg.mxu0
        %6836 = vmatpush.bf16.msra.mxu0 %v5198
        %6837 = vmatpush.bf16.msra.mxu0 %v5190
        %6838 = vmatpush.bf16.msra.mxu0 %v5182
        %6839 = vmatpush.bf16.msra.mxu0 %v5174
        %6840 = vmatpush.bf16.msra.mxu0 %v5166
        %6841 = vmatpush.bf16.msra.mxu0 %v5158
        %6842 = vmatpush.bf16.msra.mxu0 %v5150
        %6843 = vmatpush.bf16.msra.mxu0 %v5142
        %6844 = vmatmul.bf16.gmra.mxu0 %v336
        %v6845 = vpop.f32.mrf.mxu0
        %v6846 = vadd.f32 %v6833, %v6845
        %v6847 = vpop.f32.mrf.mxu0
        %6848 = vdwg.mxu0
        %6849 = vmatpush.bf16.msra.mxu0 %v5262
        %6850 = vmatpush.bf16.msra.mxu0 %v5254
        %6851 = vmatpush.bf16.msra.mxu0 %v5246
        %6852 = vmatpush.bf16.msra.mxu0 %v5238
        %6853 = vmatpush.bf16.msra.mxu0 %v5230
        %6854 = vmatpush.bf16.msra.mxu0 %v5222
        %6855 = vmatpush.bf16.msra.mxu0 %v5214
        %6856 = vmatpush.bf16.msra.mxu0 %v5206
        %6857 = vmatmul.bf16.gmra.mxu0 %v337
        %v6858 = vpop.f32.mrf.mxu0
        %v6859 = vadd.f32 %v6846, %v6858
        %v6860 = vpop.f32.mrf.mxu0
        %6861 = vdwg.mxu0
        %6862 = vmatpush.bf16.msra.mxu0 %v5326
        %6863 = vmatpush.bf16.msra.mxu0 %v5318
        %6864 = vmatpush.bf16.msra.mxu0 %v5310
        %6865 = vmatpush.bf16.msra.mxu0 %v5302
        %6866 = vmatpush.bf16.msra.mxu0 %v5294
        %6867 = vmatpush.bf16.msra.mxu0 %v5286
        %6868 = vmatpush.bf16.msra.mxu0 %v5278
        %6869 = vmatpush.bf16.msra.mxu0 %v5270
        %6870 = vmatmul.bf16.gmra.mxu0 %v338
        %v6871 = vpop.f32.mrf.mxu0
        %v6872 = vadd.f32 %v6859, %v6871
        %v6873 = vpop.f32.mrf.mxu0
        %6874 = vdwg.mxu0
        %6875 = vmatpush.bf16.msra.mxu0 %v5390
        %6876 = vmatpush.bf16.msra.mxu0 %v5382
        %6877 = vmatpush.bf16.msra.mxu0 %v5374
        %6878 = vmatpush.bf16.msra.mxu0 %v5366
        %6879 = vmatpush.bf16.msra.mxu0 %v5358
        %6880 = vmatpush.bf16.msra.mxu0 %v5350
        %6881 = vmatpush.bf16.msra.mxu0 %v5342
        %6882 = vmatpush.bf16.msra.mxu0 %v5334
        %6883 = vmatmul.bf16.gmra.mxu0 %v339
        %v6884 = vpop.f32.mrf.mxu0
        %v6885 = vadd.f32 %v6872, %v6884
        %v6886 = vpop.f32.mrf.mxu0
        %6887 = vdwg.mxu0
        %6888 = vmatpush.bf16.msra.mxu0 %v5454
        %6889 = vmatpush.bf16.msra.mxu0 %v5446
        %6890 = vmatpush.bf16.msra.mxu0 %v5438
        %6891 = vmatpush.bf16.msra.mxu0 %v5430
        %6892 = vmatpush.bf16.msra.mxu0 %v5422
        %6893 = vmatpush.bf16.msra.mxu0 %v5414
        %6894 = vmatpush.bf16.msra.mxu0 %v5406
        %6895 = vmatpush.bf16.msra.mxu0 %v5398
        %6896 = vmatmul.bf16.gmra.mxu0 %v340
        %v6897 = vpop.f32.mrf.mxu0
        %v6898 = vadd.f32 %v6885, %v6897
        %v6899 = vpop.f32.mrf.mxu0
        %6900 = vdwg.mxu0
        %6901 = vmatpush.bf16.msra.mxu0 %v4495
        %6902 = vmatpush.bf16.msra.mxu0 %v4487
        %6903 = vmatpush.bf16.msra.mxu0 %v4479
        %6904 = vmatpush.bf16.msra.mxu0 %v4471
        %6905 = vmatpush.bf16.msra.mxu0 %v4463
        %6906 = vmatpush.bf16.msra.mxu0 %v4455
        %6907 = vmatpush.bf16.msra.mxu0 %v4447
        %6908 = vmatpush.bf16.msra.mxu0 %v4439
        %6909 = vmatmul.bf16.gmra.mxu0 %v325
        %v6910 = vpop.f32.mrf.mxu0
        %v6911 = vadd.f32 0.0, %v6910
        %v6912 = vpop.f32.mrf.mxu0
        %6913 = vdwg.mxu0
        %6914 = vmatpush.bf16.msra.mxu0 %v4559
        %6915 = vmatpush.bf16.msra.mxu0 %v4551
        %6916 = vmatpush.bf16.msra.mxu0 %v4543
        %6917 = vmatpush.bf16.msra.mxu0 %v4535
        %6918 = vmatpush.bf16.msra.mxu0 %v4527
        %6919 = vmatpush.bf16.msra.mxu0 %v4519
        %6920 = vmatpush.bf16.msra.mxu0 %v4511
        %6921 = vmatpush.bf16.msra.mxu0 %v4503
        %6922 = vmatmul.bf16.gmra.mxu0 %v326
        %v6923 = vpop.f32.mrf.mxu0
        %v6924 = vadd.f32 %v6911, %v6923
        %v6925 = vpop.f32.mrf.mxu0
        %6926 = vdwg.mxu0
        %6927 = vmatpush.bf16.msra.mxu0 %v4623
        %6928 = vmatpush.bf16.msra.mxu0 %v4615
        %6929 = vmatpush.bf16.msra.mxu0 %v4607
        %6930 = vmatpush.bf16.msra.mxu0 %v4599
        %6931 = vmatpush.bf16.msra.mxu0 %v4591
        %6932 = vmatpush.bf16.msra.mxu0 %v4583
        %6933 = vmatpush.bf16.msra.mxu0 %v4575
        %6934 = vmatpush.bf16.msra.mxu0 %v4567
        %6935 = vmatmul.bf16.gmra.mxu0 %v327
        %v6936 = vpop.f32.mrf.mxu0
        %v6937 = vadd.f32 %v6924, %v6936
        %v6938 = vpop.f32.mrf.mxu0
        %6939 = vdwg.mxu0
        %6940 = vmatpush.bf16.msra.mxu0 %v4687
        %6941 = vmatpush.bf16.msra.mxu0 %v4679
        %6942 = vmatpush.bf16.msra.mxu0 %v4671
        %6943 = vmatpush.bf16.msra.mxu0 %v4663
        %6944 = vmatpush.bf16.msra.mxu0 %v4655
        %6945 = vmatpush.bf16.msra.mxu0 %v4647
        %6946 = vmatpush.bf16.msra.mxu0 %v4639
        %6947 = vmatpush.bf16.msra.mxu0 %v4631
        %6948 = vmatmul.bf16.gmra.mxu0 %v328
        %v6949 = vpop.f32.mrf.mxu0
        %v6950 = vadd.f32 %v6937, %v6949
        %v6951 = vpop.f32.mrf.mxu0
        %6952 = vdwg.mxu0
        %6953 = vmatpush.bf16.msra.mxu0 %v4751
        %6954 = vmatpush.bf16.msra.mxu0 %v4743
        %6955 = vmatpush.bf16.msra.mxu0 %v4735
        %6956 = vmatpush.bf16.msra.mxu0 %v4727
        %6957 = vmatpush.bf16.msra.mxu0 %v4719
        %6958 = vmatpush.bf16.msra.mxu0 %v4711
        %6959 = vmatpush.bf16.msra.mxu0 %v4703
        %6960 = vmatpush.bf16.msra.mxu0 %v4695
        %6961 = vmatmul.bf16.gmra.mxu0 %v329
        %v6962 = vpop.f32.mrf.mxu0
        %v6963 = vadd.f32 %v6950, %v6962
        %v6964 = vpop.f32.mrf.mxu0
        %6965 = vdwg.mxu0
        %6966 = vmatpush.bf16.msra.mxu0 %v4815
        %6967 = vmatpush.bf16.msra.mxu0 %v4807
        %6968 = vmatpush.bf16.msra.mxu0 %v4799
        %6969 = vmatpush.bf16.msra.mxu0 %v4791
        %6970 = vmatpush.bf16.msra.mxu0 %v4783
        %6971 = vmatpush.bf16.msra.mxu0 %v4775
        %6972 = vmatpush.bf16.msra.mxu0 %v4767
        %6973 = vmatpush.bf16.msra.mxu0 %v4759
        %6974 = vmatmul.bf16.gmra.mxu0 %v330
        %v6975 = vpop.f32.mrf.mxu0
        %v6976 = vadd.f32 %v6963, %v6975
        %v6977 = vpop.f32.mrf.mxu0
        %6978 = vdwg.mxu0
        %6979 = vmatpush.bf16.msra.mxu0 %v4879
        %6980 = vmatpush.bf16.msra.mxu0 %v4871
        %6981 = vmatpush.bf16.msra.mxu0 %v4863
        %6982 = vmatpush.bf16.msra.mxu0 %v4855
        %6983 = vmatpush.bf16.msra.mxu0 %v4847
        %6984 = vmatpush.bf16.msra.mxu0 %v4839
        %6985 = vmatpush.bf16.msra.mxu0 %v4831
        %6986 = vmatpush.bf16.msra.mxu0 %v4823
        %6987 = vmatmul.bf16.gmra.mxu0 %v331
        %v6988 = vpop.f32.mrf.mxu0
        %v6989 = vadd.f32 %v6976, %v6988
        %v6990 = vpop.f32.mrf.mxu0
        %6991 = vdwg.mxu0
        %6992 = vmatpush.bf16.msra.mxu0 %v4943
        %6993 = vmatpush.bf16.msra.mxu0 %v4935
        %6994 = vmatpush.bf16.msra.mxu0 %v4927
        %6995 = vmatpush.bf16.msra.mxu0 %v4919
        %6996 = vmatpush.bf16.msra.mxu0 %v4911
        %6997 = vmatpush.bf16.msra.mxu0 %v4903
        %6998 = vmatpush.bf16.msra.mxu0 %v4895
        %6999 = vmatpush.bf16.msra.mxu0 %v4887
        %7000 = vmatmul.bf16.gmra.mxu0 %v332
        %v7001 = vpop.f32.mrf.mxu0
        %v7002 = vadd.f32 %v6989, %v7001
        %v7003 = vpop.f32.mrf.mxu0
        %7004 = vdwg.mxu0
        %7005 = vmatpush.bf16.msra.mxu0 %v5007
        %7006 = vmatpush.bf16.msra.mxu0 %v4999
        %7007 = vmatpush.bf16.msra.mxu0 %v4991
        %7008 = vmatpush.bf16.msra.mxu0 %v4983
        %7009 = vmatpush.bf16.msra.mxu0 %v4975
        %7010 = vmatpush.bf16.msra.mxu0 %v4967
        %7011 = vmatpush.bf16.msra.mxu0 %v4959
        %7012 = vmatpush.bf16.msra.mxu0 %v4951
        %7013 = vmatmul.bf16.gmra.mxu0 %v333
        %v7014 = vpop.f32.mrf.mxu0
        %v7015 = vadd.f32 %v7002, %v7014
        %v7016 = vpop.f32.mrf.mxu0
        %7017 = vdwg.mxu0
        %7018 = vmatpush.bf16.msra.mxu0 %v5071
        %7019 = vmatpush.bf16.msra.mxu0 %v5063
        %7020 = vmatpush.bf16.msra.mxu0 %v5055
        %7021 = vmatpush.bf16.msra.mxu0 %v5047
        %7022 = vmatpush.bf16.msra.mxu0 %v5039
        %7023 = vmatpush.bf16.msra.mxu0 %v5031
        %7024 = vmatpush.bf16.msra.mxu0 %v5023
        %7025 = vmatpush.bf16.msra.mxu0 %v5015
        %7026 = vmatmul.bf16.gmra.mxu0 %v334
        %v7027 = vpop.f32.mrf.mxu0
        %v7028 = vadd.f32 %v7015, %v7027
        %v7029 = vpop.f32.mrf.mxu0
        %7030 = vdwg.mxu0
        %7031 = vmatpush.bf16.msra.mxu0 %v5135
        %7032 = vmatpush.bf16.msra.mxu0 %v5127
        %7033 = vmatpush.bf16.msra.mxu0 %v5119
        %7034 = vmatpush.bf16.msra.mxu0 %v5111
        %7035 = vmatpush.bf16.msra.mxu0 %v5103
        %7036 = vmatpush.bf16.msra.mxu0 %v5095
        %7037 = vmatpush.bf16.msra.mxu0 %v5087
        %7038 = vmatpush.bf16.msra.mxu0 %v5079
        %7039 = vmatmul.bf16.gmra.mxu0 %v335
        %v7040 = vpop.f32.mrf.mxu0
        %v7041 = vadd.f32 %v7028, %v7040
        %v7042 = vpop.f32.mrf.mxu0
        %7043 = vdwg.mxu0
        %7044 = vmatpush.bf16.msra.mxu0 %v5199
        %7045 = vmatpush.bf16.msra.mxu0 %v5191
        %7046 = vmatpush.bf16.msra.mxu0 %v5183
        %7047 = vmatpush.bf16.msra.mxu0 %v5175
        %7048 = vmatpush.bf16.msra.mxu0 %v5167
        %7049 = vmatpush.bf16.msra.mxu0 %v5159
        %7050 = vmatpush.bf16.msra.mxu0 %v5151
        %7051 = vmatpush.bf16.msra.mxu0 %v5143
        %7052 = vmatmul.bf16.gmra.mxu0 %v336
        %v7053 = vpop.f32.mrf.mxu0
        %v7054 = vadd.f32 %v7041, %v7053
        %v7055 = vpop.f32.mrf.mxu0
        %7056 = vdwg.mxu0
        %7057 = vmatpush.bf16.msra.mxu0 %v5263
        %7058 = vmatpush.bf16.msra.mxu0 %v5255
        %7059 = vmatpush.bf16.msra.mxu0 %v5247
        %7060 = vmatpush.bf16.msra.mxu0 %v5239
        %7061 = vmatpush.bf16.msra.mxu0 %v5231
        %7062 = vmatpush.bf16.msra.mxu0 %v5223
        %7063 = vmatpush.bf16.msra.mxu0 %v5215
        %7064 = vmatpush.bf16.msra.mxu0 %v5207
        %7065 = vmatmul.bf16.gmra.mxu0 %v337
        %v7066 = vpop.f32.mrf.mxu0
        %v7067 = vadd.f32 %v7054, %v7066
        %v7068 = vpop.f32.mrf.mxu0
        %7069 = vdwg.mxu0
        %7070 = vmatpush.bf16.msra.mxu0 %v5327
        %7071 = vmatpush.bf16.msra.mxu0 %v5319
        %7072 = vmatpush.bf16.msra.mxu0 %v5311
        %7073 = vmatpush.bf16.msra.mxu0 %v5303
        %7074 = vmatpush.bf16.msra.mxu0 %v5295
        %7075 = vmatpush.bf16.msra.mxu0 %v5287
        %7076 = vmatpush.bf16.msra.mxu0 %v5279
        %7077 = vmatpush.bf16.msra.mxu0 %v5271
        %7078 = vmatmul.bf16.gmra.mxu0 %v338
        %v7079 = vpop.f32.mrf.mxu0
        %v7080 = vadd.f32 %v7067, %v7079
        %v7081 = vpop.f32.mrf.mxu0
        %7082 = vdwg.mxu0
        %7083 = vmatpush.bf16.msra.mxu0 %v5391
        %7084 = vmatpush.bf16.msra.mxu0 %v5383
        %7085 = vmatpush.bf16.msra.mxu0 %v5375
        %7086 = vmatpush.bf16.msra.mxu0 %v5367
        %7087 = vmatpush.bf16.msra.mxu0 %v5359
        %7088 = vmatpush.bf16.msra.mxu0 %v5351
        %7089 = vmatpush.bf16.msra.mxu0 %v5343
        %7090 = vmatpush.bf16.msra.mxu0 %v5335
        %7091 = vmatmul.bf16.gmra.mxu0 %v339
        %v7092 = vpop.f32.mrf.mxu0
        %v7093 = vadd.f32 %v7080, %v7092
        %v7094 = vpop.f32.mrf.mxu0
        %7095 = vdwg.mxu0
        %7096 = vmatpush.bf16.msra.mxu0 %v5455
        %7097 = vmatpush.bf16.msra.mxu0 %v5447
        %7098 = vmatpush.bf16.msra.mxu0 %v5439
        %7099 = vmatpush.bf16.msra.mxu0 %v5431
        %7100 = vmatpush.bf16.msra.mxu0 %v5423
        %7101 = vmatpush.bf16.msra.mxu0 %v5415
        %7102 = vmatpush.bf16.msra.mxu0 %v5407
        %7103 = vmatpush.bf16.msra.mxu0 %v5399
        %7104 = vmatmul.bf16.gmra.mxu0 %v340
        %v7105 = vpop.f32.mrf.mxu0
        %v7106 = vadd.f32 %v7093, %v7105
        %v7107 = vpop.f32.mrf.mxu0
        %7108 = vdwg.mxu0
        %7109 = vmatpush.bf16.msra.mxu0 %v4496
        %7110 = vmatpush.bf16.msra.mxu0 %v4488
        %7111 = vmatpush.bf16.msra.mxu0 %v4480
        %7112 = vmatpush.bf16.msra.mxu0 %v4472
        %7113 = vmatpush.bf16.msra.mxu0 %v4464
        %7114 = vmatpush.bf16.msra.mxu0 %v4456
        %7115 = vmatpush.bf16.msra.mxu0 %v4448
        %7116 = vmatpush.bf16.msra.mxu0 %v4440
        %7117 = vmatmul.bf16.gmra.mxu0 %v325
        %v7118 = vpop.f32.mrf.mxu0
        %v7119 = vadd.f32 0.0, %v7118
        %v7120 = vpop.f32.mrf.mxu0
        %7121 = vdwg.mxu0
        %7122 = vmatpush.bf16.msra.mxu0 %v4560
        %7123 = vmatpush.bf16.msra.mxu0 %v4552
        %7124 = vmatpush.bf16.msra.mxu0 %v4544
        %7125 = vmatpush.bf16.msra.mxu0 %v4536
        %7126 = vmatpush.bf16.msra.mxu0 %v4528
        %7127 = vmatpush.bf16.msra.mxu0 %v4520
        %7128 = vmatpush.bf16.msra.mxu0 %v4512
        %7129 = vmatpush.bf16.msra.mxu0 %v4504
        %7130 = vmatmul.bf16.gmra.mxu0 %v326
        %v7131 = vpop.f32.mrf.mxu0
        %v7132 = vadd.f32 %v7119, %v7131
        %v7133 = vpop.f32.mrf.mxu0
        %7134 = vdwg.mxu0
        %7135 = vmatpush.bf16.msra.mxu0 %v4624
        %7136 = vmatpush.bf16.msra.mxu0 %v4616
        %7137 = vmatpush.bf16.msra.mxu0 %v4608
        %7138 = vmatpush.bf16.msra.mxu0 %v4600
        %7139 = vmatpush.bf16.msra.mxu0 %v4592
        %7140 = vmatpush.bf16.msra.mxu0 %v4584
        %7141 = vmatpush.bf16.msra.mxu0 %v4576
        %7142 = vmatpush.bf16.msra.mxu0 %v4568
        %7143 = vmatmul.bf16.gmra.mxu0 %v327
        %v7144 = vpop.f32.mrf.mxu0
        %v7145 = vadd.f32 %v7132, %v7144
        %v7146 = vpop.f32.mrf.mxu0
        %7147 = vdwg.mxu0
        %7148 = vmatpush.bf16.msra.mxu0 %v4688
        %7149 = vmatpush.bf16.msra.mxu0 %v4680
        %7150 = vmatpush.bf16.msra.mxu0 %v4672
        %7151 = vmatpush.bf16.msra.mxu0 %v4664
        %7152 = vmatpush.bf16.msra.mxu0 %v4656
        %7153 = vmatpush.bf16.msra.mxu0 %v4648
        %7154 = vmatpush.bf16.msra.mxu0 %v4640
        %7155 = vmatpush.bf16.msra.mxu0 %v4632
        %7156 = vmatmul.bf16.gmra.mxu0 %v328
        %v7157 = vpop.f32.mrf.mxu0
        %v7158 = vadd.f32 %v7145, %v7157
        %v7159 = vpop.f32.mrf.mxu0
        %7160 = vdwg.mxu0
        %7161 = vmatpush.bf16.msra.mxu0 %v4752
        %7162 = vmatpush.bf16.msra.mxu0 %v4744
        %7163 = vmatpush.bf16.msra.mxu0 %v4736
        %7164 = vmatpush.bf16.msra.mxu0 %v4728
        %7165 = vmatpush.bf16.msra.mxu0 %v4720
        %7166 = vmatpush.bf16.msra.mxu0 %v4712
        %7167 = vmatpush.bf16.msra.mxu0 %v4704
        %7168 = vmatpush.bf16.msra.mxu0 %v4696
        %7169 = vmatmul.bf16.gmra.mxu0 %v329
        %v7170 = vpop.f32.mrf.mxu0
        %v7171 = vadd.f32 %v7158, %v7170
        %v7172 = vpop.f32.mrf.mxu0
        %7173 = vdwg.mxu0
        %7174 = vmatpush.bf16.msra.mxu0 %v4816
        %7175 = vmatpush.bf16.msra.mxu0 %v4808
        %7176 = vmatpush.bf16.msra.mxu0 %v4800
        %7177 = vmatpush.bf16.msra.mxu0 %v4792
        %7178 = vmatpush.bf16.msra.mxu0 %v4784
        %7179 = vmatpush.bf16.msra.mxu0 %v4776
        %7180 = vmatpush.bf16.msra.mxu0 %v4768
        %7181 = vmatpush.bf16.msra.mxu0 %v4760
        %7182 = vmatmul.bf16.gmra.mxu0 %v330
        %v7183 = vpop.f32.mrf.mxu0
        %v7184 = vadd.f32 %v7171, %v7183
        %v7185 = vpop.f32.mrf.mxu0
        %7186 = vdwg.mxu0
        %7187 = vmatpush.bf16.msra.mxu0 %v4880
        %7188 = vmatpush.bf16.msra.mxu0 %v4872
        %7189 = vmatpush.bf16.msra.mxu0 %v4864
        %7190 = vmatpush.bf16.msra.mxu0 %v4856
        %7191 = vmatpush.bf16.msra.mxu0 %v4848
        %7192 = vmatpush.bf16.msra.mxu0 %v4840
        %7193 = vmatpush.bf16.msra.mxu0 %v4832
        %7194 = vmatpush.bf16.msra.mxu0 %v4824
        %7195 = vmatmul.bf16.gmra.mxu0 %v331
        %v7196 = vpop.f32.mrf.mxu0
        %v7197 = vadd.f32 %v7184, %v7196
        %v7198 = vpop.f32.mrf.mxu0
        %7199 = vdwg.mxu0
        %7200 = vmatpush.bf16.msra.mxu0 %v4944
        %7201 = vmatpush.bf16.msra.mxu0 %v4936
        %7202 = vmatpush.bf16.msra.mxu0 %v4928
        %7203 = vmatpush.bf16.msra.mxu0 %v4920
        %7204 = vmatpush.bf16.msra.mxu0 %v4912
        %7205 = vmatpush.bf16.msra.mxu0 %v4904
        %7206 = vmatpush.bf16.msra.mxu0 %v4896
        %7207 = vmatpush.bf16.msra.mxu0 %v4888
        %7208 = vmatmul.bf16.gmra.mxu0 %v332
        %v7209 = vpop.f32.mrf.mxu0
        %v7210 = vadd.f32 %v7197, %v7209
        %v7211 = vpop.f32.mrf.mxu0
        %7212 = vdwg.mxu0
        %7213 = vmatpush.bf16.msra.mxu0 %v5008
        %7214 = vmatpush.bf16.msra.mxu0 %v5000
        %7215 = vmatpush.bf16.msra.mxu0 %v4992
        %7216 = vmatpush.bf16.msra.mxu0 %v4984
        %7217 = vmatpush.bf16.msra.mxu0 %v4976
        %7218 = vmatpush.bf16.msra.mxu0 %v4968
        %7219 = vmatpush.bf16.msra.mxu0 %v4960
        %7220 = vmatpush.bf16.msra.mxu0 %v4952
        %7221 = vmatmul.bf16.gmra.mxu0 %v333
        %v7222 = vpop.f32.mrf.mxu0
        %v7223 = vadd.f32 %v7210, %v7222
        %v7224 = vpop.f32.mrf.mxu0
        %7225 = vdwg.mxu0
        %7226 = vmatpush.bf16.msra.mxu0 %v5072
        %7227 = vmatpush.bf16.msra.mxu0 %v5064
        %7228 = vmatpush.bf16.msra.mxu0 %v5056
        %7229 = vmatpush.bf16.msra.mxu0 %v5048
        %7230 = vmatpush.bf16.msra.mxu0 %v5040
        %7231 = vmatpush.bf16.msra.mxu0 %v5032
        %7232 = vmatpush.bf16.msra.mxu0 %v5024
        %7233 = vmatpush.bf16.msra.mxu0 %v5016
        %7234 = vmatmul.bf16.gmra.mxu0 %v334
        %v7235 = vpop.f32.mrf.mxu0
        %v7236 = vadd.f32 %v7223, %v7235
        %v7237 = vpop.f32.mrf.mxu0
        %7238 = vdwg.mxu0
        %7239 = vmatpush.bf16.msra.mxu0 %v5136
        %7240 = vmatpush.bf16.msra.mxu0 %v5128
        %7241 = vmatpush.bf16.msra.mxu0 %v5120
        %7242 = vmatpush.bf16.msra.mxu0 %v5112
        %7243 = vmatpush.bf16.msra.mxu0 %v5104
        %7244 = vmatpush.bf16.msra.mxu0 %v5096
        %7245 = vmatpush.bf16.msra.mxu0 %v5088
        %7246 = vmatpush.bf16.msra.mxu0 %v5080
        %7247 = vmatmul.bf16.gmra.mxu0 %v335
        %v7248 = vpop.f32.mrf.mxu0
        %v7249 = vadd.f32 %v7236, %v7248
        %v7250 = vpop.f32.mrf.mxu0
        %7251 = vdwg.mxu0
        %7252 = vmatpush.bf16.msra.mxu0 %v5200
        %7253 = vmatpush.bf16.msra.mxu0 %v5192
        %7254 = vmatpush.bf16.msra.mxu0 %v5184
        %7255 = vmatpush.bf16.msra.mxu0 %v5176
        %7256 = vmatpush.bf16.msra.mxu0 %v5168
        %7257 = vmatpush.bf16.msra.mxu0 %v5160
        %7258 = vmatpush.bf16.msra.mxu0 %v5152
        %7259 = vmatpush.bf16.msra.mxu0 %v5144
        %7260 = vmatmul.bf16.gmra.mxu0 %v336
        %v7261 = vpop.f32.mrf.mxu0
        %v7262 = vadd.f32 %v7249, %v7261
        %v7263 = vpop.f32.mrf.mxu0
        %7264 = vdwg.mxu0
        %7265 = vmatpush.bf16.msra.mxu0 %v5264
        %7266 = vmatpush.bf16.msra.mxu0 %v5256
        %7267 = vmatpush.bf16.msra.mxu0 %v5248
        %7268 = vmatpush.bf16.msra.mxu0 %v5240
        %7269 = vmatpush.bf16.msra.mxu0 %v5232
        %7270 = vmatpush.bf16.msra.mxu0 %v5224
        %7271 = vmatpush.bf16.msra.mxu0 %v5216
        %7272 = vmatpush.bf16.msra.mxu0 %v5208
        %7273 = vmatmul.bf16.gmra.mxu0 %v337
        %v7274 = vpop.f32.mrf.mxu0
        %v7275 = vadd.f32 %v7262, %v7274
        %v7276 = vpop.f32.mrf.mxu0
        %7277 = vdwg.mxu0
        %7278 = vmatpush.bf16.msra.mxu0 %v5328
        %7279 = vmatpush.bf16.msra.mxu0 %v5320
        %7280 = vmatpush.bf16.msra.mxu0 %v5312
        %7281 = vmatpush.bf16.msra.mxu0 %v5304
        %7282 = vmatpush.bf16.msra.mxu0 %v5296
        %7283 = vmatpush.bf16.msra.mxu0 %v5288
        %7284 = vmatpush.bf16.msra.mxu0 %v5280
        %7285 = vmatpush.bf16.msra.mxu0 %v5272
        %7286 = vmatmul.bf16.gmra.mxu0 %v338
        %v7287 = vpop.f32.mrf.mxu0
        %v7288 = vadd.f32 %v7275, %v7287
        %v7289 = vpop.f32.mrf.mxu0
        %7290 = vdwg.mxu0
        %7291 = vmatpush.bf16.msra.mxu0 %v5392
        %7292 = vmatpush.bf16.msra.mxu0 %v5384
        %7293 = vmatpush.bf16.msra.mxu0 %v5376
        %7294 = vmatpush.bf16.msra.mxu0 %v5368
        %7295 = vmatpush.bf16.msra.mxu0 %v5360
        %7296 = vmatpush.bf16.msra.mxu0 %v5352
        %7297 = vmatpush.bf16.msra.mxu0 %v5344
        %7298 = vmatpush.bf16.msra.mxu0 %v5336
        %7299 = vmatmul.bf16.gmra.mxu0 %v339
        %v7300 = vpop.f32.mrf.mxu0
        %v7301 = vadd.f32 %v7288, %v7300
        %v7302 = vpop.f32.mrf.mxu0
        %7303 = vdwg.mxu0
        %7304 = vmatpush.bf16.msra.mxu0 %v5456
        %7305 = vmatpush.bf16.msra.mxu0 %v5448
        %7306 = vmatpush.bf16.msra.mxu0 %v5440
        %7307 = vmatpush.bf16.msra.mxu0 %v5432
        %7308 = vmatpush.bf16.msra.mxu0 %v5424
        %7309 = vmatpush.bf16.msra.mxu0 %v5416
        %7310 = vmatpush.bf16.msra.mxu0 %v5408
        %7311 = vmatpush.bf16.msra.mxu0 %v5400
        %7312 = vmatmul.bf16.gmra.mxu0 %v340
        %v7313 = vpop.f32.mrf.mxu0
        %v7314 = vadd.f32 %v7301, %v7313
        %v7315 = vpop.f32.mrf.mxu0
        %7316 = vdwg.mxu0
        %7317 = vmatpush.bf16.msra.mxu0 %v4497
        %7318 = vmatpush.bf16.msra.mxu0 %v4489
        %7319 = vmatpush.bf16.msra.mxu0 %v4481
        %7320 = vmatpush.bf16.msra.mxu0 %v4473
        %7321 = vmatpush.bf16.msra.mxu0 %v4465
        %7322 = vmatpush.bf16.msra.mxu0 %v4457
        %7323 = vmatpush.bf16.msra.mxu0 %v4449
        %7324 = vmatpush.bf16.msra.mxu0 %v4441
        %7325 = vmatmul.bf16.gmra.mxu0 %v325
        %v7326 = vpop.f32.mrf.mxu0
        %v7327 = vadd.f32 0.0, %v7326
        %v7328 = vpop.f32.mrf.mxu0
        %7329 = vdwg.mxu0
        %7330 = vmatpush.bf16.msra.mxu0 %v4561
        %7331 = vmatpush.bf16.msra.mxu0 %v4553
        %7332 = vmatpush.bf16.msra.mxu0 %v4545
        %7333 = vmatpush.bf16.msra.mxu0 %v4537
        %7334 = vmatpush.bf16.msra.mxu0 %v4529
        %7335 = vmatpush.bf16.msra.mxu0 %v4521
        %7336 = vmatpush.bf16.msra.mxu0 %v4513
        %7337 = vmatpush.bf16.msra.mxu0 %v4505
        %7338 = vmatmul.bf16.gmra.mxu0 %v326
        %v7339 = vpop.f32.mrf.mxu0
        %v7340 = vadd.f32 %v7327, %v7339
        %v7341 = vpop.f32.mrf.mxu0
        %7342 = vdwg.mxu0
        %7343 = vmatpush.bf16.msra.mxu0 %v4625
        %7344 = vmatpush.bf16.msra.mxu0 %v4617
        %7345 = vmatpush.bf16.msra.mxu0 %v4609
        %7346 = vmatpush.bf16.msra.mxu0 %v4601
        %7347 = vmatpush.bf16.msra.mxu0 %v4593
        %7348 = vmatpush.bf16.msra.mxu0 %v4585
        %7349 = vmatpush.bf16.msra.mxu0 %v4577
        %7350 = vmatpush.bf16.msra.mxu0 %v4569
        %7351 = vmatmul.bf16.gmra.mxu0 %v327
        %v7352 = vpop.f32.mrf.mxu0
        %v7353 = vadd.f32 %v7340, %v7352
        %v7354 = vpop.f32.mrf.mxu0
        %7355 = vdwg.mxu0
        %7356 = vmatpush.bf16.msra.mxu0 %v4689
        %7357 = vmatpush.bf16.msra.mxu0 %v4681
        %7358 = vmatpush.bf16.msra.mxu0 %v4673
        %7359 = vmatpush.bf16.msra.mxu0 %v4665
        %7360 = vmatpush.bf16.msra.mxu0 %v4657
        %7361 = vmatpush.bf16.msra.mxu0 %v4649
        %7362 = vmatpush.bf16.msra.mxu0 %v4641
        %7363 = vmatpush.bf16.msra.mxu0 %v4633
        %7364 = vmatmul.bf16.gmra.mxu0 %v328
        %v7365 = vpop.f32.mrf.mxu0
        %v7366 = vadd.f32 %v7353, %v7365
        %v7367 = vpop.f32.mrf.mxu0
        %7368 = vdwg.mxu0
        %7369 = vmatpush.bf16.msra.mxu0 %v4753
        %7370 = vmatpush.bf16.msra.mxu0 %v4745
        %7371 = vmatpush.bf16.msra.mxu0 %v4737
        %7372 = vmatpush.bf16.msra.mxu0 %v4729
        %7373 = vmatpush.bf16.msra.mxu0 %v4721
        %7374 = vmatpush.bf16.msra.mxu0 %v4713
        %7375 = vmatpush.bf16.msra.mxu0 %v4705
        %7376 = vmatpush.bf16.msra.mxu0 %v4697
        %7377 = vmatmul.bf16.gmra.mxu0 %v329
        %v7378 = vpop.f32.mrf.mxu0
        %v7379 = vadd.f32 %v7366, %v7378
        %v7380 = vpop.f32.mrf.mxu0
        %7381 = vdwg.mxu0
        %7382 = vmatpush.bf16.msra.mxu0 %v4817
        %7383 = vmatpush.bf16.msra.mxu0 %v4809
        %7384 = vmatpush.bf16.msra.mxu0 %v4801
        %7385 = vmatpush.bf16.msra.mxu0 %v4793
        %7386 = vmatpush.bf16.msra.mxu0 %v4785
        %7387 = vmatpush.bf16.msra.mxu0 %v4777
        %7388 = vmatpush.bf16.msra.mxu0 %v4769
        %7389 = vmatpush.bf16.msra.mxu0 %v4761
        %7390 = vmatmul.bf16.gmra.mxu0 %v330
        %v7391 = vpop.f32.mrf.mxu0
        %v7392 = vadd.f32 %v7379, %v7391
        %v7393 = vpop.f32.mrf.mxu0
        %7394 = vdwg.mxu0
        %7395 = vmatpush.bf16.msra.mxu0 %v4881
        %7396 = vmatpush.bf16.msra.mxu0 %v4873
        %7397 = vmatpush.bf16.msra.mxu0 %v4865
        %7398 = vmatpush.bf16.msra.mxu0 %v4857
        %7399 = vmatpush.bf16.msra.mxu0 %v4849
        %7400 = vmatpush.bf16.msra.mxu0 %v4841
        %7401 = vmatpush.bf16.msra.mxu0 %v4833
        %7402 = vmatpush.bf16.msra.mxu0 %v4825
        %7403 = vmatmul.bf16.gmra.mxu0 %v331
        %v7404 = vpop.f32.mrf.mxu0
        %v7405 = vadd.f32 %v7392, %v7404
        %v7406 = vpop.f32.mrf.mxu0
        %7407 = vdwg.mxu0
        %7408 = vmatpush.bf16.msra.mxu0 %v4945
        %7409 = vmatpush.bf16.msra.mxu0 %v4937
        %7410 = vmatpush.bf16.msra.mxu0 %v4929
        %7411 = vmatpush.bf16.msra.mxu0 %v4921
        %7412 = vmatpush.bf16.msra.mxu0 %v4913
        %7413 = vmatpush.bf16.msra.mxu0 %v4905
        %7414 = vmatpush.bf16.msra.mxu0 %v4897
        %7415 = vmatpush.bf16.msra.mxu0 %v4889
        %7416 = vmatmul.bf16.gmra.mxu0 %v332
        %v7417 = vpop.f32.mrf.mxu0
        %v7418 = vadd.f32 %v7405, %v7417
        %v7419 = vpop.f32.mrf.mxu0
        %7420 = vdwg.mxu0
        %7421 = vmatpush.bf16.msra.mxu0 %v5009
        %7422 = vmatpush.bf16.msra.mxu0 %v5001
        %7423 = vmatpush.bf16.msra.mxu0 %v4993
        %7424 = vmatpush.bf16.msra.mxu0 %v4985
        %7425 = vmatpush.bf16.msra.mxu0 %v4977
        %7426 = vmatpush.bf16.msra.mxu0 %v4969
        %7427 = vmatpush.bf16.msra.mxu0 %v4961
        %7428 = vmatpush.bf16.msra.mxu0 %v4953
        %7429 = vmatmul.bf16.gmra.mxu0 %v333
        %v7430 = vpop.f32.mrf.mxu0
        %v7431 = vadd.f32 %v7418, %v7430
        %v7432 = vpop.f32.mrf.mxu0
        %7433 = vdwg.mxu0
        %7434 = vmatpush.bf16.msra.mxu0 %v5073
        %7435 = vmatpush.bf16.msra.mxu0 %v5065
        %7436 = vmatpush.bf16.msra.mxu0 %v5057
        %7437 = vmatpush.bf16.msra.mxu0 %v5049
        %7438 = vmatpush.bf16.msra.mxu0 %v5041
        %7439 = vmatpush.bf16.msra.mxu0 %v5033
        %7440 = vmatpush.bf16.msra.mxu0 %v5025
        %7441 = vmatpush.bf16.msra.mxu0 %v5017
        %7442 = vmatmul.bf16.gmra.mxu0 %v334
        %v7443 = vpop.f32.mrf.mxu0
        %v7444 = vadd.f32 %v7431, %v7443
        %v7445 = vpop.f32.mrf.mxu0
        %7446 = vdwg.mxu0
        %7447 = vmatpush.bf16.msra.mxu0 %v5137
        %7448 = vmatpush.bf16.msra.mxu0 %v5129
        %7449 = vmatpush.bf16.msra.mxu0 %v5121
        %7450 = vmatpush.bf16.msra.mxu0 %v5113
        %7451 = vmatpush.bf16.msra.mxu0 %v5105
        %7452 = vmatpush.bf16.msra.mxu0 %v5097
        %7453 = vmatpush.bf16.msra.mxu0 %v5089
        %7454 = vmatpush.bf16.msra.mxu0 %v5081
        %7455 = vmatmul.bf16.gmra.mxu0 %v335
        %v7456 = vpop.f32.mrf.mxu0
        %v7457 = vadd.f32 %v7444, %v7456
        %v7458 = vpop.f32.mrf.mxu0
        %7459 = vdwg.mxu0
        %7460 = vmatpush.bf16.msra.mxu0 %v5201
        %7461 = vmatpush.bf16.msra.mxu0 %v5193
        %7462 = vmatpush.bf16.msra.mxu0 %v5185
        %7463 = vmatpush.bf16.msra.mxu0 %v5177
        %7464 = vmatpush.bf16.msra.mxu0 %v5169
        %7465 = vmatpush.bf16.msra.mxu0 %v5161
        %7466 = vmatpush.bf16.msra.mxu0 %v5153
        %7467 = vmatpush.bf16.msra.mxu0 %v5145
        %7468 = vmatmul.bf16.gmra.mxu0 %v336
        %v7469 = vpop.f32.mrf.mxu0
        %v7470 = vadd.f32 %v7457, %v7469
        %v7471 = vpop.f32.mrf.mxu0
        %7472 = vdwg.mxu0
        %7473 = vmatpush.bf16.msra.mxu0 %v5265
        %7474 = vmatpush.bf16.msra.mxu0 %v5257
        %7475 = vmatpush.bf16.msra.mxu0 %v5249
        %7476 = vmatpush.bf16.msra.mxu0 %v5241
        %7477 = vmatpush.bf16.msra.mxu0 %v5233
        %7478 = vmatpush.bf16.msra.mxu0 %v5225
        %7479 = vmatpush.bf16.msra.mxu0 %v5217
        %7480 = vmatpush.bf16.msra.mxu0 %v5209
        %7481 = vmatmul.bf16.gmra.mxu0 %v337
        %v7482 = vpop.f32.mrf.mxu0
        %v7483 = vadd.f32 %v7470, %v7482
        %v7484 = vpop.f32.mrf.mxu0
        %7485 = vdwg.mxu0
        %7486 = vmatpush.bf16.msra.mxu0 %v5329
        %7487 = vmatpush.bf16.msra.mxu0 %v5321
        %7488 = vmatpush.bf16.msra.mxu0 %v5313
        %7489 = vmatpush.bf16.msra.mxu0 %v5305
        %7490 = vmatpush.bf16.msra.mxu0 %v5297
        %7491 = vmatpush.bf16.msra.mxu0 %v5289
        %7492 = vmatpush.bf16.msra.mxu0 %v5281
        %7493 = vmatpush.bf16.msra.mxu0 %v5273
        %7494 = vmatmul.bf16.gmra.mxu0 %v338
        %v7495 = vpop.f32.mrf.mxu0
        %v7496 = vadd.f32 %v7483, %v7495
        %v7497 = vpop.f32.mrf.mxu0
        %7498 = vdwg.mxu0
        %7499 = vmatpush.bf16.msra.mxu0 %v5393
        %7500 = vmatpush.bf16.msra.mxu0 %v5385
        %7501 = vmatpush.bf16.msra.mxu0 %v5377
        %7502 = vmatpush.bf16.msra.mxu0 %v5369
        %7503 = vmatpush.bf16.msra.mxu0 %v5361
        %7504 = vmatpush.bf16.msra.mxu0 %v5353
        %7505 = vmatpush.bf16.msra.mxu0 %v5345
        %7506 = vmatpush.bf16.msra.mxu0 %v5337
        %7507 = vmatmul.bf16.gmra.mxu0 %v339
        %v7508 = vpop.f32.mrf.mxu0
        %v7509 = vadd.f32 %v7496, %v7508
        %v7510 = vpop.f32.mrf.mxu0
        %7511 = vdwg.mxu0
        %7512 = vmatpush.bf16.msra.mxu0 %v5457
        %7513 = vmatpush.bf16.msra.mxu0 %v5449
        %7514 = vmatpush.bf16.msra.mxu0 %v5441
        %7515 = vmatpush.bf16.msra.mxu0 %v5433
        %7516 = vmatpush.bf16.msra.mxu0 %v5425
        %7517 = vmatpush.bf16.msra.mxu0 %v5417
        %7518 = vmatpush.bf16.msra.mxu0 %v5409
        %7519 = vmatpush.bf16.msra.mxu0 %v5401
        %7520 = vmatmul.bf16.gmra.mxu0 %v340
        %v7521 = vpop.f32.mrf.mxu0
        %v7522 = vadd.f32 %v7509, %v7521
        %v7523 = vpop.f32.mrf.mxu0
        %7524 = vdwg.mxu0
        %7525 = vmatpush.bf16.msra.mxu0 %v4498
        %7526 = vmatpush.bf16.msra.mxu0 %v4490
        %7527 = vmatpush.bf16.msra.mxu0 %v4482
        %7528 = vmatpush.bf16.msra.mxu0 %v4474
        %7529 = vmatpush.bf16.msra.mxu0 %v4466
        %7530 = vmatpush.bf16.msra.mxu0 %v4458
        %7531 = vmatpush.bf16.msra.mxu0 %v4450
        %7532 = vmatpush.bf16.msra.mxu0 %v4442
        %7533 = vmatmul.bf16.gmra.mxu0 %v325
        %v7534 = vpop.f32.mrf.mxu0
        %v7535 = vadd.f32 0.0, %v7534
        %v7536 = vpop.f32.mrf.mxu0
        %7537 = vdwg.mxu0
        %7538 = vmatpush.bf16.msra.mxu0 %v4562
        %7539 = vmatpush.bf16.msra.mxu0 %v4554
        %7540 = vmatpush.bf16.msra.mxu0 %v4546
        %7541 = vmatpush.bf16.msra.mxu0 %v4538
        %7542 = vmatpush.bf16.msra.mxu0 %v4530
        %7543 = vmatpush.bf16.msra.mxu0 %v4522
        %7544 = vmatpush.bf16.msra.mxu0 %v4514
        %7545 = vmatpush.bf16.msra.mxu0 %v4506
        %7546 = vmatmul.bf16.gmra.mxu0 %v326
        %v7547 = vpop.f32.mrf.mxu0
        %v7548 = vadd.f32 %v7535, %v7547
        %v7549 = vpop.f32.mrf.mxu0
        %7550 = vdwg.mxu0
        %7551 = vmatpush.bf16.msra.mxu0 %v4626
        %7552 = vmatpush.bf16.msra.mxu0 %v4618
        %7553 = vmatpush.bf16.msra.mxu0 %v4610
        %7554 = vmatpush.bf16.msra.mxu0 %v4602
        %7555 = vmatpush.bf16.msra.mxu0 %v4594
        %7556 = vmatpush.bf16.msra.mxu0 %v4586
        %7557 = vmatpush.bf16.msra.mxu0 %v4578
        %7558 = vmatpush.bf16.msra.mxu0 %v4570
        %7559 = vmatmul.bf16.gmra.mxu0 %v327
        %v7560 = vpop.f32.mrf.mxu0
        %v7561 = vadd.f32 %v7548, %v7560
        %v7562 = vpop.f32.mrf.mxu0
        %7563 = vdwg.mxu0
        %7564 = vmatpush.bf16.msra.mxu0 %v4690
        %7565 = vmatpush.bf16.msra.mxu0 %v4682
        %7566 = vmatpush.bf16.msra.mxu0 %v4674
        %7567 = vmatpush.bf16.msra.mxu0 %v4666
        %7568 = vmatpush.bf16.msra.mxu0 %v4658
        %7569 = vmatpush.bf16.msra.mxu0 %v4650
        %7570 = vmatpush.bf16.msra.mxu0 %v4642
        %7571 = vmatpush.bf16.msra.mxu0 %v4634
        %7572 = vmatmul.bf16.gmra.mxu0 %v328
        %v7573 = vpop.f32.mrf.mxu0
        %v7574 = vadd.f32 %v7561, %v7573
        %v7575 = vpop.f32.mrf.mxu0
        %7576 = vdwg.mxu0
        %7577 = vmatpush.bf16.msra.mxu0 %v4754
        %7578 = vmatpush.bf16.msra.mxu0 %v4746
        %7579 = vmatpush.bf16.msra.mxu0 %v4738
        %7580 = vmatpush.bf16.msra.mxu0 %v4730
        %7581 = vmatpush.bf16.msra.mxu0 %v4722
        %7582 = vmatpush.bf16.msra.mxu0 %v4714
        %7583 = vmatpush.bf16.msra.mxu0 %v4706
        %7584 = vmatpush.bf16.msra.mxu0 %v4698
        %7585 = vmatmul.bf16.gmra.mxu0 %v329
        %v7586 = vpop.f32.mrf.mxu0
        %v7587 = vadd.f32 %v7574, %v7586
        %v7588 = vpop.f32.mrf.mxu0
        %7589 = vdwg.mxu0
        %7590 = vmatpush.bf16.msra.mxu0 %v4818
        %7591 = vmatpush.bf16.msra.mxu0 %v4810
        %7592 = vmatpush.bf16.msra.mxu0 %v4802
        %7593 = vmatpush.bf16.msra.mxu0 %v4794
        %7594 = vmatpush.bf16.msra.mxu0 %v4786
        %7595 = vmatpush.bf16.msra.mxu0 %v4778
        %7596 = vmatpush.bf16.msra.mxu0 %v4770
        %7597 = vmatpush.bf16.msra.mxu0 %v4762
        %7598 = vmatmul.bf16.gmra.mxu0 %v330
        %v7599 = vpop.f32.mrf.mxu0
        %v7600 = vadd.f32 %v7587, %v7599
        %v7601 = vpop.f32.mrf.mxu0
        %7602 = vdwg.mxu0
        %7603 = vmatpush.bf16.msra.mxu0 %v4882
        %7604 = vmatpush.bf16.msra.mxu0 %v4874
        %7605 = vmatpush.bf16.msra.mxu0 %v4866
        %7606 = vmatpush.bf16.msra.mxu0 %v4858
        %7607 = vmatpush.bf16.msra.mxu0 %v4850
        %7608 = vmatpush.bf16.msra.mxu0 %v4842
        %7609 = vmatpush.bf16.msra.mxu0 %v4834
        %7610 = vmatpush.bf16.msra.mxu0 %v4826
        %7611 = vmatmul.bf16.gmra.mxu0 %v331
        %v7612 = vpop.f32.mrf.mxu0
        %v7613 = vadd.f32 %v7600, %v7612
        %v7614 = vpop.f32.mrf.mxu0
        %7615 = vdwg.mxu0
        %7616 = vmatpush.bf16.msra.mxu0 %v4946
        %7617 = vmatpush.bf16.msra.mxu0 %v4938
        %7618 = vmatpush.bf16.msra.mxu0 %v4930
        %7619 = vmatpush.bf16.msra.mxu0 %v4922
        %7620 = vmatpush.bf16.msra.mxu0 %v4914
        %7621 = vmatpush.bf16.msra.mxu0 %v4906
        %7622 = vmatpush.bf16.msra.mxu0 %v4898
        %7623 = vmatpush.bf16.msra.mxu0 %v4890
        %7624 = vmatmul.bf16.gmra.mxu0 %v332
        %v7625 = vpop.f32.mrf.mxu0
        %v7626 = vadd.f32 %v7613, %v7625
        %v7627 = vpop.f32.mrf.mxu0
        %7628 = vdwg.mxu0
        %7629 = vmatpush.bf16.msra.mxu0 %v5010
        %7630 = vmatpush.bf16.msra.mxu0 %v5002
        %7631 = vmatpush.bf16.msra.mxu0 %v4994
        %7632 = vmatpush.bf16.msra.mxu0 %v4986
        %7633 = vmatpush.bf16.msra.mxu0 %v4978
        %7634 = vmatpush.bf16.msra.mxu0 %v4970
        %7635 = vmatpush.bf16.msra.mxu0 %v4962
        %7636 = vmatpush.bf16.msra.mxu0 %v4954
        %7637 = vmatmul.bf16.gmra.mxu0 %v333
        %v7638 = vpop.f32.mrf.mxu0
        %v7639 = vadd.f32 %v7626, %v7638
        %v7640 = vpop.f32.mrf.mxu0
        %7641 = vdwg.mxu0
        %7642 = vmatpush.bf16.msra.mxu0 %v5074
        %7643 = vmatpush.bf16.msra.mxu0 %v5066
        %7644 = vmatpush.bf16.msra.mxu0 %v5058
        %7645 = vmatpush.bf16.msra.mxu0 %v5050
        %7646 = vmatpush.bf16.msra.mxu0 %v5042
        %7647 = vmatpush.bf16.msra.mxu0 %v5034
        %7648 = vmatpush.bf16.msra.mxu0 %v5026
        %7649 = vmatpush.bf16.msra.mxu0 %v5018
        %7650 = vmatmul.bf16.gmra.mxu0 %v334
        %v7651 = vpop.f32.mrf.mxu0
        %v7652 = vadd.f32 %v7639, %v7651
        %v7653 = vpop.f32.mrf.mxu0
        %7654 = vdwg.mxu0
        %7655 = vmatpush.bf16.msra.mxu0 %v5138
        %7656 = vmatpush.bf16.msra.mxu0 %v5130
        %7657 = vmatpush.bf16.msra.mxu0 %v5122
        %7658 = vmatpush.bf16.msra.mxu0 %v5114
        %7659 = vmatpush.bf16.msra.mxu0 %v5106
        %7660 = vmatpush.bf16.msra.mxu0 %v5098
        %7661 = vmatpush.bf16.msra.mxu0 %v5090
        %7662 = vmatpush.bf16.msra.mxu0 %v5082
        %7663 = vmatmul.bf16.gmra.mxu0 %v335
        %v7664 = vpop.f32.mrf.mxu0
        %v7665 = vadd.f32 %v7652, %v7664
        %v7666 = vpop.f32.mrf.mxu0
        %7667 = vdwg.mxu0
        %7668 = vmatpush.bf16.msra.mxu0 %v5202
        %7669 = vmatpush.bf16.msra.mxu0 %v5194
        %7670 = vmatpush.bf16.msra.mxu0 %v5186
        %7671 = vmatpush.bf16.msra.mxu0 %v5178
        %7672 = vmatpush.bf16.msra.mxu0 %v5170
        %7673 = vmatpush.bf16.msra.mxu0 %v5162
        %7674 = vmatpush.bf16.msra.mxu0 %v5154
        %7675 = vmatpush.bf16.msra.mxu0 %v5146
        %7676 = vmatmul.bf16.gmra.mxu0 %v336
        %v7677 = vpop.f32.mrf.mxu0
        %v7678 = vadd.f32 %v7665, %v7677
        %v7679 = vpop.f32.mrf.mxu0
        %7680 = vdwg.mxu0
        %7681 = vmatpush.bf16.msra.mxu0 %v5266
        %7682 = vmatpush.bf16.msra.mxu0 %v5258
        %7683 = vmatpush.bf16.msra.mxu0 %v5250
        %7684 = vmatpush.bf16.msra.mxu0 %v5242
        %7685 = vmatpush.bf16.msra.mxu0 %v5234
        %7686 = vmatpush.bf16.msra.mxu0 %v5226
        %7687 = vmatpush.bf16.msra.mxu0 %v5218
        %7688 = vmatpush.bf16.msra.mxu0 %v5210
        %7689 = vmatmul.bf16.gmra.mxu0 %v337
        %v7690 = vpop.f32.mrf.mxu0
        %v7691 = vadd.f32 %v7678, %v7690
        %v7692 = vpop.f32.mrf.mxu0
        %7693 = vdwg.mxu0
        %7694 = vmatpush.bf16.msra.mxu0 %v5330
        %7695 = vmatpush.bf16.msra.mxu0 %v5322
        %7696 = vmatpush.bf16.msra.mxu0 %v5314
        %7697 = vmatpush.bf16.msra.mxu0 %v5306
        %7698 = vmatpush.bf16.msra.mxu0 %v5298
        %7699 = vmatpush.bf16.msra.mxu0 %v5290
        %7700 = vmatpush.bf16.msra.mxu0 %v5282
        %7701 = vmatpush.bf16.msra.mxu0 %v5274
        %7702 = vmatmul.bf16.gmra.mxu0 %v338
        %v7703 = vpop.f32.mrf.mxu0
        %v7704 = vadd.f32 %v7691, %v7703
        %v7705 = vpop.f32.mrf.mxu0
        %7706 = vdwg.mxu0
        %7707 = vmatpush.bf16.msra.mxu0 %v5394
        %7708 = vmatpush.bf16.msra.mxu0 %v5386
        %7709 = vmatpush.bf16.msra.mxu0 %v5378
        %7710 = vmatpush.bf16.msra.mxu0 %v5370
        %7711 = vmatpush.bf16.msra.mxu0 %v5362
        %7712 = vmatpush.bf16.msra.mxu0 %v5354
        %7713 = vmatpush.bf16.msra.mxu0 %v5346
        %7714 = vmatpush.bf16.msra.mxu0 %v5338
        %7715 = vmatmul.bf16.gmra.mxu0 %v339
        %v7716 = vpop.f32.mrf.mxu0
        %v7717 = vadd.f32 %v7704, %v7716
        %v7718 = vpop.f32.mrf.mxu0
        %7719 = vdwg.mxu0
        %7720 = vmatpush.bf16.msra.mxu0 %v5458
        %7721 = vmatpush.bf16.msra.mxu0 %v5450
        %7722 = vmatpush.bf16.msra.mxu0 %v5442
        %7723 = vmatpush.bf16.msra.mxu0 %v5434
        %7724 = vmatpush.bf16.msra.mxu0 %v5426
        %7725 = vmatpush.bf16.msra.mxu0 %v5418
        %7726 = vmatpush.bf16.msra.mxu0 %v5410
        %7727 = vmatpush.bf16.msra.mxu0 %v5402
        %7728 = vmatmul.bf16.gmra.mxu0 %v340
        %v7729 = vpop.f32.mrf.mxu0
        %v7730 = vadd.f32 %v7717, %v7729
        %v7731 = vpop.f32.mrf.mxu0
        %7732 = vdwg.mxu0
        %7733 = vmatpush.bf16.msra.mxu0 %v4499
        %7734 = vmatpush.bf16.msra.mxu0 %v4491
        %7735 = vmatpush.bf16.msra.mxu0 %v4483
        %7736 = vmatpush.bf16.msra.mxu0 %v4475
        %7737 = vmatpush.bf16.msra.mxu0 %v4467
        %7738 = vmatpush.bf16.msra.mxu0 %v4459
        %7739 = vmatpush.bf16.msra.mxu0 %v4451
        %7740 = vmatpush.bf16.msra.mxu0 %v4443
        %7741 = vmatmul.bf16.gmra.mxu0 %v325
        %v7742 = vpop.f32.mrf.mxu0
        %v7743 = vadd.f32 0.0, %v7742
        %v7744 = vpop.f32.mrf.mxu0
        %7745 = vdwg.mxu0
        %7746 = vmatpush.bf16.msra.mxu0 %v4563
        %7747 = vmatpush.bf16.msra.mxu0 %v4555
        %7748 = vmatpush.bf16.msra.mxu0 %v4547
        %7749 = vmatpush.bf16.msra.mxu0 %v4539
        %7750 = vmatpush.bf16.msra.mxu0 %v4531
        %7751 = vmatpush.bf16.msra.mxu0 %v4523
        %7752 = vmatpush.bf16.msra.mxu0 %v4515
        %7753 = vmatpush.bf16.msra.mxu0 %v4507
        %7754 = vmatmul.bf16.gmra.mxu0 %v326
        %v7755 = vpop.f32.mrf.mxu0
        %v7756 = vadd.f32 %v7743, %v7755
        %v7757 = vpop.f32.mrf.mxu0
        %7758 = vdwg.mxu0
        %7759 = vmatpush.bf16.msra.mxu0 %v4627
        %7760 = vmatpush.bf16.msra.mxu0 %v4619
        %7761 = vmatpush.bf16.msra.mxu0 %v4611
        %7762 = vmatpush.bf16.msra.mxu0 %v4603
        %7763 = vmatpush.bf16.msra.mxu0 %v4595
        %7764 = vmatpush.bf16.msra.mxu0 %v4587
        %7765 = vmatpush.bf16.msra.mxu0 %v4579
        %7766 = vmatpush.bf16.msra.mxu0 %v4571
        %7767 = vmatmul.bf16.gmra.mxu0 %v327
        %v7768 = vpop.f32.mrf.mxu0
        %v7769 = vadd.f32 %v7756, %v7768
        %v7770 = vpop.f32.mrf.mxu0
        %7771 = vdwg.mxu0
        %7772 = vmatpush.bf16.msra.mxu0 %v4691
        %7773 = vmatpush.bf16.msra.mxu0 %v4683
        %7774 = vmatpush.bf16.msra.mxu0 %v4675
        %7775 = vmatpush.bf16.msra.mxu0 %v4667
        %7776 = vmatpush.bf16.msra.mxu0 %v4659
        %7777 = vmatpush.bf16.msra.mxu0 %v4651
        %7778 = vmatpush.bf16.msra.mxu0 %v4643
        %7779 = vmatpush.bf16.msra.mxu0 %v4635
        %7780 = vmatmul.bf16.gmra.mxu0 %v328
        %v7781 = vpop.f32.mrf.mxu0
        %v7782 = vadd.f32 %v7769, %v7781
        %v7783 = vpop.f32.mrf.mxu0
        %7784 = vdwg.mxu0
        %7785 = vmatpush.bf16.msra.mxu0 %v4755
        %7786 = vmatpush.bf16.msra.mxu0 %v4747
        %7787 = vmatpush.bf16.msra.mxu0 %v4739
        %7788 = vmatpush.bf16.msra.mxu0 %v4731
        %7789 = vmatpush.bf16.msra.mxu0 %v4723
        %7790 = vmatpush.bf16.msra.mxu0 %v4715
        %7791 = vmatpush.bf16.msra.mxu0 %v4707
        %7792 = vmatpush.bf16.msra.mxu0 %v4699
        %7793 = vmatmul.bf16.gmra.mxu0 %v329
        %v7794 = vpop.f32.mrf.mxu0
        %v7795 = vadd.f32 %v7782, %v7794
        %v7796 = vpop.f32.mrf.mxu0
        %7797 = vdwg.mxu0
        %7798 = vmatpush.bf16.msra.mxu0 %v4819
        %7799 = vmatpush.bf16.msra.mxu0 %v4811
        %7800 = vmatpush.bf16.msra.mxu0 %v4803
        %7801 = vmatpush.bf16.msra.mxu0 %v4795
        %7802 = vmatpush.bf16.msra.mxu0 %v4787
        %7803 = vmatpush.bf16.msra.mxu0 %v4779
        %7804 = vmatpush.bf16.msra.mxu0 %v4771
        %7805 = vmatpush.bf16.msra.mxu0 %v4763
        %7806 = vmatmul.bf16.gmra.mxu0 %v330
        %v7807 = vpop.f32.mrf.mxu0
        %v7808 = vadd.f32 %v7795, %v7807
        %v7809 = vpop.f32.mrf.mxu0
        %7810 = vdwg.mxu0
        %7811 = vmatpush.bf16.msra.mxu0 %v4883
        %7812 = vmatpush.bf16.msra.mxu0 %v4875
        %7813 = vmatpush.bf16.msra.mxu0 %v4867
        %7814 = vmatpush.bf16.msra.mxu0 %v4859
        %7815 = vmatpush.bf16.msra.mxu0 %v4851
        %7816 = vmatpush.bf16.msra.mxu0 %v4843
        %7817 = vmatpush.bf16.msra.mxu0 %v4835
        %7818 = vmatpush.bf16.msra.mxu0 %v4827
        %7819 = vmatmul.bf16.gmra.mxu0 %v331
        %v7820 = vpop.f32.mrf.mxu0
        %v7821 = vadd.f32 %v7808, %v7820
        %v7822 = vpop.f32.mrf.mxu0
        %7823 = vdwg.mxu0
        %7824 = vmatpush.bf16.msra.mxu0 %v4947
        %7825 = vmatpush.bf16.msra.mxu0 %v4939
        %7826 = vmatpush.bf16.msra.mxu0 %v4931
        %7827 = vmatpush.bf16.msra.mxu0 %v4923
        %7828 = vmatpush.bf16.msra.mxu0 %v4915
        %7829 = vmatpush.bf16.msra.mxu0 %v4907
        %7830 = vmatpush.bf16.msra.mxu0 %v4899
        %7831 = vmatpush.bf16.msra.mxu0 %v4891
        %7832 = vmatmul.bf16.gmra.mxu0 %v332
        %v7833 = vpop.f32.mrf.mxu0
        %v7834 = vadd.f32 %v7821, %v7833
        %v7835 = vpop.f32.mrf.mxu0
        %7836 = vdwg.mxu0
        %7837 = vmatpush.bf16.msra.mxu0 %v5011
        %7838 = vmatpush.bf16.msra.mxu0 %v5003
        %7839 = vmatpush.bf16.msra.mxu0 %v4995
        %7840 = vmatpush.bf16.msra.mxu0 %v4987
        %7841 = vmatpush.bf16.msra.mxu0 %v4979
        %7842 = vmatpush.bf16.msra.mxu0 %v4971
        %7843 = vmatpush.bf16.msra.mxu0 %v4963
        %7844 = vmatpush.bf16.msra.mxu0 %v4955
        %7845 = vmatmul.bf16.gmra.mxu0 %v333
        %v7846 = vpop.f32.mrf.mxu0
        %v7847 = vadd.f32 %v7834, %v7846
        %v7848 = vpop.f32.mrf.mxu0
        %7849 = vdwg.mxu0
        %7850 = vmatpush.bf16.msra.mxu0 %v5075
        %7851 = vmatpush.bf16.msra.mxu0 %v5067
        %7852 = vmatpush.bf16.msra.mxu0 %v5059
        %7853 = vmatpush.bf16.msra.mxu0 %v5051
        %7854 = vmatpush.bf16.msra.mxu0 %v5043
        %7855 = vmatpush.bf16.msra.mxu0 %v5035
        %7856 = vmatpush.bf16.msra.mxu0 %v5027
        %7857 = vmatpush.bf16.msra.mxu0 %v5019
        %7858 = vmatmul.bf16.gmra.mxu0 %v334
        %v7859 = vpop.f32.mrf.mxu0
        %v7860 = vadd.f32 %v7847, %v7859
        %v7861 = vpop.f32.mrf.mxu0
        %7862 = vdwg.mxu0
        %7863 = vmatpush.bf16.msra.mxu0 %v5139
        %7864 = vmatpush.bf16.msra.mxu0 %v5131
        %7865 = vmatpush.bf16.msra.mxu0 %v5123
        %7866 = vmatpush.bf16.msra.mxu0 %v5115
        %7867 = vmatpush.bf16.msra.mxu0 %v5107
        %7868 = vmatpush.bf16.msra.mxu0 %v5099
        %7869 = vmatpush.bf16.msra.mxu0 %v5091
        %7870 = vmatpush.bf16.msra.mxu0 %v5083
        %7871 = vmatmul.bf16.gmra.mxu0 %v335
        %v7872 = vpop.f32.mrf.mxu0
        %v7873 = vadd.f32 %v7860, %v7872
        %v7874 = vpop.f32.mrf.mxu0
        %7875 = vdwg.mxu0
        %7876 = vmatpush.bf16.msra.mxu0 %v5203
        %7877 = vmatpush.bf16.msra.mxu0 %v5195
        %7878 = vmatpush.bf16.msra.mxu0 %v5187
        %7879 = vmatpush.bf16.msra.mxu0 %v5179
        %7880 = vmatpush.bf16.msra.mxu0 %v5171
        %7881 = vmatpush.bf16.msra.mxu0 %v5163
        %7882 = vmatpush.bf16.msra.mxu0 %v5155
        %7883 = vmatpush.bf16.msra.mxu0 %v5147
        %7884 = vmatmul.bf16.gmra.mxu0 %v336
        %v7885 = vpop.f32.mrf.mxu0
        %v7886 = vadd.f32 %v7873, %v7885
        %v7887 = vpop.f32.mrf.mxu0
        %7888 = vdwg.mxu0
        %7889 = vmatpush.bf16.msra.mxu0 %v5267
        %7890 = vmatpush.bf16.msra.mxu0 %v5259
        %7891 = vmatpush.bf16.msra.mxu0 %v5251
        %7892 = vmatpush.bf16.msra.mxu0 %v5243
        %7893 = vmatpush.bf16.msra.mxu0 %v5235
        %7894 = vmatpush.bf16.msra.mxu0 %v5227
        %7895 = vmatpush.bf16.msra.mxu0 %v5219
        %7896 = vmatpush.bf16.msra.mxu0 %v5211
        %7897 = vmatmul.bf16.gmra.mxu0 %v337
        %v7898 = vpop.f32.mrf.mxu0
        %v7899 = vadd.f32 %v7886, %v7898
        %v7900 = vpop.f32.mrf.mxu0
        %7901 = vdwg.mxu0
        %7902 = vmatpush.bf16.msra.mxu0 %v5331
        %7903 = vmatpush.bf16.msra.mxu0 %v5323
        %7904 = vmatpush.bf16.msra.mxu0 %v5315
        %7905 = vmatpush.bf16.msra.mxu0 %v5307
        %7906 = vmatpush.bf16.msra.mxu0 %v5299
        %7907 = vmatpush.bf16.msra.mxu0 %v5291
        %7908 = vmatpush.bf16.msra.mxu0 %v5283
        %7909 = vmatpush.bf16.msra.mxu0 %v5275
        %7910 = vmatmul.bf16.gmra.mxu0 %v338
        %v7911 = vpop.f32.mrf.mxu0
        %v7912 = vadd.f32 %v7899, %v7911
        %v7913 = vpop.f32.mrf.mxu0
        %7914 = vdwg.mxu0
        %7915 = vmatpush.bf16.msra.mxu0 %v5395
        %7916 = vmatpush.bf16.msra.mxu0 %v5387
        %7917 = vmatpush.bf16.msra.mxu0 %v5379
        %7918 = vmatpush.bf16.msra.mxu0 %v5371
        %7919 = vmatpush.bf16.msra.mxu0 %v5363
        %7920 = vmatpush.bf16.msra.mxu0 %v5355
        %7921 = vmatpush.bf16.msra.mxu0 %v5347
        %7922 = vmatpush.bf16.msra.mxu0 %v5339
        %7923 = vmatmul.bf16.gmra.mxu0 %v339
        %v7924 = vpop.f32.mrf.mxu0
        %v7925 = vadd.f32 %v7912, %v7924
        %v7926 = vpop.f32.mrf.mxu0
        %7927 = vdwg.mxu0
        %7928 = vmatpush.bf16.msra.mxu0 %v5459
        %7929 = vmatpush.bf16.msra.mxu0 %v5451
        %7930 = vmatpush.bf16.msra.mxu0 %v5443
        %7931 = vmatpush.bf16.msra.mxu0 %v5435
        %7932 = vmatpush.bf16.msra.mxu0 %v5427
        %7933 = vmatpush.bf16.msra.mxu0 %v5419
        %7934 = vmatpush.bf16.msra.mxu0 %v5411
        %7935 = vmatpush.bf16.msra.mxu0 %v5403
        %7936 = vmatmul.bf16.gmra.mxu0 %v340
        %v7937 = vpop.f32.mrf.mxu0
        %v7938 = vadd.f32 %v7925, %v7937
        %v7939 = vpop.f32.mrf.mxu0
        %7940 = vdwg.mxu0
        %7941 = vmatpush.bf16.msra.mxu0 %v4500
        %7942 = vmatpush.bf16.msra.mxu0 %v4492
        %7943 = vmatpush.bf16.msra.mxu0 %v4484
        %7944 = vmatpush.bf16.msra.mxu0 %v4476
        %7945 = vmatpush.bf16.msra.mxu0 %v4468
        %7946 = vmatpush.bf16.msra.mxu0 %v4460
        %7947 = vmatpush.bf16.msra.mxu0 %v4452
        %7948 = vmatpush.bf16.msra.mxu0 %v4444
        %7949 = vmatmul.bf16.gmra.mxu0 %v325
        %v7950 = vpop.f32.mrf.mxu0
        %v7951 = vadd.f32 0.0, %v7950
        %v7952 = vpop.f32.mrf.mxu0
        %7953 = vdwg.mxu0
        %7954 = vmatpush.bf16.msra.mxu0 %v4564
        %7955 = vmatpush.bf16.msra.mxu0 %v4556
        %7956 = vmatpush.bf16.msra.mxu0 %v4548
        %7957 = vmatpush.bf16.msra.mxu0 %v4540
        %7958 = vmatpush.bf16.msra.mxu0 %v4532
        %7959 = vmatpush.bf16.msra.mxu0 %v4524
        %7960 = vmatpush.bf16.msra.mxu0 %v4516
        %7961 = vmatpush.bf16.msra.mxu0 %v4508
        %7962 = vmatmul.bf16.gmra.mxu0 %v326
        %v7963 = vpop.f32.mrf.mxu0
        %v7964 = vadd.f32 %v7951, %v7963
        %v7965 = vpop.f32.mrf.mxu0
        %7966 = vdwg.mxu0
        %7967 = vmatpush.bf16.msra.mxu0 %v4628
        %7968 = vmatpush.bf16.msra.mxu0 %v4620
        %7969 = vmatpush.bf16.msra.mxu0 %v4612
        %7970 = vmatpush.bf16.msra.mxu0 %v4604
        %7971 = vmatpush.bf16.msra.mxu0 %v4596
        %7972 = vmatpush.bf16.msra.mxu0 %v4588
        %7973 = vmatpush.bf16.msra.mxu0 %v4580
        %7974 = vmatpush.bf16.msra.mxu0 %v4572
        %7975 = vmatmul.bf16.gmra.mxu0 %v327
        %v7976 = vpop.f32.mrf.mxu0
        %v7977 = vadd.f32 %v7964, %v7976
        %v7978 = vpop.f32.mrf.mxu0
        %7979 = vdwg.mxu0
        %7980 = vmatpush.bf16.msra.mxu0 %v4692
        %7981 = vmatpush.bf16.msra.mxu0 %v4684
        %7982 = vmatpush.bf16.msra.mxu0 %v4676
        %7983 = vmatpush.bf16.msra.mxu0 %v4668
        %7984 = vmatpush.bf16.msra.mxu0 %v4660
        %7985 = vmatpush.bf16.msra.mxu0 %v4652
        %7986 = vmatpush.bf16.msra.mxu0 %v4644
        %7987 = vmatpush.bf16.msra.mxu0 %v4636
        %7988 = vmatmul.bf16.gmra.mxu0 %v328
        %v7989 = vpop.f32.mrf.mxu0
        %v7990 = vadd.f32 %v7977, %v7989
        %v7991 = vpop.f32.mrf.mxu0
        %7992 = vdwg.mxu0
        %7993 = vmatpush.bf16.msra.mxu0 %v4756
        %7994 = vmatpush.bf16.msra.mxu0 %v4748
        %7995 = vmatpush.bf16.msra.mxu0 %v4740
        %7996 = vmatpush.bf16.msra.mxu0 %v4732
        %7997 = vmatpush.bf16.msra.mxu0 %v4724
        %7998 = vmatpush.bf16.msra.mxu0 %v4716
        %7999 = vmatpush.bf16.msra.mxu0 %v4708
        %8000 = vmatpush.bf16.msra.mxu0 %v4700
        %8001 = vmatmul.bf16.gmra.mxu0 %v329
        %v8002 = vpop.f32.mrf.mxu0
        %v8003 = vadd.f32 %v7990, %v8002
        %v8004 = vpop.f32.mrf.mxu0
        %8005 = vdwg.mxu0
        %8006 = vmatpush.bf16.msra.mxu0 %v4820
        %8007 = vmatpush.bf16.msra.mxu0 %v4812
        %8008 = vmatpush.bf16.msra.mxu0 %v4804
        %8009 = vmatpush.bf16.msra.mxu0 %v4796
        %8010 = vmatpush.bf16.msra.mxu0 %v4788
        %8011 = vmatpush.bf16.msra.mxu0 %v4780
        %8012 = vmatpush.bf16.msra.mxu0 %v4772
        %8013 = vmatpush.bf16.msra.mxu0 %v4764
        %8014 = vmatmul.bf16.gmra.mxu0 %v330
        %v8015 = vpop.f32.mrf.mxu0
        %v8016 = vadd.f32 %v8003, %v8015
        %v8017 = vpop.f32.mrf.mxu0
        %8018 = vdwg.mxu0
        %8019 = vmatpush.bf16.msra.mxu0 %v4884
        %8020 = vmatpush.bf16.msra.mxu0 %v4876
        %8021 = vmatpush.bf16.msra.mxu0 %v4868
        %8022 = vmatpush.bf16.msra.mxu0 %v4860
        %8023 = vmatpush.bf16.msra.mxu0 %v4852
        %8024 = vmatpush.bf16.msra.mxu0 %v4844
        %8025 = vmatpush.bf16.msra.mxu0 %v4836
        %8026 = vmatpush.bf16.msra.mxu0 %v4828
        %8027 = vmatmul.bf16.gmra.mxu0 %v331
        %v8028 = vpop.f32.mrf.mxu0
        %v8029 = vadd.f32 %v8016, %v8028
        %v8030 = vpop.f32.mrf.mxu0
        %8031 = vdwg.mxu0
        %8032 = vmatpush.bf16.msra.mxu0 %v4948
        %8033 = vmatpush.bf16.msra.mxu0 %v4940
        %8034 = vmatpush.bf16.msra.mxu0 %v4932
        %8035 = vmatpush.bf16.msra.mxu0 %v4924
        %8036 = vmatpush.bf16.msra.mxu0 %v4916
        %8037 = vmatpush.bf16.msra.mxu0 %v4908
        %8038 = vmatpush.bf16.msra.mxu0 %v4900
        %8039 = vmatpush.bf16.msra.mxu0 %v4892
        %8040 = vmatmul.bf16.gmra.mxu0 %v332
        %v8041 = vpop.f32.mrf.mxu0
        %v8042 = vadd.f32 %v8029, %v8041
        %v8043 = vpop.f32.mrf.mxu0
        %8044 = vdwg.mxu0
        %8045 = vmatpush.bf16.msra.mxu0 %v5012
        %8046 = vmatpush.bf16.msra.mxu0 %v5004
        %8047 = vmatpush.bf16.msra.mxu0 %v4996
        %8048 = vmatpush.bf16.msra.mxu0 %v4988
        %8049 = vmatpush.bf16.msra.mxu0 %v4980
        %8050 = vmatpush.bf16.msra.mxu0 %v4972
        %8051 = vmatpush.bf16.msra.mxu0 %v4964
        %8052 = vmatpush.bf16.msra.mxu0 %v4956
        %8053 = vmatmul.bf16.gmra.mxu0 %v333
        %v8054 = vpop.f32.mrf.mxu0
        %v8055 = vadd.f32 %v8042, %v8054
        %v8056 = vpop.f32.mrf.mxu0
        %8057 = vdwg.mxu0
        %8058 = vmatpush.bf16.msra.mxu0 %v5076
        %8059 = vmatpush.bf16.msra.mxu0 %v5068
        %8060 = vmatpush.bf16.msra.mxu0 %v5060
        %8061 = vmatpush.bf16.msra.mxu0 %v5052
        %8062 = vmatpush.bf16.msra.mxu0 %v5044
        %8063 = vmatpush.bf16.msra.mxu0 %v5036
        %8064 = vmatpush.bf16.msra.mxu0 %v5028
        %8065 = vmatpush.bf16.msra.mxu0 %v5020
        %8066 = vmatmul.bf16.gmra.mxu0 %v334
        %v8067 = vpop.f32.mrf.mxu0
        %v8068 = vadd.f32 %v8055, %v8067
        %v8069 = vpop.f32.mrf.mxu0
        %8070 = vdwg.mxu0
        %8071 = vmatpush.bf16.msra.mxu0 %v5140
        %8072 = vmatpush.bf16.msra.mxu0 %v5132
        %8073 = vmatpush.bf16.msra.mxu0 %v5124
        %8074 = vmatpush.bf16.msra.mxu0 %v5116
        %8075 = vmatpush.bf16.msra.mxu0 %v5108
        %8076 = vmatpush.bf16.msra.mxu0 %v5100
        %8077 = vmatpush.bf16.msra.mxu0 %v5092
        %8078 = vmatpush.bf16.msra.mxu0 %v5084
        %8079 = vmatmul.bf16.gmra.mxu0 %v335
        %v8080 = vpop.f32.mrf.mxu0
        %v8081 = vadd.f32 %v8068, %v8080
        %v8082 = vpop.f32.mrf.mxu0
        %8083 = vdwg.mxu0
        %8084 = vmatpush.bf16.msra.mxu0 %v5204
        %8085 = vmatpush.bf16.msra.mxu0 %v5196
        %8086 = vmatpush.bf16.msra.mxu0 %v5188
        %8087 = vmatpush.bf16.msra.mxu0 %v5180
        %8088 = vmatpush.bf16.msra.mxu0 %v5172
        %8089 = vmatpush.bf16.msra.mxu0 %v5164
        %8090 = vmatpush.bf16.msra.mxu0 %v5156
        %8091 = vmatpush.bf16.msra.mxu0 %v5148
        %8092 = vmatmul.bf16.gmra.mxu0 %v336
        %v8093 = vpop.f32.mrf.mxu0
        %v8094 = vadd.f32 %v8081, %v8093
        %v8095 = vpop.f32.mrf.mxu0
        %8096 = vdwg.mxu0
        %8097 = vmatpush.bf16.msra.mxu0 %v5268
        %8098 = vmatpush.bf16.msra.mxu0 %v5260
        %8099 = vmatpush.bf16.msra.mxu0 %v5252
        %8100 = vmatpush.bf16.msra.mxu0 %v5244
        %8101 = vmatpush.bf16.msra.mxu0 %v5236
        %8102 = vmatpush.bf16.msra.mxu0 %v5228
        %8103 = vmatpush.bf16.msra.mxu0 %v5220
        %8104 = vmatpush.bf16.msra.mxu0 %v5212
        %8105 = vmatmul.bf16.gmra.mxu0 %v337
        %v8106 = vpop.f32.mrf.mxu0
        %v8107 = vadd.f32 %v8094, %v8106
        %v8108 = vpop.f32.mrf.mxu0
        %8109 = vdwg.mxu0
        %8110 = vmatpush.bf16.msra.mxu0 %v5332
        %8111 = vmatpush.bf16.msra.mxu0 %v5324
        %8112 = vmatpush.bf16.msra.mxu0 %v5316
        %8113 = vmatpush.bf16.msra.mxu0 %v5308
        %8114 = vmatpush.bf16.msra.mxu0 %v5300
        %8115 = vmatpush.bf16.msra.mxu0 %v5292
        %8116 = vmatpush.bf16.msra.mxu0 %v5284
        %8117 = vmatpush.bf16.msra.mxu0 %v5276
        %8118 = vmatmul.bf16.gmra.mxu0 %v338
        %v8119 = vpop.f32.mrf.mxu0
        %v8120 = vadd.f32 %v8107, %v8119
        %v8121 = vpop.f32.mrf.mxu0
        %8122 = vdwg.mxu0
        %8123 = vmatpush.bf16.msra.mxu0 %v5396
        %8124 = vmatpush.bf16.msra.mxu0 %v5388
        %8125 = vmatpush.bf16.msra.mxu0 %v5380
        %8126 = vmatpush.bf16.msra.mxu0 %v5372
        %8127 = vmatpush.bf16.msra.mxu0 %v5364
        %8128 = vmatpush.bf16.msra.mxu0 %v5356
        %8129 = vmatpush.bf16.msra.mxu0 %v5348
        %8130 = vmatpush.bf16.msra.mxu0 %v5340
        %8131 = vmatmul.bf16.gmra.mxu0 %v339
        %v8132 = vpop.f32.mrf.mxu0
        %v8133 = vadd.f32 %v8120, %v8132
        %v8134 = vpop.f32.mrf.mxu0
        %8135 = vdwg.mxu0
        %8136 = vmatpush.bf16.msra.mxu0 %v5460
        %8137 = vmatpush.bf16.msra.mxu0 %v5452
        %8138 = vmatpush.bf16.msra.mxu0 %v5444
        %8139 = vmatpush.bf16.msra.mxu0 %v5436
        %8140 = vmatpush.bf16.msra.mxu0 %v5428
        %8141 = vmatpush.bf16.msra.mxu0 %v5420
        %8142 = vmatpush.bf16.msra.mxu0 %v5412
        %8143 = vmatpush.bf16.msra.mxu0 %v5404
        %8144 = vmatmul.bf16.gmra.mxu0 %v340
        %v8145 = vpop.f32.mrf.mxu0
        %v8146 = vadd.f32 %v8133, %v8145
        %v8147 = vpop.f32.mrf.mxu0
        %8148 = vdwg.mxu0
        %v8149 = vadd.f32 %v301, %v6690
        %v8150 = vadd.f32 %v302, %v6898
        %v8151 = vadd.f32 %v303, %v7106
        %v8152 = vadd.f32 %v304, %v7314
        %v8153 = vadd.f32 %v305, %v7522
        %v8154 = vadd.f32 %v306, %v7730
        %v8155 = vadd.f32 %v307, %v7938
        %v8156 = vadd.f32 %v308, %v8146
        %8157 = vst [vmem:[%s283] sm:$0xff] %v8149
        %8158 = vst [vmem:[%s283 + $0x8] sm:$0xff] %v8150
        %8159 = vst [vmem:[%s283 + $0x10] sm:$0xff] %v8151
        %8160 = vst [vmem:[%s283 + $0x18] sm:$0xff] %v8152
        %8161 = vst [vmem:[%s283 + $0x20] sm:$0xff] %v8153
        %8162 = vst [vmem:[%s283 + $0x28] sm:$0xff] %v8154
        %8163 = vst [vmem:[%s283 + $0x30] sm:$0xff] %v8155
        %8164 = vst [vmem:[%s283 + $0x38] sm:$0xff] %v8156
        %p8165 = scmp.eq.s32.totalorder %s28, 3
        // Predicated region
        $region49: #{tpu_custom_call.1} parent=31 // pred_check
          %p8166 = pneg %p8165
        $region50: #{tpu_custom_call.1} parent=31 // pred_check_branch
          %8168 = sbr.rel (%p8166) target = $region52
        $region51: #{tpu_custom_call.1} parent=31 // pred_region
          %v8169 = vld [vmem:[%s283] sm:$0xff]
          %v8170 = vld [vmem:[%s283 + $0x8] sm:$0xff]
          %v8171 = vld [vmem:[%s283 + $0x10] sm:$0xff]
          %v8172 = vld [vmem:[%s283 + $0x18] sm:$0xff]
          %v8173 = vld [vmem:[%s283 + $0x20] sm:$0xff]
          %v8174 = vld [vmem:[%s283 + $0x28] sm:$0xff]
          %v8175 = vld [vmem:[%s283 + $0x30] sm:$0xff]
          %v8176 = vld [vmem:[%s283 + $0x38] sm:$0xff]
          %v8177 = vld [vmem:[%s250] sm:$0xff]
          %v8179 = vperm.slane %v8177, 0
          %v8180 = vperm.slane %v8177, 1
          %v8181 = vperm.slane %v8177, 2
          %v8182 = vperm.slane %v8177, 3
          %v8183 = vperm.slane %v8177, 4
          %v8184 = vperm.slane %v8177, 5
          %v8185 = vperm.slane %v8177, 6
          %v8186 = vperm.slane %v8177, 7
          %v8195 = vadd.f32 %v8169, %v8179
          %v8196 = vadd.f32 %v8170, %v8180
          %v8197 = vadd.f32 %v8171, %v8181
          %v8198 = vadd.f32 %v8172, %v8182
          %v8199 = vadd.f32 %v8173, %v8183
          %v8200 = vadd.f32 %v8174, %v8184
          %v8201 = vadd.f32 %v8175, %v8185
          %v8202 = vadd.f32 %v8176, %v8186
          %v8203 = vmax.f32 %v8195, 0.0
          %v8204 = vmax.f32 %v8196, 0.0
          %v8205 = vmax.f32 %v8197, 0.0
          %v8206 = vmax.f32 %v8198, 0.0
          %v8207 = vmax.f32 %v8199, 0.0
          %v8208 = vmax.f32 %v8200, 0.0
          %v8209 = vmax.f32 %v8201, 0.0
          %v8210 = vmax.f32 %v8202, 0.0
          %8211 = vst [vmem:[%s283] sm:$0xff] %v8203
          %8212 = vst [vmem:[%s283 + $0x8] sm:$0xff] %v8204
          %8213 = vst [vmem:[%s283 + $0x10] sm:$0xff] %v8205
          %8214 = vst [vmem:[%s283 + $0x18] sm:$0xff] %v8206
          %8215 = vst [vmem:[%s283 + $0x20] sm:$0xff] %v8207
          %8216 = vst [vmem:[%s283 + $0x28] sm:$0xff] %v8208
          %8217 = vst [vmem:[%s283 + $0x30] sm:$0xff] %v8209
          %8218 = vst [vmem:[%s283 + $0x38] sm:$0xff] %v8210
        $region52: #{tpu_custom_call.1} parent=31 // pred_fallthru
          _
        %s8219 = sand.u32 %s123, 1
        %s8220 = scalar_lea.sflag [#allocation4], %s8219
        %s8221 = sand.u32 %s123, 1
        %s8222 = smul.addr %s8221, 64
        %s8223 = scalar_lea.vmem [#allocation8], %s8222
        // Predicated region
        $region53: #{tpu_custom_call.1} parent=31 // pred_check
          %p8224 = pneg %p133
        $region54: #{tpu_custom_call.1} parent=31 // pred_check_branch
          %8226 = sbr.rel (%p8224) target = $region56
        $region55: #{tpu_custom_call.1} parent=31 // pred_region
          %s8227 = smul.u32 8, %s27
          %8229 = vsyncadd %s8220, 0
          %s8230 = smul.addr %s8227, 8
          %s8231 = scalar_lea.hbm %s3, %s8230
          %s8233 = sshll.u32 %s8223, 4
          %s8234 = int_to_ptr.vmem [resolvable:$true] %s8233
          %s8235 = sshll.u32 %s8231, 4
          %s8236 = int_to_ptr.hbm [resolvable:$true] %s8235
          %8238 = dma.vmem_to_hbm [thread:$0]  %s8234, 1024, %s8236, %s8220
        $region56: #{tpu_custom_call.1} parent=31 // pred_fallthru
          _
      $region32: #{tpu_custom_call.1} parent=5 // pred_fallthru
        _
      %p8239 = scmp.le.s32.totalorder 2, %s18
      // Predicated region
      $region57: #{tpu_custom_call.1} parent=5 // pred_check
        %p8240 = pneg %p8239
      $region58: #{tpu_custom_call.1} parent=5 // pred_check_branch
        %8242 = sbr.rel (%p8240) target = $region60
      $region59: #{tpu_custom_call.1} parent=5 // pred_region
        %s8243 = ssub.s32 %s18, 2
        // Predicated region
        $region61: #{tpu_custom_call.1} parent=59 // pred_check
          %p8244 = pneg %p139
        $region62: #{tpu_custom_call.1} parent=59 // pred_check_branch
          %8246 = sbr.rel (%p8244) target = $region64
        $region63: #{tpu_custom_call.1} parent=59 // pred_region
          %s8247 = sand.u32 %s124, 1
          %s8248 = scalar_lea.sflag [#allocation4], %s8247
          %s8249 = sand.u32 %s124, 1
          %s8250 = smul.addr %s8249, 64
          %s8251 = scalar_lea.vmem [#allocation8], %s8250
          %8253 = dma.done %s8248, 1024
        $region64: #{tpu_custom_call.1} parent=59 // pred_fallthru
          _
      $region60: #{tpu_custom_call.1} parent=5 // pred_fallthru
        _
    $region6: #{tpu_custom_call.1} parent=1 // loop_footer
      %s22 = sadd.s32 1, %s18
    $region7: #{tpu_custom_call.1} parent=1 // loop_footer_branch
      %17 = sbr.rel target = $region3
    $region8: #{tpu_custom_call.1} parent=1 // loop_exit
      _
    %8254 = vsyncpa [#allocation3], 1
    %s8255 = scalar_lea.sflag [#allocation3], 1
    %8256 = vsyncpa %s8255, 1
    %8257 = vsyncpa [#allocation6], 1
    %s8258 = scalar_lea.sflag [#allocation6], 1
    %8259 = vsyncpa %s8258, 1
    %8260 = vsyncpa [#allocation4], 1
    %s8261 = scalar_lea.sflag [#allocation4], 1
    %8262 = vsyncpa %s8261, 1

</llo_original>
